<compile_context>
chip_gen: v7x
topology: tpu7x:2x2x1
jax: 0.10.0
libtpu: 0.0.40
codegen_flags: <defaults>
</compile_context>

<pallas_src>
from functools import partial

import jax
import jax.numpy as jnp
from jax.experimental import pallas as pl
from jax.experimental.pallas import tpu as pltpu

LANE = 128


def basic_block_kernel(xpad_ref, w1_ref, s1_ref, b1_ref, w2_ref, s2_ref, b2_ref,
                       out_ref, mid_ref, *, H, W, compute_dtype):
    Wp = W + 2                     # padded row width
    L = H * Wp                     # flattened conv-output rows (incl. 2 wrap cols/row)
    PF = xpad_ref.shape[1]         # (H + 3) * Wp
    Cp = out_ref.shape[-1]         # lane-padded channel count (multiple of 128)

    s1 = s1_ref[...]               # (1, Cp) fused BN scale / bias, f32
    b1 = b1_ref[...]
    s2 = s2_ref[...]
    b2 = b2_ref[...]

    # ---- conv1: 3x3 / stride 1 / pad 1; dx taps folded into K (K = 3*Cp) ----
    identity = None
    acc = jnp.zeros((L, Cp), jnp.float32)
    for dy in range(3):
        base = dy * Wp
        taps = []
        for dx in range(3):
            sl = xpad_ref[0, base + dx:base + dx + L, :]      # (L, Cp) f32
            if dy == 1 and dx == 1:
                identity = sl                                  # centre tap == residual input
            taps.append(sl.astype(compute_dtype))
        patch = jnp.concatenate(taps, axis=-1)                 # (L, 3*Cp) bf16
        acc = acc + jnp.dot(patch, w1_ref[dy],
                            preferred_element_type=jnp.float32)

    # bn1 (fused inference-mode affine) + relu, in f32 on the VPU
    mid = jnp.maximum(acc * s1 + b1, 0.0)

    # zero the wrap columns (w >= W): they become conv2's left/right zero padding
    col = jax.lax.broadcasted_iota(jnp.int32, (L, 1), 0) % Wp
    mid = jnp.where(col < W, mid, 0.0)

    # re-embed mid into the flat zero-padded VMEM scratch: pixel (h, w) lands at
    # row (h+1)*Wp + (w+1) == a shift of Wp+1 rows; only halo rows get zeroed.
    head = Wp + 1
    tail = PF - head - L
    mid_ref[pl.ds(0, head), :] = jnp.zeros((head, Cp), compute_dtype)
    mid_ref[pl.ds(head, L), :] = mid.astype(compute_dtype)
    mid_ref[pl.ds(head + L, tail), :] = jnp.zeros((tail, Cp), compute_dtype)

    # ---- conv2: same folded-K 3x3 conv on the re-padded intermediate ----
    acc2 = jnp.zeros((L, Cp), jnp.float32)
    for dy in range(3):
        base = dy * Wp
        patch2 = jnp.concatenate(
            [mid_ref[base + dx:base + dx + L, :] for dx in range(3)], axis=-1)
        acc2 = acc2 + jnp.dot(patch2, w2_ref[dy],
                              preferred_element_type=jnp.float32)

    # bn2 + residual add (identity path: stride=1, Cin == Cout) + relu, f32
    out = jnp.maximum(acc2 * s2 + b2 + identity, 0.0)

    # dense writeback: keep only the W valid columns of each image row
    for h in range(H):
        out_ref[0, h] = out[h * Wp:h * Wp + W, :].astype(out_ref.dtype)


def basic_block(x_nchw, w1, g1, be1, m1, v1, w2, g2, be2, m2, v2,
                eps=1e-5, compute_dtype=jnp.bfloat16):
    N, C, H, W = x_nchw.shape
    Cout = w1.shape[-1]
    if w1.shape != (3, 3, C, Cout) or w2.shape != (3, 3, Cout, Cout) or Cout != C:
        raise ValueError("kernel supports BasicBlock(stride=1, downsample=None), Cin == Cout")

    Wp = W + 2
    L = H * Wp
    PF = (H + 3) * Wp
    Cp = ((C + LANE - 1) // LANE) * LANE          # lane-dense channel padding

    # NCHW -> NHWC, pad channels to a lane multiple, pad spatial halo, flatten
    x = jnp.transpose(x_nchw, (0, 2, 3, 1))
    xpad_flat = jnp.pad(x, ((0, 0), (1, 2), (1, 1), (0, Cp - C))).reshape(N, PF, Cp)

    # fold the 3 dx taps into the matmul K dim: (3, 3*Cp, Cp), bf16 MXU operands
    def fold_weight(w):
        wp = jnp.pad(w, ((0, 0), (0, 0), (0, Cp - C), (0, Cp - C)))
        return wp.reshape(3, 3 * Cp, Cp).astype(compute_dtype)

    w1f = fold_weight(w1)
    w2f = fold_weight(w2)

    # fuse inference-mode BN into per-channel scale/bias (padded lanes: scale=1, bias=0)
    def fuse_bn(g, b, m, v):
        inv = g / jnp.sqrt(v + eps)
        s = jnp.pad(inv, (0, Cp - C), constant_values=1.0).reshape(1, Cp)
        bb = jnp.pad(b - m * inv, (0, Cp - C)).reshape(1, Cp)
        return s.astype(jnp.float32), bb.astype(jnp.float32)

    s1, b1 = fuse_bn(g1, be1, m1, v1)
    s2, b2 = fuse_bn(g2, be2, m2, v2)

    kernel = partial(basic_block_kernel, H=H, W=W, compute_dtype=compute_dtype)
    out = pl.pallas_call(
        kernel,
        out_shape=jax.ShapeDtypeStruct((N, H, W, Cp), x.dtype),
        grid_spec=pltpu.PrefetchScalarGridSpec(
            num_scalar_prefetch=0,
            grid=(N,),
            in_specs=[
                pl.BlockSpec((1, PF, Cp), lambda n: (n, 0, 0)),          # padded input
                pl.BlockSpec((3, 3 * Cp, Cp), lambda n: (0, 0, 0)),      # conv1 weight, K-folded
                pl.BlockSpec((1, Cp), lambda n: (0, 0)),                 # bn1 scale
                pl.BlockSpec((1, Cp), lambda n: (0, 0)),                 # bn1 bias
                pl.BlockSpec((3, 3 * Cp, Cp), lambda n: (0, 0, 0)),      # conv2 weight, K-folded
                pl.BlockSpec((1, Cp), lambda n: (0, 0)),                 # bn2 scale
                pl.BlockSpec((1, Cp), lambda n: (0, 0)),                 # bn2 bias
            ],
            out_specs=pl.BlockSpec((1, H, W, Cp), lambda n: (n, 0, 0, 0)),
            scratch_shapes=[pltpu.VMEM((PF, Cp), compute_dtype)],        # conv1->conv2 buffer
        ),
        compiler_params=pltpu.CompilerParams(
            dimension_semantics=("parallel",)),
    )(xpad_flat, w1f, s1, b1, w2f, s2, b2)

    # drop the channel padding, back to NCHW (module contract)
    return jnp.transpose(out[..., :C], (0, 3, 1, 2))


def basic_block_reference(x_nchw, w1, g1, be1, m1, v1, w2, g2, be2, m2, v2, eps=1e-5):
    x = jnp.transpose(x_nchw, (0, 2, 3, 1))

    def conv(y, w):
        return jax.lax.conv_general_dilated(
            y, w, window_strides=(1, 1), padding=((1, 1), (1, 1)),
            dimension_numbers=("NHWC", "HWIO", "NHWC"))

    def bn(y, g, b, m, v):
        return (y - m) / jnp.sqrt(v + eps) * g + b

    out = jax.nn.relu(bn(conv(x, w1), g1, be1, m1, v1))
    out = bn(conv(out, w2), g2, be2, m2, v2)
    out = jax.nn.relu(out + x)
    return jnp.transpose(out, (0, 3, 1, 2))


if __name__ == "__main__":
    # BasicBlock(inplanes=4, planes=4, stride=1, downsample=None)
    N, C, H, W = 2, 4, 16, 16
    key = jax.random.PRNGKey(0)
    ks = jax.random.split(key, 10)

    x = jax.random.normal(ks[0], (N, C, H, W), jnp.float32)

    # conv weights stored directly in HWIO layout (3, 3, Cin, Cout)
    w1 = jax.random.normal(ks[1], (3, 3, C, C), jnp.float32) * 0.2
    w2 = jax.random.normal(ks[2], (3, 3, C, C), jnp.float32) * 0.2

    g1 = 1.0 + 0.1 * jax.random.normal(ks[3], (C,), jnp.float32)
    be1 = 0.1 * jax.random.normal(ks[4], (C,), jnp.float32)
    m1 = 0.1 * jax.random.normal(ks[5], (C,), jnp.float32)
    v1 = jax.random.uniform(ks[6], (C,), jnp.float32, 0.5, 1.5)

    g2 = 1.0 + 0.1 * jax.random.normal(ks[7], (C,), jnp.float32)
    be2 = 0.1 * jax.random.normal(ks[8], (C,), jnp.float32)
    m2 = 0.1 * jax.random.normal(ks[9], (C,), jnp.float32)
    v2 = jax.random.uniform(jax.random.fold_in(key, 42), (C,), jnp.float32, 0.5, 1.5)

    params = (w1, g1, be1, m1, v1, w2, g2, be2, m2, v2)

    out = jax.jit(basic_block)(x, *params)
    out = jax.block_until_ready(out)

    ref = basic_block_reference(x, *params)
    assert out.shape == (N, C, H, W), out.shape
    # bf16 MXU operands (f32 accumulation): tolerance sized for bf16 rounding;
    # compute_dtype=jnp.float32 recovers <1e-5 error if exact matching is needed.
    max_err = float(jnp.abs(out - ref).max())
    assert jnp.allclose(out, ref, atol=5e-2, rtol=5e-2), max_err

    print("KERNEL_OK")
</pallas_src>

<mosaic_0001>
module attributes {stable_mosaic.version = 11 : i64} {
  func.func @basic_block_kernel(%arg0: i32, %arg1: memref<1x342x128xf32, #tpu.memory_space<vmem>>, %arg2: memref<3x384x128xbf16, #tpu.memory_space<vmem>>, %arg3: memref<1x128xf32, #tpu.memory_space<vmem>>, %arg4: memref<1x128xf32, #tpu.memory_space<vmem>>, %arg5: memref<3x384x128xbf16, #tpu.memory_space<vmem>>, %arg6: memref<1x128xf32, #tpu.memory_space<vmem>>, %arg7: memref<1x128xf32, #tpu.memory_space<vmem>>, %arg8: memref<1x16x16x128xf32, #tpu.memory_space<vmem>>, %arg9: memref<342x128xbf16, #tpu.memory_space<vmem>>) attributes {dimension_semantics = [#tpu.dimension_semantics<parallel>], iteration_bounds = array<i64: 2>, scalar_prefetch = 0 : i64, scratch_operands = 1 : i64, tpu.core_type = #tpu.core_type<tc>, window_params = [{transform_indices = @transform_0, window_bounds = array<i64: 1, 342, 128>}, {pipeline_mode = #tpu.pipeline_mode<synchronous>, transform_indices = @transform_1, window_bounds = array<i64: 3, 384, 128>}, {pipeline_mode = #tpu.pipeline_mode<synchronous>, transform_indices = @transform_2, window_bounds = array<i64: 1, 128>}, {pipeline_mode = #tpu.pipeline_mode<synchronous>, transform_indices = @transform_3, window_bounds = array<i64: 1, 128>}, {pipeline_mode = #tpu.pipeline_mode<synchronous>, transform_indices = @transform_4, window_bounds = array<i64: 3, 384, 128>}, {pipeline_mode = #tpu.pipeline_mode<synchronous>, transform_indices = @transform_5, window_bounds = array<i64: 1, 128>}, {pipeline_mode = #tpu.pipeline_mode<synchronous>, transform_indices = @transform_6, window_bounds = array<i64: 1, 128>}, {transform_indices = @transform_7, window_bounds = array<i64: 1, 16, 16, 128>}]} {
    %c0 = arith.constant 0 : index
    %c0_0 = arith.constant 0 : index
    %0 = vector.load %arg3[%c0, %c0_0] : memref<1x128xf32, #tpu.memory_space<vmem>>, vector<1x128xf32>
    %c0_1 = arith.constant 0 : index
    %c0_2 = arith.constant 0 : index
    %1 = vector.load %arg4[%c0_1, %c0_2] : memref<1x128xf32, #tpu.memory_space<vmem>>, vector<1x128xf32>
    %c0_3 = arith.constant 0 : index
    %c0_4 = arith.constant 0 : index
    %2 = vector.load %arg6[%c0_3, %c0_4] : memref<1x128xf32, #tpu.memory_space<vmem>>, vector<1x128xf32>
    %c0_5 = arith.constant 0 : index
    %c0_6 = arith.constant 0 : index
    %3 = vector.load %arg7[%c0_5, %c0_6] : memref<1x128xf32, #tpu.memory_space<vmem>>, vector<1x128xf32>
    %cst = arith.constant 0.000000e+00 : f32
    %4 = vector.broadcast %cst : f32 to vector<288x128xf32>
    %c0_7 = arith.constant 0 : index
    %c0_8 = arith.constant 0 : index
    %c0_9 = arith.constant 0 : index
    %5 = vector.load %arg1[%c0_7, %c0_8, %c0_9] : memref<1x342x128xf32, #tpu.memory_space<vmem>>, vector<1x288x128xf32>
    %6 = vector.shape_cast %5 : vector<1x288x128xf32> to vector<288x128xf32>
    %7 = arith.truncf %6 : vector<288x128xf32> to vector<288x128xbf16>
    %c0_10 = arith.constant 0 : index
    %c1 = arith.constant 1 : index
    %c0_11 = arith.constant 0 : index
    %8 = vector.load %arg1[%c0_10, %c1, %c0_11] : memref<1x342x128xf32, #tpu.memory_space<vmem>>, vector<1x288x128xf32>
    %9 = vector.shape_cast %8 : vector<1x288x128xf32> to vector<288x128xf32>
    %10 = arith.truncf %9 : vector<288x128xf32> to vector<288x128xbf16>
    %c0_12 = arith.constant 0 : index
    %c2 = arith.constant 2 : index
    %c0_13 = arith.constant 0 : index
    %11 = vector.load %arg1[%c0_12, %c2, %c0_13] : memref<1x342x128xf32, #tpu.memory_space<vmem>>, vector<1x288x128xf32>
    %12 = vector.shape_cast %11 : vector<1x288x128xf32> to vector<288x128xf32>
    %13 = arith.truncf %12 : vector<288x128xf32> to vector<288x128xbf16>
    %14 = tpu.concatenate %7, %10, %13 in 1 : vector<288x128xbf16>, vector<288x128xbf16>, vector<288x128xbf16> -> vector<288x384xbf16>
    %c0_14 = arith.constant 0 : index
    %c0_15 = arith.constant 0 : index
    %c0_16 = arith.constant 0 : index
    %15 = vector.load %arg2[%c0_14, %c0_15, %c0_16] : memref<3x384x128xbf16, #tpu.memory_space<vmem>>, vector<1x384x128xbf16>
    %16 = vector.shape_cast %15 : vector<1x384x128xbf16> to vector<384x128xbf16>
    %cst_17 = arith.constant dense<0.000000e+00> : vector<288x128xf32>
    %17 = tpu.matmul %14, %16, %cst_17 {dimension_numbers = #tpu.dot_dimension_numbers<[1], [0], [0], [1], [0, 0, 1, 1], [], []>} : vector<288x384xbf16>, vector<384x128xbf16>, vector<288x128xf32> -> vector<288x128xf32>
    %18 = arith.addf %4, %17 : vector<288x128xf32>
    %c0_18 = arith.constant 0 : index
    %c18 = arith.constant 18 : index
    %c0_19 = arith.constant 0 : index
    %19 = vector.load %arg1[%c0_18, %c18, %c0_19] : memref<1x342x128xf32, #tpu.memory_space<vmem>>, vector<1x288x128xf32>
    %20 = vector.shape_cast %19 : vector<1x288x128xf32> to vector<288x128xf32>
    %21 = arith.truncf %20 : vector<288x128xf32> to vector<288x128xbf16>
    %c0_20 = arith.constant 0 : index
    %c19 = arith.constant 19 : index
    %c0_21 = arith.constant 0 : index
    %22 = vector.load %arg1[%c0_20, %c19, %c0_21] : memref<1x342x128xf32, #tpu.memory_space<vmem>>, vector<1x288x128xf32>
    %23 = vector.shape_cast %22 : vector<1x288x128xf32> to vector<288x128xf32>
    %24 = arith.truncf %23 : vector<288x128xf32> to vector<288x128xbf16>
    %c0_22 = arith.constant 0 : index
    %c20 = arith.constant 20 : index
    %c0_23 = arith.constant 0 : index
    %25 = vector.load %arg1[%c0_22, %c20, %c0_23] : memref<1x342x128xf32, #tpu.memory_space<vmem>>, vector<1x288x128xf32>
    %26 = vector.shape_cast %25 : vector<1x288x128xf32> to vector<288x128xf32>
    %27 = arith.truncf %26 : vector<288x128xf32> to vector<288x128xbf16>
    %28 = tpu.concatenate %21, %24, %27 in 1 : vector<288x128xbf16>, vector<288x128xbf16>, vector<288x128xbf16> -> vector<288x384xbf16>
    %c1_24 = arith.constant 1 : index
    %c0_25 = arith.constant 0 : index
    %c0_26 = arith.constant 0 : index
    %29 = vector.load %arg2[%c1_24, %c0_25, %c0_26] : memref<3x384x128xbf16, #tpu.memory_space<vmem>>, vector<1x384x128xbf16>
    %30 = vector.shape_cast %29 : vector<1x384x128xbf16> to vector<384x128xbf16>
    %cst_27 = arith.constant dense<0.000000e+00> : vector<288x128xf32>
    %31 = tpu.matmul %28, %30, %cst_27 {dimension_numbers = #tpu.dot_dimension_numbers<[1], [0], [0], [1], [0, 0, 1, 1], [], []>} : vector<288x384xbf16>, vector<384x128xbf16>, vector<288x128xf32> -> vector<288x128xf32>
    %32 = arith.addf %18, %31 : vector<288x128xf32>
    %c0_28 = arith.constant 0 : index
    %c36 = arith.constant 36 : index
    %c0_29 = arith.constant 0 : index
    %33 = vector.load %arg1[%c0_28, %c36, %c0_29] : memref<1x342x128xf32, #tpu.memory_space<vmem>>, vector<1x288x128xf32>
    %34 = vector.shape_cast %33 : vector<1x288x128xf32> to vector<288x128xf32>
    %35 = arith.truncf %34 : vector<288x128xf32> to vector<288x128xbf16>
    %c0_30 = arith.constant 0 : index
    %c37 = arith.constant 37 : index
    %c0_31 = arith.constant 0 : index
    %36 = vector.load %arg1[%c0_30, %c37, %c0_31] : memref<1x342x128xf32, #tpu.memory_space<vmem>>, vector<1x288x128xf32>
    %37 = vector.shape_cast %36 : vector<1x288x128xf32> to vector<288x128xf32>
    %38 = arith.truncf %37 : vector<288x128xf32> to vector<288x128xbf16>
    %c0_32 = arith.constant 0 : index
    %c38 = arith.constant 38 : index
    %c0_33 = arith.constant 0 : index
    %39 = vector.load %arg1[%c0_32, %c38, %c0_33] : memref<1x342x128xf32, #tpu.memory_space<vmem>>, vector<1x288x128xf32>
    %40 = vector.shape_cast %39 : vector<1x288x128xf32> to vector<288x128xf32>
    %41 = arith.truncf %40 : vector<288x128xf32> to vector<288x128xbf16>
    %42 = tpu.concatenate %35, %38, %41 in 1 : vector<288x128xbf16>, vector<288x128xbf16>, vector<288x128xbf16> -> vector<288x384xbf16>
    %c2_34 = arith.constant 2 : index
    %c0_35 = arith.constant 0 : index
    %c0_36 = arith.constant 0 : index
    %43 = vector.load %arg2[%c2_34, %c0_35, %c0_36] : memref<3x384x128xbf16, #tpu.memory_space<vmem>>, vector<1x384x128xbf16>
    %44 = vector.shape_cast %43 : vector<1x384x128xbf16> to vector<384x128xbf16>
    %cst_37 = arith.constant dense<0.000000e+00> : vector<288x128xf32>
    %45 = tpu.matmul %42, %44, %cst_37 {dimension_numbers = #tpu.dot_dimension_numbers<[1], [0], [0], [1], [0, 0, 1, 1], [], []>} : vector<288x384xbf16>, vector<384x128xbf16>, vector<288x128xf32> -> vector<288x128xf32>
    %46 = arith.addf %32, %45 : vector<288x128xf32>
    %47 = vector.broadcast %0 : vector<1x128xf32> to vector<288x128xf32>
    %48 = arith.mulf %46, %47 : vector<288x128xf32>
    %49 = vector.broadcast %1 : vector<1x128xf32> to vector<288x128xf32>
    %50 = arith.addf %48, %49 : vector<288x128xf32>
    %cst_38 = arith.constant 0.000000e+00 : f32
    %51 = vector.broadcast %cst_38 : f32 to vector<288x128xf32>
    %52 = arith.maximumf %50, %51 : vector<288x128xf32>
    %53 = tpu.iota {dimensions = array<i32: 0>} : vector<288x1xi32>
    %c18_i32 = arith.constant 18 : i32
    %c0_i32 = arith.constant 0 : i32
    %54 = arith.cmpi eq, %c18_i32, %c0_i32 : i32
    %c1_i32 = arith.constant 1 : i32
    %55 = arith.select %54, %c1_i32, %c18_i32 : i32
    %56 = vector.broadcast %55 : i32 to vector<288x1xi32>
    %57 = arith.remsi %53, %56 : vector<288x1xi32>
    %c0_i32_39 = arith.constant 0 : i32
    %58 = vector.broadcast %c0_i32_39 : i32 to vector<288x1xi32>
    %59 = arith.cmpi ne, %57, %58 : vector<288x1xi32>
    %c0_i32_40 = arith.constant 0 : i32
    %60 = vector.broadcast %c0_i32_40 : i32 to vector<288x1xi32>
    %61 = arith.cmpi slt, %57, %60 : vector<288x1xi32>
    %c0_i32_41 = arith.constant 0 : i32
    %62 = arith.cmpi slt, %55, %c0_i32_41 : i32
    %63 = vector.broadcast %62 : i1 to vector<288x1xi1>
    %64 = vector.broadcast %63 : vector<288x1xi1> to vector<288x1xi1>
    %65 = arith.xori %61, %64 : vector<288x1xi1>
    %66 = arith.andi %65, %59 : vector<288x1xi1>
    %67 = vector.broadcast %55 : i32 to vector<288x1xi32>
    %68 = arith.addi %57, %67 : vector<288x1xi32>
    %69 = arith.select %66, %68, %57 : vector<288x1xi1>, vector<288x1xi32>
    %c16_i32 = arith.constant 16 : i32
    %70 = vector.broadcast %c16_i32 : i32 to vector<288x1xi32>
    %71 = arith.cmpi slt, %69, %70 : vector<288x1xi32>
    %cst_42 = arith.constant 0.000000e+00 : f32
    %72 = vector.shape_cast %71 : vector<288x1xi1> to vector<288x1xi1>
    %73 = vector.broadcast %72 : vector<288x1xi1> to vector<288x128xi1>
    %74 = vector.broadcast %cst_42 : f32 to vector<288x128xf32>
    %75 = arith.select %73, %52, %74 : vector<288x128xi1>, vector<288x128xf32>
    %cst_43 = arith.constant 0.000000e+00 : bf16
    %76 = vector.broadcast %cst_43 : bf16 to vector<19x128xbf16>
    %c0_44 = arith.constant 0 : index
    %c0_45 = arith.constant 0 : index
    %77 = vector.load %arg9[%c0_44, %c0_45] : memref<342x128xbf16, #tpu.memory_space<vmem>>, vector<19x128xbf16>
    tpu.vector_store %arg9[%c0_44, %c0_45], %76 {strides = array<i32>} : memref<342x128xbf16, #tpu.memory_space<vmem>>, vector<19x128xbf16>,
    %78 = arith.truncf %75 : vector<288x128xf32> to vector<288x128xbf16>
    %c19_46 = arith.constant 19 : index
    %c0_47 = arith.constant 0 : index
    %79 = vector.load %arg9[%c19_46, %c0_47] : memref<342x128xbf16, #tpu.memory_space<vmem>>, vector<288x128xbf16>
    tpu.vector_store %arg9[%c19_46, %c0_47], %78 {strides = array<i32>} : memref<342x128xbf16, #tpu.memory_space<vmem>>, vector<288x128xbf16>,
    %cst_48 = arith.constant 0.000000e+00 : bf16
    %80 = vector.broadcast %cst_48 : bf16 to vector<35x128xbf16>
    %c307 = arith.constant 307 : index
    %c0_49 = arith.constant 0 : index
    %81 = vector.load %arg9[%c307, %c0_49] : memref<342x128xbf16, #tpu.memory_space<vmem>>, vector<35x128xbf16>
    tpu.vector_store %arg9[%c307, %c0_49], %80 {strides = array<i32>} : memref<342x128xbf16, #tpu.memory_space<vmem>>, vector<35x128xbf16>,
    %cst_50 = arith.constant 0.000000e+00 : f32
    %82 = vector.broadcast %cst_50 : f32 to vector<288x128xf32>
    %c0_51 = arith.constant 0 : index
    %c0_52 = arith.constant 0 : index
    %83 = vector.load %arg9[%c0_51, %c0_52] : memref<342x128xbf16, #tpu.memory_space<vmem>>, vector<288x128xbf16>
    %c1_53 = arith.constant 1 : index
    %c0_54 = arith.constant 0 : index
    %84 = vector.load %arg9[%c1_53, %c0_54] : memref<342x128xbf16, #tpu.memory_space<vmem>>, vector<288x128xbf16>
    %c2_55 = arith.constant 2 : index
    %c0_56 = arith.constant 0 : index
    %85 = vector.load %arg9[%c2_55, %c0_56] : memref<342x128xbf16, #tpu.memory_space<vmem>>, vector<288x128xbf16>
    %86 = tpu.concatenate %83, %84, %85 in 1 : vector<288x128xbf16>, vector<288x128xbf16>, vector<288x128xbf16> -> vector<288x384xbf16>
    %c0_57 = arith.constant 0 : index
    %c0_58 = arith.constant 0 : index
    %c0_59 = arith.constant 0 : index
    %87 = vector.load %arg5[%c0_57, %c0_58, %c0_59] : memref<3x384x128xbf16, #tpu.memory_space<vmem>>, vector<1x384x128xbf16>
    %88 = vector.shape_cast %87 : vector<1x384x128xbf16> to vector<384x128xbf16>
    %cst_60 = arith.constant dense<0.000000e+00> : vector<288x128xf32>
    %89 = tpu.matmul %86, %88, %cst_60 {dimension_numbers = #tpu.dot_dimension_numbers<[1], [0], [0], [1], [0, 0, 1, 1], [], []>} : vector<288x384xbf16>, vector<384x128xbf16>, vector<288x128xf32> -> vector<288x128xf32>
    %90 = arith.addf %82, %89 : vector<288x128xf32>
    %c18_61 = arith.constant 18 : index
    %c0_62 = arith.constant 0 : index
    %91 = vector.load %arg9[%c18_61, %c0_62] : memref<342x128xbf16, #tpu.memory_space<vmem>>, vector<288x128xbf16>
    %c19_63 = arith.constant 19 : index
    %c0_64 = arith.constant 0 : index
    %92 = vector.load %arg9[%c19_63, %c0_64] : memref<342x128xbf16, #tpu.memory_space<vmem>>, vector<288x128xbf16>
    %c20_65 = arith.constant 20 : index
    %c0_66 = arith.constant 0 : index
    %93 = vector.load %arg9[%c20_65, %c0_66] : memref<342x128xbf16, #tpu.memory_space<vmem>>, vector<288x128xbf16>
    %94 = tpu.concatenate %91, %92, %93 in 1 : vector<288x128xbf16>, vector<288x128xbf16>, vector<288x128xbf16> -> vector<288x384xbf16>
    %c1_67 = arith.constant 1 : index
    %c0_68 = arith.constant 0 : index
    %c0_69 = arith.constant 0 : index
    %95 = vector.load %arg5[%c1_67, %c0_68, %c0_69] : memref<3x384x128xbf16, #tpu.memory_space<vmem>>, vector<1x384x128xbf16>
    %96 = vector.shape_cast %95 : vector<1x384x128xbf16> to vector<384x128xbf16>
    %cst_70 = arith.constant dense<0.000000e+00> : vector<288x128xf32>
    %97 = tpu.matmul %94, %96, %cst_70 {dimension_numbers = #tpu.dot_dimension_numbers<[1], [0], [0], [1], [0, 0, 1, 1], [], []>} : vector<288x384xbf16>, vector<384x128xbf16>, vector<288x128xf32> -> vector<288x128xf32>
    %98 = arith.addf %90, %97 : vector<288x128xf32>
    %c36_71 = arith.constant 36 : index
    %c0_72 = arith.constant 0 : index
    %99 = vector.load %arg9[%c36_71, %c0_72] : memref<342x128xbf16, #tpu.memory_space<vmem>>, vector<288x128xbf16>
    %c37_73 = arith.constant 37 : index
    %c0_74 = arith.constant 0 : index
    %100 = vector.load %arg9[%c37_73, %c0_74] : memref<342x128xbf16, #tpu.memory_space<vmem>>, vector<288x128xbf16>
    %c38_75 = arith.constant 38 : index
    %c0_76 = arith.constant 0 : index
    %101 = vector.load %arg9[%c38_75, %c0_76] : memref<342x128xbf16, #tpu.memory_space<vmem>>, vector<288x128xbf16>
    %102 = tpu.concatenate %99, %100, %101 in 1 : vector<288x128xbf16>, vector<288x128xbf16>, vector<288x128xbf16> -> vector<288x384xbf16>
    %c2_77 = arith.constant 2 : index
    %c0_78 = arith.constant 0 : index
    %c0_79 = arith.constant 0 : index
    %103 = vector.load %arg5[%c2_77, %c0_78, %c0_79] : memref<3x384x128xbf16, #tpu.memory_space<vmem>>, vector<1x384x128xbf16>
    %104 = vector.shape_cast %103 : vector<1x384x128xbf16> to vector<384x128xbf16>
    %cst_80 = arith.constant dense<0.000000e+00> : vector<288x128xf32>
    %105 = tpu.matmul %102, %104, %cst_80 {dimension_numbers = #tpu.dot_dimension_numbers<[1], [0], [0], [1], [0, 0, 1, 1], [], []>} : vector<288x384xbf16>, vector<384x128xbf16>, vector<288x128xf32> -> vector<288x128xf32>
    %106 = arith.addf %98, %105 : vector<288x128xf32>
    %107 = vector.broadcast %2 : vector<1x128xf32> to vector<288x128xf32>
    %108 = arith.mulf %106, %107 : vector<288x128xf32>
    %109 = vector.broadcast %3 : vector<1x128xf32> to vector<288x128xf32>
    %110 = arith.addf %108, %109 : vector<288x128xf32>
    %111 = arith.addf %110, %23 : vector<288x128xf32>
    %cst_81 = arith.constant 0.000000e+00 : f32
    %112 = vector.broadcast %cst_81 : f32 to vector<288x128xf32>
    %113 = arith.maximumf %111, %112 : vector<288x128xf32>
    %114 = vector.extract_strided_slice %113 {offsets = [0, 0], sizes = [16, 128], strides = [1, 1]} : vector<288x128xf32> to vector<16x128xf32>
    %c0_82 = arith.constant 0 : index
    %c0_83 = arith.constant 0 : index
    %c0_84 = arith.constant 0 : index
    %c0_85 = arith.constant 0 : index
    %115 = vector.load %arg8[%c0_82, %c0_83, %c0_84, %c0_85] : memref<1x16x16x128xf32, #tpu.memory_space<vmem>>, vector<1x1x16x128xf32>
    %116 = vector.shape_cast %115 : vector<1x1x16x128xf32> to vector<16x128xf32>
    %117 = vector.shape_cast %114 : vector<16x128xf32> to vector<1x1x16x128xf32>
    tpu.vector_store %arg8[%c0_82, %c0_83, %c0_84, %c0_85], %117 {strides = array<i32>} : memref<1x16x16x128xf32, #tpu.memory_space<vmem>>, vector<1x1x16x128xf32>,
    %118 = vector.extract_strided_slice %113 {offsets = [18, 0], sizes = [16, 128], strides = [1, 1]} : vector<288x128xf32> to vector<16x128xf32>
    %c0_86 = arith.constant 0 : index
    %c1_87 = arith.constant 1 : index
    %c0_88 = arith.constant 0 : index
    %c0_89 = arith.constant 0 : index
    %119 = vector.load %arg8[%c0_86, %c1_87, %c0_88, %c0_89] : memref<1x16x16x128xf32, #tpu.memory_space<vmem>>, vector<1x1x16x128xf32>
    %120 = vector.shape_cast %119 : vector<1x1x16x128xf32> to vector<16x128xf32>
    %121 = vector.shape_cast %118 : vector<16x128xf32> to vector<1x1x16x128xf32>
    tpu.vector_store %arg8[%c0_86, %c1_87, %c0_88, %c0_89], %121 {strides = array<i32>} : memref<1x16x16x128xf32, #tpu.memory_space<vmem>>, vector<1x1x16x128xf32>,
    %122 = vector.extract_strided_slice %113 {offsets = [36, 0], sizes = [16, 128], strides = [1, 1]} : vector<288x128xf32> to vector<16x128xf32>
    %c0_90 = arith.constant 0 : index
    %c2_91 = arith.constant 2 : index
    %c0_92 = arith.constant 0 : index
    %c0_93 = arith.constant 0 : index
    %123 = vector.load %arg8[%c0_90, %c2_91, %c0_92, %c0_93] : memref<1x16x16x128xf32, #tpu.memory_space<vmem>>, vector<1x1x16x128xf32>
    %124 = vector.shape_cast %123 : vector<1x1x16x128xf32> to vector<16x128xf32>
    %125 = vector.shape_cast %122 : vector<16x128xf32> to vector<1x1x16x128xf32>
    tpu.vector_store %arg8[%c0_90, %c2_91, %c0_92, %c0_93], %125 {strides = array<i32>} : memref<1x16x16x128xf32, #tpu.memory_space<vmem>>, vector<1x1x16x128xf32>,
    %126 = vector.extract_strided_slice %113 {offsets = [54, 0], sizes = [16, 128], strides = [1, 1]} : vector<288x128xf32> to vector<16x128xf32>
    %c0_94 = arith.constant 0 : index
    %c3 = arith.constant 3 : index
    %c0_95 = arith.constant 0 : index
    %c0_96 = arith.constant 0 : index
    %127 = vector.load %arg8[%c0_94, %c3, %c0_95, %c0_96] : memref<1x16x16x128xf32, #tpu.memory_space<vmem>>, vector<1x1x16x128xf32>
    %128 = vector.shape_cast %127 : vector<1x1x16x128xf32> to vector<16x128xf32>
    %129 = vector.shape_cast %126 : vector<16x128xf32> to vector<1x1x16x128xf32>
    tpu.vector_store %arg8[%c0_94, %c3, %c0_95, %c0_96], %129 {strides = array<i32>} : memref<1x16x16x128xf32, #tpu.memory_space<vmem>>, vector<1x1x16x128xf32>,
    %130 = vector.extract_strided_slice %113 {offsets = [72, 0], sizes = [16, 128], strides = [1, 1]} : vector<288x128xf32> to vector<16x128xf32>
    %c0_97 = arith.constant 0 : index
    %c4 = arith.constant 4 : index
    %c0_98 = arith.constant 0 : index
    %c0_99 = arith.constant 0 : index
    %131 = vector.load %arg8[%c0_97, %c4, %c0_98, %c0_99] : memref<1x16x16x128xf32, #tpu.memory_space<vmem>>, vector<1x1x16x128xf32>
    %132 = vector.shape_cast %131 : vector<1x1x16x128xf32> to vector<16x128xf32>
    %133 = vector.shape_cast %130 : vector<16x128xf32> to vector<1x1x16x128xf32>
    tpu.vector_store %arg8[%c0_97, %c4, %c0_98, %c0_99], %133 {strides = array<i32>} : memref<1x16x16x128xf32, #tpu.memory_space<vmem>>, vector<1x1x16x128xf32>,
    %134 = vector.extract_strided_slice %113 {offsets = [90, 0], sizes = [16, 128], strides = [1, 1]} : vector<288x128xf32> to vector<16x128xf32>
    %c0_100 = arith.constant 0 : index
    %c5 = arith.constant 5 : index
    %c0_101 = arith.constant 0 : index
    %c0_102 = arith.constant 0 : index
    %135 = vector.load %arg8[%c0_100, %c5, %c0_101, %c0_102] : memref<1x16x16x128xf32, #tpu.memory_space<vmem>>, vector<1x1x16x128xf32>
    %136 = vector.shape_cast %135 : vector<1x1x16x128xf32> to vector<16x128xf32>
    %137 = vector.shape_cast %134 : vector<16x128xf32> to vector<1x1x16x128xf32>
    tpu.vector_store %arg8[%c0_100, %c5, %c0_101, %c0_102], %137 {strides = array<i32>} : memref<1x16x16x128xf32, #tpu.memory_space<vmem>>, vector<1x1x16x128xf32>,
    %138 = vector.extract_strided_slice %113 {offsets = [108, 0], sizes = [16, 128], strides = [1, 1]} : vector<288x128xf32> to vector<16x128xf32>
    %c0_103 = arith.constant 0 : index
    %c6 = arith.constant 6 : index
    %c0_104 = arith.constant 0 : index
    %c0_105 = arith.constant 0 : index
    %139 = vector.load %arg8[%c0_103, %c6, %c0_104, %c0_105] : memref<1x16x16x128xf32, #tpu.memory_space<vmem>>, vector<1x1x16x128xf32>
    %140 = vector.shape_cast %139 : vector<1x1x16x128xf32> to vector<16x128xf32>
    %141 = vector.shape_cast %138 : vector<16x128xf32> to vector<1x1x16x128xf32>
    tpu.vector_store %arg8[%c0_103, %c6, %c0_104, %c0_105], %141 {strides = array<i32>} : memref<1x16x16x128xf32, #tpu.memory_space<vmem>>, vector<1x1x16x128xf32>,
    %142 = vector.extract_strided_slice %113 {offsets = [126, 0], sizes = [16, 128], strides = [1, 1]} : vector<288x128xf32> to vector<16x128xf32>
    %c0_106 = arith.constant 0 : index
    %c7 = arith.constant 7 : index
    %c0_107 = arith.constant 0 : index
    %c0_108 = arith.constant 0 : index
    %143 = vector.load %arg8[%c0_106, %c7, %c0_107, %c0_108] : memref<1x16x16x128xf32, #tpu.memory_space<vmem>>, vector<1x1x16x128xf32>
    %144 = vector.shape_cast %143 : vector<1x1x16x128xf32> to vector<16x128xf32>
    %145 = vector.shape_cast %142 : vector<16x128xf32> to vector<1x1x16x128xf32>
    tpu.vector_store %arg8[%c0_106, %c7, %c0_107, %c0_108], %145 {strides = array<i32>} : memref<1x16x16x128xf32, #tpu.memory_space<vmem>>, vector<1x1x16x128xf32>,
    %146 = vector.extract_strided_slice %113 {offsets = [144, 0], sizes = [16, 128], strides = [1, 1]} : vector<288x128xf32> to vector<16x128xf32>
    %c0_109 = arith.constant 0 : index
    %c8 = arith.constant 8 : index
    %c0_110 = arith.constant 0 : index
    %c0_111 = arith.constant 0 : index
    %147 = vector.load %arg8[%c0_109, %c8, %c0_110, %c0_111] : memref<1x16x16x128xf32, #tpu.memory_space<vmem>>, vector<1x1x16x128xf32>
    %148 = vector.shape_cast %147 : vector<1x1x16x128xf32> to vector<16x128xf32>
    %149 = vector.shape_cast %146 : vector<16x128xf32> to vector<1x1x16x128xf32>
    tpu.vector_store %arg8[%c0_109, %c8, %c0_110, %c0_111], %149 {strides = array<i32>} : memref<1x16x16x128xf32, #tpu.memory_space<vmem>>, vector<1x1x16x128xf32>,
    %150 = vector.extract_strided_slice %113 {offsets = [162, 0], sizes = [16, 128], strides = [1, 1]} : vector<288x128xf32> to vector<16x128xf32>
    %c0_112 = arith.constant 0 : index
    %c9 = arith.constant 9 : index
    %c0_113 = arith.constant 0 : index
    %c0_114 = arith.constant 0 : index
    %151 = vector.load %arg8[%c0_112, %c9, %c0_113, %c0_114] : memref<1x16x16x128xf32, #tpu.memory_space<vmem>>, vector<1x1x16x128xf32>
    %152 = vector.shape_cast %151 : vector<1x1x16x128xf32> to vector<16x128xf32>
    %153 = vector.shape_cast %150 : vector<16x128xf32> to vector<1x1x16x128xf32>
    tpu.vector_store %arg8[%c0_112, %c9, %c0_113, %c0_114], %153 {strides = array<i32>} : memref<1x16x16x128xf32, #tpu.memory_space<vmem>>, vector<1x1x16x128xf32>,
    %154 = vector.extract_strided_slice %113 {offsets = [180, 0], sizes = [16, 128], strides = [1, 1]} : vector<288x128xf32> to vector<16x128xf32>
    %c0_115 = arith.constant 0 : index
    %c10 = arith.constant 10 : index
    %c0_116 = arith.constant 0 : index
    %c0_117 = arith.constant 0 : index
    %155 = vector.load %arg8[%c0_115, %c10, %c0_116, %c0_117] : memref<1x16x16x128xf32, #tpu.memory_space<vmem>>, vector<1x1x16x128xf32>
    %156 = vector.shape_cast %155 : vector<1x1x16x128xf32> to vector<16x128xf32>
    %157 = vector.shape_cast %154 : vector<16x128xf32> to vector<1x1x16x128xf32>
    tpu.vector_store %arg8[%c0_115, %c10, %c0_116, %c0_117], %157 {strides = array<i32>} : memref<1x16x16x128xf32, #tpu.memory_space<vmem>>, vector<1x1x16x128xf32>,
    %158 = vector.extract_strided_slice %113 {offsets = [198, 0], sizes = [16, 128], strides = [1, 1]} : vector<288x128xf32> to vector<16x128xf32>
    %c0_118 = arith.constant 0 : index
    %c11 = arith.constant 11 : index
    %c0_119 = arith.constant 0 : index
    %c0_120 = arith.constant 0 : index
    %159 = vector.load %arg8[%c0_118, %c11, %c0_119, %c0_120] : memref<1x16x16x128xf32, #tpu.memory_space<vmem>>, vector<1x1x16x128xf32>
    %160 = vector.shape_cast %159 : vector<1x1x16x128xf32> to vector<16x128xf32>
    %161 = vector.shape_cast %158 : vector<16x128xf32> to vector<1x1x16x128xf32>
    tpu.vector_store %arg8[%c0_118, %c11, %c0_119, %c0_120], %161 {strides = array<i32>} : memref<1x16x16x128xf32, #tpu.memory_space<vmem>>, vector<1x1x16x128xf32>,
    %162 = vector.extract_strided_slice %113 {offsets = [216, 0], sizes = [16, 128], strides = [1, 1]} : vector<288x128xf32> to vector<16x128xf32>
    %c0_121 = arith.constant 0 : index
    %c12 = arith.constant 12 : index
    %c0_122 = arith.constant 0 : index
    %c0_123 = arith.constant 0 : index
    %163 = vector.load %arg8[%c0_121, %c12, %c0_122, %c0_123] : memref<1x16x16x128xf32, #tpu.memory_space<vmem>>, vector<1x1x16x128xf32>
    %164 = vector.shape_cast %163 : vector<1x1x16x128xf32> to vector<16x128xf32>
    %165 = vector.shape_cast %162 : vector<16x128xf32> to vector<1x1x16x128xf32>
    tpu.vector_store %arg8[%c0_121, %c12, %c0_122, %c0_123], %165 {strides = array<i32>} : memref<1x16x16x128xf32, #tpu.memory_space<vmem>>, vector<1x1x16x128xf32>,
    %166 = vector.extract_strided_slice %113 {offsets = [234, 0], sizes = [16, 128], strides = [1, 1]} : vector<288x128xf32> to vector<16x128xf32>
    %c0_124 = arith.constant 0 : index
    %c13 = arith.constant 13 : index
    %c0_125 = arith.constant 0 : index
    %c0_126 = arith.constant 0 : index
    %167 = vector.load %arg8[%c0_124, %c13, %c0_125, %c0_126] : memref<1x16x16x128xf32, #tpu.memory_space<vmem>>, vector<1x1x16x128xf32>
    %168 = vector.shape_cast %167 : vector<1x1x16x128xf32> to vector<16x128xf32>
    %169 = vector.shape_cast %166 : vector<16x128xf32> to vector<1x1x16x128xf32>
    tpu.vector_store %arg8[%c0_124, %c13, %c0_125, %c0_126], %169 {strides = array<i32>} : memref<1x16x16x128xf32, #tpu.memory_space<vmem>>, vector<1x1x16x128xf32>,
    %170 = vector.extract_strided_slice %113 {offsets = [252, 0], sizes = [16, 128], strides = [1, 1]} : vector<288x128xf32> to vector<16x128xf32>
    %c0_127 = arith.constant 0 : index
    %c14 = arith.constant 14 : index
    %c0_128 = arith.constant 0 : index
    %c0_129 = arith.constant 0 : index
    %171 = vector.load %arg8[%c0_127, %c14, %c0_128, %c0_129] : memref<1x16x16x128xf32, #tpu.memory_space<vmem>>, vector<1x1x16x128xf32>
    %172 = vector.shape_cast %171 : vector<1x1x16x128xf32> to vector<16x128xf32>
    %173 = vector.shape_cast %170 : vector<16x128xf32> to vector<1x1x16x128xf32>
    tpu.vector_store %arg8[%c0_127, %c14, %c0_128, %c0_129], %173 {strides = array<i32>} : memref<1x16x16x128xf32, #tpu.memory_space<vmem>>, vector<1x1x16x128xf32>,
    %174 = vector.extract_strided_slice %113 {offsets = [270, 0], sizes = [16, 128], strides = [1, 1]} : vector<288x128xf32> to vector<16x128xf32>
    %c0_130 = arith.constant 0 : index
    %c15 = arith.constant 15 : index
    %c0_131 = arith.constant 0 : index
    %c0_132 = arith.constant 0 : index
    %175 = vector.load %arg8[%c0_130, %c15, %c0_131, %c0_132] : memref<1x16x16x128xf32, #tpu.memory_space<vmem>>, vector<1x1x16x128xf32>
    %176 = vector.shape_cast %175 : vector<1x1x16x128xf32> to vector<16x128xf32>
    %177 = vector.shape_cast %174 : vector<16x128xf32> to vector<1x1x16x128xf32>
    tpu.vector_store %arg8[%c0_130, %c15, %c0_131, %c0_132], %177 {strides = array<i32>} : memref<1x16x16x128xf32, #tpu.memory_space<vmem>>, vector<1x1x16x128xf32>,
    return
  }
  func.func @transform_0(%arg0: i32) -> (i32, i32, i32) {
    %c0_i32 = arith.constant 0 : i32
    %c0_i32_0 = arith.constant 0 : i32
    %c0_i32_1 = arith.constant 0 : i32
    return %arg0, %c0_i32, %c0_i32_0 : i32, i32, i32
  }
  func.func @transform_1(%arg0: i32) -> (i32, i32, i32) {
    %c0_i32 = arith.constant 0 : i32
    %c0_i32_0 = arith.constant 0 : i32
    %c0_i32_1 = arith.constant 0 : i32
    %c0_i32_2 = arith.constant 0 : i32
    return %c0_i32, %c0_i32_0, %c0_i32_1 : i32, i32, i32
  }
  func.func @transform_2(%arg0: i32) -> (i32, i32) {
    %c0_i32 = arith.constant 0 : i32
    %c0_i32_0 = arith.constant 0 : i32
    %c0_i32_1 = arith.constant 0 : i32
    return %c0_i32, %c0_i32_0 : i32, i32
  }
  func.func @transform_3(%arg0: i32) -> (i32, i32) {
    %c0_i32 = arith.constant 0 : i32
    %c0_i32_0 = arith.constant 0 : i32
    %c0_i32_1 = arith.constant 0 : i32
    return %c0_i32, %c0_i32_0 : i32, i32
  }
  func.func @transform_4(%arg0: i32) -> (i32, i32, i32) {
    %c0_i32 = arith.constant 0 : i32
    %c0_i32_0 = arith.constant 0 : i32
    %c0_i32_1 = arith.constant 0 : i32
    %c0_i32_2 = arith.constant 0 : i32
    return %c0_i32, %c0_i32_0, %c0_i32_1 : i32, i32, i32
  }
  func.func @transform_5(%arg0: i32) -> (i32, i32) {
    %c0_i32 = arith.constant 0 : i32
    %c0_i32_0 = arith.constant 0 : i32
    %c0_i32_1 = arith.constant 0 : i32
    return %c0_i32, %c0_i32_0 : i32, i32
  }
  func.func @transform_6(%arg0: i32) -> (i32, i32) {
    %c0_i32 = arith.constant 0 : i32
    %c0_i32_0 = arith.constant 0 : i32
    %c0_i32_1 = arith.constant 0 : i32
    return %c0_i32, %c0_i32_0 : i32, i32
  }
  func.func @transform_7(%arg0: i32) -> (i32, i32, i32, i32) {
    %c0_i32 = arith.constant 0 : i32
    %c0_i32_0 = arith.constant 0 : i32
    %c0_i32_1 = arith.constant 0 : i32
    %c0_i32_2 = arith.constant 0 : i32
    return %arg0, %c0_i32, %c0_i32_0, %c0_i32_1 : i32, i32, i32, i32
  }
}

</mosaic_0001>

<llo_original>
// kernel: basic_block.1
$region0: #{basic_block.1}
  #allocation0 [shape = 'u32[]', space=smem, size = 0x4, offset = 0x4, fixed_abs, tag = 'smem constant byte address 0x4 - core index']
  #allocation1 [shape = 'u32[144,128]{1,0:T(1,128)}', space=vmem, size = 0x12000, scoped, tag = 'internal scratch']
  #allocation2 [shape = 'bf16[342,128]{1,0:T(8,128)(2,1)}', space=vmem, size = 0x15800, scoped, tag = 'scratch operand']
  %s0 = inlined_call_operand.vmem [shape: f32[2,342,128], index: 0, kind: input, shape index: {}]
  %s1 = inlined_call_operand.vmem [shape: bf16[3,384,128], index: 1, kind: input, shape index: {}]
  %s2 = inlined_call_operand.vmem [shape: f32[1,128], index: 2, kind: input, shape index: {}]
  %s3 = inlined_call_operand.vmem [shape: f32[1,128], index: 3, kind: input, shape index: {}]
  %s4 = inlined_call_operand.vmem [shape: bf16[3,384,128], index: 4, kind: input, shape index: {}]
  %s5 = inlined_call_operand.vmem [shape: f32[1,128], index: 5, kind: input, shape index: {}]
  %s6 = inlined_call_operand.vmem [shape: f32[1,128], index: 6, kind: input, shape index: {}]
  %s7 = inlined_call_operand.vmem [shape: f32[2,16,16,128], index: 7, kind: output, shape index: {}]
  %s8 = sld [smem:[#allocation0]]
  $region61: #{basic_block.1} parent=0
    _
  %s10 = ssub.s32 1, %s8
  %s11 = scalar_select 0, %s10, %s8
  loop: start=0, step=1, limit=4
  $region2: #{basic_block.1} parent=0 // loop_pre_header
    _
  $region3: #{basic_block.1} parent=0 // loop_header
    %s13 = sphi 0, %s17
    %p14 = scmp.ge.s32.totalorder %s13, 4
    %s23 = sphi 0, %s25
    %s26 = sphi 0, %s23
    %s27 = sphi 0, %s26
    %s43 = sphi 0, %s27
    %s47 = sphi 0, %s47
    %s49 = sphi 0, %s47
    %s50 = sphi 0, %s49
    %s64 = sphi 0, %s50
    %s68 = sphi 0, %s68
    %s70 = sphi 0, %s68
    %s71 = sphi 0, %s70
    %s85 = sphi 0, %s71
    %s89 = sphi 0, %s89
    %s91 = sphi 0, %s89
    %s92 = sphi 0, %s91
    %s106 = sphi 0, %s92
    %s110 = sphi 0, %s110
    %s112 = sphi 0, %s110
    %s113 = sphi 0, %s112
    %s127 = sphi 0, %s113
    %s131 = sphi 0, %s131
    %s133 = sphi 0, %s131
    %s134 = sphi 0, %s133
    %s148 = sphi 0, %s134
    %s152 = sphi 0, %s152
    %s154 = sphi 0, %s152
    %s155 = sphi 0, %s154
    %s169 = sphi 0, %s155
    %s175 = sphi 0, %s177
    %s178 = sphi 0, %s175
    %s179 = sphi 0, %s178
    %s195 = sphi 0, %s179
  $region4: #{basic_block.1} parent=0 // loop_header_branch
    %16 = sbr.rel (%p14) target = $region8
  $region5: #{basic_block.1} parent=0 // loop_body
    %s18 = ssub.s32 %s13, 1
    %s19 = ssub.s32 %s13, 2
    %s20 = sadd.s32 %s13, 1
    %s21 = ssub.s32 %s13, %s20
    %p22 = scmp.eq.s32.totalorder %s21, 0
    %s24 = sadd.s32 %s23, 1
    %s25 = scalar_select %p22, %s23, %s24
    %p28 = pneg %p22
    %p29 = scmp.eq.s32.totalorder %s13, 1
    %p30 = por %p28, %p29
    %p31 = scmp.ne.s32.totalorder %s23, %s26
    %p32 = scmp.eq.s32.totalorder %s13, 0
    %p33 = por %p31, %p32
    %p34 = scmp.ne.s32.totalorder %s23, %s26
    %p35 = scmp.eq.s32.totalorder %s18, 1
    %p36 = por %p34, %p35
    %p37 = scmp.ne.s32.totalorder %s26, %s27
    %p38 = scmp.eq.s32.totalorder %s18, 0
    %p39 = por %p37, %p38
    %p40 = scmp.ne.s32.totalorder %s26, %s27
    %p41 = scmp.eq.s32.totalorder %s19, 1
    %p42 = por %p40, %p41
    %p44 = scmp.ne.s32.totalorder %s27, %s43
    %p45 = scmp.eq.s32.totalorder %s19, 0
    %p46 = por %p44, %p45
    %s48 = sadd.s32 %s47, 1
    %p51 = scmp.eq.s32.totalorder %s13, 1
    %p52 = scmp.ne.s32.totalorder %s47, %s49
    %p53 = scmp.eq.s32.totalorder %s13, 0
    %p54 = por %p52, %p53
    %p55 = scmp.ne.s32.totalorder %s47, %s49
    %p56 = scmp.eq.s32.totalorder %s18, 1
    %p57 = por %p55, %p56
    %p58 = scmp.ne.s32.totalorder %s49, %s50
    %p59 = scmp.eq.s32.totalorder %s18, 0
    %p60 = por %p58, %p59
    %p61 = scmp.ne.s32.totalorder %s49, %s50
    %p62 = scmp.eq.s32.totalorder %s19, 1
    %p63 = por %p61, %p62
    %p65 = scmp.ne.s32.totalorder %s50, %s64
    %p66 = scmp.eq.s32.totalorder %s19, 0
    %p67 = por %p65, %p66
    %s69 = sadd.s32 %s68, 1
    %p72 = scmp.eq.s32.totalorder %s13, 1
    %p73 = scmp.ne.s32.totalorder %s68, %s70
    %p74 = scmp.eq.s32.totalorder %s13, 0
    %p75 = por %p73, %p74
    %p76 = scmp.ne.s32.totalorder %s68, %s70
    %p77 = scmp.eq.s32.totalorder %s18, 1
    %p78 = por %p76, %p77
    %p79 = scmp.ne.s32.totalorder %s70, %s71
    %p80 = scmp.eq.s32.totalorder %s18, 0
    %p81 = por %p79, %p80
    %p82 = scmp.ne.s32.totalorder %s70, %s71
    %p83 = scmp.eq.s32.totalorder %s19, 1
    %p84 = por %p82, %p83
    %p86 = scmp.ne.s32.totalorder %s71, %s85
    %p87 = scmp.eq.s32.totalorder %s19, 0
    %p88 = por %p86, %p87
    %s90 = sadd.s32 %s89, 1
    %p93 = scmp.eq.s32.totalorder %s13, 1
    %p94 = scmp.ne.s32.totalorder %s89, %s91
    %p95 = scmp.eq.s32.totalorder %s13, 0
    %p96 = por %p94, %p95
    %p97 = scmp.ne.s32.totalorder %s89, %s91
    %p98 = scmp.eq.s32.totalorder %s18, 1
    %p99 = por %p97, %p98
    %p100 = scmp.ne.s32.totalorder %s91, %s92
    %p101 = scmp.eq.s32.totalorder %s18, 0
    %p102 = por %p100, %p101
    %p103 = scmp.ne.s32.totalorder %s91, %s92
    %p104 = scmp.eq.s32.totalorder %s19, 1
    %p105 = por %p103, %p104
    %p107 = scmp.ne.s32.totalorder %s92, %s106
    %p108 = scmp.eq.s32.totalorder %s19, 0
    %p109 = por %p107, %p108
    %s111 = sadd.s32 %s110, 1
    %p114 = scmp.eq.s32.totalorder %s13, 1
    %p115 = scmp.ne.s32.totalorder %s110, %s112
    %p116 = scmp.eq.s32.totalorder %s13, 0
    %p117 = por %p115, %p116
    %p118 = scmp.ne.s32.totalorder %s110, %s112
    %p119 = scmp.eq.s32.totalorder %s18, 1
    %p120 = por %p118, %p119
    %p121 = scmp.ne.s32.totalorder %s112, %s113
    %p122 = scmp.eq.s32.totalorder %s18, 0
    %p123 = por %p121, %p122
    %p124 = scmp.ne.s32.totalorder %s112, %s113
    %p125 = scmp.eq.s32.totalorder %s19, 1
    %p126 = por %p124, %p125
    %p128 = scmp.ne.s32.totalorder %s113, %s127
    %p129 = scmp.eq.s32.totalorder %s19, 0
    %p130 = por %p128, %p129
    %s132 = sadd.s32 %s131, 1
    %p135 = scmp.eq.s32.totalorder %s13, 1
    %p136 = scmp.ne.s32.totalorder %s131, %s133
    %p137 = scmp.eq.s32.totalorder %s13, 0
    %p138 = por %p136, %p137
    %p139 = scmp.ne.s32.totalorder %s131, %s133
    %p140 = scmp.eq.s32.totalorder %s18, 1
    %p141 = por %p139, %p140
    %p142 = scmp.ne.s32.totalorder %s133, %s134
    %p143 = scmp.eq.s32.totalorder %s18, 0
    %p144 = por %p142, %p143
    %p145 = scmp.ne.s32.totalorder %s133, %s134
    %p146 = scmp.eq.s32.totalorder %s19, 1
    %p147 = por %p145, %p146
    %p149 = scmp.ne.s32.totalorder %s134, %s148
    %p150 = scmp.eq.s32.totalorder %s19, 0
    %p151 = por %p149, %p150
    %s153 = sadd.s32 %s152, 1
    %p156 = scmp.eq.s32.totalorder %s13, 1
    %p157 = scmp.ne.s32.totalorder %s152, %s154
    %p158 = scmp.eq.s32.totalorder %s13, 0
    %p159 = por %p157, %p158
    %p160 = scmp.ne.s32.totalorder %s152, %s154
    %p161 = scmp.eq.s32.totalorder %s18, 1
    %p162 = por %p160, %p161
    %p163 = scmp.ne.s32.totalorder %s154, %s155
    %p164 = scmp.eq.s32.totalorder %s18, 0
    %p165 = por %p163, %p164
    %p166 = scmp.ne.s32.totalorder %s154, %s155
    %p167 = scmp.eq.s32.totalorder %s19, 1
    %p168 = por %p166, %p167
    %p170 = scmp.ne.s32.totalorder %s155, %s169
    %p171 = scmp.eq.s32.totalorder %s19, 0
    %p172 = por %p170, %p171
    %s173 = ssub.s32 %s13, %s20
    %p174 = scmp.eq.s32.totalorder %s173, 0
    %s176 = sadd.s32 %s175, 1
    %s177 = scalar_select %p174, %s175, %s176
    %p180 = pneg %p174
    %p181 = scmp.eq.s32.totalorder %s13, 1
    %p182 = por %p180, %p181
    %p183 = scmp.ne.s32.totalorder %s175, %s178
    %p184 = scmp.eq.s32.totalorder %s13, 0
    %p185 = por %p183, %p184
    %p186 = scmp.ne.s32.totalorder %s175, %s178
    %p187 = scmp.eq.s32.totalorder %s18, 1
    %p188 = por %p186, %p187
    %p189 = scmp.ne.s32.totalorder %s178, %s179
    %p190 = scmp.eq.s32.totalorder %s18, 0
    %p191 = por %p189, %p190
    %p192 = scmp.ne.s32.totalorder %s178, %s179
    %p193 = scmp.eq.s32.totalorder %s19, 1
    %p194 = por %p192, %p193
    %p196 = scmp.ne.s32.totalorder %s179, %s195
    %p197 = scmp.eq.s32.totalorder %s19, 0
    %p198 = por %p196, %p197
    %p199 = scmp.le.s32.totalorder 1, %s13
    %p200 = scmp.lt.s32.totalorder %s13, 3
    %p201 = pnand %p199, %p200
    %p202 = pneg %p201
    // Predicated region
    $region9: #{basic_block.1} parent=5 // pred_check
      _
    $region10: #{basic_block.1} parent=5 // pred_check_branch
      %204 = sbr.rel (%p201) target = $region12
    $region11: #{basic_block.1} parent=5 // pred_region
      %s205 = ssub.s32 %s13, 1
      // Predicated region
      $region13: #{basic_block.1} parent=11 // pred_check
        %p206 = pneg %p60
      $region14: #{basic_block.1} parent=11 // pred_check_branch
        %208 = sbr.rel (%p206) target = $region16
      $region15: #{basic_block.1} parent=11 // pred_region
        _
      $region16: #{basic_block.1} parent=11 // pred_fallthru
        _
      // Predicated region
      $region17: #{basic_block.1} parent=11 // pred_check
        %p209 = pneg %p81
      $region18: #{basic_block.1} parent=11 // pred_check_branch
        %211 = sbr.rel (%p209) target = $region20
      $region19: #{basic_block.1} parent=11 // pred_region
        _
      $region20: #{basic_block.1} parent=11 // pred_fallthru
        _
      // Predicated region
      $region21: #{basic_block.1} parent=11 // pred_check
        %p212 = pneg %p102
      $region22: #{basic_block.1} parent=11 // pred_check_branch
        %214 = sbr.rel (%p212) target = $region24
      $region23: #{basic_block.1} parent=11 // pred_region
        _
      $region24: #{basic_block.1} parent=11 // pred_fallthru
        _
      // Predicated region
      $region25: #{basic_block.1} parent=11 // pred_check
        %p215 = pneg %p123
      $region26: #{basic_block.1} parent=11 // pred_check_branch
        %217 = sbr.rel (%p215) target = $region28
      $region27: #{basic_block.1} parent=11 // pred_region
        _
      $region28: #{basic_block.1} parent=11 // pred_fallthru
        _
      // Predicated region
      $region29: #{basic_block.1} parent=11 // pred_check
        %p218 = pneg %p144
      $region30: #{basic_block.1} parent=11 // pred_check_branch
        %220 = sbr.rel (%p218) target = $region32
      $region31: #{basic_block.1} parent=11 // pred_region
        _
      $region32: #{basic_block.1} parent=11 // pred_fallthru
        _
      // Predicated region
      $region33: #{basic_block.1} parent=11 // pred_check
        %p221 = pneg %p165
      $region34: #{basic_block.1} parent=11 // pred_check_branch
        %223 = sbr.rel (%p221) target = $region36
      $region35: #{basic_block.1} parent=11 // pred_region
        _
      $region36: #{basic_block.1} parent=11 // pred_fallthru
        _
    $region12: #{basic_block.1} parent=5 // pred_fallthru
      _
    %p224 = scmp.lt.s32.totalorder %s13, 2
    // Predicated region
    $region37: #{basic_block.1} parent=5 // pred_check
      %p225 = pneg %p224
    $region38: #{basic_block.1} parent=5 // pred_check_branch
      %227 = sbr.rel (%p225) target = $region40
    $region39: #{basic_block.1} parent=5 // pred_region
      // Predicated region
      $region41: #{basic_block.1} parent=39 // pred_check
        %p228 = pneg %p33
      $region42: #{basic_block.1} parent=39 // pred_check_branch
        %230 = sbr.rel (%p228) target = $region44
      $region43: #{basic_block.1} parent=39 // pred_region
        %p231 = scmp.lt.s32.totalorder %s13, 1
        %s232 = scalar_select %p231, %s13, 1
        %s233 = smul.addr %s232, 43
        %s234 = smul.addr %s233, 8
        %s235 = scalar_lea.vmem %s0, %s234
      $region44: #{basic_block.1} parent=39 // pred_fallthru
        _
    $region40: #{basic_block.1} parent=5 // pred_fallthru
      _
    %p236 = scmp.le.s32.totalorder 1, %s13
    %p237 = scmp.lt.s32.totalorder %s13, 3
    %p238 = pnand %p236, %p237
    %p239 = pneg %p238
    // Predicated region
    $region45: #{basic_block.1} parent=5 // pred_check
      _
    $region46: #{basic_block.1} parent=5 // pred_check_branch
      %241 = sbr.rel (%p238) target = $region48
    $region47: #{basic_block.1} parent=5 // pred_region
      %s242 = ssub.s32 %s13, 1
      %p243 = scmp.lt.s32.totalorder %s18, 1
      %s244 = scalar_select %p243, %s18, 1
      %s245 = smul.addr %s244, 43
      %s246 = smul.addr %s245, 8
      %s247 = scalar_lea.vmem %s0, %s246
      %p248 = pneg %p39
      %p249 = pneg %p36
      %p250 = pneg %p60
      %p251 = pneg %p57
      %p252 = pneg %p81
      %p253 = pneg %p78
      %p254 = pneg %p102
      %p255 = pneg %p99
      %p256 = pneg %p123
      %p257 = pneg %p120
      %p258 = pneg %p144
      %p259 = pneg %p141
      %p260 = pneg %p165
      %p261 = pneg %p162
      %p262 = pneg %p191
      %p263 = pneg %p188
      %p264 = scmp.lt.s32.totalorder %s18, 1
      %s265 = scalar_select %p264, %s18, 1
      %s266 = smul.addr %s265, 32
      %s267 = smul.addr %s266, 8
      %s268 = scalar_lea.vmem %s7, %s267
      %p269 = scmp.lt.s32.totalorder %s18, 1
      %s270 = scalar_select %p269, %s18, 1
      %s271 = smul.addr %s270, 43
      %s272 = smul.addr %s271, 8
      %s273 = scalar_lea.vmem %s0, %s272
      %p274 = scmp.lt.s32.totalorder %s18, 1
      %s275 = scalar_select %p274, %s18, 1
      %s276 = smul.addr %s275, 32
      %s277 = smul.addr %s276, 8
      %s278 = scalar_lea.vmem %s7, %s277
      %v280 = vld [vmem:[%s2] sm:$0x1]
      %v281 = vld [vmem:[%s3] sm:$0x1]
      %v282 = vld [vmem:[%s5] sm:$0x1]
      %v283 = vld [vmem:[%s6] sm:$0x1]
      %v284 = vld [vmem:[%s273] sm:$0xff]
      %v285 = vld [vmem:[%s273 + $0x8] sm:$0xff]
      %v286 = vld [vmem:[%s273 + $0x10] sm:$0xff]
      %v287 = vld [vmem:[%s273 + $0x18] sm:$0xff]
      %v288 = vld [vmem:[%s273 + $0x20] sm:$0xff]
      %v289 = vld [vmem:[%s273 + $0x28] sm:$0xff]
      %v290 = vld [vmem:[%s273 + $0x30] sm:$0xff]
      %v291 = vld [vmem:[%s273 + $0x38] sm:$0xff]
      %v292 = vld [vmem:[%s273 + $0x40] sm:$0xff]
      %v293 = vld [vmem:[%s273 + $0x48] sm:$0xff]
      %v294 = vld [vmem:[%s273 + $0x50] sm:$0xff]
      %v295 = vld [vmem:[%s273 + $0x58] sm:$0xff]
      %v296 = vld [vmem:[%s273 + $0x60] sm:$0xff]
      %v297 = vld [vmem:[%s273 + $0x68] sm:$0xff]
      %v298 = vld [vmem:[%s273 + $0x70] sm:$0xff]
      %v299 = vld [vmem:[%s273 + $0x78] sm:$0xff]
      %v300 = vld [vmem:[%s273 + $0x80] sm:$0xff]
      %v301 = vld [vmem:[%s273 + $0x88] sm:$0xff]
      %v302 = vld [vmem:[%s273 + $0x90] sm:$0xff]
      %v303 = vld [vmem:[%s273 + $0x98] sm:$0xff]
      %v304 = vld [vmem:[%s273 + $0xa0] sm:$0xff]
      %v305 = vld [vmem:[%s273 + $0xa8] sm:$0xff]
      %v306 = vld [vmem:[%s273 + $0xb0] sm:$0xff]
      %v307 = vld [vmem:[%s273 + $0xb8] sm:$0xff]
      %v308 = vld [vmem:[%s273 + $0xc0] sm:$0xff]
      %v309 = vld [vmem:[%s273 + $0xc8] sm:$0xff]
      %v310 = vld [vmem:[%s273 + $0xd0] sm:$0xff]
      %v311 = vld [vmem:[%s273 + $0xd8] sm:$0xff]
      %v312 = vld [vmem:[%s273 + $0xe0] sm:$0xff]
      %v313 = vld [vmem:[%s273 + $0xe8] sm:$0xff]
      %v314 = vld [vmem:[%s273 + $0xf0] sm:$0xff]
      %v315 = vld [vmem:[%s273 + $0xf8] sm:$0xff]
      %v316 = vld [vmem:[%s273 + $0x100] sm:$0xff]
      %v317 = vld [vmem:[%s273 + $0x108] sm:$0xff]
      %v318 = vld [vmem:[%s273 + $0x110] sm:$0xff]
      %v319 = vld [vmem:[%s273 + $0x118] sm:$0xff]
      %v320 = vpack.c.bf16 %v285, %v284
      %v321 = vpack.c.bf16 %v287, %v286
      %v322 = vpack.c.bf16 %v289, %v288
      %v323 = vpack.c.bf16 %v291, %v290
      %v324 = vpack.c.bf16 %v293, %v292
      %v325 = vpack.c.bf16 %v295, %v294
      %v326 = vpack.c.bf16 %v297, %v296
      %v327 = vpack.c.bf16 %v299, %v298
      %v328 = vpack.c.bf16 %v301, %v300
      %v329 = vpack.c.bf16 %v303, %v302
      %v330 = vpack.c.bf16 %v305, %v304
      %v331 = vpack.c.bf16 %v307, %v306
      %v332 = vpack.c.bf16 %v309, %v308
      %v333 = vpack.c.bf16 %v311, %v310
      %v334 = vpack.c.bf16 %v313, %v312
      %v335 = vpack.c.bf16 %v315, %v314
      %v336 = vpack.c.bf16 %v317, %v316
      %v337 = vpack.c.bf16 %v319, %v318
      %v338 = vld [vmem:[%s273 + $0x1] sm:$0xff]
      %v339 = vld [vmem:[%s273 + $0x9] sm:$0xff]
      %v340 = vld [vmem:[%s273 + $0x11] sm:$0xff]
      %v341 = vld [vmem:[%s273 + $0x19] sm:$0xff]
      %v342 = vld [vmem:[%s273 + $0x21] sm:$0xff]
      %v343 = vld [vmem:[%s273 + $0x29] sm:$0xff]
      %v344 = vld [vmem:[%s273 + $0x31] sm:$0xff]
      %v345 = vld [vmem:[%s273 + $0x39] sm:$0xff]
      %v346 = vld [vmem:[%s273 + $0x41] sm:$0xff]
      %v347 = vld [vmem:[%s273 + $0x49] sm:$0xff]
      %v348 = vld [vmem:[%s273 + $0x51] sm:$0xff]
      %v349 = vld [vmem:[%s273 + $0x59] sm:$0xff]
      %v350 = vld [vmem:[%s273 + $0x61] sm:$0xff]
      %v351 = vld [vmem:[%s273 + $0x69] sm:$0xff]
      %v352 = vld [vmem:[%s273 + $0x71] sm:$0xff]
      %v353 = vld [vmem:[%s273 + $0x79] sm:$0xff]
      %v354 = vld [vmem:[%s273 + $0x81] sm:$0xff]
      %v355 = vld [vmem:[%s273 + $0x89] sm:$0xff]
      %v356 = vld [vmem:[%s273 + $0x91] sm:$0xff]
      %v357 = vld [vmem:[%s273 + $0x99] sm:$0xff]
      %v358 = vld [vmem:[%s273 + $0xa1] sm:$0xff]
      %v359 = vld [vmem:[%s273 + $0xa9] sm:$0xff]
      %v360 = vld [vmem:[%s273 + $0xb1] sm:$0xff]
      %v361 = vld [vmem:[%s273 + $0xb9] sm:$0xff]
      %v362 = vld [vmem:[%s273 + $0xc1] sm:$0xff]
      %v363 = vld [vmem:[%s273 + $0xc9] sm:$0xff]
      %v364 = vld [vmem:[%s273 + $0xd1] sm:$0xff]
      %v365 = vld [vmem:[%s273 + $0xd9] sm:$0xff]
      %v366 = vld [vmem:[%s273 + $0xe1] sm:$0xff]
      %v367 = vld [vmem:[%s273 + $0xe9] sm:$0xff]
      %v368 = vld [vmem:[%s273 + $0xf1] sm:$0xff]
      %v369 = vld [vmem:[%s273 + $0xf9] sm:$0xff]
      %v370 = vld [vmem:[%s273 + $0x101] sm:$0xff]
      %v371 = vld [vmem:[%s273 + $0x109] sm:$0xff]
      %v372 = vld [vmem:[%s273 + $0x111] sm:$0xff]
      %v373 = vld [vmem:[%s273 + $0x119] sm:$0xff]
      %v374 = vpack.c.bf16 %v339, %v338
      %v375 = vpack.c.bf16 %v341, %v340
      %v376 = vpack.c.bf16 %v343, %v342
      %v377 = vpack.c.bf16 %v345, %v344
      %v378 = vpack.c.bf16 %v347, %v346
      %v379 = vpack.c.bf16 %v349, %v348
      %v380 = vpack.c.bf16 %v351, %v350
      %v381 = vpack.c.bf16 %v353, %v352
      %v382 = vpack.c.bf16 %v355, %v354
      %v383 = vpack.c.bf16 %v357, %v356
      %v384 = vpack.c.bf16 %v359, %v358
      %v385 = vpack.c.bf16 %v361, %v360
      %v386 = vpack.c.bf16 %v363, %v362
      %v387 = vpack.c.bf16 %v365, %v364
      %v388 = vpack.c.bf16 %v367, %v366
      %v389 = vpack.c.bf16 %v369, %v368
      %v390 = vpack.c.bf16 %v371, %v370
      %v391 = vpack.c.bf16 %v373, %v372
      %v392 = vld [vmem:[%s273 + $0x2] sm:$0xff]
      %v393 = vld [vmem:[%s273 + $0xa] sm:$0xff]
      %v394 = vld [vmem:[%s273 + $0x12] sm:$0xff]
      %v395 = vld [vmem:[%s273 + $0x1a] sm:$0xff]
      %v396 = vld [vmem:[%s273 + $0x22] sm:$0xff]
      %v397 = vld [vmem:[%s273 + $0x2a] sm:$0xff]
      %v398 = vld [vmem:[%s273 + $0x32] sm:$0xff]
      %v399 = vld [vmem:[%s273 + $0x3a] sm:$0xff]
      %v400 = vld [vmem:[%s273 + $0x42] sm:$0xff]
      %v401 = vld [vmem:[%s273 + $0x4a] sm:$0xff]
      %v402 = vld [vmem:[%s273 + $0x52] sm:$0xff]
      %v403 = vld [vmem:[%s273 + $0x5a] sm:$0xff]
      %v404 = vld [vmem:[%s273 + $0x62] sm:$0xff]
      %v405 = vld [vmem:[%s273 + $0x6a] sm:$0xff]
      %v406 = vld [vmem:[%s273 + $0x72] sm:$0xff]
      %v407 = vld [vmem:[%s273 + $0x7a] sm:$0xff]
      %v408 = vld [vmem:[%s273 + $0x82] sm:$0xff]
      %v409 = vld [vmem:[%s273 + $0x8a] sm:$0xff]
      %v410 = vld [vmem:[%s273 + $0x92] sm:$0xff]
      %v411 = vld [vmem:[%s273 + $0x9a] sm:$0xff]
      %v412 = vld [vmem:[%s273 + $0xa2] sm:$0xff]
      %v413 = vld [vmem:[%s273 + $0xaa] sm:$0xff]
      %v414 = vld [vmem:[%s273 + $0xb2] sm:$0xff]
      %v415 = vld [vmem:[%s273 + $0xba] sm:$0xff]
      %v416 = vld [vmem:[%s273 + $0xc2] sm:$0xff]
      %v417 = vld [vmem:[%s273 + $0xca] sm:$0xff]
      %v418 = vld [vmem:[%s273 + $0xd2] sm:$0xff]
      %v419 = vld [vmem:[%s273 + $0xda] sm:$0xff]
      %v420 = vld [vmem:[%s273 + $0xe2] sm:$0xff]
      %v421 = vld [vmem:[%s273 + $0xea] sm:$0xff]
      %v422 = vld [vmem:[%s273 + $0xf2] sm:$0xff]
      %v423 = vld [vmem:[%s273 + $0xfa] sm:$0xff]
      %v424 = vld [vmem:[%s273 + $0x102] sm:$0xff]
      %v425 = vld [vmem:[%s273 + $0x10a] sm:$0xff]
      %v426 = vld [vmem:[%s273 + $0x112] sm:$0xff]
      %v427 = vld [vmem:[%s273 + $0x11a] sm:$0xff]
      %v428 = vpack.c.bf16 %v393, %v392
      %v429 = vpack.c.bf16 %v395, %v394
      %v430 = vpack.c.bf16 %v397, %v396
      %v431 = vpack.c.bf16 %v399, %v398
      %v432 = vpack.c.bf16 %v401, %v400
      %v433 = vpack.c.bf16 %v403, %v402
      %v434 = vpack.c.bf16 %v405, %v404
      %v435 = vpack.c.bf16 %v407, %v406
      %v436 = vpack.c.bf16 %v409, %v408
      %v437 = vpack.c.bf16 %v411, %v410
      %v438 = vpack.c.bf16 %v413, %v412
      %v439 = vpack.c.bf16 %v415, %v414
      %v440 = vpack.c.bf16 %v417, %v416
      %v441 = vpack.c.bf16 %v419, %v418
      %v442 = vpack.c.bf16 %v421, %v420
      %v443 = vpack.c.bf16 %v423, %v422
      %v444 = vpack.c.bf16 %v425, %v424
      %v445 = vpack.c.bf16 %v427, %v426
      %v446 = vld [vmem:[%s1] sm:$0xf]
      %v447 = vld [vmem:[%s1 + $0x4] sm:$0xf]
      %v448 = vld [vmem:[%s1 + $0x8] sm:$0xf]
      %v449 = vld [vmem:[%s1 + $0xc] sm:$0xf]
      %v450 = vld [vmem:[%s1 + $0x10] sm:$0xf]
      %v451 = vld [vmem:[%s1 + $0x14] sm:$0xf]
      %v452 = vld [vmem:[%s1 + $0x18] sm:$0xf]
      %v453 = vld [vmem:[%s1 + $0x1c] sm:$0xf]
      %v454 = vld [vmem:[%s1 + $0x20] sm:$0xf]
      %v455 = vld [vmem:[%s1 + $0x24] sm:$0xf]
      %v456 = vld [vmem:[%s1 + $0x28] sm:$0xf]
      %v457 = vld [vmem:[%s1 + $0x2c] sm:$0xf]
      %v458 = vld [vmem:[%s1 + $0x30] sm:$0xf]
      %v459 = vld [vmem:[%s1 + $0x34] sm:$0xf]
      %v460 = vld [vmem:[%s1 + $0x38] sm:$0xf]
      %v461 = vld [vmem:[%s1 + $0x3c] sm:$0xf]
      %v462 = vld [vmem:[%s1 + $0x40] sm:$0xf]
      %v463 = vld [vmem:[%s1 + $0x44] sm:$0xf]
      %v464 = vld [vmem:[%s1 + $0x48] sm:$0xf]
      %v465 = vld [vmem:[%s1 + $0x4c] sm:$0xf]
      %v466 = vld [vmem:[%s1 + $0x50] sm:$0xf]
      %v467 = vld [vmem:[%s1 + $0x54] sm:$0xf]
      %v468 = vld [vmem:[%s1 + $0x58] sm:$0xf]
      %v469 = vld [vmem:[%s1 + $0x5c] sm:$0xf]
      %v470 = vld [vmem:[%s1 + $0x60] sm:$0xf]
      %v471 = vld [vmem:[%s1 + $0x64] sm:$0xf]
      %v472 = vld [vmem:[%s1 + $0x68] sm:$0xf]
      %v473 = vld [vmem:[%s1 + $0x6c] sm:$0xf]
      %v474 = vld [vmem:[%s1 + $0x70] sm:$0xf]
      %v475 = vld [vmem:[%s1 + $0x74] sm:$0xf]
      %v476 = vld [vmem:[%s1 + $0x78] sm:$0xf]
      %v477 = vld [vmem:[%s1 + $0x7c] sm:$0xf]
      %v478 = vld [vmem:[%s1 + $0x80] sm:$0xf]
      %v479 = vld [vmem:[%s1 + $0x84] sm:$0xf]
      %v480 = vld [vmem:[%s1 + $0x88] sm:$0xf]
      %v481 = vld [vmem:[%s1 + $0x8c] sm:$0xf]
      %v482 = vld [vmem:[%s1 + $0x90] sm:$0xf]
      %v483 = vld [vmem:[%s1 + $0x94] sm:$0xf]
      %v484 = vld [vmem:[%s1 + $0x98] sm:$0xf]
      %v485 = vld [vmem:[%s1 + $0x9c] sm:$0xf]
      %v486 = vld [vmem:[%s1 + $0xa0] sm:$0xf]
      %v487 = vld [vmem:[%s1 + $0xa4] sm:$0xf]
      %v488 = vld [vmem:[%s1 + $0xa8] sm:$0xf]
      %v489 = vld [vmem:[%s1 + $0xac] sm:$0xf]
      %v490 = vld [vmem:[%s1 + $0xb0] sm:$0xf]
      %v491 = vld [vmem:[%s1 + $0xb4] sm:$0xf]
      %v492 = vld [vmem:[%s1 + $0xb8] sm:$0xf]
      %v493 = vld [vmem:[%s1 + $0xbc] sm:$0xf]
      %v494 = vld [vmem:[%s273 + $0x122] sm:$0xff]
      %v495 = vld [vmem:[%s273 + $0x12a] sm:$0xff]
      %v496 = vpack.c.bf16 %v495, %v494
      %v497 = vld [vmem:[%s273 + $0x13] sm:$0xff]
      %v498 = vld [vmem:[%s273 + $0x1b] sm:$0xff]
      %v499 = vld [vmem:[%s273 + $0x23] sm:$0xff]
      %v500 = vld [vmem:[%s273 + $0x2b] sm:$0xff]
      %v501 = vld [vmem:[%s273 + $0x33] sm:$0xff]
      %v502 = vld [vmem:[%s273 + $0x3b] sm:$0xff]
      %v503 = vld [vmem:[%s273 + $0x43] sm:$0xff]
      %v504 = vld [vmem:[%s273 + $0x4b] sm:$0xff]
      %v505 = vld [vmem:[%s273 + $0x53] sm:$0xff]
      %v506 = vld [vmem:[%s273 + $0x5b] sm:$0xff]
      %v507 = vld [vmem:[%s273 + $0x63] sm:$0xff]
      %v508 = vld [vmem:[%s273 + $0x6b] sm:$0xff]
      %v509 = vld [vmem:[%s273 + $0x73] sm:$0xff]
      %v510 = vld [vmem:[%s273 + $0x7b] sm:$0xff]
      %v511 = vld [vmem:[%s273 + $0x83] sm:$0xff]
      %v512 = vld [vmem:[%s273 + $0x8b] sm:$0xff]
      %v513 = vld [vmem:[%s273 + $0x93] sm:$0xff]
      %v514 = vld [vmem:[%s273 + $0x9b] sm:$0xff]
      %v515 = vld [vmem:[%s273 + $0xa3] sm:$0xff]
      %v516 = vld [vmem:[%s273 + $0xab] sm:$0xff]
      %v517 = vld [vmem:[%s273 + $0xb3] sm:$0xff]
      %v518 = vld [vmem:[%s273 + $0xbb] sm:$0xff]
      %v519 = vld [vmem:[%s273 + $0xc3] sm:$0xff]
      %v520 = vld [vmem:[%s273 + $0xcb] sm:$0xff]
      %v521 = vld [vmem:[%s273 + $0xd3] sm:$0xff]
      %v522 = vld [vmem:[%s273 + $0xdb] sm:$0xff]
      %v523 = vld [vmem:[%s273 + $0xe3] sm:$0xff]
      %v524 = vld [vmem:[%s273 + $0xeb] sm:$0xff]
      %v525 = vld [vmem:[%s273 + $0xf3] sm:$0xff]
      %v526 = vld [vmem:[%s273 + $0xfb] sm:$0xff]
      %v527 = vld [vmem:[%s273 + $0x103] sm:$0xff]
      %v528 = vld [vmem:[%s273 + $0x10b] sm:$0xff]
      %v529 = vld [vmem:[%s273 + $0x113] sm:$0xff]
      %v530 = vld [vmem:[%s273 + $0x11b] sm:$0xff]
      %v531 = vld [vmem:[%s273 + $0x123] sm:$0xff]
      %v532 = vld [vmem:[%s273 + $0x12b] sm:$0xff]
      %v533 = vpack.c.bf16 %v498, %v497
      %v534 = vpack.c.bf16 %v500, %v499
      %v535 = vpack.c.bf16 %v502, %v501
      %v536 = vpack.c.bf16 %v504, %v503
      %v537 = vpack.c.bf16 %v506, %v505
      %v538 = vpack.c.bf16 %v508, %v507
      %v539 = vpack.c.bf16 %v510, %v509
      %v540 = vpack.c.bf16 %v512, %v511
      %v541 = vpack.c.bf16 %v514, %v513
      %v542 = vpack.c.bf16 %v516, %v515
      %v543 = vpack.c.bf16 %v518, %v517
      %v544 = vpack.c.bf16 %v520, %v519
      %v545 = vpack.c.bf16 %v522, %v521
      %v546 = vpack.c.bf16 %v524, %v523
      %v547 = vpack.c.bf16 %v526, %v525
      %v548 = vpack.c.bf16 %v528, %v527
      %v549 = vpack.c.bf16 %v530, %v529
      %v550 = vpack.c.bf16 %v532, %v531
      %v551 = vld [vmem:[%s273 + $0x14] sm:$0xff]
      %v552 = vld [vmem:[%s273 + $0x1c] sm:$0xff]
      %v553 = vld [vmem:[%s273 + $0x24] sm:$0xff]
      %v554 = vld [vmem:[%s273 + $0x2c] sm:$0xff]
      %v555 = vld [vmem:[%s273 + $0x34] sm:$0xff]
      %v556 = vld [vmem:[%s273 + $0x3c] sm:$0xff]
      %v557 = vld [vmem:[%s273 + $0x44] sm:$0xff]
      %v558 = vld [vmem:[%s273 + $0x4c] sm:$0xff]
      %v559 = vld [vmem:[%s273 + $0x54] sm:$0xff]
      %v560 = vld [vmem:[%s273 + $0x5c] sm:$0xff]
      %v561 = vld [vmem:[%s273 + $0x64] sm:$0xff]
      %v562 = vld [vmem:[%s273 + $0x6c] sm:$0xff]
      %v563 = vld [vmem:[%s273 + $0x74] sm:$0xff]
      %v564 = vld [vmem:[%s273 + $0x7c] sm:$0xff]
      %v565 = vld [vmem:[%s273 + $0x84] sm:$0xff]
      %v566 = vld [vmem:[%s273 + $0x8c] sm:$0xff]
      %v567 = vld [vmem:[%s273 + $0x94] sm:$0xff]
      %v568 = vld [vmem:[%s273 + $0x9c] sm:$0xff]
      %v569 = vld [vmem:[%s273 + $0xa4] sm:$0xff]
      %v570 = vld [vmem:[%s273 + $0xac] sm:$0xff]
      %v571 = vld [vmem:[%s273 + $0xb4] sm:$0xff]
      %v572 = vld [vmem:[%s273 + $0xbc] sm:$0xff]
      %v573 = vld [vmem:[%s273 + $0xc4] sm:$0xff]
      %v574 = vld [vmem:[%s273 + $0xcc] sm:$0xff]
      %v575 = vld [vmem:[%s273 + $0xd4] sm:$0xff]
      %v576 = vld [vmem:[%s273 + $0xdc] sm:$0xff]
      %v577 = vld [vmem:[%s273 + $0xe4] sm:$0xff]
      %v578 = vld [vmem:[%s273 + $0xec] sm:$0xff]
      %v579 = vld [vmem:[%s273 + $0xf4] sm:$0xff]
      %v580 = vld [vmem:[%s273 + $0xfc] sm:$0xff]
      %v581 = vld [vmem:[%s273 + $0x104] sm:$0xff]
      %v582 = vld [vmem:[%s273 + $0x10c] sm:$0xff]
      %v583 = vld [vmem:[%s273 + $0x114] sm:$0xff]
      %v584 = vld [vmem:[%s273 + $0x11c] sm:$0xff]
      %v585 = vld [vmem:[%s273 + $0x124] sm:$0xff]
      %v586 = vld [vmem:[%s273 + $0x12c] sm:$0xff]
      %v587 = vpack.c.bf16 %v552, %v551
      %v588 = vpack.c.bf16 %v554, %v553
      %v589 = vpack.c.bf16 %v556, %v555
      %v590 = vpack.c.bf16 %v558, %v557
      %v591 = vpack.c.bf16 %v560, %v559
      %v592 = vpack.c.bf16 %v562, %v561
      %v593 = vpack.c.bf16 %v564, %v563
      %v594 = vpack.c.bf16 %v566, %v565
      %v595 = vpack.c.bf16 %v568, %v567
      %v596 = vpack.c.bf16 %v570, %v569
      %v597 = vpack.c.bf16 %v572, %v571
      %v598 = vpack.c.bf16 %v574, %v573
      %v599 = vpack.c.bf16 %v576, %v575
      %v600 = vpack.c.bf16 %v578, %v577
      %v601 = vpack.c.bf16 %v580, %v579
      %v602 = vpack.c.bf16 %v582, %v581
      %v603 = vpack.c.bf16 %v584, %v583
      %v604 = vpack.c.bf16 %v586, %v585
      %s605 = scalar_lea.vmem %s1, 192
      %v606 = vld [vmem:[%s605] sm:$0xf]
      %v607 = vld [vmem:[%s605 + $0x4] sm:$0xf]
      %v608 = vld [vmem:[%s605 + $0x8] sm:$0xf]
      %v609 = vld [vmem:[%s605 + $0xc] sm:$0xf]
      %v610 = vld [vmem:[%s605 + $0x10] sm:$0xf]
      %v611 = vld [vmem:[%s605 + $0x14] sm:$0xf]
      %v612 = vld [vmem:[%s605 + $0x18] sm:$0xf]
      %v613 = vld [vmem:[%s605 + $0x1c] sm:$0xf]
      %v614 = vld [vmem:[%s605 + $0x20] sm:$0xf]
      %v615 = vld [vmem:[%s605 + $0x24] sm:$0xf]
      %v616 = vld [vmem:[%s605 + $0x28] sm:$0xf]
      %v617 = vld [vmem:[%s605 + $0x2c] sm:$0xf]
      %v618 = vld [vmem:[%s605 + $0x30] sm:$0xf]
      %v619 = vld [vmem:[%s605 + $0x34] sm:$0xf]
      %v620 = vld [vmem:[%s605 + $0x38] sm:$0xf]
      %v621 = vld [vmem:[%s605 + $0x3c] sm:$0xf]
      %v622 = vld [vmem:[%s605 + $0x40] sm:$0xf]
      %v623 = vld [vmem:[%s605 + $0x44] sm:$0xf]
      %v624 = vld [vmem:[%s605 + $0x48] sm:$0xf]
      %v625 = vld [vmem:[%s605 + $0x4c] sm:$0xf]
      %v626 = vld [vmem:[%s605 + $0x50] sm:$0xf]
      %v627 = vld [vmem:[%s605 + $0x54] sm:$0xf]
      %v628 = vld [vmem:[%s605 + $0x58] sm:$0xf]
      %v629 = vld [vmem:[%s605 + $0x5c] sm:$0xf]
      %v630 = vld [vmem:[%s605 + $0x60] sm:$0xf]
      %v631 = vld [vmem:[%s605 + $0x64] sm:$0xf]
      %v632 = vld [vmem:[%s605 + $0x68] sm:$0xf]
      %v633 = vld [vmem:[%s605 + $0x6c] sm:$0xf]
      %v634 = vld [vmem:[%s605 + $0x70] sm:$0xf]
      %v635 = vld [vmem:[%s605 + $0x74] sm:$0xf]
      %v636 = vld [vmem:[%s605 + $0x78] sm:$0xf]
      %v637 = vld [vmem:[%s605 + $0x7c] sm:$0xf]
      %v638 = vld [vmem:[%s605 + $0x80] sm:$0xf]
      %v639 = vld [vmem:[%s605 + $0x84] sm:$0xf]
      %v640 = vld [vmem:[%s605 + $0x88] sm:$0xf]
      %v641 = vld [vmem:[%s605 + $0x8c] sm:$0xf]
      %v642 = vld [vmem:[%s605 + $0x90] sm:$0xf]
      %v643 = vld [vmem:[%s605 + $0x94] sm:$0xf]
      %v644 = vld [vmem:[%s605 + $0x98] sm:$0xf]
      %v645 = vld [vmem:[%s605 + $0x9c] sm:$0xf]
      %v646 = vld [vmem:[%s605 + $0xa0] sm:$0xf]
      %v647 = vld [vmem:[%s605 + $0xa4] sm:$0xf]
      %v648 = vld [vmem:[%s605 + $0xa8] sm:$0xf]
      %v649 = vld [vmem:[%s605 + $0xac] sm:$0xf]
      %v650 = vld [vmem:[%s605 + $0xb0] sm:$0xf]
      %v651 = vld [vmem:[%s605 + $0xb4] sm:$0xf]
      %v652 = vld [vmem:[%s605 + $0xb8] sm:$0xf]
      %v653 = vld [vmem:[%s605 + $0xbc] sm:$0xf]
      %v702 = vunpack.c.l.b16 %v606
      %v703 = vunpack.c.l.b16 %v607
      %v704 = vunpack.c.l.b16 %v608
      %v705 = vunpack.c.l.b16 %v609
      %v706 = vunpack.c.l.b16 %v610
      %v707 = vunpack.c.l.b16 %v611
      %v708 = vunpack.c.l.b16 %v612
      %v709 = vunpack.c.l.b16 %v613
      %v710 = vunpack.c.l.b16 %v614
      %v711 = vunpack.c.l.b16 %v615
      %v712 = vunpack.c.l.b16 %v616
      %v713 = vunpack.c.l.b16 %v617
      %v714 = vunpack.c.l.b16 %v618
      %v715 = vunpack.c.l.b16 %v619
      %v716 = vunpack.c.l.b16 %v620
      %v717 = vunpack.c.l.b16 %v621
      %v718 = vunpack.c.l.b16 %v622
      %v719 = vunpack.c.l.b16 %v623
      %v720 = vunpack.c.l.b16 %v624
      %v721 = vunpack.c.l.b16 %v625
      %v722 = vunpack.c.l.b16 %v626
      %v723 = vunpack.c.l.b16 %v627
      %v724 = vunpack.c.l.b16 %v628
      %v725 = vunpack.c.l.b16 %v629
      %v726 = vunpack.c.l.b16 %v630
      %v727 = vunpack.c.l.b16 %v631
      %v728 = vunpack.c.l.b16 %v632
      %v729 = vunpack.c.l.b16 %v633
      %v730 = vunpack.c.l.b16 %v634
      %v731 = vunpack.c.l.b16 %v635
      %v732 = vunpack.c.l.b16 %v636
      %v733 = vunpack.c.l.b16 %v637
      %v734 = vunpack.c.l.b16 %v638
      %v735 = vunpack.c.l.b16 %v639
      %v736 = vunpack.c.l.b16 %v640
      %v737 = vunpack.c.l.b16 %v641
      %v738 = vunpack.c.l.b16 %v642
      %v739 = vunpack.c.l.b16 %v643
      %v740 = vunpack.c.l.b16 %v644
      %v741 = vunpack.c.l.b16 %v645
      %v742 = vunpack.c.l.b16 %v646
      %v743 = vunpack.c.l.b16 %v647
      %v744 = vunpack.c.l.b16 %v648
      %v745 = vunpack.c.l.b16 %v649
      %v746 = vunpack.c.l.b16 %v650
      %v747 = vunpack.c.l.b16 %v651
      %v748 = vunpack.c.l.b16 %v652
      %v749 = vunpack.c.l.b16 %v653
      %v750 = vpack.c.b16 %v703, %v702
      %v751 = vpack.c.b16 %v705, %v704
      %v752 = vpack.c.b16 %v707, %v706
      %v753 = vpack.c.b16 %v709, %v708
      %v754 = vpack.c.b16 %v711, %v710
      %v755 = vpack.c.b16 %v713, %v712
      %v756 = vpack.c.b16 %v715, %v714
      %v757 = vpack.c.b16 %v717, %v716
      %v758 = vpack.c.b16 %v719, %v718
      %v759 = vpack.c.b16 %v721, %v720
      %v760 = vpack.c.b16 %v723, %v722
      %v761 = vpack.c.b16 %v725, %v724
      %v762 = vpack.c.b16 %v727, %v726
      %v763 = vpack.c.b16 %v729, %v728
      %v764 = vpack.c.b16 %v731, %v730
      %v765 = vpack.c.b16 %v733, %v732
      %v766 = vpack.c.b16 %v735, %v734
      %v767 = vpack.c.b16 %v737, %v736
      %v768 = vpack.c.b16 %v739, %v738
      %v769 = vpack.c.b16 %v741, %v740
      %v770 = vpack.c.b16 %v743, %v742
      %v771 = vpack.c.b16 %v745, %v744
      %v772 = vpack.c.b16 %v747, %v746
      %v773 = vpack.c.b16 %v749, %v748
      %798 = vmatprep.subr.bf16.mxu0 0
      %799 = vmatpush1.bf16.msra.mxu0 %v750
      %800 = vmatprep.subr.bf16.mxu0 0
      %801 = vmatpush1.bf16.msra.mxu0 %v751
      %802 = vmatprep.subr.bf16.mxu0 0
      %803 = vmatpush1.bf16.msra.mxu0 %v752
      %804 = vmatprep.subr.bf16.mxu0 0
      %805 = vmatpush1.bf16.msra.mxu0 %v753
      %806 = vmatprep.subr.bf16.mxu0 0
      %807 = vmatpush1.bf16.msra.mxu0 %v754
      %808 = vmatprep.subr.bf16.mxu0 0
      %809 = vmatpush1.bf16.msra.mxu0 %v755
      %810 = vmatprep.subr.bf16.mxu0 0
      %811 = vmatpush1.bf16.msra.mxu0 %v756
      %812 = vmatprep.subr.bf16.mxu0 0
      %813 = vmatpush1.bf16.msra.mxu0 %v757
      %814 = vmatprep.subr.bf16.mxu0 0
      %815 = vmatpush1.bf16.msra.mxu0 %v758
      %816 = vmatprep.subr.bf16.mxu0 0
      %817 = vmatpush1.bf16.msra.mxu0 %v759
      %818 = vmatprep.subr.bf16.mxu0 0
      %819 = vmatpush1.bf16.msra.mxu0 %v760
      %820 = vmatprep.subr.bf16.mxu0 0
      %821 = vmatpush1.bf16.msra.mxu0 %v761
      %822 = vmatprep.subr.bf16.mxu0 0
      %823 = vmatpush1.bf16.msra.mxu0 %v762
      %824 = vmatprep.subr.bf16.mxu0 0
      %825 = vmatpush1.bf16.msra.mxu0 %v763
      %826 = vmatprep.subr.bf16.mxu0 0
      %827 = vmatpush1.bf16.msra.mxu0 %v764
      %828 = vmatprep.subr.bf16.mxu0 0
      %829 = vmatpush1.bf16.msra.mxu0 %v765
      %830 = vmatprep.mubr.bf16.mxu0 %v533
      %831 = vmatmul.mubr.bf16.gmra.mrb[0].mxu0 %v429
      %v832 = vpop.f32.mrb[0].mxu0
      %v833 = vadd.f32 0.0, %v832
      %v834 = vpop.f32.mrb[0].mxu0
      %v835 = vpop.f32.mrb[0].mxu0
      %v836 = vadd.f32 0.0, %v835
      %v837 = vpop.f32.mrb[0].mxu0
      %838 = vmatprep.mubr.bf16.mxu0 %v534
      %839 = vmatmul.mubr.bf16.gmra.mrb[0].mxu0 %v430
      %v840 = vpop.f32.mrb[0].mxu0
      %v841 = vadd.f32 0.0, %v840
      %v842 = vpop.f32.mrb[0].mxu0
      %v843 = vpop.f32.mrb[0].mxu0
      %v844 = vadd.f32 0.0, %v843
      %v845 = vpop.f32.mrb[0].mxu0
      %846 = vmatprep.mubr.bf16.mxu0 %v535
      %847 = vmatmul.mubr.bf16.gmra.mrb[0].mxu0 %v431
      %v848 = vpop.f32.mrb[0].mxu0
      %v849 = vadd.f32 0.0, %v848
      %v850 = vpop.f32.mrb[0].mxu0
      %v851 = vpop.f32.mrb[0].mxu0
      %v852 = vadd.f32 0.0, %v851
      %v853 = vpop.f32.mrb[0].mxu0
      %854 = vmatprep.mubr.bf16.mxu0 %v536
      %855 = vmatmul.mubr.bf16.gmra.mrb[0].mxu0 %v432
      %v856 = vpop.f32.mrb[0].mxu0
      %v857 = vadd.f32 0.0, %v856
      %v858 = vpop.f32.mrb[0].mxu0
      %v859 = vpop.f32.mrb[0].mxu0
      %v860 = vadd.f32 0.0, %v859
      %v861 = vpop.f32.mrb[0].mxu0
      %862 = vmatprep.mubr.bf16.mxu0 %v537
      %863 = vmatmul.mubr.bf16.gmra.mrb[0].mxu0 %v433
      %v864 = vpop.f32.mrb[0].mxu0
      %v865 = vadd.f32 0.0, %v864
      %v866 = vpop.f32.mrb[0].mxu0
      %v867 = vpop.f32.mrb[0].mxu0
      %v868 = vadd.f32 0.0, %v867
      %v869 = vpop.f32.mrb[0].mxu0
      %870 = vmatprep.mubr.bf16.mxu0 %v538
      %871 = vmatmul.mubr.bf16.gmra.mrb[0].mxu0 %v434
      %v872 = vpop.f32.mrb[0].mxu0
      %v873 = vadd.f32 0.0, %v872
      %v874 = vpop.f32.mrb[0].mxu0
      %v875 = vpop.f32.mrb[0].mxu0
      %v876 = vadd.f32 0.0, %v875
      %v877 = vpop.f32.mrb[0].mxu0
      %878 = vmatprep.mubr.bf16.mxu0 %v539
      %879 = vmatmul.mubr.bf16.gmra.mrb[0].mxu0 %v435
      %v880 = vpop.f32.mrb[0].mxu0
      %v881 = vadd.f32 0.0, %v880
      %v882 = vpop.f32.mrb[0].mxu0
      %v883 = vpop.f32.mrb[0].mxu0
      %v884 = vadd.f32 0.0, %v883
      %v885 = vpop.f32.mrb[0].mxu0
      %886 = vmatprep.mubr.bf16.mxu0 %v540
      %887 = vmatmul.mubr.bf16.gmra.mrb[0].mxu0 %v436
      %v888 = vpop.f32.mrb[0].mxu0
      %v889 = vadd.f32 0.0, %v888
      %v890 = vpop.f32.mrb[0].mxu0
      %v891 = vpop.f32.mrb[0].mxu0
      %v892 = vadd.f32 0.0, %v891
      %v893 = vpop.f32.mrb[0].mxu0
      %894 = vmatprep.mubr.bf16.mxu0 %v541
      %895 = vmatmul.mubr.bf16.gmra.mrb[0].mxu0 %v437
      %v896 = vpop.f32.mrb[0].mxu0
      %v897 = vadd.f32 0.0, %v896
      %v898 = vpop.f32.mrb[0].mxu0
      %v899 = vpop.f32.mrb[0].mxu0
      %v900 = vadd.f32 0.0, %v899
      %v901 = vpop.f32.mrb[0].mxu0
      %902 = vmatprep.mubr.bf16.mxu0 %v542
      %903 = vmatmul.mubr.bf16.gmra.mrb[0].mxu0 %v438
      %v904 = vpop.f32.mrb[0].mxu0
      %v905 = vadd.f32 0.0, %v904
      %v906 = vpop.f32.mrb[0].mxu0
      %v907 = vpop.f32.mrb[0].mxu0
      %v908 = vadd.f32 0.0, %v907
      %v909 = vpop.f32.mrb[0].mxu0
      %910 = vmatprep.mubr.bf16.mxu0 %v543
      %911 = vmatmul.mubr.bf16.gmra.mrb[0].mxu0 %v439
      %v912 = vpop.f32.mrb[0].mxu0
      %v913 = vadd.f32 0.0, %v912
      %v914 = vpop.f32.mrb[0].mxu0
      %v915 = vpop.f32.mrb[0].mxu0
      %v916 = vadd.f32 0.0, %v915
      %v917 = vpop.f32.mrb[0].mxu0
      %918 = vmatprep.mubr.bf16.mxu0 %v544
      %919 = vmatmul.mubr.bf16.gmra.mrb[0].mxu0 %v440
      %v920 = vpop.f32.mrb[0].mxu0
      %v921 = vadd.f32 0.0, %v920
      %v922 = vpop.f32.mrb[0].mxu0
      %v923 = vpop.f32.mrb[0].mxu0
      %v924 = vadd.f32 0.0, %v923
      %v925 = vpop.f32.mrb[0].mxu0
      %926 = vmatprep.mubr.bf16.mxu0 %v545
      %927 = vmatmul.mubr.bf16.gmra.mrb[0].mxu0 %v441
      %v928 = vpop.f32.mrb[0].mxu0
      %v929 = vadd.f32 0.0, %v928
      %v930 = vpop.f32.mrb[0].mxu0
      %v931 = vpop.f32.mrb[0].mxu0
      %v932 = vadd.f32 0.0, %v931
      %v933 = vpop.f32.mrb[0].mxu0
      %934 = vmatprep.mubr.bf16.mxu0 %v546
      %935 = vmatmul.mubr.bf16.gmra.mrb[0].mxu0 %v442
      %v936 = vpop.f32.mrb[0].mxu0
      %v937 = vadd.f32 0.0, %v936
      %v938 = vpop.f32.mrb[0].mxu0
      %v939 = vpop.f32.mrb[0].mxu0
      %v940 = vadd.f32 0.0, %v939
      %v941 = vpop.f32.mrb[0].mxu0
      %942 = vmatprep.mubr.bf16.mxu0 %v547
      %943 = vmatmul.mubr.bf16.gmra.mrb[0].mxu0 %v443
      %v944 = vpop.f32.mrb[0].mxu0
      %v945 = vadd.f32 0.0, %v944
      %v946 = vpop.f32.mrb[0].mxu0
      %v947 = vpop.f32.mrb[0].mxu0
      %v948 = vadd.f32 0.0, %v947
      %v949 = vpop.f32.mrb[0].mxu0
      %950 = vmatprep.mubr.bf16.mxu0 %v548
      %951 = vmatmul.mubr.bf16.gmra.mrb[0].mxu0 %v444
      %v952 = vpop.f32.mrb[0].mxu0
      %v953 = vadd.f32 0.0, %v952
      %v954 = vpop.f32.mrb[0].mxu0
      %v955 = vpop.f32.mrb[0].mxu0
      %v956 = vadd.f32 0.0, %v955
      %v957 = vpop.f32.mrb[0].mxu0
      %958 = vmatprep.mubr.bf16.mxu0 %v549
      %959 = vmatmul.mubr.bf16.gmra.mrb[0].mxu0 %v445
      %v960 = vpop.f32.mrb[0].mxu0
      %v961 = vadd.f32 0.0, %v960
      %v962 = vpop.f32.mrb[0].mxu0
      %v963 = vpop.f32.mrb[0].mxu0
      %v964 = vadd.f32 0.0, %v963
      %v965 = vpop.f32.mrb[0].mxu0
      %966 = vmatprep.mubr.bf16.mxu0 %v550
      %967 = vmatmul.mubr.bf16.gmra.mrb[0].mxu0 %v496
      %v968 = vpop.f32.mrb[0].mxu0
      %v969 = vadd.f32 0.0, %v968
      %v970 = vpop.f32.mrb[0].mxu0
      %v971 = vpop.f32.mrb[0].mxu0
      %v972 = vadd.f32 0.0, %v971
      %v973 = vpop.f32.mrb[0].mxu0
      %974 = vdwg.mxu0
      %975 = vmatprep.subr.bf16.mxu0 0
      %976 = vmatpush1.bf16.msra.mxu0 %v766
      %977 = vmatprep.subr.bf16.mxu0 0
      %978 = vmatpush1.bf16.msra.mxu0 %v767
      %979 = vmatprep.subr.bf16.mxu0 0
      %980 = vmatpush1.bf16.msra.mxu0 %v768
      %981 = vmatprep.subr.bf16.mxu0 0
      %982 = vmatpush1.bf16.msra.mxu0 %v769
      %983 = vmatprep.subr.bf16.mxu0 0
      %984 = vmatpush1.bf16.msra.mxu0 %v770
      %985 = vmatprep.subr.bf16.mxu0 0
      %986 = vmatpush1.bf16.msra.mxu0 %v771
      %987 = vmatprep.subr.bf16.mxu0 0
      %988 = vmatpush1.bf16.msra.mxu0 %v772
      %989 = vmatprep.subr.bf16.mxu0 0
      %990 = vmatpush1.bf16.msra.mxu0 %v773
      %991 = vmatprep.subr.bf16.mxu0 0
      %992 = vmatpush1.bf16.msra.mxu0 0
      %993 = vmatprep.subr.bf16.mxu0 0
      %994 = vmatpush1.bf16.msra.mxu0 0
      %995 = vmatprep.subr.bf16.mxu0 0
      %996 = vmatpush1.bf16.msra.mxu0 0
      %997 = vmatprep.subr.bf16.mxu0 0
      %998 = vmatpush1.bf16.msra.mxu0 0
      %999 = vmatprep.subr.bf16.mxu0 0
      %1000 = vmatpush1.bf16.msra.mxu0 0
      %1001 = vmatprep.subr.bf16.mxu0 0
      %1002 = vmatpush1.bf16.msra.mxu0 0
      %1003 = vmatprep.subr.bf16.mxu0 0
      %1004 = vmatpush1.bf16.msra.mxu0 0
      %1005 = vmatprep.subr.bf16.mxu0 0
      %1006 = vmatpush1.bf16.msra.mxu0 0
      %1007 = vmatprep.mubr.bf16.mxu0 0
      %1008 = vmatmul.mubr.bf16.gmra.mrb[0].mxu0 %v587
      %v1009 = vpop.f32.mrb[0].mxu0
      %v1010 = vadd.f32 %v833, %v1009
      %v1011 = vpop.f32.mrb[0].mxu0
      %v1012 = vpop.f32.mrb[0].mxu0
      %v1013 = vadd.f32 %v836, %v1012
      %v1014 = vpop.f32.mrb[0].mxu0
      %1015 = vmatprep.mubr.bf16.mxu0 0
      %1016 = vmatmul.mubr.bf16.gmra.mrb[0].mxu0 %v588
      %v1017 = vpop.f32.mrb[0].mxu0
      %v1018 = vadd.f32 %v841, %v1017
      %v1019 = vpop.f32.mrb[0].mxu0
      %v1020 = vpop.f32.mrb[0].mxu0
      %v1021 = vadd.f32 %v844, %v1020
      %v1022 = vpop.f32.mrb[0].mxu0
      %1023 = vmatprep.mubr.bf16.mxu0 0
      %1024 = vmatmul.mubr.bf16.gmra.mrb[0].mxu0 %v589
      %v1025 = vpop.f32.mrb[0].mxu0
      %v1026 = vadd.f32 %v849, %v1025
      %v1027 = vpop.f32.mrb[0].mxu0
      %v1028 = vpop.f32.mrb[0].mxu0
      %v1029 = vadd.f32 %v852, %v1028
      %v1030 = vpop.f32.mrb[0].mxu0
      %1031 = vmatprep.mubr.bf16.mxu0 0
      %1032 = vmatmul.mubr.bf16.gmra.mrb[0].mxu0 %v590
      %v1033 = vpop.f32.mrb[0].mxu0
      %v1034 = vadd.f32 %v857, %v1033
      %v1035 = vpop.f32.mrb[0].mxu0
      %v1036 = vpop.f32.mrb[0].mxu0
      %v1037 = vadd.f32 %v860, %v1036
      %v1038 = vpop.f32.mrb[0].mxu0
      %1039 = vmatprep.mubr.bf16.mxu0 0
      %1040 = vmatmul.mubr.bf16.gmra.mrb[0].mxu0 %v591
      %v1041 = vpop.f32.mrb[0].mxu0
      %v1042 = vadd.f32 %v865, %v1041
      %v1043 = vpop.f32.mrb[0].mxu0
      %v1044 = vpop.f32.mrb[0].mxu0
      %v1045 = vadd.f32 %v868, %v1044
      %v1046 = vpop.f32.mrb[0].mxu0
      %1047 = vmatprep.mubr.bf16.mxu0 0
      %1048 = vmatmul.mubr.bf16.gmra.mrb[0].mxu0 %v592
      %v1049 = vpop.f32.mrb[0].mxu0
      %v1050 = vadd.f32 %v873, %v1049
      %v1051 = vpop.f32.mrb[0].mxu0
      %v1052 = vpop.f32.mrb[0].mxu0
      %v1053 = vadd.f32 %v876, %v1052
      %v1054 = vpop.f32.mrb[0].mxu0
      %1055 = vmatprep.mubr.bf16.mxu0 0
      %1056 = vmatmul.mubr.bf16.gmra.mrb[0].mxu0 %v593
      %v1057 = vpop.f32.mrb[0].mxu0
      %v1058 = vadd.f32 %v881, %v1057
      %v1059 = vpop.f32.mrb[0].mxu0
      %v1060 = vpop.f32.mrb[0].mxu0
      %v1061 = vadd.f32 %v884, %v1060
      %v1062 = vpop.f32.mrb[0].mxu0
      %1063 = vmatprep.mubr.bf16.mxu0 0
      %1064 = vmatmul.mubr.bf16.gmra.mrb[0].mxu0 %v594
      %v1065 = vpop.f32.mrb[0].mxu0
      %v1066 = vadd.f32 %v889, %v1065
      %v1067 = vpop.f32.mrb[0].mxu0
      %v1068 = vpop.f32.mrb[0].mxu0
      %v1069 = vadd.f32 %v892, %v1068
      %v1070 = vpop.f32.mrb[0].mxu0
      %1071 = vmatprep.mubr.bf16.mxu0 0
      %1072 = vmatmul.mubr.bf16.gmra.mrb[0].mxu0 %v595
      %v1073 = vpop.f32.mrb[0].mxu0
      %v1074 = vadd.f32 %v897, %v1073
      %v1075 = vpop.f32.mrb[0].mxu0
      %v1076 = vpop.f32.mrb[0].mxu0
      %v1077 = vadd.f32 %v900, %v1076
      %v1078 = vpop.f32.mrb[0].mxu0
      %1079 = vmatprep.mubr.bf16.mxu0 0
      %1080 = vmatmul.mubr.bf16.gmra.mrb[0].mxu0 %v596
      %v1081 = vpop.f32.mrb[0].mxu0
      %v1082 = vadd.f32 %v905, %v1081
      %v1083 = vpop.f32.mrb[0].mxu0
      %v1084 = vpop.f32.mrb[0].mxu0
      %v1085 = vadd.f32 %v908, %v1084
      %v1086 = vpop.f32.mrb[0].mxu0
      %1087 = vmatprep.mubr.bf16.mxu0 0
      %1088 = vmatmul.mubr.bf16.gmra.mrb[0].mxu0 %v597
      %v1089 = vpop.f32.mrb[0].mxu0
      %v1090 = vadd.f32 %v913, %v1089
      %v1091 = vpop.f32.mrb[0].mxu0
      %v1092 = vpop.f32.mrb[0].mxu0
      %v1093 = vadd.f32 %v916, %v1092
      %v1094 = vpop.f32.mrb[0].mxu0
      %1095 = vmatprep.mubr.bf16.mxu0 0
      %1096 = vmatmul.mubr.bf16.gmra.mrb[0].mxu0 %v598
      %v1097 = vpop.f32.mrb[0].mxu0
      %v1098 = vadd.f32 %v921, %v1097
      %v1099 = vpop.f32.mrb[0].mxu0
      %v1100 = vpop.f32.mrb[0].mxu0
      %v1101 = vadd.f32 %v924, %v1100
      %v1102 = vpop.f32.mrb[0].mxu0
      %1103 = vmatprep.mubr.bf16.mxu0 0
      %1104 = vmatmul.mubr.bf16.gmra.mrb[0].mxu0 %v599
      %v1105 = vpop.f32.mrb[0].mxu0
      %v1106 = vadd.f32 %v929, %v1105
      %v1107 = vpop.f32.mrb[0].mxu0
      %v1108 = vpop.f32.mrb[0].mxu0
      %v1109 = vadd.f32 %v932, %v1108
      %v1110 = vpop.f32.mrb[0].mxu0
      %1111 = vmatprep.mubr.bf16.mxu0 0
      %1112 = vmatmul.mubr.bf16.gmra.mrb[0].mxu0 %v600
      %v1113 = vpop.f32.mrb[0].mxu0
      %v1114 = vadd.f32 %v937, %v1113
      %v1115 = vpop.f32.mrb[0].mxu0
      %v1116 = vpop.f32.mrb[0].mxu0
      %v1117 = vadd.f32 %v940, %v1116
      %v1118 = vpop.f32.mrb[0].mxu0
      %1119 = vmatprep.mubr.bf16.mxu0 0
      %1120 = vmatmul.mubr.bf16.gmra.mrb[0].mxu0 %v601
      %v1121 = vpop.f32.mrb[0].mxu0
      %v1122 = vadd.f32 %v945, %v1121
      %v1123 = vpop.f32.mrb[0].mxu0
      %v1124 = vpop.f32.mrb[0].mxu0
      %v1125 = vadd.f32 %v948, %v1124
      %v1126 = vpop.f32.mrb[0].mxu0
      %1127 = vmatprep.mubr.bf16.mxu0 0
      %1128 = vmatmul.mubr.bf16.gmra.mrb[0].mxu0 %v602
      %v1129 = vpop.f32.mrb[0].mxu0
      %v1130 = vadd.f32 %v953, %v1129
      %v1131 = vpop.f32.mrb[0].mxu0
      %v1132 = vpop.f32.mrb[0].mxu0
      %v1133 = vadd.f32 %v956, %v1132
      %v1134 = vpop.f32.mrb[0].mxu0
      %1135 = vmatprep.mubr.bf16.mxu0 0
      %1136 = vmatmul.mubr.bf16.gmra.mrb[0].mxu0 %v603
      %v1137 = vpop.f32.mrb[0].mxu0
      %v1138 = vadd.f32 %v961, %v1137
      %v1139 = vpop.f32.mrb[0].mxu0
      %v1140 = vpop.f32.mrb[0].mxu0
      %v1141 = vadd.f32 %v964, %v1140
      %v1142 = vpop.f32.mrb[0].mxu0
      %1143 = vmatprep.mubr.bf16.mxu0 0
      %1144 = vmatmul.mubr.bf16.gmra.mrb[0].mxu0 %v604
      %v1145 = vpop.f32.mrb[0].mxu0
      %v1146 = vadd.f32 %v969, %v1145
      %v1147 = vpop.f32.mrb[0].mxu0
      %v1148 = vpop.f32.mrb[0].mxu0
      %v1149 = vadd.f32 %v972, %v1148
      %v1150 = vpop.f32.mrb[0].mxu0
      %1151 = vdwg.mxu0
      %v1200 = vunpack.c.l.b16 %v446
      %v1201 = vunpack.c.l.b16 %v447
      %v1202 = vunpack.c.l.b16 %v448
      %v1203 = vunpack.c.l.b16 %v449
      %v1204 = vunpack.c.l.b16 %v450
      %v1205 = vunpack.c.l.b16 %v451
      %v1206 = vunpack.c.l.b16 %v452
      %v1207 = vunpack.c.l.b16 %v453
      %v1208 = vunpack.c.l.b16 %v454
      %v1209 = vunpack.c.l.b16 %v455
      %v1210 = vunpack.c.l.b16 %v456
      %v1211 = vunpack.c.l.b16 %v457
      %v1212 = vunpack.c.l.b16 %v458
      %v1213 = vunpack.c.l.b16 %v459
      %v1214 = vunpack.c.l.b16 %v460
      %v1215 = vunpack.c.l.b16 %v461
      %v1216 = vunpack.c.l.b16 %v462
      %v1217 = vunpack.c.l.b16 %v463
      %v1218 = vunpack.c.l.b16 %v464
      %v1219 = vunpack.c.l.b16 %v465
      %v1220 = vunpack.c.l.b16 %v466
      %v1221 = vunpack.c.l.b16 %v467
      %v1222 = vunpack.c.l.b16 %v468
      %v1223 = vunpack.c.l.b16 %v469
      %v1224 = vunpack.c.l.b16 %v470
      %v1225 = vunpack.c.l.b16 %v471
      %v1226 = vunpack.c.l.b16 %v472
      %v1227 = vunpack.c.l.b16 %v473
      %v1228 = vunpack.c.l.b16 %v474
      %v1229 = vunpack.c.l.b16 %v475
      %v1230 = vunpack.c.l.b16 %v476
      %v1231 = vunpack.c.l.b16 %v477
      %v1232 = vunpack.c.l.b16 %v478
      %v1233 = vunpack.c.l.b16 %v479
      %v1234 = vunpack.c.l.b16 %v480
      %v1235 = vunpack.c.l.b16 %v481
      %v1236 = vunpack.c.l.b16 %v482
      %v1237 = vunpack.c.l.b16 %v483
      %v1238 = vunpack.c.l.b16 %v484
      %v1239 = vunpack.c.l.b16 %v485
      %v1240 = vunpack.c.l.b16 %v486
      %v1241 = vunpack.c.l.b16 %v487
      %v1242 = vunpack.c.l.b16 %v488
      %v1243 = vunpack.c.l.b16 %v489
      %v1244 = vunpack.c.l.b16 %v490
      %v1245 = vunpack.c.l.b16 %v491
      %v1246 = vunpack.c.l.b16 %v492
      %v1247 = vunpack.c.l.b16 %v493
      %v1248 = vpack.c.b16 %v1201, %v1200
      %v1249 = vpack.c.b16 %v1203, %v1202
      %v1250 = vpack.c.b16 %v1205, %v1204
      %v1251 = vpack.c.b16 %v1207, %v1206
      %v1252 = vpack.c.b16 %v1209, %v1208
      %v1253 = vpack.c.b16 %v1211, %v1210
      %v1254 = vpack.c.b16 %v1213, %v1212
      %v1255 = vpack.c.b16 %v1215, %v1214
      %v1256 = vpack.c.b16 %v1217, %v1216
      %v1257 = vpack.c.b16 %v1219, %v1218
      %v1258 = vpack.c.b16 %v1221, %v1220
      %v1259 = vpack.c.b16 %v1223, %v1222
      %v1260 = vpack.c.b16 %v1225, %v1224
      %v1261 = vpack.c.b16 %v1227, %v1226
      %v1262 = vpack.c.b16 %v1229, %v1228
      %v1263 = vpack.c.b16 %v1231, %v1230
      %v1264 = vpack.c.b16 %v1233, %v1232
      %v1265 = vpack.c.b16 %v1235, %v1234
      %v1266 = vpack.c.b16 %v1237, %v1236
      %v1267 = vpack.c.b16 %v1239, %v1238
      %v1268 = vpack.c.b16 %v1241, %v1240
      %v1269 = vpack.c.b16 %v1243, %v1242
      %v1270 = vpack.c.b16 %v1245, %v1244
      %v1271 = vpack.c.b16 %v1247, %v1246
      %1296 = vmatprep.subr.bf16.mxu0 0
      %1297 = vmatpush1.bf16.msra.mxu0 %v1248
      %1298 = vmatprep.subr.bf16.mxu0 0
      %1299 = vmatpush1.bf16.msra.mxu0 %v1249
      %1300 = vmatprep.subr.bf16.mxu0 0
      %1301 = vmatpush1.bf16.msra.mxu0 %v1250
      %1302 = vmatprep.subr.bf16.mxu0 0
      %1303 = vmatpush1.bf16.msra.mxu0 %v1251
      %1304 = vmatprep.subr.bf16.mxu0 0
      %1305 = vmatpush1.bf16.msra.mxu0 %v1252
      %1306 = vmatprep.subr.bf16.mxu0 0
      %1307 = vmatpush1.bf16.msra.mxu0 %v1253
      %1308 = vmatprep.subr.bf16.mxu0 0
      %1309 = vmatpush1.bf16.msra.mxu0 %v1254
      %1310 = vmatprep.subr.bf16.mxu0 0
      %1311 = vmatpush1.bf16.msra.mxu0 %v1255
      %1312 = vmatprep.subr.bf16.mxu0 0
      %1313 = vmatpush1.bf16.msra.mxu0 %v1256
      %1314 = vmatprep.subr.bf16.mxu0 0
      %1315 = vmatpush1.bf16.msra.mxu0 %v1257
      %1316 = vmatprep.subr.bf16.mxu0 0
      %1317 = vmatpush1.bf16.msra.mxu0 %v1258
      %1318 = vmatprep.subr.bf16.mxu0 0
      %1319 = vmatpush1.bf16.msra.mxu0 %v1259
      %1320 = vmatprep.subr.bf16.mxu0 0
      %1321 = vmatpush1.bf16.msra.mxu0 %v1260
      %1322 = vmatprep.subr.bf16.mxu0 0
      %1323 = vmatpush1.bf16.msra.mxu0 %v1261
      %1324 = vmatprep.subr.bf16.mxu0 0
      %1325 = vmatpush1.bf16.msra.mxu0 %v1262
      %1326 = vmatprep.subr.bf16.mxu0 0
      %1327 = vmatpush1.bf16.msra.mxu0 %v1263
      %1328 = vmatprep.mubr.bf16.mxu0 %v374
      %1329 = vmatmul.mubr.bf16.gmra.mrb[0].mxu0 %v320
      %v1330 = vpop.f32.mrb[0].mxu0
      %v1331 = vadd.f32 %v1010, %v1330
      %v1332 = vpop.f32.mrb[0].mxu0
      %v1333 = vpop.f32.mrb[0].mxu0
      %v1334 = vadd.f32 %v1013, %v1333
      %v1335 = vpop.f32.mrb[0].mxu0
      %1336 = vmatprep.mubr.bf16.mxu0 %v375
      %1337 = vmatmul.mubr.bf16.gmra.mrb[0].mxu0 %v321
      %v1338 = vpop.f32.mrb[0].mxu0
      %v1339 = vadd.f32 %v1018, %v1338
      %v1340 = vpop.f32.mrb[0].mxu0
      %v1341 = vpop.f32.mrb[0].mxu0
      %v1342 = vadd.f32 %v1021, %v1341
      %v1343 = vpop.f32.mrb[0].mxu0
      %1344 = vmatprep.mubr.bf16.mxu0 %v376
      %1345 = vmatmul.mubr.bf16.gmra.mrb[0].mxu0 %v322
      %v1346 = vpop.f32.mrb[0].mxu0
      %v1347 = vadd.f32 %v1026, %v1346
      %v1348 = vpop.f32.mrb[0].mxu0
      %v1349 = vpop.f32.mrb[0].mxu0
      %v1350 = vadd.f32 %v1029, %v1349
      %v1351 = vpop.f32.mrb[0].mxu0
      %1352 = vmatprep.mubr.bf16.mxu0 %v377
      %1353 = vmatmul.mubr.bf16.gmra.mrb[0].mxu0 %v323
      %v1354 = vpop.f32.mrb[0].mxu0
      %v1355 = vadd.f32 %v1034, %v1354
      %v1356 = vpop.f32.mrb[0].mxu0
      %v1357 = vpop.f32.mrb[0].mxu0
      %v1358 = vadd.f32 %v1037, %v1357
      %v1359 = vpop.f32.mrb[0].mxu0
      %1360 = vmatprep.mubr.bf16.mxu0 %v378
      %1361 = vmatmul.mubr.bf16.gmra.mrb[0].mxu0 %v324
      %v1362 = vpop.f32.mrb[0].mxu0
      %v1363 = vadd.f32 %v1042, %v1362
      %v1364 = vpop.f32.mrb[0].mxu0
      %v1365 = vpop.f32.mrb[0].mxu0
      %v1366 = vadd.f32 %v1045, %v1365
      %v1367 = vpop.f32.mrb[0].mxu0
      %1368 = vmatprep.mubr.bf16.mxu0 %v379
      %1369 = vmatmul.mubr.bf16.gmra.mrb[0].mxu0 %v325
      %v1370 = vpop.f32.mrb[0].mxu0
      %v1371 = vadd.f32 %v1050, %v1370
      %v1372 = vpop.f32.mrb[0].mxu0
      %v1373 = vpop.f32.mrb[0].mxu0
      %v1374 = vadd.f32 %v1053, %v1373
      %v1375 = vpop.f32.mrb[0].mxu0
      %1376 = vmatprep.mubr.bf16.mxu0 %v380
      %1377 = vmatmul.mubr.bf16.gmra.mrb[0].mxu0 %v326
      %v1378 = vpop.f32.mrb[0].mxu0
      %v1379 = vadd.f32 %v1058, %v1378
      %v1380 = vpop.f32.mrb[0].mxu0
      %v1381 = vpop.f32.mrb[0].mxu0
      %v1382 = vadd.f32 %v1061, %v1381
      %v1383 = vpop.f32.mrb[0].mxu0
      %1384 = vmatprep.mubr.bf16.mxu0 %v381
      %1385 = vmatmul.mubr.bf16.gmra.mrb[0].mxu0 %v327
      %v1386 = vpop.f32.mrb[0].mxu0
      %v1387 = vadd.f32 %v1066, %v1386
      %v1388 = vpop.f32.mrb[0].mxu0
      %v1389 = vpop.f32.mrb[0].mxu0
      %v1390 = vadd.f32 %v1069, %v1389
      %v1391 = vpop.f32.mrb[0].mxu0
      %1392 = vmatprep.mubr.bf16.mxu0 %v382
      %1393 = vmatmul.mubr.bf16.gmra.mrb[0].mxu0 %v328
      %v1394 = vpop.f32.mrb[0].mxu0
      %v1395 = vadd.f32 %v1074, %v1394
      %v1396 = vpop.f32.mrb[0].mxu0
      %v1397 = vpop.f32.mrb[0].mxu0
      %v1398 = vadd.f32 %v1077, %v1397
      %v1399 = vpop.f32.mrb[0].mxu0
      %1400 = vmatprep.mubr.bf16.mxu0 %v383
      %1401 = vmatmul.mubr.bf16.gmra.mrb[0].mxu0 %v329
      %v1402 = vpop.f32.mrb[0].mxu0
      %v1403 = vadd.f32 %v1082, %v1402
      %v1404 = vpop.f32.mrb[0].mxu0
      %v1405 = vpop.f32.mrb[0].mxu0
      %v1406 = vadd.f32 %v1085, %v1405
      %v1407 = vpop.f32.mrb[0].mxu0
      %1408 = vmatprep.mubr.bf16.mxu0 %v384
      %1409 = vmatmul.mubr.bf16.gmra.mrb[0].mxu0 %v330
      %v1410 = vpop.f32.mrb[0].mxu0
      %v1411 = vadd.f32 %v1090, %v1410
      %v1412 = vpop.f32.mrb[0].mxu0
      %v1413 = vpop.f32.mrb[0].mxu0
      %v1414 = vadd.f32 %v1093, %v1413
      %v1415 = vpop.f32.mrb[0].mxu0
      %1416 = vmatprep.mubr.bf16.mxu0 %v385
      %1417 = vmatmul.mubr.bf16.gmra.mrb[0].mxu0 %v331
      %v1418 = vpop.f32.mrb[0].mxu0
      %v1419 = vadd.f32 %v1098, %v1418
      %v1420 = vpop.f32.mrb[0].mxu0
      %v1421 = vpop.f32.mrb[0].mxu0
      %v1422 = vadd.f32 %v1101, %v1421
      %v1423 = vpop.f32.mrb[0].mxu0
      %1424 = vmatprep.mubr.bf16.mxu0 %v386
      %1425 = vmatmul.mubr.bf16.gmra.mrb[0].mxu0 %v332
      %v1426 = vpop.f32.mrb[0].mxu0
      %v1427 = vadd.f32 %v1106, %v1426
      %v1428 = vpop.f32.mrb[0].mxu0
      %v1429 = vpop.f32.mrb[0].mxu0
      %v1430 = vadd.f32 %v1109, %v1429
      %v1431 = vpop.f32.mrb[0].mxu0
      %1432 = vmatprep.mubr.bf16.mxu0 %v387
      %1433 = vmatmul.mubr.bf16.gmra.mrb[0].mxu0 %v333
      %v1434 = vpop.f32.mrb[0].mxu0
      %v1435 = vadd.f32 %v1114, %v1434
      %v1436 = vpop.f32.mrb[0].mxu0
      %v1437 = vpop.f32.mrb[0].mxu0
      %v1438 = vadd.f32 %v1117, %v1437
      %v1439 = vpop.f32.mrb[0].mxu0
      %1440 = vmatprep.mubr.bf16.mxu0 %v388
      %1441 = vmatmul.mubr.bf16.gmra.mrb[0].mxu0 %v334
      %v1442 = vpop.f32.mrb[0].mxu0
      %v1443 = vadd.f32 %v1122, %v1442
      %v1444 = vpop.f32.mrb[0].mxu0
      %v1445 = vpop.f32.mrb[0].mxu0
      %v1446 = vadd.f32 %v1125, %v1445
      %v1447 = vpop.f32.mrb[0].mxu0
      %1448 = vmatprep.mubr.bf16.mxu0 %v389
      %1449 = vmatmul.mubr.bf16.gmra.mrb[0].mxu0 %v335
      %v1450 = vpop.f32.mrb[0].mxu0
      %v1451 = vadd.f32 %v1130, %v1450
      %v1452 = vpop.f32.mrb[0].mxu0
      %v1453 = vpop.f32.mrb[0].mxu0
      %v1454 = vadd.f32 %v1133, %v1453
      %v1455 = vpop.f32.mrb[0].mxu0
      %1456 = vmatprep.mubr.bf16.mxu0 %v390
      %1457 = vmatmul.mubr.bf16.gmra.mrb[0].mxu0 %v336
      %v1458 = vpop.f32.mrb[0].mxu0
      %v1459 = vadd.f32 %v1138, %v1458
      %v1460 = vpop.f32.mrb[0].mxu0
      %v1461 = vpop.f32.mrb[0].mxu0
      %v1462 = vadd.f32 %v1141, %v1461
      %v1463 = vpop.f32.mrb[0].mxu0
      %1464 = vmatprep.mubr.bf16.mxu0 %v391
      %1465 = vmatmul.mubr.bf16.gmra.mrb[0].mxu0 %v337
      %v1466 = vpop.f32.mrb[0].mxu0
      %v1467 = vadd.f32 %v1146, %v1466
      %v1468 = vpop.f32.mrb[0].mxu0
      %v1469 = vpop.f32.mrb[0].mxu0
      %v1470 = vadd.f32 %v1149, %v1469
      %v1471 = vpop.f32.mrb[0].mxu0
      %1472 = vdwg.mxu0
      %1473 = vmatprep.subr.bf16.mxu0 0
      %1474 = vmatpush1.bf16.msra.mxu0 %v1264
      %1475 = vmatprep.subr.bf16.mxu0 0
      %1476 = vmatpush1.bf16.msra.mxu0 %v1265
      %1477 = vmatprep.subr.bf16.mxu0 0
      %1478 = vmatpush1.bf16.msra.mxu0 %v1266
      %1479 = vmatprep.subr.bf16.mxu0 0
      %1480 = vmatpush1.bf16.msra.mxu0 %v1267
      %1481 = vmatprep.subr.bf16.mxu0 0
      %1482 = vmatpush1.bf16.msra.mxu0 %v1268
      %1483 = vmatprep.subr.bf16.mxu0 0
      %1484 = vmatpush1.bf16.msra.mxu0 %v1269
      %1485 = vmatprep.subr.bf16.mxu0 0
      %1486 = vmatpush1.bf16.msra.mxu0 %v1270
      %1487 = vmatprep.subr.bf16.mxu0 0
      %1488 = vmatpush1.bf16.msra.mxu0 %v1271
      %1489 = vmatprep.subr.bf16.mxu0 0
      %1490 = vmatpush1.bf16.msra.mxu0 0
      %1491 = vmatprep.subr.bf16.mxu0 0
      %1492 = vmatpush1.bf16.msra.mxu0 0
      %1493 = vmatprep.subr.bf16.mxu0 0
      %1494 = vmatpush1.bf16.msra.mxu0 0
      %1495 = vmatprep.subr.bf16.mxu0 0
      %1496 = vmatpush1.bf16.msra.mxu0 0
      %1497 = vmatprep.subr.bf16.mxu0 0
      %1498 = vmatpush1.bf16.msra.mxu0 0
      %1499 = vmatprep.subr.bf16.mxu0 0
      %1500 = vmatpush1.bf16.msra.mxu0 0
      %1501 = vmatprep.subr.bf16.mxu0 0
      %1502 = vmatpush1.bf16.msra.mxu0 0
      %1503 = vmatprep.subr.bf16.mxu0 0
      %1504 = vmatpush1.bf16.msra.mxu0 0
      %1505 = vmatprep.mubr.bf16.mxu0 0
      %1506 = vmatmul.mubr.bf16.gmra.mrb[0].mxu0 %v428
      %v1507 = vpop.f32.mrb[0].mxu0
      %v1508 = vadd.f32 %v1331, %v1507
      %v1509 = vpop.f32.mrb[0].mxu0
      %v1510 = vpop.f32.mrb[0].mxu0
      %v1511 = vadd.f32 %v1334, %v1510
      %v1512 = vpop.f32.mrb[0].mxu0
      %1513 = vmatprep.mubr.bf16.mxu0 0
      %1514 = vmatmul.mubr.bf16.gmra.mrb[0].mxu0 %v429
      %v1515 = vpop.f32.mrb[0].mxu0
      %v1516 = vadd.f32 %v1339, %v1515
      %v1517 = vpop.f32.mrb[0].mxu0
      %v1518 = vpop.f32.mrb[0].mxu0
      %v1519 = vadd.f32 %v1342, %v1518
      %v1520 = vpop.f32.mrb[0].mxu0
      %1521 = vmatprep.mubr.bf16.mxu0 0
      %1522 = vmatmul.mubr.bf16.gmra.mrb[0].mxu0 %v430
      %v1523 = vpop.f32.mrb[0].mxu0
      %v1524 = vadd.f32 %v1347, %v1523
      %v1525 = vpop.f32.mrb[0].mxu0
      %v1526 = vpop.f32.mrb[0].mxu0
      %v1527 = vadd.f32 %v1350, %v1526
      %v1528 = vpop.f32.mrb[0].mxu0
      %1529 = vmatprep.mubr.bf16.mxu0 0
      %1530 = vmatmul.mubr.bf16.gmra.mrb[0].mxu0 %v431
      %v1531 = vpop.f32.mrb[0].mxu0
      %v1532 = vadd.f32 %v1355, %v1531
      %v1533 = vpop.f32.mrb[0].mxu0
      %v1534 = vpop.f32.mrb[0].mxu0
      %v1535 = vadd.f32 %v1358, %v1534
      %v1536 = vpop.f32.mrb[0].mxu0
      %1537 = vmatprep.mubr.bf16.mxu0 0
      %1538 = vmatmul.mubr.bf16.gmra.mrb[0].mxu0 %v432
      %v1539 = vpop.f32.mrb[0].mxu0
      %v1540 = vadd.f32 %v1363, %v1539
      %v1541 = vpop.f32.mrb[0].mxu0
      %v1542 = vpop.f32.mrb[0].mxu0
      %v1543 = vadd.f32 %v1366, %v1542
      %v1544 = vpop.f32.mrb[0].mxu0
      %1545 = vmatprep.mubr.bf16.mxu0 0
      %1546 = vmatmul.mubr.bf16.gmra.mrb[0].mxu0 %v433
      %v1547 = vpop.f32.mrb[0].mxu0
      %v1548 = vadd.f32 %v1371, %v1547
      %v1549 = vpop.f32.mrb[0].mxu0
      %v1550 = vpop.f32.mrb[0].mxu0
      %v1551 = vadd.f32 %v1374, %v1550
      %v1552 = vpop.f32.mrb[0].mxu0
      %1553 = vmatprep.mubr.bf16.mxu0 0
      %1554 = vmatmul.mubr.bf16.gmra.mrb[0].mxu0 %v434
      %v1555 = vpop.f32.mrb[0].mxu0
      %v1556 = vadd.f32 %v1379, %v1555
      %v1557 = vpop.f32.mrb[0].mxu0
      %v1558 = vpop.f32.mrb[0].mxu0
      %v1559 = vadd.f32 %v1382, %v1558
      %v1560 = vpop.f32.mrb[0].mxu0
      %1561 = vmatprep.mubr.bf16.mxu0 0
      %1562 = vmatmul.mubr.bf16.gmra.mrb[0].mxu0 %v435
      %v1563 = vpop.f32.mrb[0].mxu0
      %v1564 = vadd.f32 %v1387, %v1563
      %v1565 = vpop.f32.mrb[0].mxu0
      %v1566 = vpop.f32.mrb[0].mxu0
      %v1567 = vadd.f32 %v1390, %v1566
      %v1568 = vpop.f32.mrb[0].mxu0
      %1569 = vmatprep.mubr.bf16.mxu0 0
      %1570 = vmatmul.mubr.bf16.gmra.mrb[0].mxu0 %v436
      %v1571 = vpop.f32.mrb[0].mxu0
      %v1572 = vadd.f32 %v1395, %v1571
      %v1573 = vpop.f32.mrb[0].mxu0
      %v1574 = vpop.f32.mrb[0].mxu0
      %v1575 = vadd.f32 %v1398, %v1574
      %v1576 = vpop.f32.mrb[0].mxu0
      %1577 = vmatprep.mubr.bf16.mxu0 0
      %1578 = vmatmul.mubr.bf16.gmra.mrb[0].mxu0 %v437
      %v1579 = vpop.f32.mrb[0].mxu0
      %v1580 = vadd.f32 %v1403, %v1579
      %v1581 = vpop.f32.mrb[0].mxu0
      %v1582 = vpop.f32.mrb[0].mxu0
      %v1583 = vadd.f32 %v1406, %v1582
      %v1584 = vpop.f32.mrb[0].mxu0
      %1585 = vmatprep.mubr.bf16.mxu0 0
      %1586 = vmatmul.mubr.bf16.gmra.mrb[0].mxu0 %v438
      %v1587 = vpop.f32.mrb[0].mxu0
      %v1588 = vadd.f32 %v1411, %v1587
      %v1589 = vpop.f32.mrb[0].mxu0
      %v1590 = vpop.f32.mrb[0].mxu0
      %v1591 = vadd.f32 %v1414, %v1590
      %v1592 = vpop.f32.mrb[0].mxu0
      %1593 = vmatprep.mubr.bf16.mxu0 0
      %1594 = vmatmul.mubr.bf16.gmra.mrb[0].mxu0 %v439
      %v1595 = vpop.f32.mrb[0].mxu0
      %v1596 = vadd.f32 %v1419, %v1595
      %v1597 = vpop.f32.mrb[0].mxu0
      %v1598 = vpop.f32.mrb[0].mxu0
      %v1599 = vadd.f32 %v1422, %v1598
      %v1600 = vpop.f32.mrb[0].mxu0
      %1601 = vmatprep.mubr.bf16.mxu0 0
      %1602 = vmatmul.mubr.bf16.gmra.mrb[0].mxu0 %v440
      %v1603 = vpop.f32.mrb[0].mxu0
      %v1604 = vadd.f32 %v1427, %v1603
      %v1605 = vpop.f32.mrb[0].mxu0
      %v1606 = vpop.f32.mrb[0].mxu0
      %v1607 = vadd.f32 %v1430, %v1606
      %v1608 = vpop.f32.mrb[0].mxu0
      %1609 = vmatprep.mubr.bf16.mxu0 0
      %1610 = vmatmul.mubr.bf16.gmra.mrb[0].mxu0 %v441
      %v1611 = vpop.f32.mrb[0].mxu0
      %v1612 = vadd.f32 %v1435, %v1611
      %v1613 = vpop.f32.mrb[0].mxu0
      %v1614 = vpop.f32.mrb[0].mxu0
      %v1615 = vadd.f32 %v1438, %v1614
      %v1616 = vpop.f32.mrb[0].mxu0
      %1617 = vmatprep.mubr.bf16.mxu0 0
      %1618 = vmatmul.mubr.bf16.gmra.mrb[0].mxu0 %v442
      %v1619 = vpop.f32.mrb[0].mxu0
      %v1620 = vadd.f32 %v1443, %v1619
      %v1621 = vpop.f32.mrb[0].mxu0
      %v1622 = vpop.f32.mrb[0].mxu0
      %v1623 = vadd.f32 %v1446, %v1622
      %v1624 = vpop.f32.mrb[0].mxu0
      %1625 = vmatprep.mubr.bf16.mxu0 0
      %1626 = vmatmul.mubr.bf16.gmra.mrb[0].mxu0 %v443
      %v1627 = vpop.f32.mrb[0].mxu0
      %v1628 = vadd.f32 %v1451, %v1627
      %v1629 = vpop.f32.mrb[0].mxu0
      %v1630 = vpop.f32.mrb[0].mxu0
      %v1631 = vadd.f32 %v1454, %v1630
      %v1632 = vpop.f32.mrb[0].mxu0
      %1633 = vmatprep.mubr.bf16.mxu0 0
      %1634 = vmatmul.mubr.bf16.gmra.mrb[0].mxu0 %v444
      %v1635 = vpop.f32.mrb[0].mxu0
      %v1636 = vadd.f32 %v1459, %v1635
      %v1637 = vpop.f32.mrb[0].mxu0
      %v1638 = vpop.f32.mrb[0].mxu0
      %v1639 = vadd.f32 %v1462, %v1638
      %v1640 = vpop.f32.mrb[0].mxu0
      %1641 = vmatprep.mubr.bf16.mxu0 0
      %1642 = vmatmul.mubr.bf16.gmra.mrb[0].mxu0 %v445
      %v1643 = vpop.f32.mrb[0].mxu0
      %v1644 = vadd.f32 %v1467, %v1643
      %v1645 = vpop.f32.mrb[0].mxu0
      %v1646 = vpop.f32.mrb[0].mxu0
      %v1647 = vadd.f32 %v1470, %v1646
      %v1648 = vpop.f32.mrb[0].mxu0
      %1649 = vdwg.mxu0
      %v1650 = vld [vmem:[%s273 + $0x24] sm:$0xff]
      %v1651 = vld [vmem:[%s273 + $0x2c] sm:$0xff]
      %v1652 = vld [vmem:[%s273 + $0x34] sm:$0xff]
      %v1653 = vld [vmem:[%s273 + $0x3c] sm:$0xff]
      %v1654 = vld [vmem:[%s273 + $0x44] sm:$0xff]
      %v1655 = vld [vmem:[%s273 + $0x4c] sm:$0xff]
      %v1656 = vld [vmem:[%s273 + $0x54] sm:$0xff]
      %v1657 = vld [vmem:[%s273 + $0x5c] sm:$0xff]
      %v1658 = vld [vmem:[%s273 + $0x64] sm:$0xff]
      %v1659 = vld [vmem:[%s273 + $0x6c] sm:$0xff]
      %v1660 = vld [vmem:[%s273 + $0x74] sm:$0xff]
      %v1661 = vld [vmem:[%s273 + $0x7c] sm:$0xff]
      %v1662 = vld [vmem:[%s273 + $0x84] sm:$0xff]
      %v1663 = vld [vmem:[%s273 + $0x8c] sm:$0xff]
      %v1664 = vld [vmem:[%s273 + $0x94] sm:$0xff]
      %v1665 = vld [vmem:[%s273 + $0x9c] sm:$0xff]
      %v1666 = vld [vmem:[%s273 + $0xa4] sm:$0xff]
      %v1667 = vld [vmem:[%s273 + $0xac] sm:$0xff]
      %v1668 = vld [vmem:[%s273 + $0xb4] sm:$0xff]
      %v1669 = vld [vmem:[%s273 + $0xbc] sm:$0xff]
      %v1670 = vld [vmem:[%s273 + $0xc4] sm:$0xff]
      %v1671 = vld [vmem:[%s273 + $0xcc] sm:$0xff]
      %v1672 = vld [vmem:[%s273 + $0xd4] sm:$0xff]
      %v1673 = vld [vmem:[%s273 + $0xdc] sm:$0xff]
      %v1674 = vld [vmem:[%s273 + $0xe4] sm:$0xff]
      %v1675 = vld [vmem:[%s273 + $0xec] sm:$0xff]
      %v1676 = vld [vmem:[%s273 + $0xf4] sm:$0xff]
      %v1677 = vld [vmem:[%s273 + $0xfc] sm:$0xff]
      %v1678 = vld [vmem:[%s273 + $0x104] sm:$0xff]
      %v1679 = vld [vmem:[%s273 + $0x10c] sm:$0xff]
      %v1680 = vld [vmem:[%s273 + $0x114] sm:$0xff]
      %v1681 = vld [vmem:[%s273 + $0x11c] sm:$0xff]
      %v1682 = vld [vmem:[%s273 + $0x124] sm:$0xff]
      %v1683 = vld [vmem:[%s273 + $0x12c] sm:$0xff]
      %v1684 = vld [vmem:[%s273 + $0x134] sm:$0xff]
      %v1685 = vld [vmem:[%s273 + $0x13c] sm:$0xff]
      %v1686 = vpack.c.bf16 %v1651, %v1650
      %v1687 = vpack.c.bf16 %v1653, %v1652
      %v1688 = vpack.c.bf16 %v1655, %v1654
      %v1689 = vpack.c.bf16 %v1657, %v1656
      %v1690 = vpack.c.bf16 %v1659, %v1658
      %v1691 = vpack.c.bf16 %v1661, %v1660
      %v1692 = vpack.c.bf16 %v1663, %v1662
      %v1693 = vpack.c.bf16 %v1665, %v1664
      %v1694 = vpack.c.bf16 %v1667, %v1666
      %v1695 = vpack.c.bf16 %v1669, %v1668
      %v1696 = vpack.c.bf16 %v1671, %v1670
      %v1697 = vpack.c.bf16 %v1673, %v1672
      %v1698 = vpack.c.bf16 %v1675, %v1674
      %v1699 = vpack.c.bf16 %v1677, %v1676
      %v1700 = vpack.c.bf16 %v1679, %v1678
      %v1701 = vpack.c.bf16 %v1681, %v1680
      %v1702 = vpack.c.bf16 %v1683, %v1682
      %v1703 = vpack.c.bf16 %v1685, %v1684
      %v1704 = vld [vmem:[%s273 + $0x25] sm:$0xff]
      %v1705 = vld [vmem:[%s273 + $0x2d] sm:$0xff]
      %v1706 = vld [vmem:[%s273 + $0x35] sm:$0xff]
      %v1707 = vld [vmem:[%s273 + $0x3d] sm:$0xff]
      %v1708 = vld [vmem:[%s273 + $0x45] sm:$0xff]
      %v1709 = vld [vmem:[%s273 + $0x4d] sm:$0xff]
      %v1710 = vld [vmem:[%s273 + $0x55] sm:$0xff]
      %v1711 = vld [vmem:[%s273 + $0x5d] sm:$0xff]
      %v1712 = vld [vmem:[%s273 + $0x65] sm:$0xff]
      %v1713 = vld [vmem:[%s273 + $0x6d] sm:$0xff]
      %v1714 = vld [vmem:[%s273 + $0x75] sm:$0xff]
      %v1715 = vld [vmem:[%s273 + $0x7d] sm:$0xff]
      %v1716 = vld [vmem:[%s273 + $0x85] sm:$0xff]
      %v1717 = vld [vmem:[%s273 + $0x8d] sm:$0xff]
      %v1718 = vld [vmem:[%s273 + $0x95] sm:$0xff]
      %v1719 = vld [vmem:[%s273 + $0x9d] sm:$0xff]
      %v1720 = vld [vmem:[%s273 + $0xa5] sm:$0xff]
      %v1721 = vld [vmem:[%s273 + $0xad] sm:$0xff]
      %v1722 = vld [vmem:[%s273 + $0xb5] sm:$0xff]
      %v1723 = vld [vmem:[%s273 + $0xbd] sm:$0xff]
      %v1724 = vld [vmem:[%s273 + $0xc5] sm:$0xff]
      %v1725 = vld [vmem:[%s273 + $0xcd] sm:$0xff]
      %v1726 = vld [vmem:[%s273 + $0xd5] sm:$0xff]
      %v1727 = vld [vmem:[%s273 + $0xdd] sm:$0xff]
      %v1728 = vld [vmem:[%s273 + $0xe5] sm:$0xff]
      %v1729 = vld [vmem:[%s273 + $0xed] sm:$0xff]
      %v1730 = vld [vmem:[%s273 + $0xf5] sm:$0xff]
      %v1731 = vld [vmem:[%s273 + $0xfd] sm:$0xff]
      %v1732 = vld [vmem:[%s273 + $0x105] sm:$0xff]
      %v1733 = vld [vmem:[%s273 + $0x10d] sm:$0xff]
      %v1734 = vld [vmem:[%s273 + $0x115] sm:$0xff]
      %v1735 = vld [vmem:[%s273 + $0x11d] sm:$0xff]
      %v1736 = vld [vmem:[%s273 + $0x125] sm:$0xff]
      %v1737 = vld [vmem:[%s273 + $0x12d] sm:$0xff]
      %v1738 = vld [vmem:[%s273 + $0x135] sm:$0xff]
      %v1739 = vld [vmem:[%s273 + $0x13d] sm:$0xff]
      %v1740 = vpack.c.bf16 %v1705, %v1704
      %v1741 = vpack.c.bf16 %v1707, %v1706
      %v1742 = vpack.c.bf16 %v1709, %v1708
      %v1743 = vpack.c.bf16 %v1711, %v1710
      %v1744 = vpack.c.bf16 %v1713, %v1712
      %v1745 = vpack.c.bf16 %v1715, %v1714
      %v1746 = vpack.c.bf16 %v1717, %v1716
      %v1747 = vpack.c.bf16 %v1719, %v1718
      %v1748 = vpack.c.bf16 %v1721, %v1720
      %v1749 = vpack.c.bf16 %v1723, %v1722
      %v1750 = vpack.c.bf16 %v1725, %v1724
      %v1751 = vpack.c.bf16 %v1727, %v1726
      %v1752 = vpack.c.bf16 %v1729, %v1728
      %v1753 = vpack.c.bf16 %v1731, %v1730
      %v1754 = vpack.c.bf16 %v1733, %v1732
      %v1755 = vpack.c.bf16 %v1735, %v1734
      %v1756 = vpack.c.bf16 %v1737, %v1736
      %v1757 = vpack.c.bf16 %v1739, %v1738
      %v1758 = vld [vmem:[%s273 + $0x26] sm:$0xff]
      %v1759 = vld [vmem:[%s273 + $0x2e] sm:$0xff]
      %v1760 = vld [vmem:[%s273 + $0x36] sm:$0xff]
      %v1761 = vld [vmem:[%s273 + $0x3e] sm:$0xff]
      %v1762 = vld [vmem:[%s273 + $0x46] sm:$0xff]
      %v1763 = vld [vmem:[%s273 + $0x4e] sm:$0xff]
      %v1764 = vld [vmem:[%s273 + $0x56] sm:$0xff]
      %v1765 = vld [vmem:[%s273 + $0x5e] sm:$0xff]
      %v1766 = vld [vmem:[%s273 + $0x66] sm:$0xff]
      %v1767 = vld [vmem:[%s273 + $0x6e] sm:$0xff]
      %v1768 = vld [vmem:[%s273 + $0x76] sm:$0xff]
      %v1769 = vld [vmem:[%s273 + $0x7e] sm:$0xff]
      %v1770 = vld [vmem:[%s273 + $0x86] sm:$0xff]
      %v1771 = vld [vmem:[%s273 + $0x8e] sm:$0xff]
      %v1772 = vld [vmem:[%s273 + $0x96] sm:$0xff]
      %v1773 = vld [vmem:[%s273 + $0x9e] sm:$0xff]
      %v1774 = vld [vmem:[%s273 + $0xa6] sm:$0xff]
      %v1775 = vld [vmem:[%s273 + $0xae] sm:$0xff]
      %v1776 = vld [vmem:[%s273 + $0xb6] sm:$0xff]
      %v1777 = vld [vmem:[%s273 + $0xbe] sm:$0xff]
      %v1778 = vld [vmem:[%s273 + $0xc6] sm:$0xff]
      %v1779 = vld [vmem:[%s273 + $0xce] sm:$0xff]
      %v1780 = vld [vmem:[%s273 + $0xd6] sm:$0xff]
      %v1781 = vld [vmem:[%s273 + $0xde] sm:$0xff]
      %v1782 = vld [vmem:[%s273 + $0xe6] sm:$0xff]
      %v1783 = vld [vmem:[%s273 + $0xee] sm:$0xff]
      %v1784 = vld [vmem:[%s273 + $0xf6] sm:$0xff]
      %v1785 = vld [vmem:[%s273 + $0xfe] sm:$0xff]
      %v1786 = vld [vmem:[%s273 + $0x106] sm:$0xff]
      %v1787 = vld [vmem:[%s273 + $0x10e] sm:$0xff]
      %v1788 = vld [vmem:[%s273 + $0x116] sm:$0xff]
      %v1789 = vld [vmem:[%s273 + $0x11e] sm:$0xff]
      %v1790 = vld [vmem:[%s273 + $0x126] sm:$0xff]
      %v1791 = vld [vmem:[%s273 + $0x12e] sm:$0xff]
      %v1792 = vld [vmem:[%s273 + $0x136] sm:$0xff]
      %v1793 = vld [vmem:[%s273 + $0x13e] sm:$0xff]
      %v1794 = vpack.c.bf16 %v1759, %v1758
      %v1795 = vpack.c.bf16 %v1761, %v1760
      %v1796 = vpack.c.bf16 %v1763, %v1762
      %v1797 = vpack.c.bf16 %v1765, %v1764
      %v1798 = vpack.c.bf16 %v1767, %v1766
      %v1799 = vpack.c.bf16 %v1769, %v1768
      %v1800 = vpack.c.bf16 %v1771, %v1770
      %v1801 = vpack.c.bf16 %v1773, %v1772
      %v1802 = vpack.c.bf16 %v1775, %v1774
      %v1803 = vpack.c.bf16 %v1777, %v1776
      %v1804 = vpack.c.bf16 %v1779, %v1778
      %v1805 = vpack.c.bf16 %v1781, %v1780
      %v1806 = vpack.c.bf16 %v1783, %v1782
      %v1807 = vpack.c.bf16 %v1785, %v1784
      %v1808 = vpack.c.bf16 %v1787, %v1786
      %v1809 = vpack.c.bf16 %v1789, %v1788
      %v1810 = vpack.c.bf16 %v1791, %v1790
      %v1811 = vpack.c.bf16 %v1793, %v1792
      %s1812 = scalar_lea.vmem %s1, 384
      %v1813 = vld [vmem:[%s1812] sm:$0xf]
      %v1814 = vld [vmem:[%s1812 + $0x4] sm:$0xf]
      %v1815 = vld [vmem:[%s1812 + $0x8] sm:$0xf]
      %v1816 = vld [vmem:[%s1812 + $0xc] sm:$0xf]
      %v1817 = vld [vmem:[%s1812 + $0x10] sm:$0xf]
      %v1818 = vld [vmem:[%s1812 + $0x14] sm:$0xf]
      %v1819 = vld [vmem:[%s1812 + $0x18] sm:$0xf]
      %v1820 = vld [vmem:[%s1812 + $0x1c] sm:$0xf]
      %v1821 = vld [vmem:[%s1812 + $0x20] sm:$0xf]
      %v1822 = vld [vmem:[%s1812 + $0x24] sm:$0xf]
      %v1823 = vld [vmem:[%s1812 + $0x28] sm:$0xf]
      %v1824 = vld [vmem:[%s1812 + $0x2c] sm:$0xf]
      %v1825 = vld [vmem:[%s1812 + $0x30] sm:$0xf]
      %v1826 = vld [vmem:[%s1812 + $0x34] sm:$0xf]
      %v1827 = vld [vmem:[%s1812 + $0x38] sm:$0xf]
      %v1828 = vld [vmem:[%s1812 + $0x3c] sm:$0xf]
      %v1829 = vld [vmem:[%s1812 + $0x40] sm:$0xf]
      %v1830 = vld [vmem:[%s1812 + $0x44] sm:$0xf]
      %v1831 = vld [vmem:[%s1812 + $0x48] sm:$0xf]
      %v1832 = vld [vmem:[%s1812 + $0x4c] sm:$0xf]
      %v1833 = vld [vmem:[%s1812 + $0x50] sm:$0xf]
      %v1834 = vld [vmem:[%s1812 + $0x54] sm:$0xf]
      %v1835 = vld [vmem:[%s1812 + $0x58] sm:$0xf]
      %v1836 = vld [vmem:[%s1812 + $0x5c] sm:$0xf]
      %v1837 = vld [vmem:[%s1812 + $0x60] sm:$0xf]
      %v1838 = vld [vmem:[%s1812 + $0x64] sm:$0xf]
      %v1839 = vld [vmem:[%s1812 + $0x68] sm:$0xf]
      %v1840 = vld [vmem:[%s1812 + $0x6c] sm:$0xf]
      %v1841 = vld [vmem:[%s1812 + $0x70] sm:$0xf]
      %v1842 = vld [vmem:[%s1812 + $0x74] sm:$0xf]
      %v1843 = vld [vmem:[%s1812 + $0x78] sm:$0xf]
      %v1844 = vld [vmem:[%s1812 + $0x7c] sm:$0xf]
      %v1845 = vld [vmem:[%s1812 + $0x80] sm:$0xf]
      %v1846 = vld [vmem:[%s1812 + $0x84] sm:$0xf]
      %v1847 = vld [vmem:[%s1812 + $0x88] sm:$0xf]
      %v1848 = vld [vmem:[%s1812 + $0x8c] sm:$0xf]
      %v1849 = vld [vmem:[%s1812 + $0x90] sm:$0xf]
      %v1850 = vld [vmem:[%s1812 + $0x94] sm:$0xf]
      %v1851 = vld [vmem:[%s1812 + $0x98] sm:$0xf]
      %v1852 = vld [vmem:[%s1812 + $0x9c] sm:$0xf]
      %v1853 = vld [vmem:[%s1812 + $0xa0] sm:$0xf]
      %v1854 = vld [vmem:[%s1812 + $0xa4] sm:$0xf]
      %v1855 = vld [vmem:[%s1812 + $0xa8] sm:$0xf]
      %v1856 = vld [vmem:[%s1812 + $0xac] sm:$0xf]
      %v1857 = vld [vmem:[%s1812 + $0xb0] sm:$0xf]
      %v1858 = vld [vmem:[%s1812 + $0xb4] sm:$0xf]
      %v1859 = vld [vmem:[%s1812 + $0xb8] sm:$0xf]
      %v1860 = vld [vmem:[%s1812 + $0xbc] sm:$0xf]
      %v1909 = vunpack.c.l.b16 %v1813
      %v1910 = vunpack.c.l.b16 %v1814
      %v1911 = vunpack.c.l.b16 %v1815
      %v1912 = vunpack.c.l.b16 %v1816
      %v1913 = vunpack.c.l.b16 %v1817
      %v1914 = vunpack.c.l.b16 %v1818
      %v1915 = vunpack.c.l.b16 %v1819
      %v1916 = vunpack.c.l.b16 %v1820
      %v1917 = vunpack.c.l.b16 %v1821
      %v1918 = vunpack.c.l.b16 %v1822
      %v1919 = vunpack.c.l.b16 %v1823
      %v1920 = vunpack.c.l.b16 %v1824
      %v1921 = vunpack.c.l.b16 %v1825
      %v1922 = vunpack.c.l.b16 %v1826
      %v1923 = vunpack.c.l.b16 %v1827
      %v1924 = vunpack.c.l.b16 %v1828
      %v1925 = vunpack.c.l.b16 %v1829
      %v1926 = vunpack.c.l.b16 %v1830
      %v1927 = vunpack.c.l.b16 %v1831
      %v1928 = vunpack.c.l.b16 %v1832
      %v1929 = vunpack.c.l.b16 %v1833
      %v1930 = vunpack.c.l.b16 %v1834
      %v1931 = vunpack.c.l.b16 %v1835
      %v1932 = vunpack.c.l.b16 %v1836
      %v1933 = vunpack.c.l.b16 %v1837
      %v1934 = vunpack.c.l.b16 %v1838
      %v1935 = vunpack.c.l.b16 %v1839
      %v1936 = vunpack.c.l.b16 %v1840
      %v1937 = vunpack.c.l.b16 %v1841
      %v1938 = vunpack.c.l.b16 %v1842
      %v1939 = vunpack.c.l.b16 %v1843
      %v1940 = vunpack.c.l.b16 %v1844
      %v1941 = vunpack.c.l.b16 %v1845
      %v1942 = vunpack.c.l.b16 %v1846
      %v1943 = vunpack.c.l.b16 %v1847
      %v1944 = vunpack.c.l.b16 %v1848
      %v1945 = vunpack.c.l.b16 %v1849
      %v1946 = vunpack.c.l.b16 %v1850
      %v1947 = vunpack.c.l.b16 %v1851
      %v1948 = vunpack.c.l.b16 %v1852
      %v1949 = vunpack.c.l.b16 %v1853
      %v1950 = vunpack.c.l.b16 %v1854
      %v1951 = vunpack.c.l.b16 %v1855
      %v1952 = vunpack.c.l.b16 %v1856
      %v1953 = vunpack.c.l.b16 %v1857
      %v1954 = vunpack.c.l.b16 %v1858
      %v1955 = vunpack.c.l.b16 %v1859
      %v1956 = vunpack.c.l.b16 %v1860
      %v1957 = vpack.c.b16 %v1910, %v1909
      %v1958 = vpack.c.b16 %v1912, %v1911
      %v1959 = vpack.c.b16 %v1914, %v1913
      %v1960 = vpack.c.b16 %v1916, %v1915
      %v1961 = vpack.c.b16 %v1918, %v1917
      %v1962 = vpack.c.b16 %v1920, %v1919
      %v1963 = vpack.c.b16 %v1922, %v1921
      %v1964 = vpack.c.b16 %v1924, %v1923
      %v1965 = vpack.c.b16 %v1926, %v1925
      %v1966 = vpack.c.b16 %v1928, %v1927
      %v1967 = vpack.c.b16 %v1930, %v1929
      %v1968 = vpack.c.b16 %v1932, %v1931
      %v1969 = vpack.c.b16 %v1934, %v1933
      %v1970 = vpack.c.b16 %v1936, %v1935
      %v1971 = vpack.c.b16 %v1938, %v1937
      %v1972 = vpack.c.b16 %v1940, %v1939
      %v1973 = vpack.c.b16 %v1942, %v1941
      %v1974 = vpack.c.b16 %v1944, %v1943
      %v1975 = vpack.c.b16 %v1946, %v1945
      %v1976 = vpack.c.b16 %v1948, %v1947
      %v1977 = vpack.c.b16 %v1950, %v1949
      %v1978 = vpack.c.b16 %v1952, %v1951
      %v1979 = vpack.c.b16 %v1954, %v1953
      %v1980 = vpack.c.b16 %v1956, %v1955
      %2005 = vmatprep.subr.bf16.mxu0 0
      %2006 = vmatpush1.bf16.msra.mxu0 %v1957
      %2007 = vmatprep.subr.bf16.mxu0 0
      %2008 = vmatpush1.bf16.msra.mxu0 %v1958
      %2009 = vmatprep.subr.bf16.mxu0 0
      %2010 = vmatpush1.bf16.msra.mxu0 %v1959
      %2011 = vmatprep.subr.bf16.mxu0 0
      %2012 = vmatpush1.bf16.msra.mxu0 %v1960
      %2013 = vmatprep.subr.bf16.mxu0 0
      %2014 = vmatpush1.bf16.msra.mxu0 %v1961
      %2015 = vmatprep.subr.bf16.mxu0 0
      %2016 = vmatpush1.bf16.msra.mxu0 %v1962
      %2017 = vmatprep.subr.bf16.mxu0 0
      %2018 = vmatpush1.bf16.msra.mxu0 %v1963
      %2019 = vmatprep.subr.bf16.mxu0 0
      %2020 = vmatpush1.bf16.msra.mxu0 %v1964
      %2021 = vmatprep.subr.bf16.mxu0 0
      %2022 = vmatpush1.bf16.msra.mxu0 %v1965
      %2023 = vmatprep.subr.bf16.mxu0 0
      %2024 = vmatpush1.bf16.msra.mxu0 %v1966
      %2025 = vmatprep.subr.bf16.mxu0 0
      %2026 = vmatpush1.bf16.msra.mxu0 %v1967
      %2027 = vmatprep.subr.bf16.mxu0 0
      %2028 = vmatpush1.bf16.msra.mxu0 %v1968
      %2029 = vmatprep.subr.bf16.mxu0 0
      %2030 = vmatpush1.bf16.msra.mxu0 %v1969
      %2031 = vmatprep.subr.bf16.mxu0 0
      %2032 = vmatpush1.bf16.msra.mxu0 %v1970
      %2033 = vmatprep.subr.bf16.mxu0 0
      %2034 = vmatpush1.bf16.msra.mxu0 %v1971
      %2035 = vmatprep.subr.bf16.mxu0 0
      %2036 = vmatpush1.bf16.msra.mxu0 %v1972
      %2037 = vmatprep.mubr.bf16.mxu0 %v1740
      %2038 = vmatmul.mubr.bf16.gmra.mrb[0].mxu0 %v1686
      %v2039 = vpop.f32.mrb[0].mxu0
      %v2040 = vadd.f32 0.0, %v2039
      %v2041 = vpop.f32.mrb[0].mxu0
      %v2042 = vpop.f32.mrb[0].mxu0
      %v2043 = vadd.f32 0.0, %v2042
      %v2044 = vpop.f32.mrb[0].mxu0
      %2045 = vmatprep.mubr.bf16.mxu0 %v1741
      %2046 = vmatmul.mubr.bf16.gmra.mrb[0].mxu0 %v1687
      %v2047 = vpop.f32.mrb[0].mxu0
      %v2048 = vadd.f32 0.0, %v2047
      %v2049 = vpop.f32.mrb[0].mxu0
      %v2050 = vpop.f32.mrb[0].mxu0
      %v2051 = vadd.f32 0.0, %v2050
      %v2052 = vpop.f32.mrb[0].mxu0
      %2053 = vmatprep.mubr.bf16.mxu0 %v1742
      %2054 = vmatmul.mubr.bf16.gmra.mrb[0].mxu0 %v1688
      %v2055 = vpop.f32.mrb[0].mxu0
      %v2056 = vadd.f32 0.0, %v2055
      %v2057 = vpop.f32.mrb[0].mxu0
      %v2058 = vpop.f32.mrb[0].mxu0
      %v2059 = vadd.f32 0.0, %v2058
      %v2060 = vpop.f32.mrb[0].mxu0
      %2061 = vmatprep.mubr.bf16.mxu0 %v1743
      %2062 = vmatmul.mubr.bf16.gmra.mrb[0].mxu0 %v1689
      %v2063 = vpop.f32.mrb[0].mxu0
      %v2064 = vadd.f32 0.0, %v2063
      %v2065 = vpop.f32.mrb[0].mxu0
      %v2066 = vpop.f32.mrb[0].mxu0
      %v2067 = vadd.f32 0.0, %v2066
      %v2068 = vpop.f32.mrb[0].mxu0
      %2069 = vmatprep.mubr.bf16.mxu0 %v1744
      %2070 = vmatmul.mubr.bf16.gmra.mrb[0].mxu0 %v1690
      %v2071 = vpop.f32.mrb[0].mxu0
      %v2072 = vadd.f32 0.0, %v2071
      %v2073 = vpop.f32.mrb[0].mxu0
      %v2074 = vpop.f32.mrb[0].mxu0
      %v2075 = vadd.f32 0.0, %v2074
      %v2076 = vpop.f32.mrb[0].mxu0
      %2077 = vmatprep.mubr.bf16.mxu0 %v1745
      %2078 = vmatmul.mubr.bf16.gmra.mrb[0].mxu0 %v1691
      %v2079 = vpop.f32.mrb[0].mxu0
      %v2080 = vadd.f32 0.0, %v2079
      %v2081 = vpop.f32.mrb[0].mxu0
      %v2082 = vpop.f32.mrb[0].mxu0
      %v2083 = vadd.f32 0.0, %v2082
      %v2084 = vpop.f32.mrb[0].mxu0
      %2085 = vmatprep.mubr.bf16.mxu0 %v1746
      %2086 = vmatmul.mubr.bf16.gmra.mrb[0].mxu0 %v1692
      %v2087 = vpop.f32.mrb[0].mxu0
      %v2088 = vadd.f32 0.0, %v2087
      %v2089 = vpop.f32.mrb[0].mxu0
      %v2090 = vpop.f32.mrb[0].mxu0
      %v2091 = vadd.f32 0.0, %v2090
      %v2092 = vpop.f32.mrb[0].mxu0
      %2093 = vmatprep.mubr.bf16.mxu0 %v1747
      %2094 = vmatmul.mubr.bf16.gmra.mrb[0].mxu0 %v1693
      %v2095 = vpop.f32.mrb[0].mxu0
      %v2096 = vadd.f32 0.0, %v2095
      %v2097 = vpop.f32.mrb[0].mxu0
      %v2098 = vpop.f32.mrb[0].mxu0
      %v2099 = vadd.f32 0.0, %v2098
      %v2100 = vpop.f32.mrb[0].mxu0
      %2101 = vmatprep.mubr.bf16.mxu0 %v1748
      %2102 = vmatmul.mubr.bf16.gmra.mrb[0].mxu0 %v1694
      %v2103 = vpop.f32.mrb[0].mxu0
      %v2104 = vadd.f32 0.0, %v2103
      %v2105 = vpop.f32.mrb[0].mxu0
      %v2106 = vpop.f32.mrb[0].mxu0
      %v2107 = vadd.f32 0.0, %v2106
      %v2108 = vpop.f32.mrb[0].mxu0
      %2109 = vmatprep.mubr.bf16.mxu0 %v1749
      %2110 = vmatmul.mubr.bf16.gmra.mrb[0].mxu0 %v1695
      %v2111 = vpop.f32.mrb[0].mxu0
      %v2112 = vadd.f32 0.0, %v2111
      %v2113 = vpop.f32.mrb[0].mxu0
      %v2114 = vpop.f32.mrb[0].mxu0
      %v2115 = vadd.f32 0.0, %v2114
      %v2116 = vpop.f32.mrb[0].mxu0
      %2117 = vmatprep.mubr.bf16.mxu0 %v1750
      %2118 = vmatmul.mubr.bf16.gmra.mrb[0].mxu0 %v1696
      %v2119 = vpop.f32.mrb[0].mxu0
      %v2120 = vadd.f32 0.0, %v2119
      %v2121 = vpop.f32.mrb[0].mxu0
      %v2122 = vpop.f32.mrb[0].mxu0
      %v2123 = vadd.f32 0.0, %v2122
      %v2124 = vpop.f32.mrb[0].mxu0
      %2125 = vmatprep.mubr.bf16.mxu0 %v1751
      %2126 = vmatmul.mubr.bf16.gmra.mrb[0].mxu0 %v1697
      %v2127 = vpop.f32.mrb[0].mxu0
      %v2128 = vadd.f32 0.0, %v2127
      %v2129 = vpop.f32.mrb[0].mxu0
      %v2130 = vpop.f32.mrb[0].mxu0
      %v2131 = vadd.f32 0.0, %v2130
      %v2132 = vpop.f32.mrb[0].mxu0
      %2133 = vmatprep.mubr.bf16.mxu0 %v1752
      %2134 = vmatmul.mubr.bf16.gmra.mrb[0].mxu0 %v1698
      %v2135 = vpop.f32.mrb[0].mxu0
      %v2136 = vadd.f32 0.0, %v2135
      %v2137 = vpop.f32.mrb[0].mxu0
      %v2138 = vpop.f32.mrb[0].mxu0
      %v2139 = vadd.f32 0.0, %v2138
      %v2140 = vpop.f32.mrb[0].mxu0
      %2141 = vmatprep.mubr.bf16.mxu0 %v1753
      %2142 = vmatmul.mubr.bf16.gmra.mrb[0].mxu0 %v1699
      %v2143 = vpop.f32.mrb[0].mxu0
      %v2144 = vadd.f32 0.0, %v2143
      %v2145 = vpop.f32.mrb[0].mxu0
      %v2146 = vpop.f32.mrb[0].mxu0
      %v2147 = vadd.f32 0.0, %v2146
      %v2148 = vpop.f32.mrb[0].mxu0
      %2149 = vmatprep.mubr.bf16.mxu0 %v1754
      %2150 = vmatmul.mubr.bf16.gmra.mrb[0].mxu0 %v1700
      %v2151 = vpop.f32.mrb[0].mxu0
      %v2152 = vadd.f32 0.0, %v2151
      %v2153 = vpop.f32.mrb[0].mxu0
      %v2154 = vpop.f32.mrb[0].mxu0
      %v2155 = vadd.f32 0.0, %v2154
      %v2156 = vpop.f32.mrb[0].mxu0
      %2157 = vmatprep.mubr.bf16.mxu0 %v1755
      %2158 = vmatmul.mubr.bf16.gmra.mrb[0].mxu0 %v1701
      %v2159 = vpop.f32.mrb[0].mxu0
      %v2160 = vadd.f32 0.0, %v2159
      %v2161 = vpop.f32.mrb[0].mxu0
      %v2162 = vpop.f32.mrb[0].mxu0
      %v2163 = vadd.f32 0.0, %v2162
      %v2164 = vpop.f32.mrb[0].mxu0
      %2165 = vmatprep.mubr.bf16.mxu0 %v1756
      %2166 = vmatmul.mubr.bf16.gmra.mrb[0].mxu0 %v1702
      %v2167 = vpop.f32.mrb[0].mxu0
      %v2168 = vadd.f32 0.0, %v2167
      %v2169 = vpop.f32.mrb[0].mxu0
      %v2170 = vpop.f32.mrb[0].mxu0
      %v2171 = vadd.f32 0.0, %v2170
      %v2172 = vpop.f32.mrb[0].mxu0
      %2173 = vmatprep.mubr.bf16.mxu0 %v1757
      %2174 = vmatmul.mubr.bf16.gmra.mrb[0].mxu0 %v1703
      %v2175 = vpop.f32.mrb[0].mxu0
      %v2176 = vadd.f32 0.0, %v2175
      %v2177 = vpop.f32.mrb[0].mxu0
      %v2178 = vpop.f32.mrb[0].mxu0
      %v2179 = vadd.f32 0.0, %v2178
      %v2180 = vpop.f32.mrb[0].mxu0
      %2181 = vdwg.mxu0
      %2182 = vmatprep.subr.bf16.mxu0 0
      %2183 = vmatpush1.bf16.msra.mxu0 %v1973
      %2184 = vmatprep.subr.bf16.mxu0 0
      %2185 = vmatpush1.bf16.msra.mxu0 %v1974
      %2186 = vmatprep.subr.bf16.mxu0 0
      %2187 = vmatpush1.bf16.msra.mxu0 %v1975
      %2188 = vmatprep.subr.bf16.mxu0 0
      %2189 = vmatpush1.bf16.msra.mxu0 %v1976
      %2190 = vmatprep.subr.bf16.mxu0 0
      %2191 = vmatpush1.bf16.msra.mxu0 %v1977
      %2192 = vmatprep.subr.bf16.mxu0 0
      %2193 = vmatpush1.bf16.msra.mxu0 %v1978
      %2194 = vmatprep.subr.bf16.mxu0 0
      %2195 = vmatpush1.bf16.msra.mxu0 %v1979
      %2196 = vmatprep.subr.bf16.mxu0 0
      %2197 = vmatpush1.bf16.msra.mxu0 %v1980
      %2198 = vmatprep.subr.bf16.mxu0 0
      %2199 = vmatpush1.bf16.msra.mxu0 0
      %2200 = vmatprep.subr.bf16.mxu0 0
      %2201 = vmatpush1.bf16.msra.mxu0 0
      %2202 = vmatprep.subr.bf16.mxu0 0
      %2203 = vmatpush1.bf16.msra.mxu0 0
      %2204 = vmatprep.subr.bf16.mxu0 0
      %2205 = vmatpush1.bf16.msra.mxu0 0
      %2206 = vmatprep.subr.bf16.mxu0 0
      %2207 = vmatpush1.bf16.msra.mxu0 0
      %2208 = vmatprep.subr.bf16.mxu0 0
      %2209 = vmatpush1.bf16.msra.mxu0 0
      %2210 = vmatprep.subr.bf16.mxu0 0
      %2211 = vmatpush1.bf16.msra.mxu0 0
      %2212 = vmatprep.subr.bf16.mxu0 0
      %2213 = vmatpush1.bf16.msra.mxu0 0
      %2214 = vmatprep.mubr.bf16.mxu0 0
      %2215 = vmatmul.mubr.bf16.gmra.mrb[0].mxu0 %v1794
      %v2216 = vpop.f32.mrb[0].mxu0
      %v2217 = vadd.f32 %v2040, %v2216
      %v2218 = vpop.f32.mrb[0].mxu0
      %v2219 = vpop.f32.mrb[0].mxu0
      %v2220 = vadd.f32 %v2043, %v2219
      %v2221 = vpop.f32.mrb[0].mxu0
      %2222 = vmatprep.mubr.bf16.mxu0 0
      %2223 = vmatmul.mubr.bf16.gmra.mrb[0].mxu0 %v1795
      %v2224 = vpop.f32.mrb[0].mxu0
      %v2225 = vadd.f32 %v2048, %v2224
      %v2226 = vpop.f32.mrb[0].mxu0
      %v2227 = vpop.f32.mrb[0].mxu0
      %v2228 = vadd.f32 %v2051, %v2227
      %v2229 = vpop.f32.mrb[0].mxu0
      %2230 = vmatprep.mubr.bf16.mxu0 0
      %2231 = vmatmul.mubr.bf16.gmra.mrb[0].mxu0 %v1796
      %v2232 = vpop.f32.mrb[0].mxu0
      %v2233 = vadd.f32 %v2056, %v2232
      %v2234 = vpop.f32.mrb[0].mxu0
      %v2235 = vpop.f32.mrb[0].mxu0
      %v2236 = vadd.f32 %v2059, %v2235
      %v2237 = vpop.f32.mrb[0].mxu0
      %2238 = vmatprep.mubr.bf16.mxu0 0
      %2239 = vmatmul.mubr.bf16.gmra.mrb[0].mxu0 %v1797
      %v2240 = vpop.f32.mrb[0].mxu0
      %v2241 = vadd.f32 %v2064, %v2240
      %v2242 = vpop.f32.mrb[0].mxu0
      %v2243 = vpop.f32.mrb[0].mxu0
      %v2244 = vadd.f32 %v2067, %v2243
      %v2245 = vpop.f32.mrb[0].mxu0
      %2246 = vmatprep.mubr.bf16.mxu0 0
      %2247 = vmatmul.mubr.bf16.gmra.mrb[0].mxu0 %v1798
      %v2248 = vpop.f32.mrb[0].mxu0
      %v2249 = vadd.f32 %v2072, %v2248
      %v2250 = vpop.f32.mrb[0].mxu0
      %v2251 = vpop.f32.mrb[0].mxu0
      %v2252 = vadd.f32 %v2075, %v2251
      %v2253 = vpop.f32.mrb[0].mxu0
      %2254 = vmatprep.mubr.bf16.mxu0 0
      %2255 = vmatmul.mubr.bf16.gmra.mrb[0].mxu0 %v1799
      %v2256 = vpop.f32.mrb[0].mxu0
      %v2257 = vadd.f32 %v2080, %v2256
      %v2258 = vpop.f32.mrb[0].mxu0
      %v2259 = vpop.f32.mrb[0].mxu0
      %v2260 = vadd.f32 %v2083, %v2259
      %v2261 = vpop.f32.mrb[0].mxu0
      %2262 = vmatprep.mubr.bf16.mxu0 0
      %2263 = vmatmul.mubr.bf16.gmra.mrb[0].mxu0 %v1800
      %v2264 = vpop.f32.mrb[0].mxu0
      %v2265 = vadd.f32 %v2088, %v2264
      %v2266 = vpop.f32.mrb[0].mxu0
      %v2267 = vpop.f32.mrb[0].mxu0
      %v2268 = vadd.f32 %v2091, %v2267
      %v2269 = vpop.f32.mrb[0].mxu0
      %2270 = vmatprep.mubr.bf16.mxu0 0
      %2271 = vmatmul.mubr.bf16.gmra.mrb[0].mxu0 %v1801
      %v2272 = vpop.f32.mrb[0].mxu0
      %v2273 = vadd.f32 %v2096, %v2272
      %v2274 = vpop.f32.mrb[0].mxu0
      %v2275 = vpop.f32.mrb[0].mxu0
      %v2276 = vadd.f32 %v2099, %v2275
      %v2277 = vpop.f32.mrb[0].mxu0
      %2278 = vmatprep.mubr.bf16.mxu0 0
      %2279 = vmatmul.mubr.bf16.gmra.mrb[0].mxu0 %v1802
      %v2280 = vpop.f32.mrb[0].mxu0
      %v2281 = vadd.f32 %v2104, %v2280
      %v2282 = vpop.f32.mrb[0].mxu0
      %v2283 = vpop.f32.mrb[0].mxu0
      %v2284 = vadd.f32 %v2107, %v2283
      %v2285 = vpop.f32.mrb[0].mxu0
      %2286 = vmatprep.mubr.bf16.mxu0 0
      %2287 = vmatmul.mubr.bf16.gmra.mrb[0].mxu0 %v1803
      %v2288 = vpop.f32.mrb[0].mxu0
      %v2289 = vadd.f32 %v2112, %v2288
      %v2290 = vpop.f32.mrb[0].mxu0
      %v2291 = vpop.f32.mrb[0].mxu0
      %v2292 = vadd.f32 %v2115, %v2291
      %v2293 = vpop.f32.mrb[0].mxu0
      %2294 = vmatprep.mubr.bf16.mxu0 0
      %2295 = vmatmul.mubr.bf16.gmra.mrb[0].mxu0 %v1804
      %v2296 = vpop.f32.mrb[0].mxu0
      %v2297 = vadd.f32 %v2120, %v2296
      %v2298 = vpop.f32.mrb[0].mxu0
      %v2299 = vpop.f32.mrb[0].mxu0
      %v2300 = vadd.f32 %v2123, %v2299
      %v2301 = vpop.f32.mrb[0].mxu0
      %2302 = vmatprep.mubr.bf16.mxu0 0
      %2303 = vmatmul.mubr.bf16.gmra.mrb[0].mxu0 %v1805
      %v2304 = vpop.f32.mrb[0].mxu0
      %v2305 = vadd.f32 %v2128, %v2304
      %v2306 = vpop.f32.mrb[0].mxu0
      %v2307 = vpop.f32.mrb[0].mxu0
      %v2308 = vadd.f32 %v2131, %v2307
      %v2309 = vpop.f32.mrb[0].mxu0
      %2310 = vmatprep.mubr.bf16.mxu0 0
      %2311 = vmatmul.mubr.bf16.gmra.mrb[0].mxu0 %v1806
      %v2312 = vpop.f32.mrb[0].mxu0
      %v2313 = vadd.f32 %v2136, %v2312
      %v2314 = vpop.f32.mrb[0].mxu0
      %v2315 = vpop.f32.mrb[0].mxu0
      %v2316 = vadd.f32 %v2139, %v2315
      %v2317 = vpop.f32.mrb[0].mxu0
      %2318 = vmatprep.mubr.bf16.mxu0 0
      %2319 = vmatmul.mubr.bf16.gmra.mrb[0].mxu0 %v1807
      %v2320 = vpop.f32.mrb[0].mxu0
      %v2321 = vadd.f32 %v2144, %v2320
      %v2322 = vpop.f32.mrb[0].mxu0
      %v2323 = vpop.f32.mrb[0].mxu0
      %v2324 = vadd.f32 %v2147, %v2323
      %v2325 = vpop.f32.mrb[0].mxu0
      %2326 = vmatprep.mubr.bf16.mxu0 0
      %2327 = vmatmul.mubr.bf16.gmra.mrb[0].mxu0 %v1808
      %v2328 = vpop.f32.mrb[0].mxu0
      %v2329 = vadd.f32 %v2152, %v2328
      %v2330 = vpop.f32.mrb[0].mxu0
      %v2331 = vpop.f32.mrb[0].mxu0
      %v2332 = vadd.f32 %v2155, %v2331
      %v2333 = vpop.f32.mrb[0].mxu0
      %2334 = vmatprep.mubr.bf16.mxu0 0
      %2335 = vmatmul.mubr.bf16.gmra.mrb[0].mxu0 %v1809
      %v2336 = vpop.f32.mrb[0].mxu0
      %v2337 = vadd.f32 %v2160, %v2336
      %v2338 = vpop.f32.mrb[0].mxu0
      %v2339 = vpop.f32.mrb[0].mxu0
      %v2340 = vadd.f32 %v2163, %v2339
      %v2341 = vpop.f32.mrb[0].mxu0
      %2342 = vmatprep.mubr.bf16.mxu0 0
      %2343 = vmatmul.mubr.bf16.gmra.mrb[0].mxu0 %v1810
      %v2344 = vpop.f32.mrb[0].mxu0
      %v2345 = vadd.f32 %v2168, %v2344
      %v2346 = vpop.f32.mrb[0].mxu0
      %v2347 = vpop.f32.mrb[0].mxu0
      %v2348 = vadd.f32 %v2171, %v2347
      %v2349 = vpop.f32.mrb[0].mxu0
      %2350 = vmatprep.mubr.bf16.mxu0 0
      %2351 = vmatmul.mubr.bf16.gmra.mrb[0].mxu0 %v1811
      %v2352 = vpop.f32.mrb[0].mxu0
      %v2353 = vadd.f32 %v2176, %v2352
      %v2354 = vpop.f32.mrb[0].mxu0
      %v2355 = vpop.f32.mrb[0].mxu0
      %v2356 = vadd.f32 %v2179, %v2355
      %v2357 = vpop.f32.mrb[0].mxu0
      %2358 = vdwg.mxu0
      %v2359 = vadd.f32 %v1508, %v2217
      %v2360 = vadd.f32 %v1511, %v2220
      %v2361 = vadd.f32 %v1516, %v2225
      %v2362 = vadd.f32 %v1519, %v2228
      %v2363 = vadd.f32 %v1524, %v2233
      %v2364 = vadd.f32 %v1527, %v2236
      %v2365 = vadd.f32 %v1532, %v2241
      %v2366 = vadd.f32 %v1535, %v2244
      %v2367 = vadd.f32 %v1540, %v2249
      %v2368 = vadd.f32 %v1543, %v2252
      %v2369 = vadd.f32 %v1548, %v2257
      %v2370 = vadd.f32 %v1551, %v2260
      %v2371 = vadd.f32 %v1556, %v2265
      %v2372 = vadd.f32 %v1559, %v2268
      %v2373 = vadd.f32 %v1564, %v2273
      %v2374 = vadd.f32 %v1567, %v2276
      %v2375 = vadd.f32 %v1572, %v2281
      %v2376 = vadd.f32 %v1575, %v2284
      %v2377 = vadd.f32 %v1580, %v2289
      %v2378 = vadd.f32 %v1583, %v2292
      %v2379 = vadd.f32 %v1588, %v2297
      %v2380 = vadd.f32 %v1591, %v2300
      %v2381 = vadd.f32 %v1596, %v2305
      %v2382 = vadd.f32 %v1599, %v2308
      %v2383 = vadd.f32 %v1604, %v2313
      %v2384 = vadd.f32 %v1607, %v2316
      %v2385 = vadd.f32 %v1612, %v2321
      %v2386 = vadd.f32 %v1615, %v2324
      %v2387 = vadd.f32 %v1620, %v2329
      %v2388 = vadd.f32 %v1623, %v2332
      %v2389 = vadd.f32 %v1628, %v2337
      %v2390 = vadd.f32 %v1631, %v2340
      %v2391 = vadd.f32 %v1636, %v2345
      %v2392 = vadd.f32 %v1639, %v2348
      %v2393 = vadd.f32 %v1644, %v2353
      %v2394 = vadd.f32 %v1647, %v2356
      %v2396 = vlaneseq
      %v2397 = vshrl.u32 %v2396, 7
      %v2398 = vsub.s32 0, %v2397
      %v2399 = vrot.slane %v280, %v2398
      %v2401 = vmul.f32 %v2359, %v2399
      %v2402 = vmul.f32 %v2360, %v2399
      %v2403 = vmul.f32 %v2361, %v2399
      %v2404 = vmul.f32 %v2362, %v2399
      %v2405 = vmul.f32 %v2363, %v2399
      %v2406 = vmul.f32 %v2364, %v2399
      %v2407 = vmul.f32 %v2365, %v2399
      %v2408 = vmul.f32 %v2366, %v2399
      %v2409 = vmul.f32 %v2367, %v2399
      %v2410 = vmul.f32 %v2368, %v2399
      %v2411 = vmul.f32 %v2369, %v2399
      %v2412 = vmul.f32 %v2370, %v2399
      %v2413 = vmul.f32 %v2371, %v2399
      %v2414 = vmul.f32 %v2372, %v2399
      %v2415 = vmul.f32 %v2373, %v2399
      %v2416 = vmul.f32 %v2374, %v2399
      %v2417 = vmul.f32 %v2375, %v2399
      %v2418 = vmul.f32 %v2376, %v2399
      %v2419 = vmul.f32 %v2377, %v2399
      %v2420 = vmul.f32 %v2378, %v2399
      %v2421 = vmul.f32 %v2379, %v2399
      %v2422 = vmul.f32 %v2380, %v2399
      %v2423 = vmul.f32 %v2381, %v2399
      %v2424 = vmul.f32 %v2382, %v2399
      %v2425 = vmul.f32 %v2383, %v2399
      %v2426 = vmul.f32 %v2384, %v2399
      %v2427 = vmul.f32 %v2385, %v2399
      %v2428 = vmul.f32 %v2386, %v2399
      %v2429 = vmul.f32 %v2387, %v2399
      %v2430 = vmul.f32 %v2388, %v2399
      %v2431 = vmul.f32 %v2389, %v2399
      %v2432 = vmul.f32 %v2390, %v2399
      %v2433 = vmul.f32 %v2391, %v2399
      %v2434 = vmul.f32 %v2392, %v2399
      %v2435 = vmul.f32 %v2393, %v2399
      %v2436 = vmul.f32 %v2394, %v2399
      %v2438 = vlaneseq
      %v2439 = vshrl.u32 %v2438, 7
      %v2440 = vsub.s32 0, %v2439
      %v2441 = vrot.slane %v281, %v2440
      %v2443 = vadd.f32 %v2401, %v2441
      %v2444 = vadd.f32 %v2402, %v2441
      %v2445 = vadd.f32 %v2403, %v2441
      %v2446 = vadd.f32 %v2404, %v2441
      %v2447 = vadd.f32 %v2405, %v2441
      %v2448 = vadd.f32 %v2406, %v2441
      %v2449 = vadd.f32 %v2407, %v2441
      %v2450 = vadd.f32 %v2408, %v2441
      %v2451 = vadd.f32 %v2409, %v2441
      %v2452 = vadd.f32 %v2410, %v2441
      %v2453 = vadd.f32 %v2411, %v2441
      %v2454 = vadd.f32 %v2412, %v2441
      %v2455 = vadd.f32 %v2413, %v2441
      %v2456 = vadd.f32 %v2414, %v2441
      %v2457 = vadd.f32 %v2415, %v2441
      %v2458 = vadd.f32 %v2416, %v2441
      %v2459 = vadd.f32 %v2417, %v2441
      %v2460 = vadd.f32 %v2418, %v2441
      %v2461 = vadd.f32 %v2419, %v2441
      %v2462 = vadd.f32 %v2420, %v2441
      %v2463 = vadd.f32 %v2421, %v2441
      %v2464 = vadd.f32 %v2422, %v2441
      %v2465 = vadd.f32 %v2423, %v2441
      %v2466 = vadd.f32 %v2424, %v2441
      %v2467 = vadd.f32 %v2425, %v2441
      %v2468 = vadd.f32 %v2426, %v2441
      %v2469 = vadd.f32 %v2427, %v2441
      %v2470 = vadd.f32 %v2428, %v2441
      %v2471 = vadd.f32 %v2429, %v2441
      %v2472 = vadd.f32 %v2430, %v2441
      %v2473 = vadd.f32 %v2431, %v2441
      %v2474 = vadd.f32 %v2432, %v2441
      %v2475 = vadd.f32 %v2433, %v2441
      %v2476 = vadd.f32 %v2434, %v2441
      %v2477 = vadd.f32 %v2435, %v2441
      %v2478 = vadd.f32 %v2436, %v2441
      %v2479 = vmax.f32 %v2443, 0.0
      %v2480 = vmax.f32 %v2444, 0.0
      %v2481 = vmax.f32 %v2445, 0.0
      %v2482 = vmax.f32 %v2446, 0.0
      %v2483 = vmax.f32 %v2447, 0.0
      %v2484 = vmax.f32 %v2448, 0.0
      %v2485 = vmax.f32 %v2449, 0.0
      %v2486 = vmax.f32 %v2450, 0.0
      %v2487 = vmax.f32 %v2451, 0.0
      %v2488 = vmax.f32 %v2452, 0.0
      %v2489 = vmax.f32 %v2453, 0.0
      %v2490 = vmax.f32 %v2454, 0.0
      %v2491 = vmax.f32 %v2455, 0.0
      %v2492 = vmax.f32 %v2456, 0.0
      %v2493 = vmax.f32 %v2457, 0.0
      %v2494 = vmax.f32 %v2458, 0.0
      %v2495 = vmax.f32 %v2459, 0.0
      %v2496 = vmax.f32 %v2460, 0.0
      %v2497 = vmax.f32 %v2461, 0.0
      %v2498 = vmax.f32 %v2462, 0.0
      %v2499 = vmax.f32 %v2463, 0.0
      %v2500 = vmax.f32 %v2464, 0.0
      %v2501 = vmax.f32 %v2465, 0.0
      %v2502 = vmax.f32 %v2466, 0.0
      %v2503 = vmax.f32 %v2467, 0.0
      %v2504 = vmax.f32 %v2468, 0.0
      %v2505 = vmax.f32 %v2469, 0.0
      %v2506 = vmax.f32 %v2470, 0.0
      %v2507 = vmax.f32 %v2471, 0.0
      %v2508 = vmax.f32 %v2472, 0.0
      %v2509 = vmax.f32 %v2473, 0.0
      %v2510 = vmax.f32 %v2474, 0.0
      %v2511 = vmax.f32 %v2475, 0.0
      %v2512 = vmax.f32 %v2476, 0.0
      %v2513 = vmax.f32 %v2477, 0.0
      %v2514 = vmax.f32 %v2478, 0.0
      %v2515 = vlaneseq
      %v2516 = vshrl.u32 %v2515, 7
      %v2517 = vadd.s32 %v2516, 8
      %v2518 = vadd.s32 %v2516, 16
      %v2519 = vadd.s32 %v2516, 24
      %v2520 = vadd.s32 %v2516, 32
      %v2521 = vadd.s32 %v2516, 40
      %v2522 = vadd.s32 %v2516, 48
      %v2523 = vadd.s32 %v2516, 56
      %v2524 = vadd.s32 %v2516, 64
      %v2525 = vadd.s32 %v2516, 72
      %v2526 = vadd.s32 %v2516, 80
      %v2527 = vadd.s32 %v2516, 88
      %v2528 = vadd.s32 %v2516, 96
      %v2529 = vadd.s32 %v2516, 104
      %v2530 = vadd.s32 %v2516, 112
      %v2531 = vadd.s32 %v2516, 120
      %v2532 = vadd.s32 %v2516, 128
      %v2533 = vadd.s32 %v2516, 136
      %v2534 = vadd.s32 %v2516, 144
      %v2535 = vadd.s32 %v2516, 152
      %v2536 = vadd.s32 %v2516, 160
      %v2537 = vadd.s32 %v2516, 168
      %v2538 = vadd.s32 %v2516, 176
      %v2539 = vadd.s32 %v2516, 184
      %v2540 = vadd.s32 %v2516, 192
      %v2541 = vadd.s32 %v2516, 200
      %v2542 = vadd.s32 %v2516, 208
      %v2543 = vadd.s32 %v2516, 216
      %v2544 = vadd.s32 %v2516, 224
      %v2545 = vadd.s32 %v2516, 232
      %v2546 = vadd.s32 %v2516, 240
      %v2547 = vadd.s32 %v2516, 248
      %v2548 = vadd.s32 %v2516, 256
      %v2549 = vadd.s32 %v2516, 264
      %v2550 = vadd.s32 %v2516, 272
      %v2551 = vadd.s32 %v2516, 280
      %vm2552 = vcmp.lt.s32.totalorder %v2516, 0
      %v2553 = vsub.s32 0, %v2516
      %v2554 = vsel %vm2552, %v2553, %v2516
      %v2555 = vmul.u32.u64.compose %v2554, 3817748708
      %v2556 = vextract.low.u32 %v2555
      %v2557 = vextract.high.u32 %v2555
      %v2558 = vshrl.u32 %v2557, 4
      %v2559 = vmul.u32 %v2558, 18
      %v2560 = vsub.s32 %v2554, %v2559
      %v2561 = vsub.s32 0, %v2560
      %v2562 = vsel %vm2552, %v2561, %v2560
      %vm2563 = vcmp.lt.s32.totalorder %v2517, 0
      %v2564 = vsub.s32 0, %v2517
      %v2565 = vsel %vm2563, %v2564, %v2517
      %v2566 = vmul.u32.u64.compose %v2565, 3817748708
      %v2567 = vextract.low.u32 %v2566
      %v2568 = vextract.high.u32 %v2566
      %v2569 = vshrl.u32 %v2568, 4
      %v2570 = vmul.u32 %v2569, 18
      %v2571 = vsub.s32 %v2565, %v2570
      %v2572 = vsub.s32 0, %v2571
      %v2573 = vsel %vm2563, %v2572, %v2571
      %vm2574 = vcmp.lt.s32.totalorder %v2518, 0
      %v2575 = vsub.s32 0, %v2518
      %v2576 = vsel %vm2574, %v2575, %v2518
      %v2577 = vmul.u32.u64.compose %v2576, 3817748708
      %v2578 = vextract.low.u32 %v2577
      %v2579 = vextract.high.u32 %v2577
      %v2580 = vshrl.u32 %v2579, 4
      %v2581 = vmul.u32 %v2580, 18
      %v2582 = vsub.s32 %v2576, %v2581
      %v2583 = vsub.s32 0, %v2582
      %v2584 = vsel %vm2574, %v2583, %v2582
      %vm2585 = vcmp.lt.s32.totalorder %v2519, 0
      %v2586 = vsub.s32 0, %v2519
      %v2587 = vsel %vm2585, %v2586, %v2519
      %v2588 = vmul.u32.u64.compose %v2587, 3817748708
      %v2589 = vextract.low.u32 %v2588
      %v2590 = vextract.high.u32 %v2588
      %v2591 = vshrl.u32 %v2590, 4
      %v2592 = vmul.u32 %v2591, 18
      %v2593 = vsub.s32 %v2587, %v2592
      %v2594 = vsub.s32 0, %v2593
      %v2595 = vsel %vm2585, %v2594, %v2593
      %vm2596 = vcmp.lt.s32.totalorder %v2520, 0
      %v2597 = vsub.s32 0, %v2520
      %v2598 = vsel %vm2596, %v2597, %v2520
      %v2599 = vmul.u32.u64.compose %v2598, 3817748708
      %v2600 = vextract.low.u32 %v2599
      %v2601 = vextract.high.u32 %v2599
      %v2602 = vshrl.u32 %v2601, 4
      %v2603 = vmul.u32 %v2602, 18
      %v2604 = vsub.s32 %v2598, %v2603
      %v2605 = vsub.s32 0, %v2604
      %v2606 = vsel %vm2596, %v2605, %v2604
      %vm2607 = vcmp.lt.s32.totalorder %v2521, 0
      %v2608 = vsub.s32 0, %v2521
      %v2609 = vsel %vm2607, %v2608, %v2521
      %v2610 = vmul.u32.u64.compose %v2609, 3817748708
      %v2611 = vextract.low.u32 %v2610
      %v2612 = vextract.high.u32 %v2610
      %v2613 = vshrl.u32 %v2612, 4
      %v2614 = vmul.u32 %v2613, 18
      %v2615 = vsub.s32 %v2609, %v2614
      %v2616 = vsub.s32 0, %v2615
      %v2617 = vsel %vm2607, %v2616, %v2615
      %vm2618 = vcmp.lt.s32.totalorder %v2522, 0
      %v2619 = vsub.s32 0, %v2522
      %v2620 = vsel %vm2618, %v2619, %v2522
      %v2621 = vmul.u32.u64.compose %v2620, 3817748708
      %v2622 = vextract.low.u32 %v2621
      %v2623 = vextract.high.u32 %v2621
      %v2624 = vshrl.u32 %v2623, 4
      %v2625 = vmul.u32 %v2624, 18
      %v2626 = vsub.s32 %v2620, %v2625
      %v2627 = vsub.s32 0, %v2626
      %v2628 = vsel %vm2618, %v2627, %v2626
      %vm2629 = vcmp.lt.s32.totalorder %v2523, 0
      %v2630 = vsub.s32 0, %v2523
      %v2631 = vsel %vm2629, %v2630, %v2523
      %v2632 = vmul.u32.u64.compose %v2631, 3817748708
      %v2633 = vextract.low.u32 %v2632
      %v2634 = vextract.high.u32 %v2632
      %v2635 = vshrl.u32 %v2634, 4
      %v2636 = vmul.u32 %v2635, 18
      %v2637 = vsub.s32 %v2631, %v2636
      %v2638 = vsub.s32 0, %v2637
      %v2639 = vsel %vm2629, %v2638, %v2637
      %vm2640 = vcmp.lt.s32.totalorder %v2524, 0
      %v2641 = vsub.s32 0, %v2524
      %v2642 = vsel %vm2640, %v2641, %v2524
      %v2643 = vmul.u32.u64.compose %v2642, 3817748708
      %v2644 = vextract.low.u32 %v2643
      %v2645 = vextract.high.u32 %v2643
      %v2646 = vshrl.u32 %v2645, 4
      %v2647 = vmul.u32 %v2646, 18
      %v2648 = vsub.s32 %v2642, %v2647
      %v2649 = vsub.s32 0, %v2648
      %v2650 = vsel %vm2640, %v2649, %v2648
      %vm2651 = vcmp.lt.s32.totalorder %v2525, 0
      %v2652 = vsub.s32 0, %v2525
      %v2653 = vsel %vm2651, %v2652, %v2525
      %v2654 = vmul.u32.u64.compose %v2653, 3817748708
      %v2655 = vextract.low.u32 %v2654
      %v2656 = vextract.high.u32 %v2654
      %v2657 = vshrl.u32 %v2656, 4
      %v2658 = vmul.u32 %v2657, 18
      %v2659 = vsub.s32 %v2653, %v2658
      %v2660 = vsub.s32 0, %v2659
      %v2661 = vsel %vm2651, %v2660, %v2659
      %vm2662 = vcmp.lt.s32.totalorder %v2526, 0
      %v2663 = vsub.s32 0, %v2526
      %v2664 = vsel %vm2662, %v2663, %v2526
      %v2665 = vmul.u32.u64.compose %v2664, 3817748708
      %v2666 = vextract.low.u32 %v2665
      %v2667 = vextract.high.u32 %v2665
      %v2668 = vshrl.u32 %v2667, 4
      %v2669 = vmul.u32 %v2668, 18
      %v2670 = vsub.s32 %v2664, %v2669
      %v2671 = vsub.s32 0, %v2670
      %v2672 = vsel %vm2662, %v2671, %v2670
      %vm2673 = vcmp.lt.s32.totalorder %v2527, 0
      %v2674 = vsub.s32 0, %v2527
      %v2675 = vsel %vm2673, %v2674, %v2527
      %v2676 = vmul.u32.u64.compose %v2675, 3817748708
      %v2677 = vextract.low.u32 %v2676
      %v2678 = vextract.high.u32 %v2676
      %v2679 = vshrl.u32 %v2678, 4
      %v2680 = vmul.u32 %v2679, 18
      %v2681 = vsub.s32 %v2675, %v2680
      %v2682 = vsub.s32 0, %v2681
      %v2683 = vsel %vm2673, %v2682, %v2681
      %vm2684 = vcmp.lt.s32.totalorder %v2528, 0
      %v2685 = vsub.s32 0, %v2528
      %v2686 = vsel %vm2684, %v2685, %v2528
      %v2687 = vmul.u32.u64.compose %v2686, 3817748708
      %v2688 = vextract.low.u32 %v2687
      %v2689 = vextract.high.u32 %v2687
      %v2690 = vshrl.u32 %v2689, 4
      %v2691 = vmul.u32 %v2690, 18
      %v2692 = vsub.s32 %v2686, %v2691
      %v2693 = vsub.s32 0, %v2692
      %v2694 = vsel %vm2684, %v2693, %v2692
      %vm2695 = vcmp.lt.s32.totalorder %v2529, 0
      %v2696 = vsub.s32 0, %v2529
      %v2697 = vsel %vm2695, %v2696, %v2529
      %v2698 = vmul.u32.u64.compose %v2697, 3817748708
      %v2699 = vextract.low.u32 %v2698
      %v2700 = vextract.high.u32 %v2698
      %v2701 = vshrl.u32 %v2700, 4
      %v2702 = vmul.u32 %v2701, 18
      %v2703 = vsub.s32 %v2697, %v2702
      %v2704 = vsub.s32 0, %v2703
      %v2705 = vsel %vm2695, %v2704, %v2703
      %vm2706 = vcmp.lt.s32.totalorder %v2530, 0
      %v2707 = vsub.s32 0, %v2530
      %v2708 = vsel %vm2706, %v2707, %v2530
      %v2709 = vmul.u32.u64.compose %v2708, 3817748708
      %v2710 = vextract.low.u32 %v2709
      %v2711 = vextract.high.u32 %v2709
      %v2712 = vshrl.u32 %v2711, 4
      %v2713 = vmul.u32 %v2712, 18
      %v2714 = vsub.s32 %v2708, %v2713
      %v2715 = vsub.s32 0, %v2714
      %v2716 = vsel %vm2706, %v2715, %v2714
      %vm2717 = vcmp.lt.s32.totalorder %v2531, 0
      %v2718 = vsub.s32 0, %v2531
      %v2719 = vsel %vm2717, %v2718, %v2531
      %v2720 = vmul.u32.u64.compose %v2719, 3817748708
      %v2721 = vextract.low.u32 %v2720
      %v2722 = vextract.high.u32 %v2720
      %v2723 = vshrl.u32 %v2722, 4
      %v2724 = vmul.u32 %v2723, 18
      %v2725 = vsub.s32 %v2719, %v2724
      %v2726 = vsub.s32 0, %v2725
      %v2727 = vsel %vm2717, %v2726, %v2725
      %vm2728 = vcmp.lt.s32.totalorder %v2532, 0
      %v2729 = vsub.s32 0, %v2532
      %v2730 = vsel %vm2728, %v2729, %v2532
      %v2731 = vmul.u32.u64.compose %v2730, 3817748708
      %v2732 = vextract.low.u32 %v2731
      %v2733 = vextract.high.u32 %v2731
      %v2734 = vshrl.u32 %v2733, 4
      %v2735 = vmul.u32 %v2734, 18
      %v2736 = vsub.s32 %v2730, %v2735
      %v2737 = vsub.s32 0, %v2736
      %v2738 = vsel %vm2728, %v2737, %v2736
      %vm2739 = vcmp.lt.s32.totalorder %v2533, 0
      %v2740 = vsub.s32 0, %v2533
      %v2741 = vsel %vm2739, %v2740, %v2533
      %v2742 = vmul.u32.u64.compose %v2741, 3817748708
      %v2743 = vextract.low.u32 %v2742
      %v2744 = vextract.high.u32 %v2742
      %v2745 = vshrl.u32 %v2744, 4
      %v2746 = vmul.u32 %v2745, 18
      %v2747 = vsub.s32 %v2741, %v2746
      %v2748 = vsub.s32 0, %v2747
      %v2749 = vsel %vm2739, %v2748, %v2747
      %vm2750 = vcmp.lt.s32.totalorder %v2534, 0
      %v2751 = vsub.s32 0, %v2534
      %v2752 = vsel %vm2750, %v2751, %v2534
      %v2753 = vmul.u32.u64.compose %v2752, 3817748708
      %v2754 = vextract.low.u32 %v2753
      %v2755 = vextract.high.u32 %v2753
      %v2756 = vshrl.u32 %v2755, 4
      %v2757 = vmul.u32 %v2756, 18
      %v2758 = vsub.s32 %v2752, %v2757
      %v2759 = vsub.s32 0, %v2758
      %v2760 = vsel %vm2750, %v2759, %v2758
      %vm2761 = vcmp.lt.s32.totalorder %v2535, 0
      %v2762 = vsub.s32 0, %v2535
      %v2763 = vsel %vm2761, %v2762, %v2535
      %v2764 = vmul.u32.u64.compose %v2763, 3817748708
      %v2765 = vextract.low.u32 %v2764
      %v2766 = vextract.high.u32 %v2764
      %v2767 = vshrl.u32 %v2766, 4
      %v2768 = vmul.u32 %v2767, 18
      %v2769 = vsub.s32 %v2763, %v2768
      %v2770 = vsub.s32 0, %v2769
      %v2771 = vsel %vm2761, %v2770, %v2769
      %vm2772 = vcmp.lt.s32.totalorder %v2536, 0
      %v2773 = vsub.s32 0, %v2536
      %v2774 = vsel %vm2772, %v2773, %v2536
      %v2775 = vmul.u32.u64.compose %v2774, 3817748708
      %v2776 = vextract.low.u32 %v2775
      %v2777 = vextract.high.u32 %v2775
      %v2778 = vshrl.u32 %v2777, 4
      %v2779 = vmul.u32 %v2778, 18
      %v2780 = vsub.s32 %v2774, %v2779
      %v2781 = vsub.s32 0, %v2780
      %v2782 = vsel %vm2772, %v2781, %v2780
      %vm2783 = vcmp.lt.s32.totalorder %v2537, 0
      %v2784 = vsub.s32 0, %v2537
      %v2785 = vsel %vm2783, %v2784, %v2537
      %v2786 = vmul.u32.u64.compose %v2785, 3817748708
      %v2787 = vextract.low.u32 %v2786
      %v2788 = vextract.high.u32 %v2786
      %v2789 = vshrl.u32 %v2788, 4
      %v2790 = vmul.u32 %v2789, 18
      %v2791 = vsub.s32 %v2785, %v2790
      %v2792 = vsub.s32 0, %v2791
      %v2793 = vsel %vm2783, %v2792, %v2791
      %vm2794 = vcmp.lt.s32.totalorder %v2538, 0
      %v2795 = vsub.s32 0, %v2538
      %v2796 = vsel %vm2794, %v2795, %v2538
      %v2797 = vmul.u32.u64.compose %v2796, 3817748708
      %v2798 = vextract.low.u32 %v2797
      %v2799 = vextract.high.u32 %v2797
      %v2800 = vshrl.u32 %v2799, 4
      %v2801 = vmul.u32 %v2800, 18
      %v2802 = vsub.s32 %v2796, %v2801
      %v2803 = vsub.s32 0, %v2802
      %v2804 = vsel %vm2794, %v2803, %v2802
      %vm2805 = vcmp.lt.s32.totalorder %v2539, 0
      %v2806 = vsub.s32 0, %v2539
      %v2807 = vsel %vm2805, %v2806, %v2539
      %v2808 = vmul.u32.u64.compose %v2807, 3817748708
      %v2809 = vextract.low.u32 %v2808
      %v2810 = vextract.high.u32 %v2808
      %v2811 = vshrl.u32 %v2810, 4
      %v2812 = vmul.u32 %v2811, 18
      %v2813 = vsub.s32 %v2807, %v2812
      %v2814 = vsub.s32 0, %v2813
      %v2815 = vsel %vm2805, %v2814, %v2813
      %vm2816 = vcmp.lt.s32.totalorder %v2540, 0
      %v2817 = vsub.s32 0, %v2540
      %v2818 = vsel %vm2816, %v2817, %v2540
      %v2819 = vmul.u32.u64.compose %v2818, 3817748708
      %v2820 = vextract.low.u32 %v2819
      %v2821 = vextract.high.u32 %v2819
      %v2822 = vshrl.u32 %v2821, 4
      %v2823 = vmul.u32 %v2822, 18
      %v2824 = vsub.s32 %v2818, %v2823
      %v2825 = vsub.s32 0, %v2824
      %v2826 = vsel %vm2816, %v2825, %v2824
      %vm2827 = vcmp.lt.s32.totalorder %v2541, 0
      %v2828 = vsub.s32 0, %v2541
      %v2829 = vsel %vm2827, %v2828, %v2541
      %v2830 = vmul.u32.u64.compose %v2829, 3817748708
      %v2831 = vextract.low.u32 %v2830
      %v2832 = vextract.high.u32 %v2830
      %v2833 = vshrl.u32 %v2832, 4
      %v2834 = vmul.u32 %v2833, 18
      %v2835 = vsub.s32 %v2829, %v2834
      %v2836 = vsub.s32 0, %v2835
      %v2837 = vsel %vm2827, %v2836, %v2835
      %vm2838 = vcmp.lt.s32.totalorder %v2542, 0
      %v2839 = vsub.s32 0, %v2542
      %v2840 = vsel %vm2838, %v2839, %v2542
      %v2841 = vmul.u32.u64.compose %v2840, 3817748708
      %v2842 = vextract.low.u32 %v2841
      %v2843 = vextract.high.u32 %v2841
      %v2844 = vshrl.u32 %v2843, 4
      %v2845 = vmul.u32 %v2844, 18
      %v2846 = vsub.s32 %v2840, %v2845
      %v2847 = vsub.s32 0, %v2846
      %v2848 = vsel %vm2838, %v2847, %v2846
      %vm2849 = vcmp.lt.s32.totalorder %v2543, 0
      %v2850 = vsub.s32 0, %v2543
      %v2851 = vsel %vm2849, %v2850, %v2543
      %v2852 = vmul.u32.u64.compose %v2851, 3817748708
      %v2853 = vextract.low.u32 %v2852
      %v2854 = vextract.high.u32 %v2852
      %v2855 = vshrl.u32 %v2854, 4
      %v2856 = vmul.u32 %v2855, 18
      %v2857 = vsub.s32 %v2851, %v2856
      %v2858 = vsub.s32 0, %v2857
      %v2859 = vsel %vm2849, %v2858, %v2857
      %vm2860 = vcmp.lt.s32.totalorder %v2544, 0
      %v2861 = vsub.s32 0, %v2544
      %v2862 = vsel %vm2860, %v2861, %v2544
      %v2863 = vmul.u32.u64.compose %v2862, 3817748708
      %v2864 = vextract.low.u32 %v2863
      %v2865 = vextract.high.u32 %v2863
      %v2866 = vshrl.u32 %v2865, 4
      %v2867 = vmul.u32 %v2866, 18
      %v2868 = vsub.s32 %v2862, %v2867
      %v2869 = vsub.s32 0, %v2868
      %v2870 = vsel %vm2860, %v2869, %v2868
      %vm2871 = vcmp.lt.s32.totalorder %v2545, 0
      %v2872 = vsub.s32 0, %v2545
      %v2873 = vsel %vm2871, %v2872, %v2545
      %v2874 = vmul.u32.u64.compose %v2873, 3817748708
      %v2875 = vextract.low.u32 %v2874
      %v2876 = vextract.high.u32 %v2874
      %v2877 = vshrl.u32 %v2876, 4
      %v2878 = vmul.u32 %v2877, 18
      %v2879 = vsub.s32 %v2873, %v2878
      %v2880 = vsub.s32 0, %v2879
      %v2881 = vsel %vm2871, %v2880, %v2879
      %vm2882 = vcmp.lt.s32.totalorder %v2546, 0
      %v2883 = vsub.s32 0, %v2546
      %v2884 = vsel %vm2882, %v2883, %v2546
      %v2885 = vmul.u32.u64.compose %v2884, 3817748708
      %v2886 = vextract.low.u32 %v2885
      %v2887 = vextract.high.u32 %v2885
      %v2888 = vshrl.u32 %v2887, 4
      %v2889 = vmul.u32 %v2888, 18
      %v2890 = vsub.s32 %v2884, %v2889
      %v2891 = vsub.s32 0, %v2890
      %v2892 = vsel %vm2882, %v2891, %v2890
      %vm2893 = vcmp.lt.s32.totalorder %v2547, 0
      %v2894 = vsub.s32 0, %v2547
      %v2895 = vsel %vm2893, %v2894, %v2547
      %v2896 = vmul.u32.u64.compose %v2895, 3817748708
      %v2897 = vextract.low.u32 %v2896
      %v2898 = vextract.high.u32 %v2896
      %v2899 = vshrl.u32 %v2898, 4
      %v2900 = vmul.u32 %v2899, 18
      %v2901 = vsub.s32 %v2895, %v2900
      %v2902 = vsub.s32 0, %v2901
      %v2903 = vsel %vm2893, %v2902, %v2901
      %vm2904 = vcmp.lt.s32.totalorder %v2548, 0
      %v2905 = vsub.s32 0, %v2548
      %v2906 = vsel %vm2904, %v2905, %v2548
      %v2907 = vmul.u32.u64.compose %v2906, 3817748708
      %v2908 = vextract.low.u32 %v2907
      %v2909 = vextract.high.u32 %v2907
      %v2910 = vshrl.u32 %v2909, 4
      %v2911 = vmul.u32 %v2910, 18
      %v2912 = vsub.s32 %v2906, %v2911
      %v2913 = vsub.s32 0, %v2912
      %v2914 = vsel %vm2904, %v2913, %v2912
      %vm2915 = vcmp.lt.s32.totalorder %v2549, 0
      %v2916 = vsub.s32 0, %v2549
      %v2917 = vsel %vm2915, %v2916, %v2549
      %v2918 = vmul.u32.u64.compose %v2917, 3817748708
      %v2919 = vextract.low.u32 %v2918
      %v2920 = vextract.high.u32 %v2918
      %v2921 = vshrl.u32 %v2920, 4
      %v2922 = vmul.u32 %v2921, 18
      %v2923 = vsub.s32 %v2917, %v2922
      %v2924 = vsub.s32 0, %v2923
      %v2925 = vsel %vm2915, %v2924, %v2923
      %vm2926 = vcmp.lt.s32.totalorder %v2550, 0
      %v2927 = vsub.s32 0, %v2550
      %v2928 = vsel %vm2926, %v2927, %v2550
      %v2929 = vmul.u32.u64.compose %v2928, 3817748708
      %v2930 = vextract.low.u32 %v2929
      %v2931 = vextract.high.u32 %v2929
      %v2932 = vshrl.u32 %v2931, 4
      %v2933 = vmul.u32 %v2932, 18
      %v2934 = vsub.s32 %v2928, %v2933
      %v2935 = vsub.s32 0, %v2934
      %v2936 = vsel %vm2926, %v2935, %v2934
      %vm2937 = vcmp.lt.s32.totalorder %v2551, 0
      %v2938 = vsub.s32 0, %v2551
      %v2939 = vsel %vm2937, %v2938, %v2551
      %v2940 = vmul.u32.u64.compose %v2939, 3817748708
      %v2941 = vextract.low.u32 %v2940
      %v2942 = vextract.high.u32 %v2940
      %v2943 = vshrl.u32 %v2942, 4
      %v2944 = vmul.u32 %v2943, 18
      %v2945 = vsub.s32 %v2939, %v2944
      %v2946 = vsub.s32 0, %v2945
      %v2947 = vsel %vm2937, %v2946, %v2945
      %vm2948 = vcmp.ne.s32.totalorder %v2562, 0
      %vm2949 = vcmp.ne.s32.totalorder %v2573, 0
      %vm2950 = vcmp.ne.s32.totalorder %v2584, 0
      %vm2951 = vcmp.ne.s32.totalorder %v2595, 0
      %vm2952 = vcmp.ne.s32.totalorder %v2606, 0
      %vm2953 = vcmp.ne.s32.totalorder %v2617, 0
      %vm2954 = vcmp.ne.s32.totalorder %v2628, 0
      %vm2955 = vcmp.ne.s32.totalorder %v2639, 0
      %vm2956 = vcmp.ne.s32.totalorder %v2650, 0
      %vm2957 = vcmp.ne.s32.totalorder %v2661, 0
      %vm2958 = vcmp.ne.s32.totalorder %v2672, 0
      %vm2959 = vcmp.ne.s32.totalorder %v2683, 0
      %vm2960 = vcmp.ne.s32.totalorder %v2694, 0
      %vm2961 = vcmp.ne.s32.totalorder %v2705, 0
      %vm2962 = vcmp.ne.s32.totalorder %v2716, 0
      %vm2963 = vcmp.ne.s32.totalorder %v2727, 0
      %vm2964 = vcmp.ne.s32.totalorder %v2738, 0
      %vm2965 = vcmp.ne.s32.totalorder %v2749, 0
      %vm2966 = vcmp.ne.s32.totalorder %v2760, 0
      %vm2967 = vcmp.ne.s32.totalorder %v2771, 0
      %vm2968 = vcmp.ne.s32.totalorder %v2782, 0
      %vm2969 = vcmp.ne.s32.totalorder %v2793, 0
      %vm2970 = vcmp.ne.s32.totalorder %v2804, 0
      %vm2971 = vcmp.ne.s32.totalorder %v2815, 0
      %vm2972 = vcmp.ne.s32.totalorder %v2826, 0
      %vm2973 = vcmp.ne.s32.totalorder %v2837, 0
      %vm2974 = vcmp.ne.s32.totalorder %v2848, 0
      %vm2975 = vcmp.ne.s32.totalorder %v2859, 0
      %vm2976 = vcmp.ne.s32.totalorder %v2870, 0
      %vm2977 = vcmp.ne.s32.totalorder %v2881, 0
      %vm2978 = vcmp.ne.s32.totalorder %v2892, 0
      %vm2979 = vcmp.ne.s32.totalorder %v2903, 0
      %vm2980 = vcmp.ne.s32.totalorder %v2914, 0
      %vm2981 = vcmp.ne.s32.totalorder %v2925, 0
      %vm2982 = vcmp.ne.s32.totalorder %v2936, 0
      %vm2983 = vcmp.ne.s32.totalorder %v2947, 0
      %vm2984 = vcmp.lt.s32.totalorder %v2562, 0
      %vm2985 = vcmp.lt.s32.totalorder %v2573, 0
      %vm2986 = vcmp.lt.s32.totalorder %v2584, 0
      %vm2987 = vcmp.lt.s32.totalorder %v2595, 0
      %vm2988 = vcmp.lt.s32.totalorder %v2606, 0
      %vm2989 = vcmp.lt.s32.totalorder %v2617, 0
      %vm2990 = vcmp.lt.s32.totalorder %v2628, 0
      %vm2991 = vcmp.lt.s32.totalorder %v2639, 0
      %vm2992 = vcmp.lt.s32.totalorder %v2650, 0
      %vm2993 = vcmp.lt.s32.totalorder %v2661, 0
      %vm2994 = vcmp.lt.s32.totalorder %v2672, 0
      %vm2995 = vcmp.lt.s32.totalorder %v2683, 0
      %vm2996 = vcmp.lt.s32.totalorder %v2694, 0
      %vm2997 = vcmp.lt.s32.totalorder %v2705, 0
      %vm2998 = vcmp.lt.s32.totalorder %v2716, 0
      %vm2999 = vcmp.lt.s32.totalorder %v2727, 0
      %vm3000 = vcmp.lt.s32.totalorder %v2738, 0
      %vm3001 = vcmp.lt.s32.totalorder %v2749, 0
      %vm3002 = vcmp.lt.s32.totalorder %v2760, 0
      %vm3003 = vcmp.lt.s32.totalorder %v2771, 0
      %vm3004 = vcmp.lt.s32.totalorder %v2782, 0
      %vm3005 = vcmp.lt.s32.totalorder %v2793, 0
      %vm3006 = vcmp.lt.s32.totalorder %v2804, 0
      %vm3007 = vcmp.lt.s32.totalorder %v2815, 0
      %vm3008 = vcmp.lt.s32.totalorder %v2826, 0
      %vm3009 = vcmp.lt.s32.totalorder %v2837, 0
      %vm3010 = vcmp.lt.s32.totalorder %v2848, 0
      %vm3011 = vcmp.lt.s32.totalorder %v2859, 0
      %vm3012 = vcmp.lt.s32.totalorder %v2870, 0
      %vm3013 = vcmp.lt.s32.totalorder %v2881, 0
      %vm3014 = vcmp.lt.s32.totalorder %v2892, 0
      %vm3015 = vcmp.lt.s32.totalorder %v2903, 0
      %vm3016 = vcmp.lt.s32.totalorder %v2914, 0
      %vm3017 = vcmp.lt.s32.totalorder %v2925, 0
      %vm3018 = vcmp.lt.s32.totalorder %v2936, 0
      %vm3019 = vcmp.lt.s32.totalorder %v2947, 0
      %vm3020 = vmand %vm2984, %vm2948
      %vm3021 = vmand %vm2985, %vm2949
      %vm3022 = vmand %vm2986, %vm2950
      %vm3023 = vmand %vm2987, %vm2951
      %vm3024 = vmand %vm2988, %vm2952
      %vm3025 = vmand %vm2989, %vm2953
      %vm3026 = vmand %vm2990, %vm2954
      %vm3027 = vmand %vm2991, %vm2955
      %vm3028 = vmand %vm2992, %vm2956
      %vm3029 = vmand %vm2993, %vm2957
      %vm3030 = vmand %vm2994, %vm2958
      %vm3031 = vmand %vm2995, %vm2959
      %vm3032 = vmand %vm2996, %vm2960
      %vm3033 = vmand %vm2997, %vm2961
      %vm3034 = vmand %vm2998, %vm2962
      %vm3035 = vmand %vm2999, %vm2963
      %vm3036 = vmand %vm3000, %vm2964
      %vm3037 = vmand %vm3001, %vm2965
      %vm3038 = vmand %vm3002, %vm2966
      %vm3039 = vmand %vm3003, %vm2967
      %vm3040 = vmand %vm3004, %vm2968
      %vm3041 = vmand %vm3005, %vm2969
      %vm3042 = vmand %vm3006, %vm2970
      %vm3043 = vmand %vm3007, %vm2971
      %vm3044 = vmand %vm3008, %vm2972
      %vm3045 = vmand %vm3009, %vm2973
      %vm3046 = vmand %vm3010, %vm2974
      %vm3047 = vmand %vm3011, %vm2975
      %vm3048 = vmand %vm3012, %vm2976
      %vm3049 = vmand %vm3013, %vm2977
      %vm3050 = vmand %vm3014, %vm2978
      %vm3051 = vmand %vm3015, %vm2979
      %vm3052 = vmand %vm3016, %vm2980
      %vm3053 = vmand %vm3017, %vm2981
      %vm3054 = vmand %vm3018, %vm2982
      %vm3055 = vmand %vm3019, %vm2983
      %v3056 = vadd.s32 %v2562, 18
      %v3057 = vadd.s32 %v2573, 18
      %v3058 = vadd.s32 %v2584, 18
      %v3059 = vadd.s32 %v2595, 18
      %v3060 = vadd.s32 %v2606, 18
      %v3061 = vadd.s32 %v2617, 18
      %v3062 = vadd.s32 %v2628, 18
      %v3063 = vadd.s32 %v2639, 18
      %v3064 = vadd.s32 %v2650, 18
      %v3065 = vadd.s32 %v2661, 18
      %v3066 = vadd.s32 %v2672, 18
      %v3067 = vadd.s32 %v2683, 18
      %v3068 = vadd.s32 %v2694, 18
      %v3069 = vadd.s32 %v2705, 18
      %v3070 = vadd.s32 %v2716, 18
      %v3071 = vadd.s32 %v2727, 18
      %v3072 = vadd.s32 %v2738, 18
      %v3073 = vadd.s32 %v2749, 18
      %v3074 = vadd.s32 %v2760, 18
      %v3075 = vadd.s32 %v2771, 18
      %v3076 = vadd.s32 %v2782, 18
      %v3077 = vadd.s32 %v2793, 18
      %v3078 = vadd.s32 %v2804, 18
      %v3079 = vadd.s32 %v2815, 18
      %v3080 = vadd.s32 %v2826, 18
      %v3081 = vadd.s32 %v2837, 18
      %v3082 = vadd.s32 %v2848, 18
      %v3083 = vadd.s32 %v2859, 18
      %v3084 = vadd.s32 %v2870, 18
      %v3085 = vadd.s32 %v2881, 18
      %v3086 = vadd.s32 %v2892, 18
      %v3087 = vadd.s32 %v2903, 18
      %v3088 = vadd.s32 %v2914, 18
      %v3089 = vadd.s32 %v2925, 18
      %v3090 = vadd.s32 %v2936, 18
      %v3091 = vadd.s32 %v2947, 18
      %v3092 = vsel %vm3020, %v3056, %v2562
      %v3093 = vsel %vm3021, %v3057, %v2573
      %v3094 = vsel %vm3022, %v3058, %v2584
      %v3095 = vsel %vm3023, %v3059, %v2595
      %v3096 = vsel %vm3024, %v3060, %v2606
      %v3097 = vsel %vm3025, %v3061, %v2617
      %v3098 = vsel %vm3026, %v3062, %v2628
      %v3099 = vsel %vm3027, %v3063, %v2639
      %v3100 = vsel %vm3028, %v3064, %v2650
      %v3101 = vsel %vm3029, %v3065, %v2661
      %v3102 = vsel %vm3030, %v3066, %v2672
      %v3103 = vsel %vm3031, %v3067, %v2683
      %v3104 = vsel %vm3032, %v3068, %v2694
      %v3105 = vsel %vm3033, %v3069, %v2705
      %v3106 = vsel %vm3034, %v3070, %v2716
      %v3107 = vsel %vm3035, %v3071, %v2727
      %v3108 = vsel %vm3036, %v3072, %v2738
      %v3109 = vsel %vm3037, %v3073, %v2749
      %v3110 = vsel %vm3038, %v3074, %v2760
      %v3111 = vsel %vm3039, %v3075, %v2771
      %v3112 = vsel %vm3040, %v3076, %v2782
      %v3113 = vsel %vm3041, %v3077, %v2793
      %v3114 = vsel %vm3042, %v3078, %v2804
      %v3115 = vsel %vm3043, %v3079, %v2815
      %v3116 = vsel %vm3044, %v3080, %v2826
      %v3117 = vsel %vm3045, %v3081, %v2837
      %v3118 = vsel %vm3046, %v3082, %v2848
      %v3119 = vsel %vm3047, %v3083, %v2859
      %v3120 = vsel %vm3048, %v3084, %v2870
      %v3121 = vsel %vm3049, %v3085, %v2881
      %v3122 = vsel %vm3050, %v3086, %v2892
      %v3123 = vsel %vm3051, %v3087, %v2903
      %v3124 = vsel %vm3052, %v3088, %v2914
      %v3125 = vsel %vm3053, %v3089, %v2925
      %v3126 = vsel %vm3054, %v3090, %v2936
      %v3127 = vsel %vm3055, %v3091, %v2947
      %vm3128 = vcmp.lt.s32.totalorder %v3092, 16
      %vm3129 = vcmp.lt.s32.totalorder %v3093, 16
      %vm3130 = vcmp.lt.s32.totalorder %v3094, 16
      %vm3131 = vcmp.lt.s32.totalorder %v3095, 16
      %vm3132 = vcmp.lt.s32.totalorder %v3096, 16
      %vm3133 = vcmp.lt.s32.totalorder %v3097, 16
      %vm3134 = vcmp.lt.s32.totalorder %v3098, 16
      %vm3135 = vcmp.lt.s32.totalorder %v3099, 16
      %vm3136 = vcmp.lt.s32.totalorder %v3100, 16
      %vm3137 = vcmp.lt.s32.totalorder %v3101, 16
      %vm3138 = vcmp.lt.s32.totalorder %v3102, 16
      %vm3139 = vcmp.lt.s32.totalorder %v3103, 16
      %vm3140 = vcmp.lt.s32.totalorder %v3104, 16
      %vm3141 = vcmp.lt.s32.totalorder %v3105, 16
      %vm3142 = vcmp.lt.s32.totalorder %v3106, 16
      %vm3143 = vcmp.lt.s32.totalorder %v3107, 16
      %vm3144 = vcmp.lt.s32.totalorder %v3108, 16
      %vm3145 = vcmp.lt.s32.totalorder %v3109, 16
      %vm3146 = vcmp.lt.s32.totalorder %v3110, 16
      %vm3147 = vcmp.lt.s32.totalorder %v3111, 16
      %vm3148 = vcmp.lt.s32.totalorder %v3112, 16
      %vm3149 = vcmp.lt.s32.totalorder %v3113, 16
      %vm3150 = vcmp.lt.s32.totalorder %v3114, 16
      %vm3151 = vcmp.lt.s32.totalorder %v3115, 16
      %vm3152 = vcmp.lt.s32.totalorder %v3116, 16
      %vm3153 = vcmp.lt.s32.totalorder %v3117, 16
      %vm3154 = vcmp.lt.s32.totalorder %v3118, 16
      %vm3155 = vcmp.lt.s32.totalorder %v3119, 16
      %vm3156 = vcmp.lt.s32.totalorder %v3120, 16
      %vm3157 = vcmp.lt.s32.totalorder %v3121, 16
      %vm3158 = vcmp.lt.s32.totalorder %v3122, 16
      %vm3159 = vcmp.lt.s32.totalorder %v3123, 16
      %vm3160 = vcmp.lt.s32.totalorder %v3124, 16
      %vm3161 = vcmp.lt.s32.totalorder %v3125, 16
      %vm3162 = vcmp.lt.s32.totalorder %v3126, 16
      %vm3163 = vcmp.lt.s32.totalorder %v3127, 16
      %v3164 = vsel %vm3128, 1, 0
      %v3165 = vsel %vm3129, 1, 0
      %v3166 = vsel %vm3130, 1, 0
      %v3167 = vsel %vm3131, 1, 0
      %v3168 = vsel %vm3132, 1, 0
      %v3169 = vsel %vm3133, 1, 0
      %v3170 = vsel %vm3134, 1, 0
      %v3171 = vsel %vm3135, 1, 0
      %v3172 = vsel %vm3136, 1, 0
      %v3173 = vsel %vm3137, 1, 0
      %v3174 = vsel %vm3138, 1, 0
      %v3175 = vsel %vm3139, 1, 0
      %v3176 = vsel %vm3140, 1, 0
      %v3177 = vsel %vm3141, 1, 0
      %v3178 = vsel %vm3142, 1, 0
      %v3179 = vsel %vm3143, 1, 0
      %v3180 = vsel %vm3144, 1, 0
      %v3181 = vsel %vm3145, 1, 0
      %v3182 = vsel %vm3146, 1, 0
      %v3183 = vsel %vm3147, 1, 0
      %v3184 = vsel %vm3148, 1, 0
      %v3185 = vsel %vm3149, 1, 0
      %v3186 = vsel %vm3150, 1, 0
      %v3187 = vsel %vm3151, 1, 0
      %v3188 = vsel %vm3152, 1, 0
      %v3189 = vsel %vm3153, 1, 0
      %v3190 = vsel %vm3154, 1, 0
      %v3191 = vsel %vm3155, 1, 0
      %v3192 = vsel %vm3156, 1, 0
      %v3193 = vsel %vm3157, 1, 0
      %v3194 = vsel %vm3158, 1, 0
      %v3195 = vsel %vm3159, 1, 0
      %v3196 = vsel %vm3160, 1, 0
      %v3197 = vsel %vm3161, 1, 0
      %v3198 = vsel %vm3162, 1, 0
      %v3199 = vsel %vm3163, 1, 0
      %vm3200 = vcmp.eq.s32.totalorder %v3164, 1
      %vm3201 = vcmp.eq.s32.totalorder %v3165, 1
      %vm3202 = vcmp.eq.s32.totalorder %v3166, 1
      %vm3203 = vcmp.eq.s32.totalorder %v3167, 1
      %vm3204 = vcmp.eq.s32.totalorder %v3168, 1
      %vm3205 = vcmp.eq.s32.totalorder %v3169, 1
      %vm3206 = vcmp.eq.s32.totalorder %v3170, 1
      %vm3207 = vcmp.eq.s32.totalorder %v3171, 1
      %vm3208 = vcmp.eq.s32.totalorder %v3172, 1
      %vm3209 = vcmp.eq.s32.totalorder %v3173, 1
      %vm3210 = vcmp.eq.s32.totalorder %v3174, 1
      %vm3211 = vcmp.eq.s32.totalorder %v3175, 1
      %vm3212 = vcmp.eq.s32.totalorder %v3176, 1
      %vm3213 = vcmp.eq.s32.totalorder %v3177, 1
      %vm3214 = vcmp.eq.s32.totalorder %v3178, 1
      %vm3215 = vcmp.eq.s32.totalorder %v3179, 1
      %vm3216 = vcmp.eq.s32.totalorder %v3180, 1
      %vm3217 = vcmp.eq.s32.totalorder %v3181, 1
      %vm3218 = vcmp.eq.s32.totalorder %v3182, 1
      %vm3219 = vcmp.eq.s32.totalorder %v3183, 1
      %vm3220 = vcmp.eq.s32.totalorder %v3184, 1
      %vm3221 = vcmp.eq.s32.totalorder %v3185, 1
      %vm3222 = vcmp.eq.s32.totalorder %v3186, 1
      %vm3223 = vcmp.eq.s32.totalorder %v3187, 1
      %vm3224 = vcmp.eq.s32.totalorder %v3188, 1
      %vm3225 = vcmp.eq.s32.totalorder %v3189, 1
      %vm3226 = vcmp.eq.s32.totalorder %v3190, 1
      %vm3227 = vcmp.eq.s32.totalorder %v3191, 1
      %vm3228 = vcmp.eq.s32.totalorder %v3192, 1
      %vm3229 = vcmp.eq.s32.totalorder %v3193, 1
      %vm3230 = vcmp.eq.s32.totalorder %v3194, 1
      %vm3231 = vcmp.eq.s32.totalorder %v3195, 1
      %vm3232 = vcmp.eq.s32.totalorder %v3196, 1
      %vm3233 = vcmp.eq.s32.totalorder %v3197, 1
      %vm3234 = vcmp.eq.s32.totalorder %v3198, 1
      %vm3235 = vcmp.eq.s32.totalorder %v3199, 1
      %v3236 = vsel %vm3200, %v2479, 0.0
      %v3237 = vsel %vm3201, %v2480, 0.0
      %v3238 = vsel %vm3202, %v2481, 0.0
      %v3239 = vsel %vm3203, %v2482, 0.0
      %v3240 = vsel %vm3204, %v2483, 0.0
      %v3241 = vsel %vm3205, %v2484, 0.0
      %v3242 = vsel %vm3206, %v2485, 0.0
      %v3243 = vsel %vm3207, %v2486, 0.0
      %v3244 = vsel %vm3208, %v2487, 0.0
      %v3245 = vsel %vm3209, %v2488, 0.0
      %v3246 = vsel %vm3210, %v2489, 0.0
      %v3247 = vsel %vm3211, %v2490, 0.0
      %v3248 = vsel %vm3212, %v2491, 0.0
      %v3249 = vsel %vm3213, %v2492, 0.0
      %v3250 = vsel %vm3214, %v2493, 0.0
      %v3251 = vsel %vm3215, %v2494, 0.0
      %v3252 = vsel %vm3216, %v2495, 0.0
      %v3253 = vsel %vm3217, %v2496, 0.0
      %v3254 = vsel %vm3218, %v2497, 0.0
      %v3255 = vsel %vm3219, %v2498, 0.0
      %v3256 = vsel %vm3220, %v2499, 0.0
      %v3257 = vsel %vm3221, %v2500, 0.0
      %v3258 = vsel %vm3222, %v2501, 0.0
      %v3259 = vsel %vm3223, %v2502, 0.0
      %v3260 = vsel %vm3224, %v2503, 0.0
      %v3261 = vsel %vm3225, %v2504, 0.0
      %v3262 = vsel %vm3226, %v2505, 0.0
      %v3263 = vsel %vm3227, %v2506, 0.0
      %v3264 = vsel %vm3228, %v2507, 0.0
      %v3265 = vsel %vm3229, %v2508, 0.0
      %v3266 = vsel %vm3230, %v2509, 0.0
      %v3267 = vsel %vm3231, %v2510, 0.0
      %v3268 = vsel %vm3232, %v2511, 0.0
      %v3269 = vsel %vm3233, %v2512, 0.0
      %v3270 = vsel %vm3234, %v2513, 0.0
      %v3271 = vsel %vm3235, %v2514, 0.0
      %3272 = vst [vmem:[#allocation2] sm:$0xf] 0
      %3273 = vst [vmem:[#allocation2 + $0x4] sm:$0xf] 0
      %vm3274 = vcmask 1041408
      %vm3275 = vsmask.f32 1280
      %vm3276 = vmand %vm3274, %vm3275
      %v3277 = vld [vmem:[#allocation2 + $0x8] sm:$0x3]
      %v3278 = vsel %vm3276, 0, %v3277
      %3279 = vst [vmem:[#allocation2 + $0x8] sm:$0x3] %v3278
      %v3280 = vpack.c.bf16 %v3237, %v3236
      %v3281 = vpack.c.bf16 %v3239, %v3238
      %v3282 = vpack.c.bf16 %v3241, %v3240
      %v3283 = vpack.c.bf16 %v3243, %v3242
      %v3284 = vpack.c.bf16 %v3245, %v3244
      %v3285 = vpack.c.bf16 %v3247, %v3246
      %v3286 = vpack.c.bf16 %v3249, %v3248
      %v3287 = vpack.c.bf16 %v3251, %v3250
      %v3288 = vpack.c.bf16 %v3253, %v3252
      %v3289 = vpack.c.bf16 %v3255, %v3254
      %v3290 = vpack.c.bf16 %v3257, %v3256
      %v3291 = vpack.c.bf16 %v3259, %v3258
      %v3292 = vpack.c.bf16 %v3261, %v3260
      %v3293 = vpack.c.bf16 %v3263, %v3262
      %v3294 = vpack.c.bf16 %v3265, %v3264
      %v3295 = vpack.c.bf16 %v3267, %v3266
      %v3296 = vpack.c.bf16 %v3269, %v3268
      %v3297 = vpack.c.bf16 %v3271, %v3270
      %v3316 = vunpack.c.l.b16 %v3280
      %v3317 = vunpack.c.h.b16 %v3280
      %v3318 = vunpack.c.l.b16 %v3281
      %v3319 = vunpack.c.h.b16 %v3281
      %v3320 = vunpack.c.l.b16 %v3282
      %v3321 = vunpack.c.h.b16 %v3282
      %v3322 = vunpack.c.l.b16 %v3283
      %v3323 = vunpack.c.h.b16 %v3283
      %v3324 = vunpack.c.l.b16 %v3284
      %v3325 = vunpack.c.h.b16 %v3284
      %v3326 = vunpack.c.l.b16 %v3285
      %v3327 = vunpack.c.h.b16 %v3285
      %v3328 = vunpack.c.l.b16 %v3286
      %v3329 = vunpack.c.h.b16 %v3286
      %v3330 = vunpack.c.l.b16 %v3287
      %v3331 = vunpack.c.h.b16 %v3287
      %v3332 = vunpack.c.l.b16 %v3288
      %v3333 = vunpack.c.h.b16 %v3288
      %v3334 = vunpack.c.l.b16 %v3289
      %v3335 = vunpack.c.h.b16 %v3289
      %v3336 = vunpack.c.l.b16 %v3290
      %v3337 = vunpack.c.h.b16 %v3290
      %v3338 = vunpack.c.l.b16 %v3291
      %v3339 = vunpack.c.h.b16 %v3291
      %v3340 = vunpack.c.l.b16 %v3292
      %v3341 = vunpack.c.h.b16 %v3292
      %v3342 = vunpack.c.l.b16 %v3293
      %v3343 = vunpack.c.h.b16 %v3293
      %v3344 = vunpack.c.l.b16 %v3294
      %v3345 = vunpack.c.h.b16 %v3294
      %v3346 = vunpack.c.l.b16 %v3295
      %v3347 = vunpack.c.h.b16 %v3295
      %v3348 = vunpack.c.l.b16 %v3296
      %v3349 = vunpack.c.h.b16 %v3296
      %v3350 = vunpack.c.l.b16 %v3297
      %v3351 = vunpack.c.h.b16 %v3297
      %v3352 = vpack.c.b16 %v3316, %v3316
      %v3353 = vpack.c.b16 %v3317, %v3317
      %v3354 = vpack.c.b16 %v3318, %v3318
      %v3355 = vpack.c.b16 %v3319, %v3319
      %v3356 = vpack.c.b16 %v3320, %v3320
      %v3357 = vpack.c.b16 %v3321, %v3321
      %v3358 = vpack.c.b16 %v3322, %v3322
      %v3359 = vpack.c.b16 %v3323, %v3323
      %v3360 = vpack.c.b16 %v3324, %v3324
      %v3361 = vpack.c.b16 %v3325, %v3325
      %v3362 = vpack.c.b16 %v3326, %v3326
      %v3363 = vpack.c.b16 %v3327, %v3327
      %v3364 = vpack.c.b16 %v3328, %v3328
      %v3365 = vpack.c.b16 %v3329, %v3329
      %v3366 = vpack.c.b16 %v3330, %v3330
      %v3367 = vpack.c.b16 %v3331, %v3331
      %v3368 = vpack.c.b16 %v3332, %v3332
      %v3369 = vpack.c.b16 %v3333, %v3333
      %v3370 = vpack.c.b16 %v3334, %v3334
      %v3371 = vpack.c.b16 %v3335, %v3335
      %v3372 = vpack.c.b16 %v3336, %v3336
      %v3373 = vpack.c.b16 %v3337, %v3337
      %v3374 = vpack.c.b16 %v3338, %v3338
      %v3375 = vpack.c.b16 %v3339, %v3339
      %v3376 = vpack.c.b16 %v3340, %v3340
      %v3377 = vpack.c.b16 %v3341, %v3341
      %v3378 = vpack.c.b16 %v3342, %v3342
      %v3379 = vpack.c.b16 %v3343, %v3343
      %v3380 = vpack.c.b16 %v3344, %v3344
      %v3381 = vpack.c.b16 %v3345, %v3345
      %v3382 = vpack.c.b16 %v3346, %v3346
      %v3383 = vpack.c.b16 %v3347, %v3347
      %v3384 = vpack.c.b16 %v3348, %v3348
      %v3385 = vpack.c.b16 %v3349, %v3349
      %v3386 = vpack.c.b16 %v3350, %v3350
      %v3387 = vpack.c.b16 %v3351, %v3351
      %vm3388 = vsmask.f32 5392
      %vm3389 = vmor %vm3275, %vm3388
      %v3391 = vshrl.u32 %v3352, 16
      %v3393 = vrot.slane %v3391, 6
      %v3394 = vshll.u32 %v3352, 16
      %v3396 = vrot.slane %v3394, 7
      %v3397 = vor.u32 %v3393, %v3396
      %v3398 = vrot.slane %v3397, 4
      %v3400 = vshrl.u32 %v3353, 16
      %v3402 = vrot.slane %v3400, 6
      %v3403 = vshll.u32 %v3353, 16
      %v3405 = vrot.slane %v3403, 7
      %v3406 = vor.u32 %v3402, %v3405
      %v3407 = vsel %vm3389, %v3398, %v3406
      %v3408 = vrot.slane %v3406, 4
      %v3410 = vshrl.u32 %v3354, 16
      %v3412 = vrot.slane %v3410, 6
      %v3413 = vshll.u32 %v3354, 16
      %v3415 = vrot.slane %v3413, 7
      %v3416 = vor.u32 %v3412, %v3415
      %v3417 = vsel %vm3389, %v3408, %v3416
      %v3418 = vrot.slane %v3416, 4
      %v3420 = vshrl.u32 %v3355, 16
      %v3422 = vrot.slane %v3420, 6
      %v3423 = vshll.u32 %v3355, 16
      %v3425 = vrot.slane %v3423, 7
      %v3426 = vor.u32 %v3422, %v3425
      %v3427 = vsel %vm3389, %v3418, %v3426
      %v3428 = vrot.slane %v3426, 4
      %v3430 = vshrl.u32 %v3356, 16
      %v3432 = vrot.slane %v3430, 6
      %v3433 = vshll.u32 %v3356, 16
      %v3435 = vrot.slane %v3433, 7
      %v3436 = vor.u32 %v3432, %v3435
      %v3437 = vsel %vm3389, %v3428, %v3436
      %v3438 = vrot.slane %v3436, 4
      %v3440 = vshrl.u32 %v3357, 16
      %v3442 = vrot.slane %v3440, 6
      %v3443 = vshll.u32 %v3357, 16
      %v3445 = vrot.slane %v3443, 7
      %v3446 = vor.u32 %v3442, %v3445
      %v3447 = vsel %vm3389, %v3438, %v3446
      %v3448 = vrot.slane %v3446, 4
      %v3450 = vshrl.u32 %v3358, 16
      %v3452 = vrot.slane %v3450, 6
      %v3453 = vshll.u32 %v3358, 16
      %v3455 = vrot.slane %v3453, 7
      %v3456 = vor.u32 %v3452, %v3455
      %v3457 = vsel %vm3389, %v3448, %v3456
      %v3458 = vrot.slane %v3456, 4
      %v3460 = vshrl.u32 %v3359, 16
      %v3462 = vrot.slane %v3460, 6
      %v3463 = vshll.u32 %v3359, 16
      %v3465 = vrot.slane %v3463, 7
      %v3466 = vor.u32 %v3462, %v3465
      %v3467 = vsel %vm3389, %v3458, %v3466
      %v3468 = vrot.slane %v3466, 4
      %v3470 = vshrl.u32 %v3360, 16
      %v3472 = vrot.slane %v3470, 6
      %v3473 = vshll.u32 %v3360, 16
      %v3475 = vrot.slane %v3473, 7
      %v3476 = vor.u32 %v3472, %v3475
      %v3477 = vsel %vm3389, %v3468, %v3476
      %v3478 = vrot.slane %v3476, 4
      %v3480 = vshrl.u32 %v3361, 16
      %v3482 = vrot.slane %v3480, 6
      %v3483 = vshll.u32 %v3361, 16
      %v3485 = vrot.slane %v3483, 7
      %v3486 = vor.u32 %v3482, %v3485
      %v3487 = vsel %vm3389, %v3478, %v3486
      %v3488 = vrot.slane %v3486, 4
      %v3490 = vshrl.u32 %v3362, 16
      %v3492 = vrot.slane %v3490, 6
      %v3493 = vshll.u32 %v3362, 16
      %v3495 = vrot.slane %v3493, 7
      %v3496 = vor.u32 %v3492, %v3495
      %v3497 = vsel %vm3389, %v3488, %v3496
      %v3498 = vrot.slane %v3496, 4
      %v3500 = vshrl.u32 %v3363, 16
      %v3502 = vrot.slane %v3500, 6
      %v3503 = vshll.u32 %v3363, 16
      %v3505 = vrot.slane %v3503, 7
      %v3506 = vor.u32 %v3502, %v3505
      %v3507 = vsel %vm3389, %v3498, %v3506
      %v3508 = vrot.slane %v3506, 4
      %v3510 = vshrl.u32 %v3364, 16
      %v3512 = vrot.slane %v3510, 6
      %v3513 = vshll.u32 %v3364, 16
      %v3515 = vrot.slane %v3513, 7
      %v3516 = vor.u32 %v3512, %v3515
      %v3517 = vsel %vm3389, %v3508, %v3516
      %v3518 = vrot.slane %v3516, 4
      %v3520 = vshrl.u32 %v3365, 16
      %v3522 = vrot.slane %v3520, 6
      %v3523 = vshll.u32 %v3365, 16
      %v3525 = vrot.slane %v3523, 7
      %v3526 = vor.u32 %v3522, %v3525
      %v3527 = vsel %vm3389, %v3518, %v3526
      %v3528 = vrot.slane %v3526, 4
      %v3530 = vshrl.u32 %v3366, 16
      %v3532 = vrot.slane %v3530, 6
      %v3533 = vshll.u32 %v3366, 16
      %v3535 = vrot.slane %v3533, 7
      %v3536 = vor.u32 %v3532, %v3535
      %v3537 = vsel %vm3389, %v3528, %v3536
      %v3538 = vrot.slane %v3536, 4
      %v3540 = vshrl.u32 %v3367, 16
      %v3542 = vrot.slane %v3540, 6
      %v3543 = vshll.u32 %v3367, 16
      %v3545 = vrot.slane %v3543, 7
      %v3546 = vor.u32 %v3542, %v3545
      %v3547 = vsel %vm3389, %v3538, %v3546
      %v3548 = vrot.slane %v3546, 4
      %v3550 = vshrl.u32 %v3368, 16
      %v3552 = vrot.slane %v3550, 6
      %v3553 = vshll.u32 %v3368, 16
      %v3555 = vrot.slane %v3553, 7
      %v3556 = vor.u32 %v3552, %v3555
      %v3557 = vsel %vm3389, %v3548, %v3556
      %v3558 = vrot.slane %v3556, 4
      %v3560 = vshrl.u32 %v3369, 16
      %v3562 = vrot.slane %v3560, 6
      %v3563 = vshll.u32 %v3369, 16
      %v3565 = vrot.slane %v3563, 7
      %v3566 = vor.u32 %v3562, %v3565
      %v3567 = vsel %vm3389, %v3558, %v3566
      %v3568 = vrot.slane %v3566, 4
      %v3570 = vshrl.u32 %v3370, 16
      %v3572 = vrot.slane %v3570, 6
      %v3573 = vshll.u32 %v3370, 16
      %v3575 = vrot.slane %v3573, 7
      %v3576 = vor.u32 %v3572, %v3575
      %v3577 = vsel %vm3389, %v3568, %v3576
      %v3578 = vrot.slane %v3576, 4
      %v3580 = vshrl.u32 %v3371, 16
      %v3582 = vrot.slane %v3580, 6
      %v3583 = vshll.u32 %v3371, 16
      %v3585 = vrot.slane %v3583, 7
      %v3586 = vor.u32 %v3582, %v3585
      %v3587 = vsel %vm3389, %v3578, %v3586
      %v3588 = vrot.slane %v3586, 4
      %v3590 = vshrl.u32 %v3372, 16
      %v3592 = vrot.slane %v3590, 6
      %v3593 = vshll.u32 %v3372, 16
      %v3595 = vrot.slane %v3593, 7
      %v3596 = vor.u32 %v3592, %v3595
      %v3597 = vsel %vm3389, %v3588, %v3596
      %v3598 = vrot.slane %v3596, 4
      %v3600 = vshrl.u32 %v3373, 16
      %v3602 = vrot.slane %v3600, 6
      %v3603 = vshll.u32 %v3373, 16
      %v3605 = vrot.slane %v3603, 7
      %v3606 = vor.u32 %v3602, %v3605
      %v3607 = vsel %vm3389, %v3598, %v3606
      %v3608 = vrot.slane %v3606, 4
      %v3610 = vshrl.u32 %v3374, 16
      %v3612 = vrot.slane %v3610, 6
      %v3613 = vshll.u32 %v3374, 16
      %v3615 = vrot.slane %v3613, 7
      %v3616 = vor.u32 %v3612, %v3615
      %v3617 = vsel %vm3389, %v3608, %v3616
      %v3618 = vrot.slane %v3616, 4
      %v3620 = vshrl.u32 %v3375, 16
      %v3622 = vrot.slane %v3620, 6
      %v3623 = vshll.u32 %v3375, 16
      %v3625 = vrot.slane %v3623, 7
      %v3626 = vor.u32 %v3622, %v3625
      %v3627 = vsel %vm3389, %v3618, %v3626
      %v3628 = vrot.slane %v3626, 4
      %v3630 = vshrl.u32 %v3376, 16
      %v3632 = vrot.slane %v3630, 6
      %v3633 = vshll.u32 %v3376, 16
      %v3635 = vrot.slane %v3633, 7
      %v3636 = vor.u32 %v3632, %v3635
      %v3637 = vsel %vm3389, %v3628, %v3636
      %v3638 = vrot.slane %v3636, 4
      %v3640 = vshrl.u32 %v3377, 16
      %v3642 = vrot.slane %v3640, 6
      %v3643 = vshll.u32 %v3377, 16
      %v3645 = vrot.slane %v3643, 7
      %v3646 = vor.u32 %v3642, %v3645
      %v3647 = vsel %vm3389, %v3638, %v3646
      %v3648 = vrot.slane %v3646, 4
      %v3650 = vshrl.u32 %v3378, 16
      %v3652 = vrot.slane %v3650, 6
      %v3653 = vshll.u32 %v3378, 16
      %v3655 = vrot.slane %v3653, 7
      %v3656 = vor.u32 %v3652, %v3655
      %v3657 = vsel %vm3389, %v3648, %v3656
      %v3658 = vrot.slane %v3656, 4
      %v3660 = vshrl.u32 %v3379, 16
      %v3662 = vrot.slane %v3660, 6
      %v3663 = vshll.u32 %v3379, 16
      %v3665 = vrot.slane %v3663, 7
      %v3666 = vor.u32 %v3662, %v3665
      %v3667 = vsel %vm3389, %v3658, %v3666
      %v3668 = vrot.slane %v3666, 4
      %v3670 = vshrl.u32 %v3380, 16
      %v3672 = vrot.slane %v3670, 6
      %v3673 = vshll.u32 %v3380, 16
      %v3675 = vrot.slane %v3673, 7
      %v3676 = vor.u32 %v3672, %v3675
      %v3677 = vsel %vm3389, %v3668, %v3676
      %v3678 = vrot.slane %v3676, 4
      %v3680 = vshrl.u32 %v3381, 16
      %v3682 = vrot.slane %v3680, 6
      %v3683 = vshll.u32 %v3381, 16
      %v3685 = vrot.slane %v3683, 7
      %v3686 = vor.u32 %v3682, %v3685
      %v3687 = vsel %vm3389, %v3678, %v3686
      %v3688 = vrot.slane %v3686, 4
      %v3690 = vshrl.u32 %v3382, 16
      %v3692 = vrot.slane %v3690, 6
      %v3693 = vshll.u32 %v3382, 16
      %v3695 = vrot.slane %v3693, 7
      %v3696 = vor.u32 %v3692, %v3695
      %v3697 = vsel %vm3389, %v3688, %v3696
      %v3698 = vrot.slane %v3696, 4
      %v3700 = vshrl.u32 %v3383, 16
      %v3702 = vrot.slane %v3700, 6
      %v3703 = vshll.u32 %v3383, 16
      %v3705 = vrot.slane %v3703, 7
      %v3706 = vor.u32 %v3702, %v3705
      %v3707 = vsel %vm3389, %v3698, %v3706
      %v3708 = vrot.slane %v3706, 4
      %v3710 = vshrl.u32 %v3384, 16
      %v3712 = vrot.slane %v3710, 6
      %v3713 = vshll.u32 %v3384, 16
      %v3715 = vrot.slane %v3713, 7
      %v3716 = vor.u32 %v3712, %v3715
      %v3717 = vsel %vm3389, %v3708, %v3716
      %v3718 = vrot.slane %v3716, 4
      %v3720 = vshrl.u32 %v3385, 16
      %v3722 = vrot.slane %v3720, 6
      %v3723 = vshll.u32 %v3385, 16
      %v3725 = vrot.slane %v3723, 7
      %v3726 = vor.u32 %v3722, %v3725
      %v3727 = vsel %vm3389, %v3718, %v3726
      %v3728 = vrot.slane %v3726, 4
      %v3730 = vshrl.u32 %v3386, 16
      %v3732 = vrot.slane %v3730, 6
      %v3733 = vshll.u32 %v3386, 16
      %v3735 = vrot.slane %v3733, 7
      %v3736 = vor.u32 %v3732, %v3735
      %v3737 = vsel %vm3389, %v3728, %v3736
      %v3738 = vrot.slane %v3736, 4
      %v3740 = vshrl.u32 %v3387, 16
      %v3742 = vrot.slane %v3740, 6
      %v3743 = vshll.u32 %v3387, 16
      %v3745 = vrot.slane %v3743, 7
      %v3746 = vor.u32 %v3742, %v3745
      %v3747 = vsel %vm3389, %v3738, %v3746
      %v3748 = vrot.slane %v3746, 4
      %vm3786 = vcmask 1043457
      %vm3787 = vsmask.f32 7942
      %vm3788 = vmand %vm3786, %vm3787
      %v3789 = vld [vmem:[#allocation2 + $0x8] sm:$0xe]
      %v3790 = vsel %vm3788, %v3397, %v3789
      %3791 = vst [vmem:[#allocation2 + $0x8] sm:$0xe] %v3790
      %3792 = vst [vmem:[#allocation2 + $0xc] sm:$0xf] %v3407
      %3793 = vst [vmem:[#allocation2 + $0x10] sm:$0xf] %v3417
      %3794 = vst [vmem:[#allocation2 + $0x14] sm:$0xf] %v3427
      %3795 = vst [vmem:[#allocation2 + $0x18] sm:$0xf] %v3437
      %3796 = vst [vmem:[#allocation2 + $0x1c] sm:$0xf] %v3447
      %3797 = vst [vmem:[#allocation2 + $0x20] sm:$0xf] %v3457
      %3798 = vst [vmem:[#allocation2 + $0x24] sm:$0xf] %v3467
      %3799 = vst [vmem:[#allocation2 + $0x28] sm:$0xf] %v3477
      %3800 = vst [vmem:[#allocation2 + $0x2c] sm:$0xf] %v3487
      %3801 = vst [vmem:[#allocation2 + $0x30] sm:$0xf] %v3497
      %3802 = vst [vmem:[#allocation2 + $0x34] sm:$0xf] %v3507
      %3803 = vst [vmem:[#allocation2 + $0x38] sm:$0xf] %v3517
      %3804 = vst [vmem:[#allocation2 + $0x3c] sm:$0xf] %v3527
      %3805 = vst [vmem:[#allocation2 + $0x40] sm:$0xf] %v3537
      %3806 = vst [vmem:[#allocation2 + $0x44] sm:$0xf] %v3547
      %3807 = vst [vmem:[#allocation2 + $0x48] sm:$0xf] %v3557
      %3808 = vst [vmem:[#allocation2 + $0x4c] sm:$0xf] %v3567
      %3809 = vst [vmem:[#allocation2 + $0x50] sm:$0xf] %v3577
      %3810 = vst [vmem:[#allocation2 + $0x54] sm:$0xf] %v3587
      %3811 = vst [vmem:[#allocation2 + $0x58] sm:$0xf] %v3597
      %3812 = vst [vmem:[#allocation2 + $0x5c] sm:$0xf] %v3607
      %3813 = vst [vmem:[#allocation2 + $0x60] sm:$0xf] %v3617
      %3814 = vst [vmem:[#allocation2 + $0x64] sm:$0xf] %v3627
      %3815 = vst [vmem:[#allocation2 + $0x68] sm:$0xf] %v3637
      %3816 = vst [vmem:[#allocation2 + $0x6c] sm:$0xf] %v3647
      %3817 = vst [vmem:[#allocation2 + $0x70] sm:$0xf] %v3657
      %3818 = vst [vmem:[#allocation2 + $0x74] sm:$0xf] %v3667
      %3819 = vst [vmem:[#allocation2 + $0x78] sm:$0xf] %v3677
      %3820 = vst [vmem:[#allocation2 + $0x7c] sm:$0xf] %v3687
      %3821 = vst [vmem:[#allocation2 + $0x80] sm:$0xf] %v3697
      %3822 = vst [vmem:[#allocation2 + $0x84] sm:$0xf] %v3707
      %3823 = vst [vmem:[#allocation2 + $0x88] sm:$0xf] %v3717
      %3824 = vst [vmem:[#allocation2 + $0x8c] sm:$0xf] %v3727
      %3825 = vst [vmem:[#allocation2 + $0x90] sm:$0xf] %v3737
      %3826 = vst [vmem:[#allocation2 + $0x94] sm:$0xf] %v3747
      %v3827 = vld [vmem:[#allocation2 + $0x98] sm:$0x3]
      %v3828 = vsel %vm3276, %v3748, %v3827
      %3829 = vst [vmem:[#allocation2 + $0x98] sm:$0x3] %v3828
      %v3830 = vld [vmem:[#allocation2 + $0x98] sm:$0xe]
      %v3831 = vsel %vm3788, 0, %v3830
      %3832 = vst [vmem:[#allocation2 + $0x98] sm:$0xe] %v3831
      %3833 = vst [vmem:[#allocation2 + $0x9c] sm:$0xf] 0
      %3834 = vst [vmem:[#allocation2 + $0xa0] sm:$0xf] 0
      %3835 = vst [vmem:[#allocation2 + $0xa4] sm:$0xf] 0
      %3836 = vst [vmem:[#allocation2 + $0xa8] sm:$0x7] 0
      %v3837 = vld [vmem:[#allocation2] sm:$0xf]
      %v3838 = vld [vmem:[#allocation2 + $0x4] sm:$0xf]
      %v3839 = vld [vmem:[#allocation2 + $0x8] sm:$0xf]
      %v3840 = vld [vmem:[#allocation2 + $0xc] sm:$0xf]
      %v3841 = vld [vmem:[#allocation2 + $0x10] sm:$0xf]
      %v3842 = vld [vmem:[#allocation2 + $0x14] sm:$0xf]
      %v3843 = vld [vmem:[#allocation2 + $0x18] sm:$0xf]
      %v3844 = vld [vmem:[#allocation2 + $0x1c] sm:$0xf]
      %v3845 = vld [vmem:[#allocation2 + $0x20] sm:$0xf]
      %v3846 = vld [vmem:[#allocation2 + $0x24] sm:$0xf]
      %v3847 = vld [vmem:[#allocation2 + $0x28] sm:$0xf]
      %v3848 = vld [vmem:[#allocation2 + $0x2c] sm:$0xf]
      %v3849 = vld [vmem:[#allocation2 + $0x30] sm:$0xf]
      %v3850 = vld [vmem:[#allocation2 + $0x34] sm:$0xf]
      %v3851 = vld [vmem:[#allocation2 + $0x38] sm:$0xf]
      %v3852 = vld [vmem:[#allocation2 + $0x3c] sm:$0xf]
      %v3853 = vld [vmem:[#allocation2 + $0x40] sm:$0xf]
      %v3854 = vld [vmem:[#allocation2 + $0x44] sm:$0xf]
      %v3855 = vld [vmem:[#allocation2 + $0x48] sm:$0xf]
      %v3856 = vld [vmem:[#allocation2 + $0x4c] sm:$0xf]
      %v3857 = vld [vmem:[#allocation2 + $0x50] sm:$0xf]
      %v3858 = vld [vmem:[#allocation2 + $0x54] sm:$0xf]
      %v3859 = vld [vmem:[#allocation2 + $0x58] sm:$0xf]
      %v3860 = vld [vmem:[#allocation2 + $0x5c] sm:$0xf]
      %v3861 = vld [vmem:[#allocation2 + $0x60] sm:$0xf]
      %v3862 = vld [vmem:[#allocation2 + $0x64] sm:$0xf]
      %v3863 = vld [vmem:[#allocation2 + $0x68] sm:$0xf]
      %v3864 = vld [vmem:[#allocation2 + $0x6c] sm:$0xf]
      %v3865 = vld [vmem:[#allocation2 + $0x70] sm:$0xf]
      %v3866 = vld [vmem:[#allocation2 + $0x74] sm:$0xf]
      %v3867 = vld [vmem:[#allocation2 + $0x78] sm:$0xf]
      %v3868 = vld [vmem:[#allocation2 + $0x7c] sm:$0xf]
      %v3869 = vld [vmem:[#allocation2 + $0x80] sm:$0xf]
      %v3870 = vld [vmem:[#allocation2 + $0x84] sm:$0xf]
      %v3871 = vld [vmem:[#allocation2 + $0x88] sm:$0xf]
      %v3872 = vld [vmem:[#allocation2 + $0x8c] sm:$0xf]
      %v3873 = vld [vmem:[#allocation2 + $0x90] sm:$0x1]
      %v3874 = vld [vmem:[#allocation2] sm:$0xe]
      %v3911 = vunpack.c.l.b16 %v3837
      %v3912 = vunpack.c.l.b16 %v3838
      %v3913 = vunpack.c.l.b16 %v3839
      %v3914 = vunpack.c.l.b16 %v3840
      %v3915 = vunpack.c.l.b16 %v3841
      %v3916 = vunpack.c.l.b16 %v3842
      %v3917 = vunpack.c.l.b16 %v3843
      %v3918 = vunpack.c.l.b16 %v3844
      %v3919 = vunpack.c.l.b16 %v3845
      %v3920 = vunpack.c.l.b16 %v3846
      %v3921 = vunpack.c.l.b16 %v3847
      %v3922 = vunpack.c.l.b16 %v3848
      %v3923 = vunpack.c.l.b16 %v3849
      %v3924 = vunpack.c.l.b16 %v3850
      %v3925 = vunpack.c.l.b16 %v3851
      %v3926 = vunpack.c.l.b16 %v3852
      %v3927 = vunpack.c.l.b16 %v3853
      %v3928 = vunpack.c.l.b16 %v3854
      %v3929 = vunpack.c.l.b16 %v3855
      %v3930 = vunpack.c.l.b16 %v3856
      %v3931 = vunpack.c.l.b16 %v3857
      %v3932 = vunpack.c.l.b16 %v3858
      %v3933 = vunpack.c.l.b16 %v3859
      %v3934 = vunpack.c.l.b16 %v3860
      %v3935 = vunpack.c.l.b16 %v3861
      %v3936 = vunpack.c.l.b16 %v3862
      %v3937 = vunpack.c.l.b16 %v3863
      %v3938 = vunpack.c.l.b16 %v3864
      %v3939 = vunpack.c.l.b16 %v3865
      %v3940 = vunpack.c.l.b16 %v3866
      %v3941 = vunpack.c.l.b16 %v3867
      %v3942 = vunpack.c.l.b16 %v3868
      %v3943 = vunpack.c.l.b16 %v3869
      %v3944 = vunpack.c.l.b16 %v3870
      %v3945 = vunpack.c.l.b16 %v3871
      %v3946 = vunpack.c.l.b16 %v3872
      %v3947 = vpack.c.b16 %v3912, %v3911
      %v3948 = vpack.c.b16 %v3914, %v3913
      %v3949 = vpack.c.b16 %v3916, %v3915
      %v3950 = vpack.c.b16 %v3918, %v3917
      %v3951 = vpack.c.b16 %v3920, %v3919
      %v3952 = vpack.c.b16 %v3922, %v3921
      %v3953 = vpack.c.b16 %v3924, %v3923
      %v3954 = vpack.c.b16 %v3926, %v3925
      %v3955 = vpack.c.b16 %v3928, %v3927
      %v3956 = vpack.c.b16 %v3930, %v3929
      %v3957 = vpack.c.b16 %v3932, %v3931
      %v3958 = vpack.c.b16 %v3934, %v3933
      %v3959 = vpack.c.b16 %v3936, %v3935
      %v3960 = vpack.c.b16 %v3938, %v3937
      %v3961 = vpack.c.b16 %v3940, %v3939
      %v3962 = vpack.c.b16 %v3942, %v3941
      %v3963 = vpack.c.b16 %v3944, %v3943
      %v3964 = vpack.c.b16 %v3946, %v3945
      %v3984 = vunpack.c.l.b16 %v3873
      %v3985 = vpack.c.b16 %v3984, %v3984
      %vm3986 = vsmask.f32 7424
      %v3988 = vshrl.u32 %v3947, 16
      %v3990 = vshll.u32 %v3947, 16
      %v3992 = vrot.slane %v3990, 1
      %v3993 = vor.u32 %v3988, %v3992
      %v3995 = vshll.u32 %v3948, 16
      %v3997 = vrot.slane %v3995, 1
      %v3998 = vsel %vm3986, %v3993, %v3997
      %v3999 = vshrl.u32 %v3948, 16
      %v4001 = vor.u32 %v3999, %v3997
      %v4003 = vshll.u32 %v3949, 16
      %v4005 = vrot.slane %v4003, 1
      %v4006 = vsel %vm3986, %v4001, %v4005
      %v4007 = vshrl.u32 %v3949, 16
      %v4009 = vor.u32 %v4007, %v4005
      %v4011 = vshll.u32 %v3950, 16
      %v4013 = vrot.slane %v4011, 1
      %v4014 = vsel %vm3986, %v4009, %v4013
      %v4015 = vshrl.u32 %v3950, 16
      %v4017 = vor.u32 %v4015, %v4013
      %v4019 = vshll.u32 %v3951, 16
      %v4021 = vrot.slane %v4019, 1
      %v4022 = vsel %vm3986, %v4017, %v4021
      %v4023 = vshrl.u32 %v3951, 16
      %v4025 = vor.u32 %v4023, %v4021
      %v4027 = vshll.u32 %v3952, 16
      %v4029 = vrot.slane %v4027, 1
      %v4030 = vsel %vm3986, %v4025, %v4029
      %v4031 = vshrl.u32 %v3952, 16
      %v4033 = vor.u32 %v4031, %v4029
      %v4035 = vshll.u32 %v3953, 16
      %v4037 = vrot.slane %v4035, 1
      %v4038 = vsel %vm3986, %v4033, %v4037
      %v4039 = vshrl.u32 %v3953, 16
      %v4041 = vor.u32 %v4039, %v4037
      %v4043 = vshll.u32 %v3954, 16
      %v4045 = vrot.slane %v4043, 1
      %v4046 = vsel %vm3986, %v4041, %v4045
      %v4047 = vshrl.u32 %v3954, 16
      %v4049 = vor.u32 %v4047, %v4045
      %v4051 = vshll.u32 %v3955, 16
      %v4053 = vrot.slane %v4051, 1
      %v4054 = vsel %vm3986, %v4049, %v4053
      %v4055 = vshrl.u32 %v3955, 16
      %v4057 = vor.u32 %v4055, %v4053
      %v4059 = vshll.u32 %v3956, 16
      %v4061 = vrot.slane %v4059, 1
      %v4062 = vsel %vm3986, %v4057, %v4061
      %v4063 = vshrl.u32 %v3956, 16
      %v4065 = vor.u32 %v4063, %v4061
      %v4067 = vshll.u32 %v3957, 16
      %v4069 = vrot.slane %v4067, 1
      %v4070 = vsel %vm3986, %v4065, %v4069
      %v4071 = vshrl.u32 %v3957, 16
      %v4073 = vor.u32 %v4071, %v4069
      %v4075 = vshll.u32 %v3958, 16
      %v4077 = vrot.slane %v4075, 1
      %v4078 = vsel %vm3986, %v4073, %v4077
      %v4079 = vshrl.u32 %v3958, 16
      %v4081 = vor.u32 %v4079, %v4077
      %v4083 = vshll.u32 %v3959, 16
      %v4085 = vrot.slane %v4083, 1
      %v4086 = vsel %vm3986, %v4081, %v4085
      %v4087 = vshrl.u32 %v3959, 16
      %v4089 = vor.u32 %v4087, %v4085
      %v4091 = vshll.u32 %v3960, 16
      %v4093 = vrot.slane %v4091, 1
      %v4094 = vsel %vm3986, %v4089, %v4093
      %v4095 = vshrl.u32 %v3960, 16
      %v4097 = vor.u32 %v4095, %v4093
      %v4099 = vshll.u32 %v3961, 16
      %v4101 = vrot.slane %v4099, 1
      %v4102 = vsel %vm3986, %v4097, %v4101
      %v4103 = vshrl.u32 %v3961, 16
      %v4105 = vor.u32 %v4103, %v4101
      %v4107 = vshll.u32 %v3962, 16
      %v4109 = vrot.slane %v4107, 1
      %v4110 = vsel %vm3986, %v4105, %v4109
      %v4111 = vshrl.u32 %v3962, 16
      %v4113 = vor.u32 %v4111, %v4109
      %v4115 = vshll.u32 %v3963, 16
      %v4117 = vrot.slane %v4115, 1
      %v4118 = vsel %vm3986, %v4113, %v4117
      %v4119 = vshrl.u32 %v3963, 16
      %v4121 = vor.u32 %v4119, %v4117
      %v4123 = vshll.u32 %v3964, 16
      %v4125 = vrot.slane %v4123, 1
      %v4126 = vsel %vm3986, %v4121, %v4125
      %v4127 = vshrl.u32 %v3964, 16
      %v4129 = vor.u32 %v4127, %v4125
      %v4131 = vshll.u32 %v3985, 16
      %v4133 = vrot.slane %v4131, 1
      %v4134 = vsel %vm3986, %v4129, %v4133
      %v4154 = vunpack.c.l.b16 %v3874
      %v4155 = vpack.c.b16 %v3912, %v4154
      %vm4156 = vcmask 1046528
      %v4157 = vrot.slane %v4155, 1
      %v4158 = vrot.slane %v3948, 1
      %v4159 = vsel %vm4156, %v4157, %v4158
      %v4160 = vrot.slane %v3949, 1
      %v4161 = vsel %vm4156, %v4158, %v4160
      %v4162 = vrot.slane %v3950, 1
      %v4163 = vsel %vm4156, %v4160, %v4162
      %v4164 = vrot.slane %v3951, 1
      %v4165 = vsel %vm4156, %v4162, %v4164
      %v4166 = vrot.slane %v3952, 1
      %v4167 = vsel %vm4156, %v4164, %v4166
      %v4168 = vrot.slane %v3953, 1
      %v4169 = vsel %vm4156, %v4166, %v4168
      %v4170 = vrot.slane %v3954, 1
      %v4171 = vsel %vm4156, %v4168, %v4170
      %v4172 = vrot.slane %v3955, 1
      %v4173 = vsel %vm4156, %v4170, %v4172
      %v4174 = vrot.slane %v3956, 1
      %v4175 = vsel %vm4156, %v4172, %v4174
      %v4176 = vrot.slane %v3957, 1
      %v4177 = vsel %vm4156, %v4174, %v4176
      %v4178 = vrot.slane %v3958, 1
      %v4179 = vsel %vm4156, %v4176, %v4178
      %v4180 = vrot.slane %v3959, 1
      %v4181 = vsel %vm4156, %v4178, %v4180
      %v4182 = vrot.slane %v3960, 1
      %v4183 = vsel %vm4156, %v4180, %v4182
      %v4184 = vrot.slane %v3961, 1
      %v4185 = vsel %vm4156, %v4182, %v4184
      %v4186 = vrot.slane %v3962, 1
      %v4187 = vsel %vm4156, %v4184, %v4186
      %v4188 = vrot.slane %v3963, 1
      %v4189 = vsel %vm4156, %v4186, %v4188
      %v4190 = vrot.slane %v3964, 1
      %v4191 = vsel %vm4156, %v4188, %v4190
      %v4192 = vrot.slane %v3985, 1
      %v4193 = vsel %vm4156, %v4190, %v4192
      %v4212 = vld [vmem:[%s4] sm:$0xf]
      %v4213 = vld [vmem:[%s4 + $0x4] sm:$0xf]
      %v4214 = vld [vmem:[%s4 + $0x8] sm:$0xf]
      %v4215 = vld [vmem:[%s4 + $0xc] sm:$0xf]
      %v4216 = vld [vmem:[%s4 + $0x10] sm:$0xf]
      %v4217 = vld [vmem:[%s4 + $0x14] sm:$0xf]
      %v4218 = vld [vmem:[%s4 + $0x18] sm:$0xf]
      %v4219 = vld [vmem:[%s4 + $0x1c] sm:$0xf]
      %v4220 = vld [vmem:[%s4 + $0x20] sm:$0xf]
      %v4221 = vld [vmem:[%s4 + $0x24] sm:$0xf]
      %v4222 = vld [vmem:[%s4 + $0x28] sm:$0xf]
      %v4223 = vld [vmem:[%s4 + $0x2c] sm:$0xf]
      %v4224 = vld [vmem:[%s4 + $0x30] sm:$0xf]
      %v4225 = vld [vmem:[%s4 + $0x34] sm:$0xf]
      %v4226 = vld [vmem:[%s4 + $0x38] sm:$0xf]
      %v4227 = vld [vmem:[%s4 + $0x3c] sm:$0xf]
      %v4228 = vld [vmem:[%s4 + $0x40] sm:$0xf]
      %v4229 = vld [vmem:[%s4 + $0x44] sm:$0xf]
      %v4230 = vld [vmem:[%s4 + $0x48] sm:$0xf]
      %v4231 = vld [vmem:[%s4 + $0x4c] sm:$0xf]
      %v4232 = vld [vmem:[%s4 + $0x50] sm:$0xf]
      %v4233 = vld [vmem:[%s4 + $0x54] sm:$0xf]
      %v4234 = vld [vmem:[%s4 + $0x58] sm:$0xf]
      %v4235 = vld [vmem:[%s4 + $0x5c] sm:$0xf]
      %v4236 = vld [vmem:[%s4 + $0x60] sm:$0xf]
      %v4237 = vld [vmem:[%s4 + $0x64] sm:$0xf]
      %v4238 = vld [vmem:[%s4 + $0x68] sm:$0xf]
      %v4239 = vld [vmem:[%s4 + $0x6c] sm:$0xf]
      %v4240 = vld [vmem:[%s4 + $0x70] sm:$0xf]
      %v4241 = vld [vmem:[%s4 + $0x74] sm:$0xf]
      %v4242 = vld [vmem:[%s4 + $0x78] sm:$0xf]
      %v4243 = vld [vmem:[%s4 + $0x7c] sm:$0xf]
      %v4244 = vld [vmem:[%s4 + $0x80] sm:$0xf]
      %v4245 = vld [vmem:[%s4 + $0x84] sm:$0xf]
      %v4246 = vld [vmem:[%s4 + $0x88] sm:$0xf]
      %v4247 = vld [vmem:[%s4 + $0x8c] sm:$0xf]
      %v4248 = vld [vmem:[%s4 + $0x90] sm:$0xf]
      %v4249 = vld [vmem:[%s4 + $0x94] sm:$0xf]
      %v4250 = vld [vmem:[%s4 + $0x98] sm:$0xf]
      %v4251 = vld [vmem:[%s4 + $0x9c] sm:$0xf]
      %v4252 = vld [vmem:[%s4 + $0xa0] sm:$0xf]
      %v4253 = vld [vmem:[%s4 + $0xa4] sm:$0xf]
      %v4254 = vld [vmem:[%s4 + $0xa8] sm:$0xf]
      %v4255 = vld [vmem:[%s4 + $0xac] sm:$0xf]
      %v4256 = vld [vmem:[%s4 + $0xb0] sm:$0xf]
      %v4257 = vld [vmem:[%s4 + $0xb4] sm:$0xf]
      %v4258 = vld [vmem:[%s4 + $0xb8] sm:$0xf]
      %v4259 = vld [vmem:[%s4 + $0xbc] sm:$0xf]
      %v4260 = vld [vmem:[#allocation2 + $0x8] sm:$0xe]
      %v4261 = vld [vmem:[#allocation2 + $0x90] sm:$0xf]
      %v4262 = vld [vmem:[#allocation2 + $0x94] sm:$0xf]
      %v4263 = vld [vmem:[#allocation2 + $0x98] sm:$0x1]
      %v4264 = vld [vmem:[#allocation2 + $0x98] sm:$0x3]
      %v4265 = vld [vmem:[#allocation2 + $0x8] sm:$0xc]
      %v4270 = vunpack.c.l.b16 %v4260
      %v4271 = vunpack.c.l.b16 %v4261
      %v4272 = vunpack.c.l.b16 %v4262
      %v4273 = vunpack.c.l.b16 %v4263
      %v4274 = vpack.c.b16 %v3914, %v4270
      %v4275 = vpack.c.b16 %v4272, %v4271
      %v4276 = vpack.c.b16 %v4273, %v4273
      %v4278 = vunpack.c.l.b16 %v4264
      %v4279 = vpack.c.b16 %v4278, %v4278
      %v4281 = vshrl.u32 %v4274, 16
      %v4283 = vshll.u32 %v4274, 16
      %v4285 = vrot.slane %v4283, 1
      %v4286 = vor.u32 %v4281, %v4285
      %v4287 = vsel %vm3986, %v4286, %v4005
      %v4289 = vshll.u32 %v4275, 16
      %v4291 = vrot.slane %v4289, 1
      %v4292 = vsel %vm3986, %v4129, %v4291
      %v4293 = vshrl.u32 %v4275, 16
      %v4295 = vor.u32 %v4293, %v4291
      %v4297 = vshll.u32 %v4279, 16
      %v4299 = vrot.slane %v4297, 1
      %v4300 = vsel %vm3986, %v4295, %v4299
      %v4301 = vshrl.u32 %v4279, 16
      %v4303 = vor.u32 %v4301, %v4299
      %v4305 = vunpack.c.l.b16 %v4265
      %v4306 = vpack.c.b16 %v3914, %v4305
      %v4307 = vrot.slane %v4306, 1
      %v4308 = vsel %vm4156, %v4307, %v4160
      %v4309 = vrot.slane %v4275, 1
      %v4310 = vsel %vm4156, %v4190, %v4309
      %v4311 = vrot.slane %v4279, 1
      %v4312 = vsel %vm4156, %v4309, %v4311
      %s4313 = scalar_lea.vmem %s4, 192
      %v4314 = vld [vmem:[%s4313] sm:$0xf]
      %v4315 = vld [vmem:[%s4313 + $0x4] sm:$0xf]
      %v4316 = vld [vmem:[%s4313 + $0x8] sm:$0xf]
      %v4317 = vld [vmem:[%s4313 + $0xc] sm:$0xf]
      %v4318 = vld [vmem:[%s4313 + $0x10] sm:$0xf]
      %v4319 = vld [vmem:[%s4313 + $0x14] sm:$0xf]
      %v4320 = vld [vmem:[%s4313 + $0x18] sm:$0xf]
      %v4321 = vld [vmem:[%s4313 + $0x1c] sm:$0xf]
      %v4322 = vld [vmem:[%s4313 + $0x20] sm:$0xf]
      %v4323 = vld [vmem:[%s4313 + $0x24] sm:$0xf]
      %v4324 = vld [vmem:[%s4313 + $0x28] sm:$0xf]
      %v4325 = vld [vmem:[%s4313 + $0x2c] sm:$0xf]
      %v4326 = vld [vmem:[%s4313 + $0x30] sm:$0xf]
      %v4327 = vld [vmem:[%s4313 + $0x34] sm:$0xf]
      %v4328 = vld [vmem:[%s4313 + $0x38] sm:$0xf]
      %v4329 = vld [vmem:[%s4313 + $0x3c] sm:$0xf]
      %v4330 = vld [vmem:[%s4313 + $0x40] sm:$0xf]
      %v4331 = vld [vmem:[%s4313 + $0x44] sm:$0xf]
      %v4332 = vld [vmem:[%s4313 + $0x48] sm:$0xf]
      %v4333 = vld [vmem:[%s4313 + $0x4c] sm:$0xf]
      %v4334 = vld [vmem:[%s4313 + $0x50] sm:$0xf]
      %v4335 = vld [vmem:[%s4313 + $0x54] sm:$0xf]
      %v4336 = vld [vmem:[%s4313 + $0x58] sm:$0xf]
      %v4337 = vld [vmem:[%s4313 + $0x5c] sm:$0xf]
      %v4338 = vld [vmem:[%s4313 + $0x60] sm:$0xf]
      %v4339 = vld [vmem:[%s4313 + $0x64] sm:$0xf]
      %v4340 = vld [vmem:[%s4313 + $0x68] sm:$0xf]
      %v4341 = vld [vmem:[%s4313 + $0x6c] sm:$0xf]
      %v4342 = vld [vmem:[%s4313 + $0x70] sm:$0xf]
      %v4343 = vld [vmem:[%s4313 + $0x74] sm:$0xf]
      %v4344 = vld [vmem:[%s4313 + $0x78] sm:$0xf]
      %v4345 = vld [vmem:[%s4313 + $0x7c] sm:$0xf]
      %v4346 = vld [vmem:[%s4313 + $0x80] sm:$0xf]
      %v4347 = vld [vmem:[%s4313 + $0x84] sm:$0xf]
      %v4348 = vld [vmem:[%s4313 + $0x88] sm:$0xf]
      %v4349 = vld [vmem:[%s4313 + $0x8c] sm:$0xf]
      %v4350 = vld [vmem:[%s4313 + $0x90] sm:$0xf]
      %v4351 = vld [vmem:[%s4313 + $0x94] sm:$0xf]
      %v4352 = vld [vmem:[%s4313 + $0x98] sm:$0xf]
      %v4353 = vld [vmem:[%s4313 + $0x9c] sm:$0xf]
      %v4354 = vld [vmem:[%s4313 + $0xa0] sm:$0xf]
      %v4355 = vld [vmem:[%s4313 + $0xa4] sm:$0xf]
      %v4356 = vld [vmem:[%s4313 + $0xa8] sm:$0xf]
      %v4357 = vld [vmem:[%s4313 + $0xac] sm:$0xf]
      %v4358 = vld [vmem:[%s4313 + $0xb0] sm:$0xf]
      %v4359 = vld [vmem:[%s4313 + $0xb4] sm:$0xf]
      %v4360 = vld [vmem:[%s4313 + $0xb8] sm:$0xf]
      %v4361 = vld [vmem:[%s4313 + $0xbc] sm:$0xf]
      %v4362 = vrot.slane %v4274, 1
      %v4363 = vsel %vm4156, %v4362, %v4160
      %v4364 = vrot.slane %v4287, 1
      %v4365 = vrot.slane %v4014, 1
      %v4366 = vsel %vm4156, %v4364, %v4365
      %v4367 = vrot.slane %v4308, 1
      %v4368 = vrot.slane %v4163, 1
      %v4369 = vsel %vm4156, %v4367, %v4368
      %v4370 = vrot.slane %v4022, 1
      %v4371 = vsel %vm4156, %v4365, %v4370
      %v4372 = vrot.slane %v4165, 1
      %v4373 = vsel %vm4156, %v4368, %v4372
      %v4374 = vrot.slane %v4030, 1
      %v4375 = vsel %vm4156, %v4370, %v4374
      %v4376 = vrot.slane %v4167, 1
      %v4377 = vsel %vm4156, %v4372, %v4376
      %v4378 = vrot.slane %v4038, 1
      %v4379 = vsel %vm4156, %v4374, %v4378
      %v4380 = vrot.slane %v4169, 1
      %v4381 = vsel %vm4156, %v4376, %v4380
      %v4382 = vrot.slane %v4046, 1
      %v4383 = vsel %vm4156, %v4378, %v4382
      %v4384 = vrot.slane %v4171, 1
      %v4385 = vsel %vm4156, %v4380, %v4384
      %v4386 = vrot.slane %v4054, 1
      %v4387 = vsel %vm4156, %v4382, %v4386
      %v4388 = vrot.slane %v4173, 1
      %v4389 = vsel %vm4156, %v4384, %v4388
      %v4390 = vrot.slane %v4062, 1
      %v4391 = vsel %vm4156, %v4386, %v4390
      %v4392 = vrot.slane %v4175, 1
      %v4393 = vsel %vm4156, %v4388, %v4392
      %v4394 = vrot.slane %v4070, 1
      %v4395 = vsel %vm4156, %v4390, %v4394
      %v4396 = vrot.slane %v4177, 1
      %v4397 = vsel %vm4156, %v4392, %v4396
      %v4398 = vrot.slane %v4078, 1
      %v4399 = vsel %vm4156, %v4394, %v4398
      %v4400 = vrot.slane %v4179, 1
      %v4401 = vsel %vm4156, %v4396, %v4400
      %v4402 = vrot.slane %v4086, 1
      %v4403 = vsel %vm4156, %v4398, %v4402
      %v4404 = vrot.slane %v4181, 1
      %v4405 = vsel %vm4156, %v4400, %v4404
      %v4406 = vrot.slane %v4094, 1
      %v4407 = vsel %vm4156, %v4402, %v4406
      %v4408 = vrot.slane %v4183, 1
      %v4409 = vsel %vm4156, %v4404, %v4408
      %v4410 = vrot.slane %v4102, 1
      %v4411 = vsel %vm4156, %v4406, %v4410
      %v4412 = vrot.slane %v4185, 1
      %v4413 = vsel %vm4156, %v4408, %v4412
      %v4414 = vrot.slane %v4110, 1
      %v4415 = vsel %vm4156, %v4410, %v4414
      %v4416 = vrot.slane %v4187, 1
      %v4417 = vsel %vm4156, %v4412, %v4416
      %v4418 = vrot.slane %v4118, 1
      %v4419 = vsel %vm4156, %v4414, %v4418
      %v4420 = vrot.slane %v4189, 1
      %v4421 = vsel %vm4156, %v4416, %v4420
      %v4422 = vrot.slane %v4126, 1
      %v4423 = vsel %vm4156, %v4418, %v4422
      %v4424 = vrot.slane %v4191, 1
      %v4425 = vsel %vm4156, %v4420, %v4424
      %v4426 = vrot.slane %v4292, 1
      %v4427 = vsel %vm4156, %v4422, %v4426
      %v4428 = vrot.slane %v4310, 1
      %v4429 = vsel %vm4156, %v4424, %v4428
      %v4430 = vrot.slane %v4300, 1
      %v4431 = vsel %vm4156, %v4426, %v4430
      %v4432 = vrot.slane %v4312, 1
      %v4433 = vsel %vm4156, %v4428, %v4432
      %v4434 = vrot.slane %v4276, 1
      %v4435 = vsel %vm4156, %v4309, %v4434
      %v4436 = vrot.slane %v4303, 1
      %v4437 = vsel %vm4156, %v4430, %v4436
      %v4438 = vrot.slane %v4311, 1
      %v4439 = vsel %vm4156, %v4432, %v4438
      %v4527 = vunpack.c.l.b16 %v4314
      %v4528 = vunpack.c.l.b16 %v4315
      %v4529 = vunpack.c.l.b16 %v4316
      %v4530 = vunpack.c.l.b16 %v4317
      %v4531 = vunpack.c.l.b16 %v4318
      %v4532 = vunpack.c.l.b16 %v4319
      %v4533 = vunpack.c.l.b16 %v4320
      %v4534 = vunpack.c.l.b16 %v4321
      %v4535 = vunpack.c.l.b16 %v4322
      %v4536 = vunpack.c.l.b16 %v4323
      %v4537 = vunpack.c.l.b16 %v4324
      %v4538 = vunpack.c.l.b16 %v4325
      %v4539 = vunpack.c.l.b16 %v4326
      %v4540 = vunpack.c.l.b16 %v4327
      %v4541 = vunpack.c.l.b16 %v4328
      %v4542 = vunpack.c.l.b16 %v4329
      %v4543 = vunpack.c.l.b16 %v4330
      %v4544 = vunpack.c.l.b16 %v4331
      %v4545 = vunpack.c.l.b16 %v4332
      %v4546 = vunpack.c.l.b16 %v4333
      %v4547 = vunpack.c.l.b16 %v4334
      %v4548 = vunpack.c.l.b16 %v4335
      %v4549 = vunpack.c.l.b16 %v4336
      %v4550 = vunpack.c.l.b16 %v4337
      %v4551 = vunpack.c.l.b16 %v4338
      %v4552 = vunpack.c.l.b16 %v4339
      %v4553 = vunpack.c.l.b16 %v4340
      %v4554 = vunpack.c.l.b16 %v4341
      %v4555 = vunpack.c.l.b16 %v4342
      %v4556 = vunpack.c.l.b16 %v4343
      %v4557 = vunpack.c.l.b16 %v4344
      %v4558 = vunpack.c.l.b16 %v4345
      %v4559 = vunpack.c.l.b16 %v4346
      %v4560 = vunpack.c.l.b16 %v4347
      %v4561 = vunpack.c.l.b16 %v4348
      %v4562 = vunpack.c.l.b16 %v4349
      %v4563 = vunpack.c.l.b16 %v4350
      %v4564 = vunpack.c.l.b16 %v4351
      %v4565 = vunpack.c.l.b16 %v4352
      %v4566 = vunpack.c.l.b16 %v4353
      %v4567 = vunpack.c.l.b16 %v4354
      %v4568 = vunpack.c.l.b16 %v4355
      %v4569 = vunpack.c.l.b16 %v4356
      %v4570 = vunpack.c.l.b16 %v4357
      %v4571 = vunpack.c.l.b16 %v4358
      %v4572 = vunpack.c.l.b16 %v4359
      %v4573 = vunpack.c.l.b16 %v4360
      %v4574 = vunpack.c.l.b16 %v4361
      %v4575 = vpack.c.b16 %v4528, %v4527
      %v4576 = vpack.c.b16 %v4530, %v4529
      %v4577 = vpack.c.b16 %v4532, %v4531
      %v4578 = vpack.c.b16 %v4534, %v4533
      %v4579 = vpack.c.b16 %v4536, %v4535
      %v4580 = vpack.c.b16 %v4538, %v4537
      %v4581 = vpack.c.b16 %v4540, %v4539
      %v4582 = vpack.c.b16 %v4542, %v4541
      %v4583 = vpack.c.b16 %v4544, %v4543
      %v4584 = vpack.c.b16 %v4546, %v4545
      %v4585 = vpack.c.b16 %v4548, %v4547
      %v4586 = vpack.c.b16 %v4550, %v4549
      %v4587 = vpack.c.b16 %v4552, %v4551
      %v4588 = vpack.c.b16 %v4554, %v4553
      %v4589 = vpack.c.b16 %v4556, %v4555
      %v4590 = vpack.c.b16 %v4558, %v4557
      %v4591 = vpack.c.b16 %v4560, %v4559
      %v4592 = vpack.c.b16 %v4562, %v4561
      %v4593 = vpack.c.b16 %v4564, %v4563
      %v4594 = vpack.c.b16 %v4566, %v4565
      %v4595 = vpack.c.b16 %v4568, %v4567
      %v4596 = vpack.c.b16 %v4570, %v4569
      %v4597 = vpack.c.b16 %v4572, %v4571
      %v4598 = vpack.c.b16 %v4574, %v4573
      %4623 = vmatprep.subr.bf16.mxu0 0
      %4624 = vmatpush1.bf16.msra.mxu0 %v4575
      %4625 = vmatprep.subr.bf16.mxu0 0
      %4626 = vmatpush1.bf16.msra.mxu0 %v4576
      %4627 = vmatprep.subr.bf16.mxu0 0
      %4628 = vmatpush1.bf16.msra.mxu0 %v4577
      %4629 = vmatprep.subr.bf16.mxu0 0
      %4630 = vmatpush1.bf16.msra.mxu0 %v4578
      %4631 = vmatprep.subr.bf16.mxu0 0
      %4632 = vmatpush1.bf16.msra.mxu0 %v4579
      %4633 = vmatprep.subr.bf16.mxu0 0
      %4634 = vmatpush1.bf16.msra.mxu0 %v4580
      %4635 = vmatprep.subr.bf16.mxu0 0
      %4636 = vmatpush1.bf16.msra.mxu0 %v4581
      %4637 = vmatprep.subr.bf16.mxu0 0
      %4638 = vmatpush1.bf16.msra.mxu0 %v4582
      %4639 = vmatprep.subr.bf16.mxu0 0
      %4640 = vmatpush1.bf16.msra.mxu0 %v4583
      %4641 = vmatprep.subr.bf16.mxu0 0
      %4642 = vmatpush1.bf16.msra.mxu0 %v4584
      %4643 = vmatprep.subr.bf16.mxu0 0
      %4644 = vmatpush1.bf16.msra.mxu0 %v4585
      %4645 = vmatprep.subr.bf16.mxu0 0
      %4646 = vmatpush1.bf16.msra.mxu0 %v4586
      %4647 = vmatprep.subr.bf16.mxu0 0
      %4648 = vmatpush1.bf16.msra.mxu0 %v4587
      %4649 = vmatprep.subr.bf16.mxu0 0
      %4650 = vmatpush1.bf16.msra.mxu0 %v4588
      %4651 = vmatprep.subr.bf16.mxu0 0
      %4652 = vmatpush1.bf16.msra.mxu0 %v4589
      %4653 = vmatprep.subr.bf16.mxu0 0
      %4654 = vmatpush1.bf16.msra.mxu0 %v4590
      %4655 = vmatprep.mubr.bf16.mxu0 %v4366
      %4656 = vmatmul.mubr.bf16.gmra.mrb[0].mxu0 %v4363
      %v4657 = vpop.f32.mrb[0].mxu0
      %v4658 = vadd.f32 0.0, %v4657
      %v4659 = vpop.f32.mrb[0].mxu0
      %v4660 = vpop.f32.mrb[0].mxu0
      %v4661 = vadd.f32 0.0, %v4660
      %v4662 = vpop.f32.mrb[0].mxu0
      %4663 = vmatprep.mubr.bf16.mxu0 %v4371
      %4664 = vmatmul.mubr.bf16.gmra.mrb[0].mxu0 %v4163
      %v4665 = vpop.f32.mrb[0].mxu0
      %v4666 = vadd.f32 0.0, %v4665
      %v4667 = vpop.f32.mrb[0].mxu0
      %v4668 = vpop.f32.mrb[0].mxu0
      %v4669 = vadd.f32 0.0, %v4668
      %v4670 = vpop.f32.mrb[0].mxu0
      %4671 = vmatprep.mubr.bf16.mxu0 %v4375
      %4672 = vmatmul.mubr.bf16.gmra.mrb[0].mxu0 %v4165
      %v4673 = vpop.f32.mrb[0].mxu0
      %v4674 = vadd.f32 0.0, %v4673
      %v4675 = vpop.f32.mrb[0].mxu0
      %v4676 = vpop.f32.mrb[0].mxu0
      %v4677 = vadd.f32 0.0, %v4676
      %v4678 = vpop.f32.mrb[0].mxu0
      %4679 = vmatprep.mubr.bf16.mxu0 %v4379
      %4680 = vmatmul.mubr.bf16.gmra.mrb[0].mxu0 %v4167
      %v4681 = vpop.f32.mrb[0].mxu0
      %v4682 = vadd.f32 0.0, %v4681
      %v4683 = vpop.f32.mrb[0].mxu0
      %v4684 = vpop.f32.mrb[0].mxu0
      %v4685 = vadd.f32 0.0, %v4684
      %v4686 = vpop.f32.mrb[0].mxu0
      %4687 = vmatprep.mubr.bf16.mxu0 %v4383
      %4688 = vmatmul.mubr.bf16.gmra.mrb[0].mxu0 %v4169
      %v4689 = vpop.f32.mrb[0].mxu0
      %v4690 = vadd.f32 0.0, %v4689
      %v4691 = vpop.f32.mrb[0].mxu0
      %v4692 = vpop.f32.mrb[0].mxu0
      %v4693 = vadd.f32 0.0, %v4692
      %v4694 = vpop.f32.mrb[0].mxu0
      %4695 = vmatprep.mubr.bf16.mxu0 %v4387
      %4696 = vmatmul.mubr.bf16.gmra.mrb[0].mxu0 %v4171
      %v4697 = vpop.f32.mrb[0].mxu0
      %v4698 = vadd.f32 0.0, %v4697
      %v4699 = vpop.f32.mrb[0].mxu0
      %v4700 = vpop.f32.mrb[0].mxu0
      %v4701 = vadd.f32 0.0, %v4700
      %v4702 = vpop.f32.mrb[0].mxu0
      %4703 = vmatprep.mubr.bf16.mxu0 %v4391
      %4704 = vmatmul.mubr.bf16.gmra.mrb[0].mxu0 %v4173
      %v4705 = vpop.f32.mrb[0].mxu0
      %v4706 = vadd.f32 0.0, %v4705
      %v4707 = vpop.f32.mrb[0].mxu0
      %v4708 = vpop.f32.mrb[0].mxu0
      %v4709 = vadd.f32 0.0, %v4708
      %v4710 = vpop.f32.mrb[0].mxu0
      %4711 = vmatprep.mubr.bf16.mxu0 %v4395
      %4712 = vmatmul.mubr.bf16.gmra.mrb[0].mxu0 %v4175
      %v4713 = vpop.f32.mrb[0].mxu0
      %v4714 = vadd.f32 0.0, %v4713
      %v4715 = vpop.f32.mrb[0].mxu0
      %v4716 = vpop.f32.mrb[0].mxu0
      %v4717 = vadd.f32 0.0, %v4716
      %v4718 = vpop.f32.mrb[0].mxu0
      %4719 = vmatprep.mubr.bf16.mxu0 %v4399
      %4720 = vmatmul.mubr.bf16.gmra.mrb[0].mxu0 %v4177
      %v4721 = vpop.f32.mrb[0].mxu0
      %v4722 = vadd.f32 0.0, %v4721
      %v4723 = vpop.f32.mrb[0].mxu0
      %v4724 = vpop.f32.mrb[0].mxu0
      %v4725 = vadd.f32 0.0, %v4724
      %v4726 = vpop.f32.mrb[0].mxu0
      %4727 = vmatprep.mubr.bf16.mxu0 %v4403
      %4728 = vmatmul.mubr.bf16.gmra.mrb[0].mxu0 %v4179
      %v4729 = vpop.f32.mrb[0].mxu0
      %v4730 = vadd.f32 0.0, %v4729
      %v4731 = vpop.f32.mrb[0].mxu0
      %v4732 = vpop.f32.mrb[0].mxu0
      %v4733 = vadd.f32 0.0, %v4732
      %v4734 = vpop.f32.mrb[0].mxu0
      %4735 = vmatprep.mubr.bf16.mxu0 %v4407
      %4736 = vmatmul.mubr.bf16.gmra.mrb[0].mxu0 %v4181
      %v4737 = vpop.f32.mrb[0].mxu0
      %v4738 = vadd.f32 0.0, %v4737
      %v4739 = vpop.f32.mrb[0].mxu0
      %v4740 = vpop.f32.mrb[0].mxu0
      %v4741 = vadd.f32 0.0, %v4740
      %v4742 = vpop.f32.mrb[0].mxu0
      %4743 = vmatprep.mubr.bf16.mxu0 %v4411
      %4744 = vmatmul.mubr.bf16.gmra.mrb[0].mxu0 %v4183
      %v4745 = vpop.f32.mrb[0].mxu0
      %v4746 = vadd.f32 0.0, %v4745
      %v4747 = vpop.f32.mrb[0].mxu0
      %v4748 = vpop.f32.mrb[0].mxu0
      %v4749 = vadd.f32 0.0, %v4748
      %v4750 = vpop.f32.mrb[0].mxu0
      %4751 = vmatprep.mubr.bf16.mxu0 %v4415
      %4752 = vmatmul.mubr.bf16.gmra.mrb[0].mxu0 %v4185
      %v4753 = vpop.f32.mrb[0].mxu0
      %v4754 = vadd.f32 0.0, %v4753
      %v4755 = vpop.f32.mrb[0].mxu0
      %v4756 = vpop.f32.mrb[0].mxu0
      %v4757 = vadd.f32 0.0, %v4756
      %v4758 = vpop.f32.mrb[0].mxu0
      %4759 = vmatprep.mubr.bf16.mxu0 %v4419
      %4760 = vmatmul.mubr.bf16.gmra.mrb[0].mxu0 %v4187
      %v4761 = vpop.f32.mrb[0].mxu0
      %v4762 = vadd.f32 0.0, %v4761
      %v4763 = vpop.f32.mrb[0].mxu0
      %v4764 = vpop.f32.mrb[0].mxu0
      %v4765 = vadd.f32 0.0, %v4764
      %v4766 = vpop.f32.mrb[0].mxu0
      %4767 = vmatprep.mubr.bf16.mxu0 %v4423
      %4768 = vmatmul.mubr.bf16.gmra.mrb[0].mxu0 %v4189
      %v4769 = vpop.f32.mrb[0].mxu0
      %v4770 = vadd.f32 0.0, %v4769
      %v4771 = vpop.f32.mrb[0].mxu0
      %v4772 = vpop.f32.mrb[0].mxu0
      %v4773 = vadd.f32 0.0, %v4772
      %v4774 = vpop.f32.mrb[0].mxu0
      %4775 = vmatprep.mubr.bf16.mxu0 %v4427
      %4776 = vmatmul.mubr.bf16.gmra.mrb[0].mxu0 %v4191
      %v4777 = vpop.f32.mrb[0].mxu0
      %v4778 = vadd.f32 0.0, %v4777
      %v4779 = vpop.f32.mrb[0].mxu0
      %v4780 = vpop.f32.mrb[0].mxu0
      %v4781 = vadd.f32 0.0, %v4780
      %v4782 = vpop.f32.mrb[0].mxu0
      %4783 = vmatprep.mubr.bf16.mxu0 %v4431
      %4784 = vmatmul.mubr.bf16.gmra.mrb[0].mxu0 %v4310
      %v4785 = vpop.f32.mrb[0].mxu0
      %v4786 = vadd.f32 0.0, %v4785
      %v4787 = vpop.f32.mrb[0].mxu0
      %v4788 = vpop.f32.mrb[0].mxu0
      %v4789 = vadd.f32 0.0, %v4788
      %v4790 = vpop.f32.mrb[0].mxu0
      %4791 = vmatprep.mubr.bf16.mxu0 %v4437
      %4792 = vmatmul.mubr.bf16.gmra.mrb[0].mxu0 %v4435
      %v4793 = vpop.f32.mrb[0].mxu0
      %v4794 = vadd.f32 0.0, %v4793
      %v4795 = vpop.f32.mrb[0].mxu0
      %v4796 = vpop.f32.mrb[0].mxu0
      %v4797 = vadd.f32 0.0, %v4796
      %v4798 = vpop.f32.mrb[0].mxu0
      %4799 = vdwg.mxu0
      %4800 = vmatprep.subr.bf16.mxu0 0
      %4801 = vmatpush1.bf16.msra.mxu0 %v4591
      %4802 = vmatprep.subr.bf16.mxu0 0
      %4803 = vmatpush1.bf16.msra.mxu0 %v4592
      %4804 = vmatprep.subr.bf16.mxu0 0
      %4805 = vmatpush1.bf16.msra.mxu0 %v4593
      %4806 = vmatprep.subr.bf16.mxu0 0
      %4807 = vmatpush1.bf16.msra.mxu0 %v4594
      %4808 = vmatprep.subr.bf16.mxu0 0
      %4809 = vmatpush1.bf16.msra.mxu0 %v4595
      %4810 = vmatprep.subr.bf16.mxu0 0
      %4811 = vmatpush1.bf16.msra.mxu0 %v4596
      %4812 = vmatprep.subr.bf16.mxu0 0
      %4813 = vmatpush1.bf16.msra.mxu0 %v4597
      %4814 = vmatprep.subr.bf16.mxu0 0
      %4815 = vmatpush1.bf16.msra.mxu0 %v4598
      %4816 = vmatprep.subr.bf16.mxu0 0
      %4817 = vmatpush1.bf16.msra.mxu0 0
      %4818 = vmatprep.subr.bf16.mxu0 0
      %4819 = vmatpush1.bf16.msra.mxu0 0
      %4820 = vmatprep.subr.bf16.mxu0 0
      %4821 = vmatpush1.bf16.msra.mxu0 0
      %4822 = vmatprep.subr.bf16.mxu0 0
      %4823 = vmatpush1.bf16.msra.mxu0 0
      %4824 = vmatprep.subr.bf16.mxu0 0
      %4825 = vmatpush1.bf16.msra.mxu0 0
      %4826 = vmatprep.subr.bf16.mxu0 0
      %4827 = vmatpush1.bf16.msra.mxu0 0
      %4828 = vmatprep.subr.bf16.mxu0 0
      %4829 = vmatpush1.bf16.msra.mxu0 0
      %4830 = vmatprep.subr.bf16.mxu0 0
      %4831 = vmatpush1.bf16.msra.mxu0 0
      %4832 = vmatprep.mubr.bf16.mxu0 0
      %4833 = vmatmul.mubr.bf16.gmra.mrb[0].mxu0 %v4369
      %v4834 = vpop.f32.mrb[0].mxu0
      %v4835 = vadd.f32 %v4658, %v4834
      %v4836 = vpop.f32.mrb[0].mxu0
      %v4837 = vpop.f32.mrb[0].mxu0
      %v4838 = vadd.f32 %v4661, %v4837
      %v4839 = vpop.f32.mrb[0].mxu0
      %4840 = vmatprep.mubr.bf16.mxu0 0
      %4841 = vmatmul.mubr.bf16.gmra.mrb[0].mxu0 %v4373
      %v4842 = vpop.f32.mrb[0].mxu0
      %v4843 = vadd.f32 %v4666, %v4842
      %v4844 = vpop.f32.mrb[0].mxu0
      %v4845 = vpop.f32.mrb[0].mxu0
      %v4846 = vadd.f32 %v4669, %v4845
      %v4847 = vpop.f32.mrb[0].mxu0
      %4848 = vmatprep.mubr.bf16.mxu0 0
      %4849 = vmatmul.mubr.bf16.gmra.mrb[0].mxu0 %v4377
      %v4850 = vpop.f32.mrb[0].mxu0
      %v4851 = vadd.f32 %v4674, %v4850
      %v4852 = vpop.f32.mrb[0].mxu0
      %v4853 = vpop.f32.mrb[0].mxu0
      %v4854 = vadd.f32 %v4677, %v4853
      %v4855 = vpop.f32.mrb[0].mxu0
      %4856 = vmatprep.mubr.bf16.mxu0 0
      %4857 = vmatmul.mubr.bf16.gmra.mrb[0].mxu0 %v4381
      %v4858 = vpop.f32.mrb[0].mxu0
      %v4859 = vadd.f32 %v4682, %v4858
      %v4860 = vpop.f32.mrb[0].mxu0
      %v4861 = vpop.f32.mrb[0].mxu0
      %v4862 = vadd.f32 %v4685, %v4861
      %v4863 = vpop.f32.mrb[0].mxu0
      %4864 = vmatprep.mubr.bf16.mxu0 0
      %4865 = vmatmul.mubr.bf16.gmra.mrb[0].mxu0 %v4385
      %v4866 = vpop.f32.mrb[0].mxu0
      %v4867 = vadd.f32 %v4690, %v4866
      %v4868 = vpop.f32.mrb[0].mxu0
      %v4869 = vpop.f32.mrb[0].mxu0
      %v4870 = vadd.f32 %v4693, %v4869
      %v4871 = vpop.f32.mrb[0].mxu0
      %4872 = vmatprep.mubr.bf16.mxu0 0
      %4873 = vmatmul.mubr.bf16.gmra.mrb[0].mxu0 %v4389
      %v4874 = vpop.f32.mrb[0].mxu0
      %v4875 = vadd.f32 %v4698, %v4874
      %v4876 = vpop.f32.mrb[0].mxu0
      %v4877 = vpop.f32.mrb[0].mxu0
      %v4878 = vadd.f32 %v4701, %v4877
      %v4879 = vpop.f32.mrb[0].mxu0
      %4880 = vmatprep.mubr.bf16.mxu0 0
      %4881 = vmatmul.mubr.bf16.gmra.mrb[0].mxu0 %v4393
      %v4882 = vpop.f32.mrb[0].mxu0
      %v4883 = vadd.f32 %v4706, %v4882
      %v4884 = vpop.f32.mrb[0].mxu0
      %v4885 = vpop.f32.mrb[0].mxu0
      %v4886 = vadd.f32 %v4709, %v4885
      %v4887 = vpop.f32.mrb[0].mxu0
      %4888 = vmatprep.mubr.bf16.mxu0 0
      %4889 = vmatmul.mubr.bf16.gmra.mrb[0].mxu0 %v4397
      %v4890 = vpop.f32.mrb[0].mxu0
      %v4891 = vadd.f32 %v4714, %v4890
      %v4892 = vpop.f32.mrb[0].mxu0
      %v4893 = vpop.f32.mrb[0].mxu0
      %v4894 = vadd.f32 %v4717, %v4893
      %v4895 = vpop.f32.mrb[0].mxu0
      %4896 = vmatprep.mubr.bf16.mxu0 0
      %4897 = vmatmul.mubr.bf16.gmra.mrb[0].mxu0 %v4401
      %v4898 = vpop.f32.mrb[0].mxu0
      %v4899 = vadd.f32 %v4722, %v4898
      %v4900 = vpop.f32.mrb[0].mxu0
      %v4901 = vpop.f32.mrb[0].mxu0
      %v4902 = vadd.f32 %v4725, %v4901
      %v4903 = vpop.f32.mrb[0].mxu0
      %4904 = vmatprep.mubr.bf16.mxu0 0
      %4905 = vmatmul.mubr.bf16.gmra.mrb[0].mxu0 %v4405
      %v4906 = vpop.f32.mrb[0].mxu0
      %v4907 = vadd.f32 %v4730, %v4906
      %v4908 = vpop.f32.mrb[0].mxu0
      %v4909 = vpop.f32.mrb[0].mxu0
      %v4910 = vadd.f32 %v4733, %v4909
      %v4911 = vpop.f32.mrb[0].mxu0
      %4912 = vmatprep.mubr.bf16.mxu0 0
      %4913 = vmatmul.mubr.bf16.gmra.mrb[0].mxu0 %v4409
      %v4914 = vpop.f32.mrb[0].mxu0
      %v4915 = vadd.f32 %v4738, %v4914
      %v4916 = vpop.f32.mrb[0].mxu0
      %v4917 = vpop.f32.mrb[0].mxu0
      %v4918 = vadd.f32 %v4741, %v4917
      %v4919 = vpop.f32.mrb[0].mxu0
      %4920 = vmatprep.mubr.bf16.mxu0 0
      %4921 = vmatmul.mubr.bf16.gmra.mrb[0].mxu0 %v4413
      %v4922 = vpop.f32.mrb[0].mxu0
      %v4923 = vadd.f32 %v4746, %v4922
      %v4924 = vpop.f32.mrb[0].mxu0
      %v4925 = vpop.f32.mrb[0].mxu0
      %v4926 = vadd.f32 %v4749, %v4925
      %v4927 = vpop.f32.mrb[0].mxu0
      %4928 = vmatprep.mubr.bf16.mxu0 0
      %4929 = vmatmul.mubr.bf16.gmra.mrb[0].mxu0 %v4417
      %v4930 = vpop.f32.mrb[0].mxu0
      %v4931 = vadd.f32 %v4754, %v4930
      %v4932 = vpop.f32.mrb[0].mxu0
      %v4933 = vpop.f32.mrb[0].mxu0
      %v4934 = vadd.f32 %v4757, %v4933
      %v4935 = vpop.f32.mrb[0].mxu0
      %4936 = vmatprep.mubr.bf16.mxu0 0
      %4937 = vmatmul.mubr.bf16.gmra.mrb[0].mxu0 %v4421
      %v4938 = vpop.f32.mrb[0].mxu0
      %v4939 = vadd.f32 %v4762, %v4938
      %v4940 = vpop.f32.mrb[0].mxu0
      %v4941 = vpop.f32.mrb[0].mxu0
      %v4942 = vadd.f32 %v4765, %v4941
      %v4943 = vpop.f32.mrb[0].mxu0
      %4944 = vmatprep.mubr.bf16.mxu0 0
      %4945 = vmatmul.mubr.bf16.gmra.mrb[0].mxu0 %v4425
      %v4946 = vpop.f32.mrb[0].mxu0
      %v4947 = vadd.f32 %v4770, %v4946
      %v4948 = vpop.f32.mrb[0].mxu0
      %v4949 = vpop.f32.mrb[0].mxu0
      %v4950 = vadd.f32 %v4773, %v4949
      %v4951 = vpop.f32.mrb[0].mxu0
      %4952 = vmatprep.mubr.bf16.mxu0 0
      %4953 = vmatmul.mubr.bf16.gmra.mrb[0].mxu0 %v4429
      %v4954 = vpop.f32.mrb[0].mxu0
      %v4955 = vadd.f32 %v4778, %v4954
      %v4956 = vpop.f32.mrb[0].mxu0
      %v4957 = vpop.f32.mrb[0].mxu0
      %v4958 = vadd.f32 %v4781, %v4957
      %v4959 = vpop.f32.mrb[0].mxu0
      %4960 = vmatprep.mubr.bf16.mxu0 0
      %4961 = vmatmul.mubr.bf16.gmra.mrb[0].mxu0 %v4433
      %v4962 = vpop.f32.mrb[0].mxu0
      %v4963 = vadd.f32 %v4786, %v4962
      %v4964 = vpop.f32.mrb[0].mxu0
      %v4965 = vpop.f32.mrb[0].mxu0
      %v4966 = vadd.f32 %v4789, %v4965
      %v4967 = vpop.f32.mrb[0].mxu0
      %4968 = vmatprep.mubr.bf16.mxu0 0
      %4969 = vmatmul.mubr.bf16.gmra.mrb[0].mxu0 %v4439
      %v4970 = vpop.f32.mrb[0].mxu0
      %v4971 = vadd.f32 %v4794, %v4970
      %v4972 = vpop.f32.mrb[0].mxu0
      %v4973 = vpop.f32.mrb[0].mxu0
      %v4974 = vadd.f32 %v4797, %v4973
      %v4975 = vpop.f32.mrb[0].mxu0
      %4976 = vdwg.mxu0
      %v5025 = vunpack.c.l.b16 %v4212
      %v5026 = vunpack.c.l.b16 %v4213
      %v5027 = vunpack.c.l.b16 %v4214
      %v5028 = vunpack.c.l.b16 %v4215
      %v5029 = vunpack.c.l.b16 %v4216
      %v5030 = vunpack.c.l.b16 %v4217
      %v5031 = vunpack.c.l.b16 %v4218
      %v5032 = vunpack.c.l.b16 %v4219
      %v5033 = vunpack.c.l.b16 %v4220
      %v5034 = vunpack.c.l.b16 %v4221
      %v5035 = vunpack.c.l.b16 %v4222
      %v5036 = vunpack.c.l.b16 %v4223
      %v5037 = vunpack.c.l.b16 %v4224
      %v5038 = vunpack.c.l.b16 %v4225
      %v5039 = vunpack.c.l.b16 %v4226
      %v5040 = vunpack.c.l.b16 %v4227
      %v5041 = vunpack.c.l.b16 %v4228
      %v5042 = vunpack.c.l.b16 %v4229
      %v5043 = vunpack.c.l.b16 %v4230
      %v5044 = vunpack.c.l.b16 %v4231
      %v5045 = vunpack.c.l.b16 %v4232
      %v5046 = vunpack.c.l.b16 %v4233
      %v5047 = vunpack.c.l.b16 %v4234
      %v5048 = vunpack.c.l.b16 %v4235
      %v5049 = vunpack.c.l.b16 %v4236
      %v5050 = vunpack.c.l.b16 %v4237
      %v5051 = vunpack.c.l.b16 %v4238
      %v5052 = vunpack.c.l.b16 %v4239
      %v5053 = vunpack.c.l.b16 %v4240
      %v5054 = vunpack.c.l.b16 %v4241
      %v5055 = vunpack.c.l.b16 %v4242
      %v5056 = vunpack.c.l.b16 %v4243
      %v5057 = vunpack.c.l.b16 %v4244
      %v5058 = vunpack.c.l.b16 %v4245
      %v5059 = vunpack.c.l.b16 %v4246
      %v5060 = vunpack.c.l.b16 %v4247
      %v5061 = vunpack.c.l.b16 %v4248
      %v5062 = vunpack.c.l.b16 %v4249
      %v5063 = vunpack.c.l.b16 %v4250
      %v5064 = vunpack.c.l.b16 %v4251
      %v5065 = vunpack.c.l.b16 %v4252
      %v5066 = vunpack.c.l.b16 %v4253
      %v5067 = vunpack.c.l.b16 %v4254
      %v5068 = vunpack.c.l.b16 %v4255
      %v5069 = vunpack.c.l.b16 %v4256
      %v5070 = vunpack.c.l.b16 %v4257
      %v5071 = vunpack.c.l.b16 %v4258
      %v5072 = vunpack.c.l.b16 %v4259
      %v5073 = vpack.c.b16 %v5026, %v5025
      %v5074 = vpack.c.b16 %v5028, %v5027
      %v5075 = vpack.c.b16 %v5030, %v5029
      %v5076 = vpack.c.b16 %v5032, %v5031
      %v5077 = vpack.c.b16 %v5034, %v5033
      %v5078 = vpack.c.b16 %v5036, %v5035
      %v5079 = vpack.c.b16 %v5038, %v5037
      %v5080 = vpack.c.b16 %v5040, %v5039
      %v5081 = vpack.c.b16 %v5042, %v5041
      %v5082 = vpack.c.b16 %v5044, %v5043
      %v5083 = vpack.c.b16 %v5046, %v5045
      %v5084 = vpack.c.b16 %v5048, %v5047
      %v5085 = vpack.c.b16 %v5050, %v5049
      %v5086 = vpack.c.b16 %v5052, %v5051
      %v5087 = vpack.c.b16 %v5054, %v5053
      %v5088 = vpack.c.b16 %v5056, %v5055
      %v5089 = vpack.c.b16 %v5058, %v5057
      %v5090 = vpack.c.b16 %v5060, %v5059
      %v5091 = vpack.c.b16 %v5062, %v5061
      %v5092 = vpack.c.b16 %v5064, %v5063
      %v5093 = vpack.c.b16 %v5066, %v5065
      %v5094 = vpack.c.b16 %v5068, %v5067
      %v5095 = vpack.c.b16 %v5070, %v5069
      %v5096 = vpack.c.b16 %v5072, %v5071
      %5121 = vmatprep.subr.bf16.mxu0 0
      %5122 = vmatpush1.bf16.msra.mxu0 %v5073
      %5123 = vmatprep.subr.bf16.mxu0 0
      %5124 = vmatpush1.bf16.msra.mxu0 %v5074
      %5125 = vmatprep.subr.bf16.mxu0 0
      %5126 = vmatpush1.bf16.msra.mxu0 %v5075
      %5127 = vmatprep.subr.bf16.mxu0 0
      %5128 = vmatpush1.bf16.msra.mxu0 %v5076
      %5129 = vmatprep.subr.bf16.mxu0 0
      %5130 = vmatpush1.bf16.msra.mxu0 %v5077
      %5131 = vmatprep.subr.bf16.mxu0 0
      %5132 = vmatpush1.bf16.msra.mxu0 %v5078
      %5133 = vmatprep.subr.bf16.mxu0 0
      %5134 = vmatpush1.bf16.msra.mxu0 %v5079
      %5135 = vmatprep.subr.bf16.mxu0 0
      %5136 = vmatpush1.bf16.msra.mxu0 %v5080
      %5137 = vmatprep.subr.bf16.mxu0 0
      %5138 = vmatpush1.bf16.msra.mxu0 %v5081
      %5139 = vmatprep.subr.bf16.mxu0 0
      %5140 = vmatpush1.bf16.msra.mxu0 %v5082
      %5141 = vmatprep.subr.bf16.mxu0 0
      %5142 = vmatpush1.bf16.msra.mxu0 %v5083
      %5143 = vmatprep.subr.bf16.mxu0 0
      %5144 = vmatpush1.bf16.msra.mxu0 %v5084
      %5145 = vmatprep.subr.bf16.mxu0 0
      %5146 = vmatpush1.bf16.msra.mxu0 %v5085
      %5147 = vmatprep.subr.bf16.mxu0 0
      %5148 = vmatpush1.bf16.msra.mxu0 %v5086
      %5149 = vmatprep.subr.bf16.mxu0 0
      %5150 = vmatpush1.bf16.msra.mxu0 %v5087
      %5151 = vmatprep.subr.bf16.mxu0 0
      %5152 = vmatpush1.bf16.msra.mxu0 %v5088
      %5153 = vmatprep.mubr.bf16.mxu0 %v3998
      %5154 = vmatmul.mubr.bf16.gmra.mrb[0].mxu0 %v3947
      %v5155 = vpop.f32.mrb[0].mxu0
      %v5156 = vadd.f32 %v4835, %v5155
      %v5157 = vpop.f32.mrb[0].mxu0
      %v5158 = vpop.f32.mrb[0].mxu0
      %v5159 = vadd.f32 %v4838, %v5158
      %v5160 = vpop.f32.mrb[0].mxu0
      %5161 = vmatprep.mubr.bf16.mxu0 %v4006
      %5162 = vmatmul.mubr.bf16.gmra.mrb[0].mxu0 %v3948
      %v5163 = vpop.f32.mrb[0].mxu0
      %v5164 = vadd.f32 %v4843, %v5163
      %v5165 = vpop.f32.mrb[0].mxu0
      %v5166 = vpop.f32.mrb[0].mxu0
      %v5167 = vadd.f32 %v4846, %v5166
      %v5168 = vpop.f32.mrb[0].mxu0
      %5169 = vmatprep.mubr.bf16.mxu0 %v4014
      %5170 = vmatmul.mubr.bf16.gmra.mrb[0].mxu0 %v3949
      %v5171 = vpop.f32.mrb[0].mxu0
      %v5172 = vadd.f32 %v4851, %v5171
      %v5173 = vpop.f32.mrb[0].mxu0
      %v5174 = vpop.f32.mrb[0].mxu0
      %v5175 = vadd.f32 %v4854, %v5174
      %v5176 = vpop.f32.mrb[0].mxu0
      %5177 = vmatprep.mubr.bf16.mxu0 %v4022
      %5178 = vmatmul.mubr.bf16.gmra.mrb[0].mxu0 %v3950
      %v5179 = vpop.f32.mrb[0].mxu0
      %v5180 = vadd.f32 %v4859, %v5179
      %v5181 = vpop.f32.mrb[0].mxu0
      %v5182 = vpop.f32.mrb[0].mxu0
      %v5183 = vadd.f32 %v4862, %v5182
      %v5184 = vpop.f32.mrb[0].mxu0
      %5185 = vmatprep.mubr.bf16.mxu0 %v4030
      %5186 = vmatmul.mubr.bf16.gmra.mrb[0].mxu0 %v3951
      %v5187 = vpop.f32.mrb[0].mxu0
      %v5188 = vadd.f32 %v4867, %v5187
      %v5189 = vpop.f32.mrb[0].mxu0
      %v5190 = vpop.f32.mrb[0].mxu0
      %v5191 = vadd.f32 %v4870, %v5190
      %v5192 = vpop.f32.mrb[0].mxu0
      %5193 = vmatprep.mubr.bf16.mxu0 %v4038
      %5194 = vmatmul.mubr.bf16.gmra.mrb[0].mxu0 %v3952
      %v5195 = vpop.f32.mrb[0].mxu0
      %v5196 = vadd.f32 %v4875, %v5195
      %v5197 = vpop.f32.mrb[0].mxu0
      %v5198 = vpop.f32.mrb[0].mxu0
      %v5199 = vadd.f32 %v4878, %v5198
      %v5200 = vpop.f32.mrb[0].mxu0
      %5201 = vmatprep.mubr.bf16.mxu0 %v4046
      %5202 = vmatmul.mubr.bf16.gmra.mrb[0].mxu0 %v3953
      %v5203 = vpop.f32.mrb[0].mxu0
      %v5204 = vadd.f32 %v4883, %v5203
      %v5205 = vpop.f32.mrb[0].mxu0
      %v5206 = vpop.f32.mrb[0].mxu0
      %v5207 = vadd.f32 %v4886, %v5206
      %v5208 = vpop.f32.mrb[0].mxu0
      %5209 = vmatprep.mubr.bf16.mxu0 %v4054
      %5210 = vmatmul.mubr.bf16.gmra.mrb[0].mxu0 %v3954
      %v5211 = vpop.f32.mrb[0].mxu0
      %v5212 = vadd.f32 %v4891, %v5211
      %v5213 = vpop.f32.mrb[0].mxu0
      %v5214 = vpop.f32.mrb[0].mxu0
      %v5215 = vadd.f32 %v4894, %v5214
      %v5216 = vpop.f32.mrb[0].mxu0
      %5217 = vmatprep.mubr.bf16.mxu0 %v4062
      %5218 = vmatmul.mubr.bf16.gmra.mrb[0].mxu0 %v3955
      %v5219 = vpop.f32.mrb[0].mxu0
      %v5220 = vadd.f32 %v4899, %v5219
      %v5221 = vpop.f32.mrb[0].mxu0
      %v5222 = vpop.f32.mrb[0].mxu0
      %v5223 = vadd.f32 %v4902, %v5222
      %v5224 = vpop.f32.mrb[0].mxu0
      %5225 = vmatprep.mubr.bf16.mxu0 %v4070
      %5226 = vmatmul.mubr.bf16.gmra.mrb[0].mxu0 %v3956
      %v5227 = vpop.f32.mrb[0].mxu0
      %v5228 = vadd.f32 %v4907, %v5227
      %v5229 = vpop.f32.mrb[0].mxu0
      %v5230 = vpop.f32.mrb[0].mxu0
      %v5231 = vadd.f32 %v4910, %v5230
      %v5232 = vpop.f32.mrb[0].mxu0
      %5233 = vmatprep.mubr.bf16.mxu0 %v4078
      %5234 = vmatmul.mubr.bf16.gmra.mrb[0].mxu0 %v3957
      %v5235 = vpop.f32.mrb[0].mxu0
      %v5236 = vadd.f32 %v4915, %v5235
      %v5237 = vpop.f32.mrb[0].mxu0
      %v5238 = vpop.f32.mrb[0].mxu0
      %v5239 = vadd.f32 %v4918, %v5238
      %v5240 = vpop.f32.mrb[0].mxu0
      %5241 = vmatprep.mubr.bf16.mxu0 %v4086
      %5242 = vmatmul.mubr.bf16.gmra.mrb[0].mxu0 %v3958
      %v5243 = vpop.f32.mrb[0].mxu0
      %v5244 = vadd.f32 %v4923, %v5243
      %v5245 = vpop.f32.mrb[0].mxu0
      %v5246 = vpop.f32.mrb[0].mxu0
      %v5247 = vadd.f32 %v4926, %v5246
      %v5248 = vpop.f32.mrb[0].mxu0
      %5249 = vmatprep.mubr.bf16.mxu0 %v4094
      %5250 = vmatmul.mubr.bf16.gmra.mrb[0].mxu0 %v3959
      %v5251 = vpop.f32.mrb[0].mxu0
      %v5252 = vadd.f32 %v4931, %v5251
      %v5253 = vpop.f32.mrb[0].mxu0
      %v5254 = vpop.f32.mrb[0].mxu0
      %v5255 = vadd.f32 %v4934, %v5254
      %v5256 = vpop.f32.mrb[0].mxu0
      %5257 = vmatprep.mubr.bf16.mxu0 %v4102
      %5258 = vmatmul.mubr.bf16.gmra.mrb[0].mxu0 %v3960
      %v5259 = vpop.f32.mrb[0].mxu0
      %v5260 = vadd.f32 %v4939, %v5259
      %v5261 = vpop.f32.mrb[0].mxu0
      %v5262 = vpop.f32.mrb[0].mxu0
      %v5263 = vadd.f32 %v4942, %v5262
      %v5264 = vpop.f32.mrb[0].mxu0
      %5265 = vmatprep.mubr.bf16.mxu0 %v4110
      %5266 = vmatmul.mubr.bf16.gmra.mrb[0].mxu0 %v3961
      %v5267 = vpop.f32.mrb[0].mxu0
      %v5268 = vadd.f32 %v4947, %v5267
      %v5269 = vpop.f32.mrb[0].mxu0
      %v5270 = vpop.f32.mrb[0].mxu0
      %v5271 = vadd.f32 %v4950, %v5270
      %v5272 = vpop.f32.mrb[0].mxu0
      %5273 = vmatprep.mubr.bf16.mxu0 %v4118
      %5274 = vmatmul.mubr.bf16.gmra.mrb[0].mxu0 %v3962
      %v5275 = vpop.f32.mrb[0].mxu0
      %v5276 = vadd.f32 %v4955, %v5275
      %v5277 = vpop.f32.mrb[0].mxu0
      %v5278 = vpop.f32.mrb[0].mxu0
      %v5279 = vadd.f32 %v4958, %v5278
      %v5280 = vpop.f32.mrb[0].mxu0
      %5281 = vmatprep.mubr.bf16.mxu0 %v4126
      %5282 = vmatmul.mubr.bf16.gmra.mrb[0].mxu0 %v3963
      %v5283 = vpop.f32.mrb[0].mxu0
      %v5284 = vadd.f32 %v4963, %v5283
      %v5285 = vpop.f32.mrb[0].mxu0
      %v5286 = vpop.f32.mrb[0].mxu0
      %v5287 = vadd.f32 %v4966, %v5286
      %v5288 = vpop.f32.mrb[0].mxu0
      %5289 = vmatprep.mubr.bf16.mxu0 %v4134
      %5290 = vmatmul.mubr.bf16.gmra.mrb[0].mxu0 %v3964
      %v5291 = vpop.f32.mrb[0].mxu0
      %v5292 = vadd.f32 %v4971, %v5291
      %v5293 = vpop.f32.mrb[0].mxu0
      %v5294 = vpop.f32.mrb[0].mxu0
      %v5295 = vadd.f32 %v4974, %v5294
      %v5296 = vpop.f32.mrb[0].mxu0
      %5297 = vdwg.mxu0
      %5298 = vmatprep.subr.bf16.mxu0 0
      %5299 = vmatpush1.bf16.msra.mxu0 %v5089
      %5300 = vmatprep.subr.bf16.mxu0 0
      %5301 = vmatpush1.bf16.msra.mxu0 %v5090
      %5302 = vmatprep.subr.bf16.mxu0 0
      %5303 = vmatpush1.bf16.msra.mxu0 %v5091
      %5304 = vmatprep.subr.bf16.mxu0 0
      %5305 = vmatpush1.bf16.msra.mxu0 %v5092
      %5306 = vmatprep.subr.bf16.mxu0 0
      %5307 = vmatpush1.bf16.msra.mxu0 %v5093
      %5308 = vmatprep.subr.bf16.mxu0 0
      %5309 = vmatpush1.bf16.msra.mxu0 %v5094
      %5310 = vmatprep.subr.bf16.mxu0 0
      %5311 = vmatpush1.bf16.msra.mxu0 %v5095
      %5312 = vmatprep.subr.bf16.mxu0 0
      %5313 = vmatpush1.bf16.msra.mxu0 %v5096
      %5314 = vmatprep.subr.bf16.mxu0 0
      %5315 = vmatpush1.bf16.msra.mxu0 0
      %5316 = vmatprep.subr.bf16.mxu0 0
      %5317 = vmatpush1.bf16.msra.mxu0 0
      %5318 = vmatprep.subr.bf16.mxu0 0
      %5319 = vmatpush1.bf16.msra.mxu0 0
      %5320 = vmatprep.subr.bf16.mxu0 0
      %5321 = vmatpush1.bf16.msra.mxu0 0
      %5322 = vmatprep.subr.bf16.mxu0 0
      %5323 = vmatpush1.bf16.msra.mxu0 0
      %5324 = vmatprep.subr.bf16.mxu0 0
      %5325 = vmatpush1.bf16.msra.mxu0 0
      %5326 = vmatprep.subr.bf16.mxu0 0
      %5327 = vmatpush1.bf16.msra.mxu0 0
      %5328 = vmatprep.subr.bf16.mxu0 0
      %5329 = vmatpush1.bf16.msra.mxu0 0
      %5330 = vmatprep.mubr.bf16.mxu0 0
      %5331 = vmatmul.mubr.bf16.gmra.mrb[0].mxu0 %v4159
      %v5332 = vpop.f32.mrb[0].mxu0
      %v5333 = vadd.f32 %v5156, %v5332
      %v5334 = vpop.f32.mrb[0].mxu0
      %v5335 = vpop.f32.mrb[0].mxu0
      %v5336 = vadd.f32 %v5159, %v5335
      %v5337 = vpop.f32.mrb[0].mxu0
      %5338 = vmatprep.mubr.bf16.mxu0 0
      %5339 = vmatmul.mubr.bf16.gmra.mrb[0].mxu0 %v4161
      %v5340 = vpop.f32.mrb[0].mxu0
      %v5341 = vadd.f32 %v5164, %v5340
      %v5342 = vpop.f32.mrb[0].mxu0
      %v5343 = vpop.f32.mrb[0].mxu0
      %v5344 = vadd.f32 %v5167, %v5343
      %v5345 = vpop.f32.mrb[0].mxu0
      %5346 = vmatprep.mubr.bf16.mxu0 0
      %5347 = vmatmul.mubr.bf16.gmra.mrb[0].mxu0 %v4163
      %v5348 = vpop.f32.mrb[0].mxu0
      %v5349 = vadd.f32 %v5172, %v5348
      %v5350 = vpop.f32.mrb[0].mxu0
      %v5351 = vpop.f32.mrb[0].mxu0
      %v5352 = vadd.f32 %v5175, %v5351
      %v5353 = vpop.f32.mrb[0].mxu0
      %5354 = vmatprep.mubr.bf16.mxu0 0
      %5355 = vmatmul.mubr.bf16.gmra.mrb[0].mxu0 %v4165
      %v5356 = vpop.f32.mrb[0].mxu0
      %v5357 = vadd.f32 %v5180, %v5356
      %v5358 = vpop.f32.mrb[0].mxu0
      %v5359 = vpop.f32.mrb[0].mxu0
      %v5360 = vadd.f32 %v5183, %v5359
      %v5361 = vpop.f32.mrb[0].mxu0
      %5362 = vmatprep.mubr.bf16.mxu0 0
      %5363 = vmatmul.mubr.bf16.gmra.mrb[0].mxu0 %v4167
      %v5364 = vpop.f32.mrb[0].mxu0
      %v5365 = vadd.f32 %v5188, %v5364
      %v5366 = vpop.f32.mrb[0].mxu0
      %v5367 = vpop.f32.mrb[0].mxu0
      %v5368 = vadd.f32 %v5191, %v5367
      %v5369 = vpop.f32.mrb[0].mxu0
      %5370 = vmatprep.mubr.bf16.mxu0 0
      %5371 = vmatmul.mubr.bf16.gmra.mrb[0].mxu0 %v4169
      %v5372 = vpop.f32.mrb[0].mxu0
      %v5373 = vadd.f32 %v5196, %v5372
      %v5374 = vpop.f32.mrb[0].mxu0
      %v5375 = vpop.f32.mrb[0].mxu0
      %v5376 = vadd.f32 %v5199, %v5375
      %v5377 = vpop.f32.mrb[0].mxu0
      %5378 = vmatprep.mubr.bf16.mxu0 0
      %5379 = vmatmul.mubr.bf16.gmra.mrb[0].mxu0 %v4171
      %v5380 = vpop.f32.mrb[0].mxu0
      %v5381 = vadd.f32 %v5204, %v5380
      %v5382 = vpop.f32.mrb[0].mxu0
      %v5383 = vpop.f32.mrb[0].mxu0
      %v5384 = vadd.f32 %v5207, %v5383
      %v5385 = vpop.f32.mrb[0].mxu0
      %5386 = vmatprep.mubr.bf16.mxu0 0
      %5387 = vmatmul.mubr.bf16.gmra.mrb[0].mxu0 %v4173
      %v5388 = vpop.f32.mrb[0].mxu0
      %v5389 = vadd.f32 %v5212, %v5388
      %v5390 = vpop.f32.mrb[0].mxu0
      %v5391 = vpop.f32.mrb[0].mxu0
      %v5392 = vadd.f32 %v5215, %v5391
      %v5393 = vpop.f32.mrb[0].mxu0
      %5394 = vmatprep.mubr.bf16.mxu0 0
      %5395 = vmatmul.mubr.bf16.gmra.mrb[0].mxu0 %v4175
      %v5396 = vpop.f32.mrb[0].mxu0
      %v5397 = vadd.f32 %v5220, %v5396
      %v5398 = vpop.f32.mrb[0].mxu0
      %v5399 = vpop.f32.mrb[0].mxu0
      %v5400 = vadd.f32 %v5223, %v5399
      %v5401 = vpop.f32.mrb[0].mxu0
      %5402 = vmatprep.mubr.bf16.mxu0 0
      %5403 = vmatmul.mubr.bf16.gmra.mrb[0].mxu0 %v4177
      %v5404 = vpop.f32.mrb[0].mxu0
      %v5405 = vadd.f32 %v5228, %v5404
      %v5406 = vpop.f32.mrb[0].mxu0
      %v5407 = vpop.f32.mrb[0].mxu0
      %v5408 = vadd.f32 %v5231, %v5407
      %v5409 = vpop.f32.mrb[0].mxu0
      %5410 = vmatprep.mubr.bf16.mxu0 0
      %5411 = vmatmul.mubr.bf16.gmra.mrb[0].mxu0 %v4179
      %v5412 = vpop.f32.mrb[0].mxu0
      %v5413 = vadd.f32 %v5236, %v5412
      %v5414 = vpop.f32.mrb[0].mxu0
      %v5415 = vpop.f32.mrb[0].mxu0
      %v5416 = vadd.f32 %v5239, %v5415
      %v5417 = vpop.f32.mrb[0].mxu0
      %5418 = vmatprep.mubr.bf16.mxu0 0
      %5419 = vmatmul.mubr.bf16.gmra.mrb[0].mxu0 %v4181
      %v5420 = vpop.f32.mrb[0].mxu0
      %v5421 = vadd.f32 %v5244, %v5420
      %v5422 = vpop.f32.mrb[0].mxu0
      %v5423 = vpop.f32.mrb[0].mxu0
      %v5424 = vadd.f32 %v5247, %v5423
      %v5425 = vpop.f32.mrb[0].mxu0
      %5426 = vmatprep.mubr.bf16.mxu0 0
      %5427 = vmatmul.mubr.bf16.gmra.mrb[0].mxu0 %v4183
      %v5428 = vpop.f32.mrb[0].mxu0
      %v5429 = vadd.f32 %v5252, %v5428
      %v5430 = vpop.f32.mrb[0].mxu0
      %v5431 = vpop.f32.mrb[0].mxu0
      %v5432 = vadd.f32 %v5255, %v5431
      %v5433 = vpop.f32.mrb[0].mxu0
      %5434 = vmatprep.mubr.bf16.mxu0 0
      %5435 = vmatmul.mubr.bf16.gmra.mrb[0].mxu0 %v4185
      %v5436 = vpop.f32.mrb[0].mxu0
      %v5437 = vadd.f32 %v5260, %v5436
      %v5438 = vpop.f32.mrb[0].mxu0
      %v5439 = vpop.f32.mrb[0].mxu0
      %v5440 = vadd.f32 %v5263, %v5439
      %v5441 = vpop.f32.mrb[0].mxu0
      %5442 = vmatprep.mubr.bf16.mxu0 0
      %5443 = vmatmul.mubr.bf16.gmra.mrb[0].mxu0 %v4187
      %v5444 = vpop.f32.mrb[0].mxu0
      %v5445 = vadd.f32 %v5268, %v5444
      %v5446 = vpop.f32.mrb[0].mxu0
      %v5447 = vpop.f32.mrb[0].mxu0
      %v5448 = vadd.f32 %v5271, %v5447
      %v5449 = vpop.f32.mrb[0].mxu0
      %5450 = vmatprep.mubr.bf16.mxu0 0
      %5451 = vmatmul.mubr.bf16.gmra.mrb[0].mxu0 %v4189
      %v5452 = vpop.f32.mrb[0].mxu0
      %v5453 = vadd.f32 %v5276, %v5452
      %v5454 = vpop.f32.mrb[0].mxu0
      %v5455 = vpop.f32.mrb[0].mxu0
      %v5456 = vadd.f32 %v5279, %v5455
      %v5457 = vpop.f32.mrb[0].mxu0
      %5458 = vmatprep.mubr.bf16.mxu0 0
      %5459 = vmatmul.mubr.bf16.gmra.mrb[0].mxu0 %v4191
      %v5460 = vpop.f32.mrb[0].mxu0
      %v5461 = vadd.f32 %v5284, %v5460
      %v5462 = vpop.f32.mrb[0].mxu0
      %v5463 = vpop.f32.mrb[0].mxu0
      %v5464 = vadd.f32 %v5287, %v5463
      %v5465 = vpop.f32.mrb[0].mxu0
      %5466 = vmatprep.mubr.bf16.mxu0 0
      %5467 = vmatmul.mubr.bf16.gmra.mrb[0].mxu0 %v4193
      %v5468 = vpop.f32.mrb[0].mxu0
      %v5469 = vadd.f32 %v5292, %v5468
      %v5470 = vpop.f32.mrb[0].mxu0
      %v5471 = vpop.f32.mrb[0].mxu0
      %v5472 = vadd.f32 %v5295, %v5471
      %v5473 = vpop.f32.mrb[0].mxu0
      %5474 = vdwg.mxu0
      %v5475 = vld [vmem:[#allocation2 + $0x10] sm:$0xc]
      %v5476 = vld [vmem:[#allocation2 + $0x14] sm:$0xf]
      %v5477 = vld [vmem:[#allocation2 + $0x18] sm:$0xf]
      %v5478 = vld [vmem:[#allocation2 + $0x1c] sm:$0xf]
      %v5479 = vld [vmem:[#allocation2 + $0x20] sm:$0xf]
      %v5480 = vld [vmem:[#allocation2 + $0x24] sm:$0xf]
      %v5481 = vld [vmem:[#allocation2 + $0x28] sm:$0xf]
      %v5482 = vld [vmem:[#allocation2 + $0x2c] sm:$0xf]
      %v5483 = vld [vmem:[#allocation2 + $0x30] sm:$0xf]
      %v5484 = vld [vmem:[#allocation2 + $0x34] sm:$0xf]
      %v5485 = vld [vmem:[#allocation2 + $0x38] sm:$0xf]
      %v5486 = vld [vmem:[#allocation2 + $0x3c] sm:$0xf]
      %v5487 = vld [vmem:[#allocation2 + $0x40] sm:$0xf]
      %v5488 = vld [vmem:[#allocation2 + $0x44] sm:$0xf]
      %v5489 = vld [vmem:[#allocation2 + $0x48] sm:$0xf]
      %v5490 = vld [vmem:[#allocation2 + $0x4c] sm:$0xf]
      %v5491 = vld [vmem:[#allocation2 + $0x50] sm:$0xf]
      %v5492 = vld [vmem:[#allocation2 + $0x54] sm:$0xf]
      %v5493 = vld [vmem:[#allocation2 + $0x58] sm:$0xf]
      %v5494 = vld [vmem:[#allocation2 + $0x5c] sm:$0xf]
      %v5495 = vld [vmem:[#allocation2 + $0x60] sm:$0xf]
      %v5496 = vld [vmem:[#allocation2 + $0x64] sm:$0xf]
      %v5497 = vld [vmem:[#allocation2 + $0x68] sm:$0xf]
      %v5498 = vld [vmem:[#allocation2 + $0x6c] sm:$0xf]
      %v5499 = vld [vmem:[#allocation2 + $0x70] sm:$0xf]
      %v5500 = vld [vmem:[#allocation2 + $0x74] sm:$0xf]
      %v5501 = vld [vmem:[#allocation2 + $0x78] sm:$0xf]
      %v5502 = vld [vmem:[#allocation2 + $0x7c] sm:$0xf]
      %v5503 = vld [vmem:[#allocation2 + $0x80] sm:$0xf]
      %v5504 = vld [vmem:[#allocation2 + $0x84] sm:$0xf]
      %v5505 = vld [vmem:[#allocation2 + $0x88] sm:$0xf]
      %v5506 = vld [vmem:[#allocation2 + $0x8c] sm:$0xf]
      %v5507 = vld [vmem:[#allocation2 + $0x90] sm:$0xf]
      %v5508 = vld [vmem:[#allocation2 + $0x94] sm:$0xf]
      %v5509 = vld [vmem:[#allocation2 + $0x98] sm:$0xf]
      %v5510 = vld [vmem:[#allocation2 + $0x9c] sm:$0xf]
      %v5511 = vld [vmem:[#allocation2 + $0xa0] sm:$0x3]
      %v5512 = vld [vmem:[#allocation2 + $0xa0] sm:$0x7]
      %v5513 = vld [vmem:[#allocation2 + $0x10] sm:$0x8]
      %v5551 = vunpack.c.l.b16 %v5475
      %v5552 = vunpack.c.l.b16 %v5476
      %v5553 = vunpack.c.l.b16 %v5477
      %v5554 = vunpack.c.l.b16 %v5478
      %v5555 = vunpack.c.l.b16 %v5479
      %v5556 = vunpack.c.l.b16 %v5480
      %v5557 = vunpack.c.l.b16 %v5481
      %v5558 = vunpack.c.l.b16 %v5482
      %v5559 = vunpack.c.l.b16 %v5483
      %v5560 = vunpack.c.l.b16 %v5484
      %v5561 = vunpack.c.l.b16 %v5485
      %v5562 = vunpack.c.l.b16 %v5486
      %v5563 = vunpack.c.l.b16 %v5487
      %v5564 = vunpack.c.l.b16 %v5488
      %v5565 = vunpack.c.l.b16 %v5489
      %v5566 = vunpack.c.l.b16 %v5490
      %v5567 = vunpack.c.l.b16 %v5491
      %v5568 = vunpack.c.l.b16 %v5492
      %v5569 = vunpack.c.l.b16 %v5493
      %v5570 = vunpack.c.l.b16 %v5494
      %v5571 = vunpack.c.l.b16 %v5495
      %v5572 = vunpack.c.l.b16 %v5496
      %v5573 = vunpack.c.l.b16 %v5497
      %v5574 = vunpack.c.l.b16 %v5498
      %v5575 = vunpack.c.l.b16 %v5499
      %v5576 = vunpack.c.l.b16 %v5500
      %v5577 = vunpack.c.l.b16 %v5501
      %v5578 = vunpack.c.l.b16 %v5502
      %v5579 = vunpack.c.l.b16 %v5503
      %v5580 = vunpack.c.l.b16 %v5504
      %v5581 = vunpack.c.l.b16 %v5505
      %v5582 = vunpack.c.l.b16 %v5506
      %v5583 = vunpack.c.l.b16 %v5507
      %v5584 = vunpack.c.l.b16 %v5508
      %v5585 = vunpack.c.l.b16 %v5509
      %v5586 = vunpack.c.l.b16 %v5510
      %v5587 = vunpack.c.l.b16 %v5511
      %v5588 = vpack.c.b16 %v5552, %v5551
      %v5589 = vpack.c.b16 %v5554, %v5553
      %v5590 = vpack.c.b16 %v5556, %v5555
      %v5591 = vpack.c.b16 %v5558, %v5557
      %v5592 = vpack.c.b16 %v5560, %v5559
      %v5593 = vpack.c.b16 %v5562, %v5561
      %v5594 = vpack.c.b16 %v5564, %v5563
      %v5595 = vpack.c.b16 %v5566, %v5565
      %v5596 = vpack.c.b16 %v5568, %v5567
      %v5597 = vpack.c.b16 %v5570, %v5569
      %v5598 = vpack.c.b16 %v5572, %v5571
      %v5599 = vpack.c.b16 %v5574, %v5573
      %v5600 = vpack.c.b16 %v5576, %v5575
      %v5601 = vpack.c.b16 %v5578, %v5577
      %v5602 = vpack.c.b16 %v5580, %v5579
      %v5603 = vpack.c.b16 %v5582, %v5581
      %v5604 = vpack.c.b16 %v5584, %v5583
      %v5605 = vpack.c.b16 %v5586, %v5585
      %v5606 = vpack.c.b16 %v5587, %v5587
      %v5608 = vunpack.c.l.b16 %v5512
      %v5609 = vpack.c.b16 %v5608, %v5608
      %v5611 = vshrl.u32 %v5588, 16
      %v5613 = vshll.u32 %v5588, 16
      %v5615 = vrot.slane %v5613, 1
      %v5616 = vor.u32 %v5611, %v5615
      %v5618 = vshll.u32 %v5589, 16
      %v5620 = vrot.slane %v5618, 1
      %v5621 = vsel %vm3986, %v5616, %v5620
      %v5622 = vshrl.u32 %v5589, 16
      %v5624 = vor.u32 %v5622, %v5620
      %v5626 = vshll.u32 %v5590, 16
      %v5628 = vrot.slane %v5626, 1
      %v5629 = vsel %vm3986, %v5624, %v5628
      %v5630 = vshrl.u32 %v5590, 16
      %v5632 = vor.u32 %v5630, %v5628
      %v5634 = vshll.u32 %v5591, 16
      %v5636 = vrot.slane %v5634, 1
      %v5637 = vsel %vm3986, %v5632, %v5636
      %v5638 = vshrl.u32 %v5591, 16
      %v5640 = vor.u32 %v5638, %v5636
      %v5642 = vshll.u32 %v5592, 16
      %v5644 = vrot.slane %v5642, 1
      %v5645 = vsel %vm3986, %v5640, %v5644
      %v5646 = vshrl.u32 %v5592, 16
      %v5648 = vor.u32 %v5646, %v5644
      %v5650 = vshll.u32 %v5593, 16
      %v5652 = vrot.slane %v5650, 1
      %v5653 = vsel %vm3986, %v5648, %v5652
      %v5654 = vshrl.u32 %v5593, 16
      %v5656 = vor.u32 %v5654, %v5652
      %v5658 = vshll.u32 %v5594, 16
      %v5660 = vrot.slane %v5658, 1
      %v5661 = vsel %vm3986, %v5656, %v5660
      %v5662 = vshrl.u32 %v5594, 16
      %v5664 = vor.u32 %v5662, %v5660
      %v5666 = vshll.u32 %v5595, 16
      %v5668 = vrot.slane %v5666, 1
      %v5669 = vsel %vm3986, %v5664, %v5668
      %v5670 = vshrl.u32 %v5595, 16
      %v5672 = vor.u32 %v5670, %v5668
      %v5674 = vshll.u32 %v5596, 16
      %v5676 = vrot.slane %v5674, 1
      %v5677 = vsel %vm3986, %v5672, %v5676
      %v5678 = vshrl.u32 %v5596, 16
      %v5680 = vor.u32 %v5678, %v5676
      %v5682 = vshll.u32 %v5597, 16
      %v5684 = vrot.slane %v5682, 1
      %v5685 = vsel %vm3986, %v5680, %v5684
      %v5686 = vshrl.u32 %v5597, 16
      %v5688 = vor.u32 %v5686, %v5684
      %v5690 = vshll.u32 %v5598, 16
      %v5692 = vrot.slane %v5690, 1
      %v5693 = vsel %vm3986, %v5688, %v5692
      %v5694 = vshrl.u32 %v5598, 16
      %v5696 = vor.u32 %v5694, %v5692
      %v5698 = vshll.u32 %v5599, 16
      %v5700 = vrot.slane %v5698, 1
      %v5701 = vsel %vm3986, %v5696, %v5700
      %v5702 = vshrl.u32 %v5599, 16
      %v5704 = vor.u32 %v5702, %v5700
      %v5706 = vshll.u32 %v5600, 16
      %v5708 = vrot.slane %v5706, 1
      %v5709 = vsel %vm3986, %v5704, %v5708
      %v5710 = vshrl.u32 %v5600, 16
      %v5712 = vor.u32 %v5710, %v5708
      %v5714 = vshll.u32 %v5601, 16
      %v5716 = vrot.slane %v5714, 1
      %v5717 = vsel %vm3986, %v5712, %v5716
      %v5718 = vshrl.u32 %v5601, 16
      %v5720 = vor.u32 %v5718, %v5716
      %v5722 = vshll.u32 %v5602, 16
      %v5724 = vrot.slane %v5722, 1
      %v5725 = vsel %vm3986, %v5720, %v5724
      %v5726 = vshrl.u32 %v5602, 16
      %v5728 = vor.u32 %v5726, %v5724
      %v5730 = vshll.u32 %v5603, 16
      %v5732 = vrot.slane %v5730, 1
      %v5733 = vsel %vm3986, %v5728, %v5732
      %v5734 = vshrl.u32 %v5603, 16
      %v5736 = vor.u32 %v5734, %v5732
      %v5738 = vshll.u32 %v5604, 16
      %v5740 = vrot.slane %v5738, 1
      %v5741 = vsel %vm3986, %v5736, %v5740
      %v5742 = vshrl.u32 %v5604, 16
      %v5744 = vor.u32 %v5742, %v5740
      %v5746 = vshll.u32 %v5605, 16
      %v5748 = vrot.slane %v5746, 1
      %v5749 = vsel %vm3986, %v5744, %v5748
      %v5750 = vshrl.u32 %v5605, 16
      %v5752 = vor.u32 %v5750, %v5748
      %v5754 = vshll.u32 %v5609, 16
      %v5756 = vrot.slane %v5754, 1
      %v5757 = vsel %vm3986, %v5752, %v5756
      %v5758 = vshrl.u32 %v5609, 16
      %v5760 = vor.u32 %v5758, %v5756
      %v5762 = vunpack.c.l.b16 %v5513
      %v5763 = vpack.c.b16 %v5552, %v5762
      %v5764 = vrot.slane %v5763, 1
      %v5765 = vrot.slane %v5589, 1
      %v5766 = vsel %vm4156, %v5764, %v5765
      %v5767 = vrot.slane %v5590, 1
      %v5768 = vsel %vm4156, %v5765, %v5767
      %v5769 = vrot.slane %v5591, 1
      %v5770 = vsel %vm4156, %v5767, %v5769
      %v5771 = vrot.slane %v5592, 1
      %v5772 = vsel %vm4156, %v5769, %v5771
      %v5773 = vrot.slane %v5593, 1
      %v5774 = vsel %vm4156, %v5771, %v5773
      %v5775 = vrot.slane %v5594, 1
      %v5776 = vsel %vm4156, %v5773, %v5775
      %v5777 = vrot.slane %v5595, 1
      %v5778 = vsel %vm4156, %v5775, %v5777
      %v5779 = vrot.slane %v5596, 1
      %v5780 = vsel %vm4156, %v5777, %v5779
      %v5781 = vrot.slane %v5597, 1
      %v5782 = vsel %vm4156, %v5779, %v5781
      %v5783 = vrot.slane %v5598, 1
      %v5784 = vsel %vm4156, %v5781, %v5783
      %v5785 = vrot.slane %v5599, 1
      %v5786 = vsel %vm4156, %v5783, %v5785
      %v5787 = vrot.slane %v5600, 1
      %v5788 = vsel %vm4156, %v5785, %v5787
      %v5789 = vrot.slane %v5601, 1
      %v5790 = vsel %vm4156, %v5787, %v5789
      %v5791 = vrot.slane %v5602, 1
      %v5792 = vsel %vm4156, %v5789, %v5791
      %v5793 = vrot.slane %v5603, 1
      %v5794 = vsel %vm4156, %v5791, %v5793
      %v5795 = vrot.slane %v5604, 1
      %v5796 = vsel %vm4156, %v5793, %v5795
      %v5797 = vrot.slane %v5605, 1
      %v5798 = vsel %vm4156, %v5795, %v5797
      %v5799 = vrot.slane %v5609, 1
      %v5800 = vsel %vm4156, %v5797, %v5799
      %s5801 = scalar_lea.vmem %s4, 384
      %v5802 = vld [vmem:[%s5801] sm:$0xf]
      %v5803 = vld [vmem:[%s5801 + $0x4] sm:$0xf]
      %v5804 = vld [vmem:[%s5801 + $0x8] sm:$0xf]
      %v5805 = vld [vmem:[%s5801 + $0xc] sm:$0xf]
      %v5806 = vld [vmem:[%s5801 + $0x10] sm:$0xf]
      %v5807 = vld [vmem:[%s5801 + $0x14] sm:$0xf]
      %v5808 = vld [vmem:[%s5801 + $0x18] sm:$0xf]
      %v5809 = vld [vmem:[%s5801 + $0x1c] sm:$0xf]
      %v5810 = vld [vmem:[%s5801 + $0x20] sm:$0xf]
      %v5811 = vld [vmem:[%s5801 + $0x24] sm:$0xf]
      %v5812 = vld [vmem:[%s5801 + $0x28] sm:$0xf]
      %v5813 = vld [vmem:[%s5801 + $0x2c] sm:$0xf]
      %v5814 = vld [vmem:[%s5801 + $0x30] sm:$0xf]
      %v5815 = vld [vmem:[%s5801 + $0x34] sm:$0xf]
      %v5816 = vld [vmem:[%s5801 + $0x38] sm:$0xf]
      %v5817 = vld [vmem:[%s5801 + $0x3c] sm:$0xf]
      %v5818 = vld [vmem:[%s5801 + $0x40] sm:$0xf]
      %v5819 = vld [vmem:[%s5801 + $0x44] sm:$0xf]
      %v5820 = vld [vmem:[%s5801 + $0x48] sm:$0xf]
      %v5821 = vld [vmem:[%s5801 + $0x4c] sm:$0xf]
      %v5822 = vld [vmem:[%s5801 + $0x50] sm:$0xf]
      %v5823 = vld [vmem:[%s5801 + $0x54] sm:$0xf]
      %v5824 = vld [vmem:[%s5801 + $0x58] sm:$0xf]
      %v5825 = vld [vmem:[%s5801 + $0x5c] sm:$0xf]
      %v5826 = vld [vmem:[%s5801 + $0x60] sm:$0xf]
      %v5827 = vld [vmem:[%s5801 + $0x64] sm:$0xf]
      %v5828 = vld [vmem:[%s5801 + $0x68] sm:$0xf]
      %v5829 = vld [vmem:[%s5801 + $0x6c] sm:$0xf]
      %v5830 = vld [vmem:[%s5801 + $0x70] sm:$0xf]
      %v5831 = vld [vmem:[%s5801 + $0x74] sm:$0xf]
      %v5832 = vld [vmem:[%s5801 + $0x78] sm:$0xf]
      %v5833 = vld [vmem:[%s5801 + $0x7c] sm:$0xf]
      %v5834 = vld [vmem:[%s5801 + $0x80] sm:$0xf]
      %v5835 = vld [vmem:[%s5801 + $0x84] sm:$0xf]
      %v5836 = vld [vmem:[%s5801 + $0x88] sm:$0xf]
      %v5837 = vld [vmem:[%s5801 + $0x8c] sm:$0xf]
      %v5838 = vld [vmem:[%s5801 + $0x90] sm:$0xf]
      %v5839 = vld [vmem:[%s5801 + $0x94] sm:$0xf]
      %v5840 = vld [vmem:[%s5801 + $0x98] sm:$0xf]
      %v5841 = vld [vmem:[%s5801 + $0x9c] sm:$0xf]
      %v5842 = vld [vmem:[%s5801 + $0xa0] sm:$0xf]
      %v5843 = vld [vmem:[%s5801 + $0xa4] sm:$0xf]
      %v5844 = vld [vmem:[%s5801 + $0xa8] sm:$0xf]
      %v5845 = vld [vmem:[%s5801 + $0xac] sm:$0xf]
      %v5846 = vld [vmem:[%s5801 + $0xb0] sm:$0xf]
      %v5847 = vld [vmem:[%s5801 + $0xb4] sm:$0xf]
      %v5848 = vld [vmem:[%s5801 + $0xb8] sm:$0xf]
      %v5849 = vld [vmem:[%s5801 + $0xbc] sm:$0xf]
      %vm5850 = vcmask 1045504
      %v5851 = vrot.slane %v5588, 2
      %v5852 = vrot.slane %v5589, 2
      %v5853 = vsel %vm5850, %v5851, %v5852
      %v5854 = vrot.slane %v5621, 2
      %v5855 = vrot.slane %v5629, 2
      %v5856 = vsel %vm5850, %v5854, %v5855
      %v5857 = vrot.slane %v5766, 2
      %v5858 = vrot.slane %v5768, 2
      %v5859 = vsel %vm5850, %v5857, %v5858
      %v5860 = vrot.slane %v5590, 2
      %v5861 = vsel %vm5850, %v5852, %v5860
      %v5862 = vrot.slane %v5637, 2
      %v5863 = vsel %vm5850, %v5855, %v5862
      %v5864 = vrot.slane %v5770, 2
      %v5865 = vsel %vm5850, %v5858, %v5864
      %v5866 = vrot.slane %v5591, 2
      %v5867 = vsel %vm5850, %v5860, %v5866
      %v5868 = vrot.slane %v5645, 2
      %v5869 = vsel %vm5850, %v5862, %v5868
      %v5870 = vrot.slane %v5772, 2
      %v5871 = vsel %vm5850, %v5864, %v5870
      %v5872 = vrot.slane %v5592, 2
      %v5873 = vsel %vm5850, %v5866, %v5872
      %v5874 = vrot.slane %v5653, 2
      %v5875 = vsel %vm5850, %v5868, %v5874
      %v5876 = vrot.slane %v5774, 2
      %v5877 = vsel %vm5850, %v5870, %v5876
      %v5878 = vrot.slane %v5593, 2
      %v5879 = vsel %vm5850, %v5872, %v5878
      %v5880 = vrot.slane %v5661, 2
      %v5881 = vsel %vm5850, %v5874, %v5880
      %v5882 = vrot.slane %v5776, 2
      %v5883 = vsel %vm5850, %v5876, %v5882
      %v5884 = vrot.slane %v5594, 2
      %v5885 = vsel %vm5850, %v5878, %v5884
      %v5886 = vrot.slane %v5669, 2
      %v5887 = vsel %vm5850, %v5880, %v5886
      %v5888 = vrot.slane %v5778, 2
      %v5889 = vsel %vm5850, %v5882, %v5888
      %v5890 = vrot.slane %v5595, 2
      %v5891 = vsel %vm5850, %v5884, %v5890
      %v5892 = vrot.slane %v5677, 2
      %v5893 = vsel %vm5850, %v5886, %v5892
      %v5894 = vrot.slane %v5780, 2
      %v5895 = vsel %vm5850, %v5888, %v5894
      %v5896 = vrot.slane %v5596, 2
      %v5897 = vsel %vm5850, %v5890, %v5896
      %v5898 = vrot.slane %v5685, 2
      %v5899 = vsel %vm5850, %v5892, %v5898
      %v5900 = vrot.slane %v5782, 2
      %v5901 = vsel %vm5850, %v5894, %v5900
      %v5902 = vrot.slane %v5597, 2
      %v5903 = vsel %vm5850, %v5896, %v5902
      %v5904 = vrot.slane %v5693, 2
      %v5905 = vsel %vm5850, %v5898, %v5904
      %v5906 = vrot.slane %v5784, 2
      %v5907 = vsel %vm5850, %v5900, %v5906
      %v5908 = vrot.slane %v5598, 2
      %v5909 = vsel %vm5850, %v5902, %v5908
      %v5910 = vrot.slane %v5701, 2
      %v5911 = vsel %vm5850, %v5904, %v5910
      %v5912 = vrot.slane %v5786, 2
      %v5913 = vsel %vm5850, %v5906, %v5912
      %v5914 = vrot.slane %v5599, 2
      %v5915 = vsel %vm5850, %v5908, %v5914
      %v5916 = vrot.slane %v5709, 2
      %v5917 = vsel %vm5850, %v5910, %v5916
      %v5918 = vrot.slane %v5788, 2
      %v5919 = vsel %vm5850, %v5912, %v5918
      %v5920 = vrot.slane %v5600, 2
      %v5921 = vsel %vm5850, %v5914, %v5920
      %v5922 = vrot.slane %v5717, 2
      %v5923 = vsel %vm5850, %v5916, %v5922
      %v5924 = vrot.slane %v5790, 2
      %v5925 = vsel %vm5850, %v5918, %v5924
      %v5926 = vrot.slane %v5601, 2
      %v5927 = vsel %vm5850, %v5920, %v5926
      %v5928 = vrot.slane %v5725, 2
      %v5929 = vsel %vm5850, %v5922, %v5928
      %v5930 = vrot.slane %v5792, 2
      %v5931 = vsel %vm5850, %v5924, %v5930
      %v5932 = vrot.slane %v5602, 2
      %v5933 = vsel %vm5850, %v5926, %v5932
      %v5934 = vrot.slane %v5733, 2
      %v5935 = vsel %vm5850, %v5928, %v5934
      %v5936 = vrot.slane %v5794, 2
      %v5937 = vsel %vm5850, %v5930, %v5936
      %v5938 = vrot.slane %v5603, 2
      %v5939 = vsel %vm5850, %v5932, %v5938
      %v5940 = vrot.slane %v5741, 2
      %v5941 = vsel %vm5850, %v5934, %v5940
      %v5942 = vrot.slane %v5796, 2
      %v5943 = vsel %vm5850, %v5936, %v5942
      %v5944 = vrot.slane %v5604, 2
      %v5945 = vsel %vm5850, %v5938, %v5944
      %v5946 = vrot.slane %v5749, 2
      %v5947 = vsel %vm5850, %v5940, %v5946
      %v5948 = vrot.slane %v5798, 2
      %v5949 = vsel %vm5850, %v5942, %v5948
      %v5950 = vrot.slane %v5605, 2
      %v5951 = vsel %vm5850, %v5944, %v5950
      %v5952 = vrot.slane %v5757, 2
      %v5953 = vsel %vm5850, %v5946, %v5952
      %v5954 = vrot.slane %v5800, 2
      %v5955 = vsel %vm5850, %v5948, %v5954
      %v5956 = vrot.slane %v5606, 2
      %v5957 = vsel %vm5850, %v5950, %v5956
      %v5958 = vrot.slane %v5760, 2
      %v5959 = vsel %vm5850, %v5952, %v5958
      %v5960 = vrot.slane %v5799, 2
      %v5961 = vsel %vm5850, %v5954, %v5960
      %v6064 = vunpack.c.l.b16 %v5802
      %v6065 = vunpack.c.l.b16 %v5803
      %v6066 = vunpack.c.l.b16 %v5804
      %v6067 = vunpack.c.l.b16 %v5805
      %v6068 = vunpack.c.l.b16 %v5806
      %v6069 = vunpack.c.l.b16 %v5807
      %v6070 = vunpack.c.l.b16 %v5808
      %v6071 = vunpack.c.l.b16 %v5809
      %v6072 = vunpack.c.l.b16 %v5810
      %v6073 = vunpack.c.l.b16 %v5811
      %v6074 = vunpack.c.l.b16 %v5812
      %v6075 = vunpack.c.l.b16 %v5813
      %v6076 = vunpack.c.l.b16 %v5814
      %v6077 = vunpack.c.l.b16 %v5815
      %v6078 = vunpack.c.l.b16 %v5816
      %v6079 = vunpack.c.l.b16 %v5817
      %v6080 = vunpack.c.l.b16 %v5818
      %v6081 = vunpack.c.l.b16 %v5819
      %v6082 = vunpack.c.l.b16 %v5820
      %v6083 = vunpack.c.l.b16 %v5821
      %v6084 = vunpack.c.l.b16 %v5822
      %v6085 = vunpack.c.l.b16 %v5823
      %v6086 = vunpack.c.l.b16 %v5824
      %v6087 = vunpack.c.l.b16 %v5825
      %v6088 = vunpack.c.l.b16 %v5826
      %v6089 = vunpack.c.l.b16 %v5827
      %v6090 = vunpack.c.l.b16 %v5828
      %v6091 = vunpack.c.l.b16 %v5829
      %v6092 = vunpack.c.l.b16 %v5830
      %v6093 = vunpack.c.l.b16 %v5831
      %v6094 = vunpack.c.l.b16 %v5832
      %v6095 = vunpack.c.l.b16 %v5833
      %v6096 = vunpack.c.l.b16 %v5834
      %v6097 = vunpack.c.l.b16 %v5835
      %v6098 = vunpack.c.l.b16 %v5836
      %v6099 = vunpack.c.l.b16 %v5837
      %v6100 = vunpack.c.l.b16 %v5838
      %v6101 = vunpack.c.l.b16 %v5839
      %v6102 = vunpack.c.l.b16 %v5840
      %v6103 = vunpack.c.l.b16 %v5841
      %v6104 = vunpack.c.l.b16 %v5842
      %v6105 = vunpack.c.l.b16 %v5843
      %v6106 = vunpack.c.l.b16 %v5844
      %v6107 = vunpack.c.l.b16 %v5845
      %v6108 = vunpack.c.l.b16 %v5846
      %v6109 = vunpack.c.l.b16 %v5847
      %v6110 = vunpack.c.l.b16 %v5848
      %v6111 = vunpack.c.l.b16 %v5849
      %v6112 = vpack.c.b16 %v6065, %v6064
      %v6113 = vpack.c.b16 %v6067, %v6066
      %v6114 = vpack.c.b16 %v6069, %v6068
      %v6115 = vpack.c.b16 %v6071, %v6070
      %v6116 = vpack.c.b16 %v6073, %v6072
      %v6117 = vpack.c.b16 %v6075, %v6074
      %v6118 = vpack.c.b16 %v6077, %v6076
      %v6119 = vpack.c.b16 %v6079, %v6078
      %v6120 = vpack.c.b16 %v6081, %v6080
      %v6121 = vpack.c.b16 %v6083, %v6082
      %v6122 = vpack.c.b16 %v6085, %v6084
      %v6123 = vpack.c.b16 %v6087, %v6086
      %v6124 = vpack.c.b16 %v6089, %v6088
      %v6125 = vpack.c.b16 %v6091, %v6090
      %v6126 = vpack.c.b16 %v6093, %v6092
      %v6127 = vpack.c.b16 %v6095, %v6094
      %v6128 = vpack.c.b16 %v6097, %v6096
      %v6129 = vpack.c.b16 %v6099, %v6098
      %v6130 = vpack.c.b16 %v6101, %v6100
      %v6131 = vpack.c.b16 %v6103, %v6102
      %v6132 = vpack.c.b16 %v6105, %v6104
      %v6133 = vpack.c.b16 %v6107, %v6106
      %v6134 = vpack.c.b16 %v6109, %v6108
      %v6135 = vpack.c.b16 %v6111, %v6110
      %6160 = vmatprep.subr.bf16.mxu0 0
      %6161 = vmatpush1.bf16.msra.mxu0 %v6112
      %6162 = vmatprep.subr.bf16.mxu0 0
      %6163 = vmatpush1.bf16.msra.mxu0 %v6113
      %6164 = vmatprep.subr.bf16.mxu0 0
      %6165 = vmatpush1.bf16.msra.mxu0 %v6114
      %6166 = vmatprep.subr.bf16.mxu0 0
      %6167 = vmatpush1.bf16.msra.mxu0 %v6115
      %6168 = vmatprep.subr.bf16.mxu0 0
      %6169 = vmatpush1.bf16.msra.mxu0 %v6116
      %6170 = vmatprep.subr.bf16.mxu0 0
      %6171 = vmatpush1.bf16.msra.mxu0 %v6117
      %6172 = vmatprep.subr.bf16.mxu0 0
      %6173 = vmatpush1.bf16.msra.mxu0 %v6118
      %6174 = vmatprep.subr.bf16.mxu0 0
      %6175 = vmatpush1.bf16.msra.mxu0 %v6119
      %6176 = vmatprep.subr.bf16.mxu0 0
      %6177 = vmatpush1.bf16.msra.mxu0 %v6120
      %6178 = vmatprep.subr.bf16.mxu0 0
      %6179 = vmatpush1.bf16.msra.mxu0 %v6121
      %6180 = vmatprep.subr.bf16.mxu0 0
      %6181 = vmatpush1.bf16.msra.mxu0 %v6122
      %6182 = vmatprep.subr.bf16.mxu0 0
      %6183 = vmatpush1.bf16.msra.mxu0 %v6123
      %6184 = vmatprep.subr.bf16.mxu0 0
      %6185 = vmatpush1.bf16.msra.mxu0 %v6124
      %6186 = vmatprep.subr.bf16.mxu0 0
      %6187 = vmatpush1.bf16.msra.mxu0 %v6125
      %6188 = vmatprep.subr.bf16.mxu0 0
      %6189 = vmatpush1.bf16.msra.mxu0 %v6126
      %6190 = vmatprep.subr.bf16.mxu0 0
      %6191 = vmatpush1.bf16.msra.mxu0 %v6127
      %6192 = vmatprep.mubr.bf16.mxu0 %v5856
      %6193 = vmatmul.mubr.bf16.gmra.mrb[0].mxu0 %v5853
      %v6194 = vpop.f32.mrb[0].mxu0
      %v6195 = vadd.f32 0.0, %v6194
      %v6196 = vpop.f32.mrb[0].mxu0
      %v6197 = vpop.f32.mrb[0].mxu0
      %v6198 = vadd.f32 0.0, %v6197
      %v6199 = vpop.f32.mrb[0].mxu0
      %6200 = vmatprep.mubr.bf16.mxu0 %v5863
      %6201 = vmatmul.mubr.bf16.gmra.mrb[0].mxu0 %v5861
      %v6202 = vpop.f32.mrb[0].mxu0
      %v6203 = vadd.f32 0.0, %v6202
      %v6204 = vpop.f32.mrb[0].mxu0
      %v6205 = vpop.f32.mrb[0].mxu0
      %v6206 = vadd.f32 0.0, %v6205
      %v6207 = vpop.f32.mrb[0].mxu0
      %6208 = vmatprep.mubr.bf16.mxu0 %v5869
      %6209 = vmatmul.mubr.bf16.gmra.mrb[0].mxu0 %v5867
      %v6210 = vpop.f32.mrb[0].mxu0
      %v6211 = vadd.f32 0.0, %v6210
      %v6212 = vpop.f32.mrb[0].mxu0
      %v6213 = vpop.f32.mrb[0].mxu0
      %v6214 = vadd.f32 0.0, %v6213
      %v6215 = vpop.f32.mrb[0].mxu0
      %6216 = vmatprep.mubr.bf16.mxu0 %v5875
      %6217 = vmatmul.mubr.bf16.gmra.mrb[0].mxu0 %v5873
      %v6218 = vpop.f32.mrb[0].mxu0
      %v6219 = vadd.f32 0.0, %v6218
      %v6220 = vpop.f32.mrb[0].mxu0
      %v6221 = vpop.f32.mrb[0].mxu0
      %v6222 = vadd.f32 0.0, %v6221
      %v6223 = vpop.f32.mrb[0].mxu0
      %6224 = vmatprep.mubr.bf16.mxu0 %v5881
      %6225 = vmatmul.mubr.bf16.gmra.mrb[0].mxu0 %v5879
      %v6226 = vpop.f32.mrb[0].mxu0
      %v6227 = vadd.f32 0.0, %v6226
      %v6228 = vpop.f32.mrb[0].mxu0
      %v6229 = vpop.f32.mrb[0].mxu0
      %v6230 = vadd.f32 0.0, %v6229
      %v6231 = vpop.f32.mrb[0].mxu0
      %6232 = vmatprep.mubr.bf16.mxu0 %v5887
      %6233 = vmatmul.mubr.bf16.gmra.mrb[0].mxu0 %v5885
      %v6234 = vpop.f32.mrb[0].mxu0
      %v6235 = vadd.f32 0.0, %v6234
      %v6236 = vpop.f32.mrb[0].mxu0
      %v6237 = vpop.f32.mrb[0].mxu0
      %v6238 = vadd.f32 0.0, %v6237
      %v6239 = vpop.f32.mrb[0].mxu0
      %6240 = vmatprep.mubr.bf16.mxu0 %v5893
      %6241 = vmatmul.mubr.bf16.gmra.mrb[0].mxu0 %v5891
      %v6242 = vpop.f32.mrb[0].mxu0
      %v6243 = vadd.f32 0.0, %v6242
      %v6244 = vpop.f32.mrb[0].mxu0
      %v6245 = vpop.f32.mrb[0].mxu0
      %v6246 = vadd.f32 0.0, %v6245
      %v6247 = vpop.f32.mrb[0].mxu0
      %6248 = vmatprep.mubr.bf16.mxu0 %v5899
      %6249 = vmatmul.mubr.bf16.gmra.mrb[0].mxu0 %v5897
      %v6250 = vpop.f32.mrb[0].mxu0
      %v6251 = vadd.f32 0.0, %v6250
      %v6252 = vpop.f32.mrb[0].mxu0
      %v6253 = vpop.f32.mrb[0].mxu0
      %v6254 = vadd.f32 0.0, %v6253
      %v6255 = vpop.f32.mrb[0].mxu0
      %6256 = vmatprep.mubr.bf16.mxu0 %v5905
      %6257 = vmatmul.mubr.bf16.gmra.mrb[0].mxu0 %v5903
      %v6258 = vpop.f32.mrb[0].mxu0
      %v6259 = vadd.f32 0.0, %v6258
      %v6260 = vpop.f32.mrb[0].mxu0
      %v6261 = vpop.f32.mrb[0].mxu0
      %v6262 = vadd.f32 0.0, %v6261
      %v6263 = vpop.f32.mrb[0].mxu0
      %6264 = vmatprep.mubr.bf16.mxu0 %v5911
      %6265 = vmatmul.mubr.bf16.gmra.mrb[0].mxu0 %v5909
      %v6266 = vpop.f32.mrb[0].mxu0
      %v6267 = vadd.f32 0.0, %v6266
      %v6268 = vpop.f32.mrb[0].mxu0
      %v6269 = vpop.f32.mrb[0].mxu0
      %v6270 = vadd.f32 0.0, %v6269
      %v6271 = vpop.f32.mrb[0].mxu0
      %6272 = vmatprep.mubr.bf16.mxu0 %v5917
      %6273 = vmatmul.mubr.bf16.gmra.mrb[0].mxu0 %v5915
      %v6274 = vpop.f32.mrb[0].mxu0
      %v6275 = vadd.f32 0.0, %v6274
      %v6276 = vpop.f32.mrb[0].mxu0
      %v6277 = vpop.f32.mrb[0].mxu0
      %v6278 = vadd.f32 0.0, %v6277
      %v6279 = vpop.f32.mrb[0].mxu0
      %6280 = vmatprep.mubr.bf16.mxu0 %v5923
      %6281 = vmatmul.mubr.bf16.gmra.mrb[0].mxu0 %v5921
      %v6282 = vpop.f32.mrb[0].mxu0
      %v6283 = vadd.f32 0.0, %v6282
      %v6284 = vpop.f32.mrb[0].mxu0
      %v6285 = vpop.f32.mrb[0].mxu0
      %v6286 = vadd.f32 0.0, %v6285
      %v6287 = vpop.f32.mrb[0].mxu0
      %6288 = vmatprep.mubr.bf16.mxu0 %v5929
      %6289 = vmatmul.mubr.bf16.gmra.mrb[0].mxu0 %v5927
      %v6290 = vpop.f32.mrb[0].mxu0
      %v6291 = vadd.f32 0.0, %v6290
      %v6292 = vpop.f32.mrb[0].mxu0
      %v6293 = vpop.f32.mrb[0].mxu0
      %v6294 = vadd.f32 0.0, %v6293
      %v6295 = vpop.f32.mrb[0].mxu0
      %6296 = vmatprep.mubr.bf16.mxu0 %v5935
      %6297 = vmatmul.mubr.bf16.gmra.mrb[0].mxu0 %v5933
      %v6298 = vpop.f32.mrb[0].mxu0
      %v6299 = vadd.f32 0.0, %v6298
      %v6300 = vpop.f32.mrb[0].mxu0
      %v6301 = vpop.f32.mrb[0].mxu0
      %v6302 = vadd.f32 0.0, %v6301
      %v6303 = vpop.f32.mrb[0].mxu0
      %6304 = vmatprep.mubr.bf16.mxu0 %v5941
      %6305 = vmatmul.mubr.bf16.gmra.mrb[0].mxu0 %v5939
      %v6306 = vpop.f32.mrb[0].mxu0
      %v6307 = vadd.f32 0.0, %v6306
      %v6308 = vpop.f32.mrb[0].mxu0
      %v6309 = vpop.f32.mrb[0].mxu0
      %v6310 = vadd.f32 0.0, %v6309
      %v6311 = vpop.f32.mrb[0].mxu0
      %6312 = vmatprep.mubr.bf16.mxu0 %v5947
      %6313 = vmatmul.mubr.bf16.gmra.mrb[0].mxu0 %v5945
      %v6314 = vpop.f32.mrb[0].mxu0
      %v6315 = vadd.f32 0.0, %v6314
      %v6316 = vpop.f32.mrb[0].mxu0
      %v6317 = vpop.f32.mrb[0].mxu0
      %v6318 = vadd.f32 0.0, %v6317
      %v6319 = vpop.f32.mrb[0].mxu0
      %6320 = vmatprep.mubr.bf16.mxu0 %v5953
      %6321 = vmatmul.mubr.bf16.gmra.mrb[0].mxu0 %v5951
      %v6322 = vpop.f32.mrb[0].mxu0
      %v6323 = vadd.f32 0.0, %v6322
      %v6324 = vpop.f32.mrb[0].mxu0
      %v6325 = vpop.f32.mrb[0].mxu0
      %v6326 = vadd.f32 0.0, %v6325
      %v6327 = vpop.f32.mrb[0].mxu0
      %6328 = vmatprep.mubr.bf16.mxu0 %v5959
      %6329 = vmatmul.mubr.bf16.gmra.mrb[0].mxu0 %v5957
      %v6330 = vpop.f32.mrb[0].mxu0
      %v6331 = vadd.f32 0.0, %v6330
      %v6332 = vpop.f32.mrb[0].mxu0
      %v6333 = vpop.f32.mrb[0].mxu0
      %v6334 = vadd.f32 0.0, %v6333
      %v6335 = vpop.f32.mrb[0].mxu0
      %6336 = vdwg.mxu0
      %6337 = vmatprep.subr.bf16.mxu0 0
      %6338 = vmatpush1.bf16.msra.mxu0 %v6128
      %6339 = vmatprep.subr.bf16.mxu0 0
      %6340 = vmatpush1.bf16.msra.mxu0 %v6129
      %6341 = vmatprep.subr.bf16.mxu0 0
      %6342 = vmatpush1.bf16.msra.mxu0 %v6130
      %6343 = vmatprep.subr.bf16.mxu0 0
      %6344 = vmatpush1.bf16.msra.mxu0 %v6131
      %6345 = vmatprep.subr.bf16.mxu0 0
      %6346 = vmatpush1.bf16.msra.mxu0 %v6132
      %6347 = vmatprep.subr.bf16.mxu0 0
      %6348 = vmatpush1.bf16.msra.mxu0 %v6133
      %6349 = vmatprep.subr.bf16.mxu0 0
      %6350 = vmatpush1.bf16.msra.mxu0 %v6134
      %6351 = vmatprep.subr.bf16.mxu0 0
      %6352 = vmatpush1.bf16.msra.mxu0 %v6135
      %6353 = vmatprep.subr.bf16.mxu0 0
      %6354 = vmatpush1.bf16.msra.mxu0 0
      %6355 = vmatprep.subr.bf16.mxu0 0
      %6356 = vmatpush1.bf16.msra.mxu0 0
      %6357 = vmatprep.subr.bf16.mxu0 0
      %6358 = vmatpush1.bf16.msra.mxu0 0
      %6359 = vmatprep.subr.bf16.mxu0 0
      %6360 = vmatpush1.bf16.msra.mxu0 0
      %6361 = vmatprep.subr.bf16.mxu0 0
      %6362 = vmatpush1.bf16.msra.mxu0 0
      %6363 = vmatprep.subr.bf16.mxu0 0
      %6364 = vmatpush1.bf16.msra.mxu0 0
      %6365 = vmatprep.subr.bf16.mxu0 0
      %6366 = vmatpush1.bf16.msra.mxu0 0
      %6367 = vmatprep.subr.bf16.mxu0 0
      %6368 = vmatpush1.bf16.msra.mxu0 0
      %6369 = vmatprep.mubr.bf16.mxu0 0
      %6370 = vmatmul.mubr.bf16.gmra.mrb[0].mxu0 %v5859
      %v6371 = vpop.f32.mrb[0].mxu0
      %v6372 = vadd.f32 %v6195, %v6371
      %v6373 = vpop.f32.mrb[0].mxu0
      %v6374 = vpop.f32.mrb[0].mxu0
      %v6375 = vadd.f32 %v6198, %v6374
      %v6376 = vpop.f32.mrb[0].mxu0
      %6377 = vmatprep.mubr.bf16.mxu0 0
      %6378 = vmatmul.mubr.bf16.gmra.mrb[0].mxu0 %v5865
      %v6379 = vpop.f32.mrb[0].mxu0
      %v6380 = vadd.f32 %v6203, %v6379
      %v6381 = vpop.f32.mrb[0].mxu0
      %v6382 = vpop.f32.mrb[0].mxu0
      %v6383 = vadd.f32 %v6206, %v6382
      %v6384 = vpop.f32.mrb[0].mxu0
      %6385 = vmatprep.mubr.bf16.mxu0 0
      %6386 = vmatmul.mubr.bf16.gmra.mrb[0].mxu0 %v5871
      %v6387 = vpop.f32.mrb[0].mxu0
      %v6388 = vadd.f32 %v6211, %v6387
      %v6389 = vpop.f32.mrb[0].mxu0
      %v6390 = vpop.f32.mrb[0].mxu0
      %v6391 = vadd.f32 %v6214, %v6390
      %v6392 = vpop.f32.mrb[0].mxu0
      %6393 = vmatprep.mubr.bf16.mxu0 0
      %6394 = vmatmul.mubr.bf16.gmra.mrb[0].mxu0 %v5877
      %v6395 = vpop.f32.mrb[0].mxu0
      %v6396 = vadd.f32 %v6219, %v6395
      %v6397 = vpop.f32.mrb[0].mxu0
      %v6398 = vpop.f32.mrb[0].mxu0
      %v6399 = vadd.f32 %v6222, %v6398
      %v6400 = vpop.f32.mrb[0].mxu0
      %6401 = vmatprep.mubr.bf16.mxu0 0
      %6402 = vmatmul.mubr.bf16.gmra.mrb[0].mxu0 %v5883
      %v6403 = vpop.f32.mrb[0].mxu0
      %v6404 = vadd.f32 %v6227, %v6403
      %v6405 = vpop.f32.mrb[0].mxu0
      %v6406 = vpop.f32.mrb[0].mxu0
      %v6407 = vadd.f32 %v6230, %v6406
      %v6408 = vpop.f32.mrb[0].mxu0
      %6409 = vmatprep.mubr.bf16.mxu0 0
      %6410 = vmatmul.mubr.bf16.gmra.mrb[0].mxu0 %v5889
      %v6411 = vpop.f32.mrb[0].mxu0
      %v6412 = vadd.f32 %v6235, %v6411
      %v6413 = vpop.f32.mrb[0].mxu0
      %v6414 = vpop.f32.mrb[0].mxu0
      %v6415 = vadd.f32 %v6238, %v6414
      %v6416 = vpop.f32.mrb[0].mxu0
      %6417 = vmatprep.mubr.bf16.mxu0 0
      %6418 = vmatmul.mubr.bf16.gmra.mrb[0].mxu0 %v5895
      %v6419 = vpop.f32.mrb[0].mxu0
      %v6420 = vadd.f32 %v6243, %v6419
      %v6421 = vpop.f32.mrb[0].mxu0
      %v6422 = vpop.f32.mrb[0].mxu0
      %v6423 = vadd.f32 %v6246, %v6422
      %v6424 = vpop.f32.mrb[0].mxu0
      %6425 = vmatprep.mubr.bf16.mxu0 0
      %6426 = vmatmul.mubr.bf16.gmra.mrb[0].mxu0 %v5901
      %v6427 = vpop.f32.mrb[0].mxu0
      %v6428 = vadd.f32 %v6251, %v6427
      %v6429 = vpop.f32.mrb[0].mxu0
      %v6430 = vpop.f32.mrb[0].mxu0
      %v6431 = vadd.f32 %v6254, %v6430
      %v6432 = vpop.f32.mrb[0].mxu0
      %6433 = vmatprep.mubr.bf16.mxu0 0
      %6434 = vmatmul.mubr.bf16.gmra.mrb[0].mxu0 %v5907
      %v6435 = vpop.f32.mrb[0].mxu0
      %v6436 = vadd.f32 %v6259, %v6435
      %v6437 = vpop.f32.mrb[0].mxu0
      %v6438 = vpop.f32.mrb[0].mxu0
      %v6439 = vadd.f32 %v6262, %v6438
      %v6440 = vpop.f32.mrb[0].mxu0
      %6441 = vmatprep.mubr.bf16.mxu0 0
      %6442 = vmatmul.mubr.bf16.gmra.mrb[0].mxu0 %v5913
      %v6443 = vpop.f32.mrb[0].mxu0
      %v6444 = vadd.f32 %v6267, %v6443
      %v6445 = vpop.f32.mrb[0].mxu0
      %v6446 = vpop.f32.mrb[0].mxu0
      %v6447 = vadd.f32 %v6270, %v6446
      %v6448 = vpop.f32.mrb[0].mxu0
      %6449 = vmatprep.mubr.bf16.mxu0 0
      %6450 = vmatmul.mubr.bf16.gmra.mrb[0].mxu0 %v5919
      %v6451 = vpop.f32.mrb[0].mxu0
      %v6452 = vadd.f32 %v6275, %v6451
      %v6453 = vpop.f32.mrb[0].mxu0
      %v6454 = vpop.f32.mrb[0].mxu0
      %v6455 = vadd.f32 %v6278, %v6454
      %v6456 = vpop.f32.mrb[0].mxu0
      %6457 = vmatprep.mubr.bf16.mxu0 0
      %6458 = vmatmul.mubr.bf16.gmra.mrb[0].mxu0 %v5925
      %v6459 = vpop.f32.mrb[0].mxu0
      %v6460 = vadd.f32 %v6283, %v6459
      %v6461 = vpop.f32.mrb[0].mxu0
      %v6462 = vpop.f32.mrb[0].mxu0
      %v6463 = vadd.f32 %v6286, %v6462
      %v6464 = vpop.f32.mrb[0].mxu0
      %6465 = vmatprep.mubr.bf16.mxu0 0
      %6466 = vmatmul.mubr.bf16.gmra.mrb[0].mxu0 %v5931
      %v6467 = vpop.f32.mrb[0].mxu0
      %v6468 = vadd.f32 %v6291, %v6467
      %v6469 = vpop.f32.mrb[0].mxu0
      %v6470 = vpop.f32.mrb[0].mxu0
      %v6471 = vadd.f32 %v6294, %v6470
      %v6472 = vpop.f32.mrb[0].mxu0
      %6473 = vmatprep.mubr.bf16.mxu0 0
      %6474 = vmatmul.mubr.bf16.gmra.mrb[0].mxu0 %v5937
      %v6475 = vpop.f32.mrb[0].mxu0
      %v6476 = vadd.f32 %v6299, %v6475
      %v6477 = vpop.f32.mrb[0].mxu0
      %v6478 = vpop.f32.mrb[0].mxu0
      %v6479 = vadd.f32 %v6302, %v6478
      %v6480 = vpop.f32.mrb[0].mxu0
      %6481 = vmatprep.mubr.bf16.mxu0 0
      %6482 = vmatmul.mubr.bf16.gmra.mrb[0].mxu0 %v5943
      %v6483 = vpop.f32.mrb[0].mxu0
      %v6484 = vadd.f32 %v6307, %v6483
      %v6485 = vpop.f32.mrb[0].mxu0
      %v6486 = vpop.f32.mrb[0].mxu0
      %v6487 = vadd.f32 %v6310, %v6486
      %v6488 = vpop.f32.mrb[0].mxu0
      %6489 = vmatprep.mubr.bf16.mxu0 0
      %6490 = vmatmul.mubr.bf16.gmra.mrb[0].mxu0 %v5949
      %v6491 = vpop.f32.mrb[0].mxu0
      %v6492 = vadd.f32 %v6315, %v6491
      %v6493 = vpop.f32.mrb[0].mxu0
      %v6494 = vpop.f32.mrb[0].mxu0
      %v6495 = vadd.f32 %v6318, %v6494
      %v6496 = vpop.f32.mrb[0].mxu0
      %6497 = vmatprep.mubr.bf16.mxu0 0
      %6498 = vmatmul.mubr.bf16.gmra.mrb[0].mxu0 %v5955
      %v6499 = vpop.f32.mrb[0].mxu0
      %v6500 = vadd.f32 %v6323, %v6499
      %v6501 = vpop.f32.mrb[0].mxu0
      %v6502 = vpop.f32.mrb[0].mxu0
      %v6503 = vadd.f32 %v6326, %v6502
      %v6504 = vpop.f32.mrb[0].mxu0
      %6505 = vmatprep.mubr.bf16.mxu0 0
      %6506 = vmatmul.mubr.bf16.gmra.mrb[0].mxu0 %v5961
      %v6507 = vpop.f32.mrb[0].mxu0
      %v6508 = vadd.f32 %v6331, %v6507
      %v6509 = vpop.f32.mrb[0].mxu0
      %v6510 = vpop.f32.mrb[0].mxu0
      %v6511 = vadd.f32 %v6334, %v6510
      %v6512 = vpop.f32.mrb[0].mxu0
      %6513 = vdwg.mxu0
      %v6514 = vadd.f32 %v5333, %v6372
      %v6515 = vadd.f32 %v5336, %v6375
      %v6516 = vadd.f32 %v5341, %v6380
      %v6517 = vadd.f32 %v5344, %v6383
      %v6518 = vadd.f32 %v5349, %v6388
      %v6519 = vadd.f32 %v5352, %v6391
      %v6520 = vadd.f32 %v5357, %v6396
      %v6521 = vadd.f32 %v5360, %v6399
      %v6522 = vadd.f32 %v5365, %v6404
      %v6523 = vadd.f32 %v5368, %v6407
      %v6524 = vadd.f32 %v5373, %v6412
      %v6525 = vadd.f32 %v5376, %v6415
      %v6526 = vadd.f32 %v5381, %v6420
      %v6527 = vadd.f32 %v5384, %v6423
      %v6528 = vadd.f32 %v5389, %v6428
      %v6529 = vadd.f32 %v5392, %v6431
      %v6530 = vadd.f32 %v5397, %v6436
      %v6531 = vadd.f32 %v5400, %v6439
      %v6532 = vadd.f32 %v5405, %v6444
      %v6533 = vadd.f32 %v5408, %v6447
      %v6534 = vadd.f32 %v5413, %v6452
      %v6535 = vadd.f32 %v5416, %v6455
      %v6536 = vadd.f32 %v5421, %v6460
      %v6537 = vadd.f32 %v5424, %v6463
      %v6538 = vadd.f32 %v5429, %v6468
      %v6539 = vadd.f32 %v5432, %v6471
      %v6540 = vadd.f32 %v5437, %v6476
      %v6541 = vadd.f32 %v5440, %v6479
      %v6542 = vadd.f32 %v5445, %v6484
      %v6543 = vadd.f32 %v5448, %v6487
      %v6544 = vadd.f32 %v5453, %v6492
      %v6545 = vadd.f32 %v5456, %v6495
      %v6546 = vadd.f32 %v5461, %v6500
      %v6547 = vadd.f32 %v5464, %v6503
      %v6548 = vadd.f32 %v5469, %v6508
      %v6549 = vadd.f32 %v5472, %v6511
      %v6551 = vlaneseq
      %v6552 = vshrl.u32 %v6551, 7
      %v6553 = vsub.s32 0, %v6552
      %v6554 = vrot.slane %v282, %v6553
      %v6556 = vmul.f32 %v6514, %v6554
      %v6557 = vmul.f32 %v6515, %v6554
      %v6558 = vmul.f32 %v6516, %v6554
      %v6559 = vmul.f32 %v6517, %v6554
      %v6560 = vmul.f32 %v6518, %v6554
      %v6561 = vmul.f32 %v6519, %v6554
      %v6562 = vmul.f32 %v6520, %v6554
      %v6563 = vmul.f32 %v6521, %v6554
      %v6564 = vmul.f32 %v6522, %v6554
      %v6565 = vmul.f32 %v6523, %v6554
      %v6566 = vmul.f32 %v6524, %v6554
      %v6567 = vmul.f32 %v6525, %v6554
      %v6568 = vmul.f32 %v6526, %v6554
      %v6569 = vmul.f32 %v6527, %v6554
      %v6570 = vmul.f32 %v6528, %v6554
      %v6571 = vmul.f32 %v6529, %v6554
      %v6572 = vmul.f32 %v6530, %v6554
      %v6573 = vmul.f32 %v6531, %v6554
      %v6574 = vmul.f32 %v6532, %v6554
      %v6575 = vmul.f32 %v6533, %v6554
      %v6576 = vmul.f32 %v6534, %v6554
      %v6577 = vmul.f32 %v6535, %v6554
      %v6578 = vmul.f32 %v6536, %v6554
      %v6579 = vmul.f32 %v6537, %v6554
      %v6580 = vmul.f32 %v6538, %v6554
      %v6581 = vmul.f32 %v6539, %v6554
      %v6582 = vmul.f32 %v6540, %v6554
      %v6583 = vmul.f32 %v6541, %v6554
      %v6584 = vmul.f32 %v6542, %v6554
      %v6585 = vmul.f32 %v6543, %v6554
      %v6586 = vmul.f32 %v6544, %v6554
      %v6587 = vmul.f32 %v6545, %v6554
      %v6588 = vmul.f32 %v6546, %v6554
      %v6589 = vmul.f32 %v6547, %v6554
      %v6590 = vmul.f32 %v6548, %v6554
      %v6591 = vmul.f32 %v6549, %v6554
      %v6593 = vlaneseq
      %v6594 = vshrl.u32 %v6593, 7
      %v6595 = vsub.s32 0, %v6594
      %v6596 = vrot.slane %v283, %v6595
      %v6598 = vadd.f32 %v6556, %v6596
      %v6599 = vadd.f32 %v6557, %v6596
      %v6600 = vadd.f32 %v6558, %v6596
      %v6601 = vadd.f32 %v6559, %v6596
      %v6602 = vadd.f32 %v6560, %v6596
      %v6603 = vadd.f32 %v6561, %v6596
      %v6604 = vadd.f32 %v6562, %v6596
      %v6605 = vadd.f32 %v6563, %v6596
      %v6606 = vadd.f32 %v6564, %v6596
      %v6607 = vadd.f32 %v6565, %v6596
      %v6608 = vadd.f32 %v6566, %v6596
      %v6609 = vadd.f32 %v6567, %v6596
      %v6610 = vadd.f32 %v6568, %v6596
      %v6611 = vadd.f32 %v6569, %v6596
      %v6612 = vadd.f32 %v6570, %v6596
      %v6613 = vadd.f32 %v6571, %v6596
      %v6614 = vadd.f32 %v6572, %v6596
      %v6615 = vadd.f32 %v6573, %v6596
      %v6616 = vadd.f32 %v6574, %v6596
      %v6617 = vadd.f32 %v6575, %v6596
      %v6618 = vadd.f32 %v6576, %v6596
      %v6619 = vadd.f32 %v6577, %v6596
      %v6620 = vadd.f32 %v6578, %v6596
      %v6621 = vadd.f32 %v6579, %v6596
      %v6622 = vadd.f32 %v6580, %v6596
      %v6623 = vadd.f32 %v6581, %v6596
      %v6624 = vadd.f32 %v6582, %v6596
      %v6625 = vadd.f32 %v6583, %v6596
      %v6626 = vadd.f32 %v6584, %v6596
      %v6627 = vadd.f32 %v6585, %v6596
      %v6628 = vadd.f32 %v6586, %v6596
      %v6629 = vadd.f32 %v6587, %v6596
      %v6630 = vadd.f32 %v6588, %v6596
      %v6631 = vadd.f32 %v6589, %v6596
      %v6632 = vadd.f32 %v6590, %v6596
      %v6633 = vadd.f32 %v6591, %v6596
      %v6634 = vadd.f32 %v6598, %v497
      %v6635 = vadd.f32 %v6599, %v498
      %v6636 = vadd.f32 %v6600, %v499
      %v6637 = vadd.f32 %v6601, %v500
      %v6638 = vadd.f32 %v6602, %v501
      %v6639 = vadd.f32 %v6603, %v502
      %v6640 = vadd.f32 %v6604, %v503
      %v6641 = vadd.f32 %v6605, %v504
      %v6642 = vadd.f32 %v6606, %v505
      %v6643 = vadd.f32 %v6607, %v506
      %v6644 = vadd.f32 %v6608, %v507
      %v6645 = vadd.f32 %v6609, %v508
      %v6646 = vadd.f32 %v6610, %v509
      %v6647 = vadd.f32 %v6611, %v510
      %v6648 = vadd.f32 %v6612, %v511
      %v6649 = vadd.f32 %v6613, %v512
      %v6650 = vadd.f32 %v6614, %v513
      %v6651 = vadd.f32 %v6615, %v514
      %v6652 = vadd.f32 %v6616, %v515
      %v6653 = vadd.f32 %v6617, %v516
      %v6654 = vadd.f32 %v6618, %v517
      %v6655 = vadd.f32 %v6619, %v518
      %v6656 = vadd.f32 %v6620, %v519
      %v6657 = vadd.f32 %v6621, %v520
      %v6658 = vadd.f32 %v6622, %v521
      %v6659 = vadd.f32 %v6623, %v522
      %v6660 = vadd.f32 %v6624, %v523
      %v6661 = vadd.f32 %v6625, %v524
      %v6662 = vadd.f32 %v6626, %v525
      %v6663 = vadd.f32 %v6627, %v526
      %v6664 = vadd.f32 %v6628, %v527
      %v6665 = vadd.f32 %v6629, %v528
      %v6666 = vadd.f32 %v6630, %v529
      %v6667 = vadd.f32 %v6631, %v530
      %v6668 = vadd.f32 %v6632, %v531
      %v6669 = vadd.f32 %v6633, %v532
      %v6670 = vmax.f32 %v6634, 0.0
      %v6671 = vmax.f32 %v6635, 0.0
      %v6672 = vmax.f32 %v6636, 0.0
      %v6673 = vmax.f32 %v6637, 0.0
      %v6674 = vmax.f32 %v6638, 0.0
      %v6675 = vmax.f32 %v6639, 0.0
      %v6676 = vmax.f32 %v6640, 0.0
      %v6677 = vmax.f32 %v6641, 0.0
      %v6678 = vmax.f32 %v6642, 0.0
      %v6679 = vmax.f32 %v6643, 0.0
      %v6680 = vmax.f32 %v6644, 0.0
      %v6681 = vmax.f32 %v6645, 0.0
      %v6682 = vmax.f32 %v6646, 0.0
      %v6683 = vmax.f32 %v6647, 0.0
      %v6684 = vmax.f32 %v6648, 0.0
      %v6685 = vmax.f32 %v6649, 0.0
      %v6686 = vmax.f32 %v6650, 0.0
      %v6687 = vmax.f32 %v6651, 0.0
      %v6688 = vmax.f32 %v6652, 0.0
      %v6689 = vmax.f32 %v6653, 0.0
      %v6690 = vmax.f32 %v6654, 0.0
      %v6691 = vmax.f32 %v6655, 0.0
      %v6692 = vmax.f32 %v6656, 0.0
      %v6693 = vmax.f32 %v6657, 0.0
      %v6694 = vmax.f32 %v6658, 0.0
      %v6695 = vmax.f32 %v6659, 0.0
      %v6696 = vmax.f32 %v6660, 0.0
      %v6697 = vmax.f32 %v6661, 0.0
      %v6698 = vmax.f32 %v6662, 0.0
      %v6699 = vmax.f32 %v6663, 0.0
      %v6700 = vmax.f32 %v6664, 0.0
      %v6701 = vmax.f32 %v6665, 0.0
      %v6702 = vmax.f32 %v6666, 0.0
      %v6703 = vmax.f32 %v6667, 0.0
      %v6704 = vmax.f32 %v6668, 0.0
      %v6705 = vmax.f32 %v6669, 0.0
      %6706 = vst [vmem:[%s278] sm:$0xff] %v6670
      %6707 = vst [vmem:[%s278 + $0x8] sm:$0xff] %v6671
      %s6708 = scalar_lea.vmem %s278, 16
      %6709 = vst [vmem:[%s6708 - $0x2] sm:$0xfc] %v6672
      %6710 = vst [vmem:[%s6708 + $0x6] sm:$0xff] %v6673
      %6711 = vst [vmem:[%s6708 + $0xe] sm:$0x3] %v6674
      %s6712 = scalar_lea.vmem %s278, 32
      %6713 = vst [vmem:[%s6712 - $0x4] sm:$0xf0] %v6674
      %6714 = vst [vmem:[%s6712 + $0x4] sm:$0xff] %v6675
      %6715 = vst [vmem:[%s6712 + $0xc] sm:$0xf] %v6676
      %s6716 = scalar_lea.vmem %s278, 48
      %6717 = vst [vmem:[%s6716 - $0x6] sm:$0xc0] %v6676
      %6718 = vst [vmem:[%s6716 + $0x2] sm:$0xff] %v6677
      %6719 = vst [vmem:[%s6716 + $0xa] sm:$0x3f] %v6678
      %s6720 = scalar_lea.vmem %s278, 64
      %6721 = vst [vmem:[%s6720] sm:$0xff] %v6679
      %6722 = vst [vmem:[%s6720 + $0x8] sm:$0xff] %v6680
      %s6723 = scalar_lea.vmem %s278, 80
      %6724 = vst [vmem:[%s6723 - $0x2] sm:$0xfc] %v6681
      %6725 = vst [vmem:[%s6723 + $0x6] sm:$0xff] %v6682
      %6726 = vst [vmem:[%s6723 + $0xe] sm:$0x3] %v6683
      %s6727 = scalar_lea.vmem %s278, 96
      %6728 = vst [vmem:[%s6727 - $0x4] sm:$0xf0] %v6683
      %6729 = vst [vmem:[%s6727 + $0x4] sm:$0xff] %v6684
      %6730 = vst [vmem:[%s6727 + $0xc] sm:$0xf] %v6685
      %s6731 = scalar_lea.vmem %s278, 112
      %6732 = vst [vmem:[%s6731 - $0x6] sm:$0xc0] %v6685
      %6733 = vst [vmem:[%s6731 + $0x2] sm:$0xff] %v6686
      %6734 = vst [vmem:[%s6731 + $0xa] sm:$0x3f] %v6687
      %s6735 = scalar_lea.vmem %s278, 128
      %6736 = vst [vmem:[%s6735] sm:$0xff] %v6688
      %6737 = vst [vmem:[%s6735 + $0x8] sm:$0xff] %v6689
      %s6738 = scalar_lea.vmem %s278, 144
      %6739 = vst [vmem:[%s6738 - $0x2] sm:$0xfc] %v6690
      %6740 = vst [vmem:[%s6738 + $0x6] sm:$0xff] %v6691
      %6741 = vst [vmem:[%s6738 + $0xe] sm:$0x3] %v6692
      %s6742 = scalar_lea.vmem %s278, 160
      %6743 = vst [vmem:[%s6742 - $0x4] sm:$0xf0] %v6692
      %6744 = vst [vmem:[%s6742 + $0x4] sm:$0xff] %v6693
      %6745 = vst [vmem:[%s6742 + $0xc] sm:$0xf] %v6694
      %s6746 = scalar_lea.vmem %s278, 176
      %6747 = vst [vmem:[%s6746 - $0x6] sm:$0xc0] %v6694
      %6748 = vst [vmem:[%s6746 + $0x2] sm:$0xff] %v6695
      %6749 = vst [vmem:[%s6746 + $0xa] sm:$0x3f] %v6696
      %s6750 = scalar_lea.vmem %s278, 192
      %6751 = vst [vmem:[%s6750] sm:$0xff] %v6697
      %6752 = vst [vmem:[%s6750 + $0x8] sm:$0xff] %v6698
      %s6753 = scalar_lea.vmem %s278, 208
      %6754 = vst [vmem:[%s6753 - $0x2] sm:$0xfc] %v6699
      %6755 = vst [vmem:[%s6753 + $0x6] sm:$0xff] %v6700
      %6756 = vst [vmem:[%s6753 + $0xe] sm:$0x3] %v6701
      %s6757 = scalar_lea.vmem %s278, 224
      %6758 = vst [vmem:[%s6757 - $0x4] sm:$0xf0] %v6701
      %6759 = vst [vmem:[%s6757 + $0x4] sm:$0xff] %v6702
      %6760 = vst [vmem:[%s6757 + $0xc] sm:$0xf] %v6703
      %s6761 = scalar_lea.vmem %s278, 240
      %6762 = vst [vmem:[%s6761 - $0x6] sm:$0xc0] %v6703
      %6763 = vst [vmem:[%s6761 + $0x2] sm:$0xff] %v6704
      %6764 = vst [vmem:[%s6761 + $0xa] sm:$0x3f] %v6705
      %p6765 = scmp.lt.s32.totalorder %s18, 1
      %s6766 = scalar_select %p6765, %s18, 1
      %s6767 = smul.addr %s6766, 32
      %s6768 = smul.addr %s6767, 8
      %s6769 = scalar_lea.vmem %s7, %s6768
      // Predicated region
      $region49: #{basic_block.1} parent=47 // pred_check
        %p6770 = pneg %p188
      $region50: #{basic_block.1} parent=47 // pred_check_branch
        %6772 = sbr.rel (%p6770) target = $region52
      $region51: #{basic_block.1} parent=47 // pred_region
        _
      $region52: #{basic_block.1} parent=47 // pred_fallthru
        _
    $region48: #{basic_block.1} parent=5 // pred_fallthru
      _
    %p6773 = scmp.le.s32.totalorder 2, %s13
    // Predicated region
    $region53: #{basic_block.1} parent=5 // pred_check
      %p6774 = pneg %p6773
    $region54: #{basic_block.1} parent=5 // pred_check_branch
      %6776 = sbr.rel (%p6774) target = $region56
    $region55: #{basic_block.1} parent=5 // pred_region
      %s6777 = ssub.s32 %s13, 2
      // Predicated region
      $region57: #{basic_block.1} parent=55 // pred_check
        %p6778 = pneg %p194
      $region58: #{basic_block.1} parent=55 // pred_check_branch
        %6780 = sbr.rel (%p6778) target = $region60
      $region59: #{basic_block.1} parent=55 // pred_region
        %p6781 = scmp.lt.s32.totalorder %s19, 1
        %s6782 = scalar_select %p6781, %s19, 1
        %s6783 = smul.addr %s6782, 32
        %s6784 = smul.addr %s6783, 8
        %s6785 = scalar_lea.vmem %s7, %s6784
      $region60: #{basic_block.1} parent=55 // pred_fallthru
        _
    $region56: #{basic_block.1} parent=5 // pred_fallthru
      _
  $region6: #{basic_block.1} parent=0 // loop_footer
    %s17 = sadd.s32 1, %s13
  $region7: #{basic_block.1} parent=0 // loop_footer_branch
    %12 = sbr.rel target = $region3
  $region8: #{basic_block.1} parent=0 // loop_exit
    _

</llo_original>
